<compile_context>
chip_gen: v7x
topology: tpu7x:2x2x1
jax: 0.10.0
libtpu: 0.0.40
codegen_flags: <defaults>
</compile_context>

<pallas_src>
from functools import partial

import numpy as np

import jax
import jax.numpy as jnp
from jax.experimental import pallas as pl
from jax.experimental.pallas import tpu as pltpu


# ---------------------------------------------------------------------------
# Shared in-kernel helper: 3x3 "same" conv via im2col + ONE deep-K matmul.
# ---------------------------------------------------------------------------
def _conv3x3_im2col(x_bf16, w_ref, pad_ref, col_ref, *, H, W, Cin):
    """x_bf16: (H, W, Cin) bf16 value (already live in VMEM/vregs).

    pad_ref: (H+2, W+2, Cin) bf16 scratch, col_ref: (H*W, 9*Cin) bf16 scratch,
    w_ref:   (9*Cin, Cout) bf16 im2col-ordered weight (rows = (ky, kx, cin)).
    Returns the (H*W, Cout) float32 convolution result (no bias / BN)."""
    M = H * W
    # Zero the halo, then overwrite the interior (one masked-sublane write).
    pad_ref[...] = jnp.zeros_like(pad_ref)
    pad_ref[1:H + 1, 1:W + 1, :] = x_bf16
    # Build the im2col once; with Cin=128 every column store is a full-lane,
    # 128-aligned, unmasked store.
    for ky in range(3):
        for kx in range(3):
            t = ky * 3 + kx
            col_ref[:, t * Cin:(t + 1) * Cin] = (
                pad_ref[ky:ky + H, kx:kx + W, :].reshape(M, Cin))
    # Single MXU pass with K = 9*Cin (= 1152): f32 accumulation.
    return jnp.dot(col_ref[...], w_ref[...],
                   preferred_element_type=jnp.float32)


# ---------------------------------------------------------------------------
# Stage 1: cbr1(in_low) + cbr2(pooled in_high) + channel concat + per-sample
# GAP, all as ONE block-diagonal 128->128 conv per batch item.
# ---------------------------------------------------------------------------
def _bdrm_stage1_kernel(xlow_ref, xh2l_ref, w12_ref, s12_ref, b12_ref,
                        feaca_ref, gap_ref, pad_ref, col_ref, *, H, W, C):
    C2 = 2 * C
    # Stage [in_low | pooled in_high] as one lane-dense 128-channel image.
    x = jnp.concatenate([xlow_ref[0], xh2l_ref[0]], axis=-1).astype(jnp.bfloat16)
    acc = _conv3x3_im2col(x, w12_ref, pad_ref, col_ref, H=H, W=W, Cin=C2)
    # Folded BN + ReLU (f32 epilogue); result IS fea_ca = [fea_low | fea_h2l].
    fea = jnp.maximum(acc * s12_ref[...] + b12_ref[...], 0.0)       # (M, 2C)
    feaca_ref[...] = fea.reshape(1, H, W, C2)                       # 128-lane dense store
    # Per-sample GAP (AdaptiveAvgPool2d((1,1))) for the CAM stage.
    gap_ref[...] = jnp.mean(fea, axis=0).reshape(1, 1, C2)


# ---------------------------------------------------------------------------
# Stage 2: CAM attention + fea_fuse conv(128->64) + BN + residual + ReLU.
# ---------------------------------------------------------------------------
def _bdrm_stage2_kernel(gap_ref, feaca_ref, xlow_ref,
                        wa1_ref, ba1_ref, wa2_ref, ba2_ref,
                        w3_ref, s3_ref, b3_ref,
                        out_ref, att_ref, pad_ref, col_ref, *, N, H, W, C):
    b = pl.program_id(0)
    C2 = 2 * C
    M = H * W

    # --- CAM on the FULL batch (tiny (N,2C) MLP), recomputed every step so
    # the global att.min()/att.max() stays exact under a parallel batch grid.
    gap = gap_ref[...].reshape(N, C2)
    z = jnp.maximum(
        jnp.dot(gap, wa1_ref[...], preferred_element_type=jnp.float32)
        + ba1_ref[...], 0.0)
    logits = (jnp.dot(z, wa2_ref[...], preferred_element_type=jnp.float32)
              + ba2_ref[...])
    logits = logits - jnp.max(logits, axis=-1, keepdims=True)
    p = jnp.exp(logits)
    att = p / jnp.sum(p, axis=-1, keepdims=True)        # softmax over channels
    att = att - jnp.min(att)                            # GLOBAL min (PyTorch semantics)
    att = att / jnp.max(att)                            # GLOBAL max (0-div only if att
                                                        # is uniform, same as PyTorch)
    # Row b without dynamic value slicing: one-hot contraction (N is tiny).
    onehot = (jax.lax.broadcasted_iota(jnp.int32, (N, 1), 0) == b).astype(att.dtype)
    att_b = jnp.sum(att * onehot, axis=0, keepdims=True)            # (1, 2C)
    att_ref[...] = att_b.reshape(1, 1, C2)

    # --- fea_fuse = att * fea_ca ; 3x3 conv(128->64) + BN + residual + ReLU --
    fuse = feaca_ref[0].reshape(M, C2) * att_b                      # (M, 2C) f32
    acc = _conv3x3_im2col(fuse.reshape(H, W, C2).astype(jnp.bfloat16),
                          w3_ref, pad_ref, col_ref, H=H, W=W, Cin=C2)
    y = acc * s3_ref[...] + b3_ref[...] + xlow_ref[0].reshape(M, C)
    out_ref[...] = jnp.maximum(y, 0.0).reshape(1, H, W, C)


# ---------------------------------------------------------------------------
# BlockSpec helpers.
# ---------------------------------------------------------------------------
def _per_batch_spec(inner_shape):
    nd = len(inner_shape)
    return pl.BlockSpec((1,) + tuple(inner_shape),
                        lambda b, _nd=nd: (b,) + (0,) * _nd)


def _broadcast_spec(shape):
    nd = len(shape)
    return pl.BlockSpec(tuple(shape), lambda b, _nd=nd: (0,) * _nd)


# ---------------------------------------------------------------------------
# Wrapper.
# ---------------------------------------------------------------------------
def bdrm_forward(packed, in_high, in_low, downfactor=2):
    """in_high: (N, d*H, d*W, 64) NHWC, in_low: (N, H, W, 64) NHWC (float32).

    Returns (fea_out (N,H,W,64), att_ca (N,1,1,128), fea_ca (N,H,W,128))."""
    N, H, W, C = in_low.shape
    C2 = 2 * C
    d = downfactor

    # F.max_pool2d(kernel=d, stride=d) with floor semantics: crop + reshape +
    # max (one small fused XLA op); pooling before the kernel shrinks the
    # HBM read of in_high by d^2.
    Hh, Wh = in_high.shape[1], in_high.shape[2]
    xh2l = (in_high[:, :(Hh // d) * d, :(Wh // d) * d, :]
            .reshape(N, Hh // d, d, Wh // d, d, C).max(axis=(2, 4)))
    assert xh2l.shape == in_low.shape

    cparams = pltpu.CompilerParams(
        dimension_semantics=("parallel",),           # batch axis -> v7x megacore
        vmem_limit_bytes=32 * 1024 * 1024)           # explicit; ~2.5 MiB/step used
    scratch = [pltpu.VMEM((H + 2, W + 2, C2), jnp.bfloat16),   # padded staging
               pltpu.VMEM((H * W, 9 * C2), jnp.bfloat16)]      # im2col (K = 1152)

    # --- stage 1: cbr1 + cbr2 (+ channel concat) fused into one conv --------
    fea_ca, gap = pl.pallas_call(
        partial(_bdrm_stage1_kernel, H=H, W=W, C=C),
        grid=(N,),
        in_specs=[_per_batch_spec((H, W, C)),                   # in_low
                  _per_batch_spec((H, W, C)),                   # pooled in_high
                  _broadcast_spec(packed["w12c"].shape),
                  _broadcast_spec(packed["s12"].shape),
                  _broadcast_spec(packed["b12"].shape)],
        out_specs=(_per_batch_spec((H, W, C2)),                 # fea_ca
                   _per_batch_spec((1, C2))),                   # per-sample GAP
        out_shape=(jax.ShapeDtypeStruct((N, H, W, C2), jnp.float32),
                   jax.ShapeDtypeStruct((N, 1, C2), jnp.float32)),
        scratch_shapes=scratch,
        compiler_params=cparams,
    )(in_low, xh2l, packed["w12c"], packed["s12"], packed["b12"])

    # --- stage 2: CAM + fuse conv(128->64) + BN + residual + ReLU -----------
    fea_out, att = pl.pallas_call(
        partial(_bdrm_stage2_kernel, N=N, H=H, W=W, C=C),
        grid=(N,),
        in_specs=[_broadcast_spec((N, 1, C2)),                  # GAP, all samples
                  _per_batch_spec((H, W, C2)),                  # fea_ca
                  _per_batch_spec((H, W, C)),                   # in_low (residual)
                  _broadcast_spec(packed["wa1"].shape),
                  _broadcast_spec(packed["ba1"].shape),
                  _broadcast_spec(packed["wa2"].shape),
                  _broadcast_spec(packed["ba2"].shape),
                  _broadcast_spec(packed["w3c"].shape),
                  _broadcast_spec(packed["s3"].shape),
                  _broadcast_spec(packed["b3"].shape)],
        out_specs=(_per_batch_spec((H, W, C)),                  # fea_out
                   _per_batch_spec((1, C2))),                   # att row b
        out_shape=(jax.ShapeDtypeStruct((N, H, W, C), jnp.float32),
                   jax.ShapeDtypeStruct((N, 1, C2), jnp.float32)),
        scratch_shapes=scratch,
        compiler_params=cparams,
    )(gap, fea_ca, in_low,
      packed["wa1"], packed["ba1"], packed["wa2"], packed["ba2"],
      packed["w3c"], packed["s3"], packed["b3"])

    return fea_out, att.reshape(N, 1, 1, C2), fea_ca


# ---------------------------------------------------------------------------
# Synthetic parameters.  BatchNorm (inference) is folded:
#   scale = gamma / sqrt(running_var + eps); bias = beta + scale*(cb - mean).
# Master weights are kept in f32 (used by the pure-JAX reference); the kernel
# consumes bf16, im2col-ordered copies built by pack_params().
# ---------------------------------------------------------------------------
def _init_conv_bn(key, cin, cout, conv_bias):
    k = jax.random.split(key, 6)
    w = jax.random.normal(k[0], (3, 3, cin, cout), jnp.float32) * 0.05
    gamma = 1.0 + 0.1 * jax.random.normal(k[1], (cout,), jnp.float32)
    beta = 0.1 * jax.random.normal(k[2], (cout,), jnp.float32)
    rmean = 0.1 * jax.random.normal(k[3], (cout,), jnp.float32)
    rvar = jnp.abs(1.0 + 0.1 * jax.random.normal(k[4], (cout,), jnp.float32))
    cb = (0.1 * jax.random.normal(k[5], (cout,), jnp.float32)
          if conv_bias else jnp.zeros((cout,), jnp.float32))
    scale = gamma / jnp.sqrt(rvar + 1e-5)
    bias = beta + scale * (cb - rmean)
    return w, scale.reshape(1, cout), bias.reshape(1, cout)


def init_bdrm(key, C=64):
    k1, k2, k3, k4 = jax.random.split(key, 4)
    w1, s1, b1 = _init_conv_bn(k1, C, C, conv_bias=False)
    w2, s2, b2 = _init_conv_bn(k2, C, C, conv_bias=False)
    w3, s3, b3 = _init_conv_bn(k3, 2 * C, C, conv_bias=True)
    ka = jax.random.split(k4, 4)
    wa1 = jax.random.normal(ka[0], (2 * C, C // 2), jnp.float32) * 0.05
    ba1 = (0.1 * jax.random.normal(ka[1], (C // 2,), jnp.float32)).reshape(1, -1)
    wa2 = jax.random.normal(ka[2], (C // 2, 2 * C), jnp.float32) * 0.05
    ba2 = (0.1 * jax.random.normal(ka[3], (2 * C,), jnp.float32)).reshape(1, -1)
    return dict(w1=w1, s1=s1, b1=b1, w2=w2, s2=s2, b2=b2, w3=w3, s3=s3, b3=b3,
                wa1=wa1, ba1=ba1, wa2=wa2, ba2=ba2)


def pack_params(p, C=64):
    """Kernel-format params: bf16 MXU weights in im2col row order; cbr1+cbr2
    fused into a block-diagonal (9*128, 128) weight so both convs and the
    channel concat run as one matmul."""
    C2 = 2 * C
    bf = jnp.bfloat16
    w12 = jnp.zeros((3, 3, C2, C2), jnp.float32)
    w12 = w12.at[:, :, :C, :C].set(p["w1"])       # in_low  -> fea_low  outputs
    w12 = w12.at[:, :, C:, C:].set(p["w2"])       # xh2l    -> fea_h2l outputs
    return dict(
        w12c=w12.reshape(9 * C2, C2).astype(bf),
        s12=jnp.concatenate([p["s1"], p["s2"]], axis=-1),
        b12=jnp.concatenate([p["b1"], p["b2"]], axis=-1),
        w3c=p["w3"].reshape(9 * C2, C).astype(bf),
        s3=p["s3"], b3=p["b3"],
        wa1=p["wa1"], ba1=p["ba1"], wa2=p["wa2"], ba2=p["ba2"])


# ---------------------------------------------------------------------------
# Pure-JAX reference (full f32 convs) for a tolerance check against the kernel.
# ---------------------------------------------------------------------------
def _reference_bdrm(params, in_high, in_low, downfactor=2):
    N, H, W, C = in_low.shape
    d = downfactor
    xh2l = in_high.reshape(N, H, d, W, d, C).max(axis=(2, 4))

    def conv3x3(x, w, scale, bias):
        y = jax.lax.conv_general_dilated(
            x, w, window_strides=(1, 1), padding=((1, 1), (1, 1)),
            dimension_numbers=("NHWC", "HWIO", "NHWC"),
            precision=jax.lax.Precision.HIGHEST)
        return y * scale.reshape(1, 1, 1, -1) + bias.reshape(1, 1, 1, -1)

    fea_low = jnp.maximum(conv3x3(in_low, params["w1"], params["s1"], params["b1"]), 0.0)
    fea_h2l = jnp.maximum(conv3x3(xh2l, params["w2"], params["s2"], params["b2"]), 0.0)
    fea_ca = jnp.concatenate([fea_low, fea_h2l], axis=-1)            # (N,H,W,2C)
    avg = jnp.mean(fea_ca, axis=(1, 2))                              # (N,2C)
    z = jnp.maximum(avg @ params["wa1"] + params["ba1"], 0.0)
    logits = z @ params["wa2"] + params["ba2"]
    att = jax.nn.softmax(logits, axis=-1)
    att = att - jnp.min(att)
    att = att / jnp.max(att)
    fea_fuse = fea_ca * att[:, None, None, :]
    y = conv3x3(fea_fuse, params["w3"], params["s3"], params["b3"])
    fea_out = jnp.maximum(y + in_low, 0.0)
    return fea_out, att.reshape(N, 1, 1, 2 * C), fea_ca


# ---------------------------------------------------------------------------
if __name__ == "__main__":
    key = jax.random.PRNGKey(0)
    kp, kh, kl = jax.random.split(key, 3)
    N, C, H, W = 2, 64, 16, 16
    params = init_bdrm(kp, C=C)
    packed = pack_params(params, C=C)

    # PyTorch-style NCHW inputs: in_high (N,64,2H,2W), in_low (N,64,H,W)
    in_high_nchw = jax.random.normal(kh, (N, C, 2 * H, 2 * W), jnp.float32)
    in_low_nchw = jax.random.normal(kl, (N, C, H, W), jnp.float32)

    # Layout: kernel operates in NHWC.
    in_high = jnp.transpose(in_high_nchw, (0, 2, 3, 1))
    in_low = jnp.transpose(in_low_nchw, (0, 2, 3, 1))

    fwd = jax.jit(bdrm_forward)
    fea_out, att_ca, fea_ca = fwd(packed, in_high, in_low)
    jax.block_until_ready((fea_out, att_ca, fea_ca))

    assert fea_out.shape == (N, H, W, C)
    assert att_ca.shape == (N, 1, 1, 2 * C)
    assert fea_ca.shape == (N, H, W, 2 * C)
    assert all(bool(jnp.all(jnp.isfinite(o))) for o in (fea_out, att_ca, fea_ca))
    assert float(jnp.min(att_ca)) >= -1e-5 and float(jnp.max(att_ca)) <= 1.0 + 1e-5

    # Numerical check vs a pure-JAX f32 reference (kernel uses bf16 MXU
    # operands with f32 accumulation, hence the loose-ish tolerance).
    r_out, r_att, r_ca = _reference_bdrm(params, in_high, in_low)
    np.testing.assert_allclose(np.asarray(fea_ca), np.asarray(r_ca),
                               rtol=5e-2, atol=5e-2)
    np.testing.assert_allclose(np.asarray(att_ca), np.asarray(r_att),
                               rtol=5e-2, atol=5e-2)
    np.testing.assert_allclose(np.asarray(fea_out), np.asarray(r_out),
                               rtol=5e-2, atol=5e-2)

    print("KERNEL_OK")
</pallas_src>

<mosaic_0001>
module attributes {stable_mosaic.version = 11 : i64} {
  func.func @_bdrm_stage1_kernel(%arg0: i32, %arg1: memref<1x16x16x64xf32, #tpu.memory_space<vmem>>, %arg2: memref<1x16x16x64xf32, #tpu.memory_space<vmem>>, %arg3: memref<1152x128xbf16, #tpu.memory_space<vmem>>, %arg4: memref<1x128xf32, #tpu.memory_space<vmem>>, %arg5: memref<1x128xf32, #tpu.memory_space<vmem>>, %arg6: memref<1x16x16x128xf32, #tpu.memory_space<vmem>>, %arg7: memref<1x1x128xf32, #tpu.memory_space<vmem>>, %arg8: memref<18x18x128xbf16, #tpu.memory_space<vmem>>, %arg9: memref<256x1152xbf16, #tpu.memory_space<vmem>>) attributes {dimension_semantics = [#tpu.dimension_semantics<parallel>], iteration_bounds = array<i64: 2>, scalar_prefetch = 0 : i64, scratch_operands = 2 : i64, tpu.core_type = #tpu.core_type<tc>, window_params = [{transform_indices = @transform_0, window_bounds = array<i64: 1, 16, 16, 64>}, {transform_indices = @transform_1, window_bounds = array<i64: 1, 16, 16, 64>}, {pipeline_mode = #tpu.pipeline_mode<synchronous>, transform_indices = @transform_2, window_bounds = array<i64: 1152, 128>}, {pipeline_mode = #tpu.pipeline_mode<synchronous>, transform_indices = @transform_3, window_bounds = array<i64: 1, 128>}, {pipeline_mode = #tpu.pipeline_mode<synchronous>, transform_indices = @transform_4, window_bounds = array<i64: 1, 128>}, {transform_indices = @transform_5, window_bounds = array<i64: 1, 16, 16, 128>}, {transform_indices = @transform_6, window_bounds = array<i64: 1, 1, 128>}]} {
    %c0 = arith.constant 0 : index
    %c0_0 = arith.constant 0 : index
    %c0_1 = arith.constant 0 : index
    %c0_2 = arith.constant 0 : index
    %0 = vector.load %arg1[%c0, %c0_0, %c0_1, %c0_2] : memref<1x16x16x64xf32, #tpu.memory_space<vmem>>, vector<1x16x16x64xf32>
    %1 = vector.shape_cast %0 : vector<1x16x16x64xf32> to vector<16x16x64xf32>
    %c0_3 = arith.constant 0 : index
    %c0_4 = arith.constant 0 : index
    %c0_5 = arith.constant 0 : index
    %c0_6 = arith.constant 0 : index
    %2 = vector.load %arg2[%c0_3, %c0_4, %c0_5, %c0_6] : memref<1x16x16x64xf32, #tpu.memory_space<vmem>>, vector<1x16x16x64xf32>
    %3 = vector.shape_cast %2 : vector<1x16x16x64xf32> to vector<16x16x64xf32>
    %4 = tpu.concatenate %1, %3 in 2 : vector<16x16x64xf32>, vector<16x16x64xf32> -> vector<16x16x128xf32>
    %5 = arith.truncf %4 : vector<16x16x128xf32> to vector<16x16x128xbf16>
    %cst = arith.constant 0.000000e+00 : bf16
    %6 = vector.broadcast %cst : bf16 to vector<18x18x128xbf16>
    %c0_7 = arith.constant 0 : index
    %c0_8 = arith.constant 0 : index
    %c0_9 = arith.constant 0 : index
    %7 = vector.load %arg8[%c0_7, %c0_8, %c0_9] : memref<18x18x128xbf16, #tpu.memory_space<vmem>>, vector<18x18x128xbf16>
    tpu.vector_store %arg8[%c0_7, %c0_8, %c0_9], %6 {strides = array<i32>} : memref<18x18x128xbf16, #tpu.memory_space<vmem>>, vector<18x18x128xbf16>,
    %c1 = arith.constant 1 : index
    %c1_10 = arith.constant 1 : index
    %c0_11 = arith.constant 0 : index
    %8 = vector.load %arg8[%c1, %c1_10, %c0_11] : memref<18x18x128xbf16, #tpu.memory_space<vmem>>, vector<16x16x128xbf16>
    tpu.vector_store %arg8[%c1, %c1_10, %c0_11], %5 {strides = array<i32>} : memref<18x18x128xbf16, #tpu.memory_space<vmem>>, vector<16x16x128xbf16>,
    %c0_12 = arith.constant 0 : index
    %c0_13 = arith.constant 0 : index
    %c0_14 = arith.constant 0 : index
    %9 = vector.load %arg8[%c0_12, %c0_13, %c0_14] : memref<18x18x128xbf16, #tpu.memory_space<vmem>>, vector<16x16x128xbf16>
    %10 = vector.shape_cast %9 : vector<16x16x128xbf16> to vector<256x128xbf16>
    %c0_15 = arith.constant 0 : index
    %c0_16 = arith.constant 0 : index
    %11 = vector.load %arg9[%c0_15, %c0_16] : memref<256x1152xbf16, #tpu.memory_space<vmem>>, vector<256x128xbf16>
    tpu.vector_store %arg9[%c0_15, %c0_16], %10 {strides = array<i32>} : memref<256x1152xbf16, #tpu.memory_space<vmem>>, vector<256x128xbf16>,
    %c0_17 = arith.constant 0 : index
    %c1_18 = arith.constant 1 : index
    %c0_19 = arith.constant 0 : index
    %12 = vector.load %arg8[%c0_17, %c1_18, %c0_19] : memref<18x18x128xbf16, #tpu.memory_space<vmem>>, vector<16x16x128xbf16>
    %13 = vector.shape_cast %12 : vector<16x16x128xbf16> to vector<256x128xbf16>
    %c0_20 = arith.constant 0 : index
    %c128 = arith.constant 128 : index
    %14 = vector.load %arg9[%c0_20, %c128] : memref<256x1152xbf16, #tpu.memory_space<vmem>>, vector<256x128xbf16>
    tpu.vector_store %arg9[%c0_20, %c128], %13 {strides = array<i32>} : memref<256x1152xbf16, #tpu.memory_space<vmem>>, vector<256x128xbf16>,
    %c0_21 = arith.constant 0 : index
    %c2 = arith.constant 2 : index
    %c0_22 = arith.constant 0 : index
    %15 = vector.load %arg8[%c0_21, %c2, %c0_22] : memref<18x18x128xbf16, #tpu.memory_space<vmem>>, vector<16x16x128xbf16>
    %16 = vector.shape_cast %15 : vector<16x16x128xbf16> to vector<256x128xbf16>
    %c0_23 = arith.constant 0 : index
    %c256 = arith.constant 256 : index
    %17 = vector.load %arg9[%c0_23, %c256] : memref<256x1152xbf16, #tpu.memory_space<vmem>>, vector<256x128xbf16>
    tpu.vector_store %arg9[%c0_23, %c256], %16 {strides = array<i32>} : memref<256x1152xbf16, #tpu.memory_space<vmem>>, vector<256x128xbf16>,
    %c1_24 = arith.constant 1 : index
    %c0_25 = arith.constant 0 : index
    %c0_26 = arith.constant 0 : index
    %18 = vector.load %arg8[%c1_24, %c0_25, %c0_26] : memref<18x18x128xbf16, #tpu.memory_space<vmem>>, vector<16x16x128xbf16>
    %19 = vector.shape_cast %18 : vector<16x16x128xbf16> to vector<256x128xbf16>
    %c0_27 = arith.constant 0 : index
    %c384 = arith.constant 384 : index
    %20 = vector.load %arg9[%c0_27, %c384] : memref<256x1152xbf16, #tpu.memory_space<vmem>>, vector<256x128xbf16>
    tpu.vector_store %arg9[%c0_27, %c384], %19 {strides = array<i32>} : memref<256x1152xbf16, #tpu.memory_space<vmem>>, vector<256x128xbf16>,
    %c1_28 = arith.constant 1 : index
    %c1_29 = arith.constant 1 : index
    %c0_30 = arith.constant 0 : index
    %21 = vector.load %arg8[%c1_28, %c1_29, %c0_30] : memref<18x18x128xbf16, #tpu.memory_space<vmem>>, vector<16x16x128xbf16>
    %22 = vector.shape_cast %21 : vector<16x16x128xbf16> to vector<256x128xbf16>
    %c0_31 = arith.constant 0 : index
    %c512 = arith.constant 512 : index
    %23 = vector.load %arg9[%c0_31, %c512] : memref<256x1152xbf16, #tpu.memory_space<vmem>>, vector<256x128xbf16>
    tpu.vector_store %arg9[%c0_31, %c512], %22 {strides = array<i32>} : memref<256x1152xbf16, #tpu.memory_space<vmem>>, vector<256x128xbf16>,
    %c1_32 = arith.constant 1 : index
    %c2_33 = arith.constant 2 : index
    %c0_34 = arith.constant 0 : index
    %24 = vector.load %arg8[%c1_32, %c2_33, %c0_34] : memref<18x18x128xbf16, #tpu.memory_space<vmem>>, vector<16x16x128xbf16>
    %25 = vector.shape_cast %24 : vector<16x16x128xbf16> to vector<256x128xbf16>
    %c0_35 = arith.constant 0 : index
    %c640 = arith.constant 640 : index
    %26 = vector.load %arg9[%c0_35, %c640] : memref<256x1152xbf16, #tpu.memory_space<vmem>>, vector<256x128xbf16>
    tpu.vector_store %arg9[%c0_35, %c640], %25 {strides = array<i32>} : memref<256x1152xbf16, #tpu.memory_space<vmem>>, vector<256x128xbf16>,
    %c2_36 = arith.constant 2 : index
    %c0_37 = arith.constant 0 : index
    %c0_38 = arith.constant 0 : index
    %27 = vector.load %arg8[%c2_36, %c0_37, %c0_38] : memref<18x18x128xbf16, #tpu.memory_space<vmem>>, vector<16x16x128xbf16>
    %28 = vector.shape_cast %27 : vector<16x16x128xbf16> to vector<256x128xbf16>
    %c0_39 = arith.constant 0 : index
    %c768 = arith.constant 768 : index
    %29 = vector.load %arg9[%c0_39, %c768] : memref<256x1152xbf16, #tpu.memory_space<vmem>>, vector<256x128xbf16>
    tpu.vector_store %arg9[%c0_39, %c768], %28 {strides = array<i32>} : memref<256x1152xbf16, #tpu.memory_space<vmem>>, vector<256x128xbf16>,
    %c2_40 = arith.constant 2 : index
    %c1_41 = arith.constant 1 : index
    %c0_42 = arith.constant 0 : index
    %30 = vector.load %arg8[%c2_40, %c1_41, %c0_42] : memref<18x18x128xbf16, #tpu.memory_space<vmem>>, vector<16x16x128xbf16>
    %31 = vector.shape_cast %30 : vector<16x16x128xbf16> to vector<256x128xbf16>
    %c0_43 = arith.constant 0 : index
    %c896 = arith.constant 896 : index
    %32 = vector.load %arg9[%c0_43, %c896] : memref<256x1152xbf16, #tpu.memory_space<vmem>>, vector<256x128xbf16>
    tpu.vector_store %arg9[%c0_43, %c896], %31 {strides = array<i32>} : memref<256x1152xbf16, #tpu.memory_space<vmem>>, vector<256x128xbf16>,
    %c2_44 = arith.constant 2 : index
    %c2_45 = arith.constant 2 : index
    %c0_46 = arith.constant 0 : index
    %33 = vector.load %arg8[%c2_44, %c2_45, %c0_46] : memref<18x18x128xbf16, #tpu.memory_space<vmem>>, vector<16x16x128xbf16>
    %34 = vector.shape_cast %33 : vector<16x16x128xbf16> to vector<256x128xbf16>
    %c0_47 = arith.constant 0 : index
    %c1024 = arith.constant 1024 : index
    %35 = vector.load %arg9[%c0_47, %c1024] : memref<256x1152xbf16, #tpu.memory_space<vmem>>, vector<256x128xbf16>
    tpu.vector_store %arg9[%c0_47, %c1024], %34 {strides = array<i32>} : memref<256x1152xbf16, #tpu.memory_space<vmem>>, vector<256x128xbf16>,
    %c0_48 = arith.constant 0 : index
    %c0_49 = arith.constant 0 : index
    %36 = vector.load %arg9[%c0_48, %c0_49] : memref<256x1152xbf16, #tpu.memory_space<vmem>>, vector<256x1152xbf16>
    %c0_50 = arith.constant 0 : index
    %c0_51 = arith.constant 0 : index
    %37 = vector.load %arg3[%c0_50, %c0_51] : memref<1152x128xbf16, #tpu.memory_space<vmem>>, vector<1152x128xbf16>
    %cst_52 = arith.constant dense<0.000000e+00> : vector<256x128xf32>
    %38 = tpu.matmul %36, %37, %cst_52 {dimension_numbers = #tpu.dot_dimension_numbers<[1], [0], [0], [1], [0, 0, 1, 1], [], []>} : vector<256x1152xbf16>, vector<1152x128xbf16>, vector<256x128xf32> -> vector<256x128xf32>
    %c0_53 = arith.constant 0 : index
    %c0_54 = arith.constant 0 : index
    %39 = vector.load %arg4[%c0_53, %c0_54] : memref<1x128xf32, #tpu.memory_space<vmem>>, vector<1x128xf32>
    %40 = vector.broadcast %39 : vector<1x128xf32> to vector<256x128xf32>
    %41 = arith.mulf %38, %40 : vector<256x128xf32>
    %c0_55 = arith.constant 0 : index
    %c0_56 = arith.constant 0 : index
    %42 = vector.load %arg5[%c0_55, %c0_56] : memref<1x128xf32, #tpu.memory_space<vmem>>, vector<1x128xf32>
    %43 = vector.broadcast %42 : vector<1x128xf32> to vector<256x128xf32>
    %44 = arith.addf %41, %43 : vector<256x128xf32>
    %cst_57 = arith.constant 0.000000e+00 : f32
    %45 = vector.broadcast %cst_57 : f32 to vector<256x128xf32>
    %46 = arith.maximumf %44, %45 : vector<256x128xf32>
    %47 = vector.shape_cast %46 : vector<256x128xf32> to vector<1x16x16x128xf32>
    %c0_58 = arith.constant 0 : index
    %c0_59 = arith.constant 0 : index
    %c0_60 = arith.constant 0 : index
    %c0_61 = arith.constant 0 : index
    %48 = vector.load %arg6[%c0_58, %c0_59, %c0_60, %c0_61] : memref<1x16x16x128xf32, #tpu.memory_space<vmem>>, vector<1x16x16x128xf32>
    tpu.vector_store %arg6[%c0_58, %c0_59, %c0_60, %c0_61], %47 {strides = array<i32>} : memref<1x16x16x128xf32, #tpu.memory_space<vmem>>, vector<1x16x16x128xf32>,
    %cst_62 = arith.constant dense<0.000000e+00> : vector<128xf32>
    %49 = vector.multi_reduction <add>, %46, %cst_62 [0] : vector<256x128xf32> to vector<128xf32>
    %cst_63 = arith.constant 2.560000e+02 : f32
    %50 = vector.broadcast %cst_63 : f32 to vector<128xf32>
    %51 = arith.divf %49, %50 : vector<128xf32>
    %52 = vector.shape_cast %51 : vector<128xf32> to vector<1x1x128xf32>
    %c0_64 = arith.constant 0 : index
    %c0_65 = arith.constant 0 : index
    %c0_66 = arith.constant 0 : index
    %53 = vector.load %arg7[%c0_64, %c0_65, %c0_66] : memref<1x1x128xf32, #tpu.memory_space<vmem>>, vector<1x1x128xf32>
    tpu.vector_store %arg7[%c0_64, %c0_65, %c0_66], %52 {strides = array<i32>} : memref<1x1x128xf32, #tpu.memory_space<vmem>>, vector<1x1x128xf32>,
    return
  }
  func.func @transform_0(%arg0: i32) -> (i32, i32, i32, i32) {
    %c0_i32 = arith.constant 0 : i32
    %c0_i32_0 = arith.constant 0 : i32
    %c0_i32_1 = arith.constant 0 : i32
    %c0_i32_2 = arith.constant 0 : i32
    return %arg0, %c0_i32, %c0_i32_0, %c0_i32_1 : i32, i32, i32, i32
  }
  func.func @transform_1(%arg0: i32) -> (i32, i32, i32, i32) {
    %c0_i32 = arith.constant 0 : i32
    %c0_i32_0 = arith.constant 0 : i32
    %c0_i32_1 = arith.constant 0 : i32
    %c0_i32_2 = arith.constant 0 : i32
    return %arg0, %c0_i32, %c0_i32_0, %c0_i32_1 : i32, i32, i32, i32
  }
  func.func @transform_2(%arg0: i32) -> (i32, i32) {
    %c0_i32 = arith.constant 0 : i32
    %c0_i32_0 = arith.constant 0 : i32
    %c0_i32_1 = arith.constant 0 : i32
    return %c0_i32, %c0_i32_0 : i32, i32
  }
  func.func @transform_3(%arg0: i32) -> (i32, i32) {
    %c0_i32 = arith.constant 0 : i32
    %c0_i32_0 = arith.constant 0 : i32
    %c0_i32_1 = arith.constant 0 : i32
    return %c0_i32, %c0_i32_0 : i32, i32
  }
  func.func @transform_4(%arg0: i32) -> (i32, i32) {
    %c0_i32 = arith.constant 0 : i32
    %c0_i32_0 = arith.constant 0 : i32
    %c0_i32_1 = arith.constant 0 : i32
    return %c0_i32, %c0_i32_0 : i32, i32
  }
  func.func @transform_5(%arg0: i32) -> (i32, i32, i32, i32) {
    %c0_i32 = arith.constant 0 : i32
    %c0_i32_0 = arith.constant 0 : i32
    %c0_i32_1 = arith.constant 0 : i32
    %c0_i32_2 = arith.constant 0 : i32
    return %arg0, %c0_i32, %c0_i32_0, %c0_i32_1 : i32, i32, i32, i32
  }
  func.func @transform_6(%arg0: i32) -> (i32, i32, i32) {
    %c0_i32 = arith.constant 0 : i32
    %c0_i32_0 = arith.constant 0 : i32
    %c0_i32_1 = arith.constant 0 : i32
    return %arg0, %c0_i32, %c0_i32_0 : i32, i32, i32
  }
}

module attributes {stable_mosaic.version = 11 : i64} {
  func.func @_bdrm_stage2_kernel(%arg0: i32, %arg1: memref<2x1x128xf32, #tpu.memory_space<vmem>>, %arg2: memref<1x16x16x128xf32, #tpu.memory_space<vmem>>, %arg3: memref<1x16x16x64xf32, #tpu.memory_space<vmem>>, %arg4: memref<128x32xf32, #tpu.memory_space<vmem>>, %arg5: memref<1x32xf32, #tpu.memory_space<vmem>>, %arg6: memref<32x128xf32, #tpu.memory_space<vmem>>, %arg7: memref<1x128xf32, #tpu.memory_space<vmem>>, %arg8: memref<1152x64xbf16, #tpu.memory_space<vmem>>, %arg9: memref<1x64xf32, #tpu.memory_space<vmem>>, %arg10: memref<1x64xf32, #tpu.memory_space<vmem>>, %arg11: memref<1x16x16x64xf32, #tpu.memory_space<vmem>>, %arg12: memref<1x1x128xf32, #tpu.memory_space<vmem>>, %arg13: memref<18x18x128xbf16, #tpu.memory_space<vmem>>, %arg14: memref<256x1152xbf16, #tpu.memory_space<vmem>>) attributes {dimension_semantics = [#tpu.dimension_semantics<parallel>], iteration_bounds = array<i64: 2>, scalar_prefetch = 0 : i64, scratch_operands = 2 : i64, tpu.core_type = #tpu.core_type<tc>, window_params = [{pipeline_mode = #tpu.pipeline_mode<synchronous>, transform_indices = @transform_0, window_bounds = array<i64: 2, 1, 128>}, {transform_indices = @transform_1, window_bounds = array<i64: 1, 16, 16, 128>}, {transform_indices = @transform_2, window_bounds = array<i64: 1, 16, 16, 64>}, {pipeline_mode = #tpu.pipeline_mode<synchronous>, transform_indices = @transform_3, window_bounds = array<i64: 128, 32>}, {pipeline_mode = #tpu.pipeline_mode<synchronous>, transform_indices = @transform_4, window_bounds = array<i64: 1, 32>}, {pipeline_mode = #tpu.pipeline_mode<synchronous>, transform_indices = @transform_5, window_bounds = array<i64: 32, 128>}, {pipeline_mode = #tpu.pipeline_mode<synchronous>, transform_indices = @transform_6, window_bounds = array<i64: 1, 128>}, {pipeline_mode = #tpu.pipeline_mode<synchronous>, transform_indices = @transform_7, window_bounds = array<i64: 1152, 64>}, {pipeline_mode = #tpu.pipeline_mode<synchronous>, transform_indices = @transform_8, window_bounds = array<i64: 1, 64>}, {pipeline_mode = #tpu.pipeline_mode<synchronous>, transform_indices = @transform_9, window_bounds = array<i64: 1, 64>}, {transform_indices = @transform_10, window_bounds = array<i64: 1, 16, 16, 64>}, {transform_indices = @transform_11, window_bounds = array<i64: 1, 1, 128>}]} {
    %c0 = arith.constant 0 : index
    %c0_0 = arith.constant 0 : index
    %c0_1 = arith.constant 0 : index
    %0 = vector.load %arg1[%c0, %c0_0, %c0_1] : memref<2x1x128xf32, #tpu.memory_space<vmem>>, vector<2x1x128xf32>
    %1 = vector.shape_cast %0 : vector<2x1x128xf32> to vector<2x128xf32>
    %c0_2 = arith.constant 0 : index
    %c0_3 = arith.constant 0 : index
    %2 = vector.load %arg4[%c0_2, %c0_3] : memref<128x32xf32, #tpu.memory_space<vmem>>, vector<128x32xf32>
    %cst = arith.constant dense<0.000000e+00> : vector<2x32xf32>
    %3 = tpu.matmul %1, %2, %cst {dimension_numbers = #tpu.dot_dimension_numbers<[1], [0], [0], [1], [0, 0, 1, 1], [], []>} : vector<2x128xf32>, vector<128x32xf32>, vector<2x32xf32> -> vector<2x32xf32>
    %c0_4 = arith.constant 0 : index
    %c0_5 = arith.constant 0 : index
    %4 = vector.load %arg5[%c0_4, %c0_5] : memref<1x32xf32, #tpu.memory_space<vmem>>, vector<1x32xf32>
    %5 = vector.broadcast %4 : vector<1x32xf32> to vector<2x32xf32>
    %6 = arith.addf %3, %5 : vector<2x32xf32>
    %cst_6 = arith.constant 0.000000e+00 : f32
    %7 = vector.broadcast %cst_6 : f32 to vector<2x32xf32>
    %8 = arith.maximumf %6, %7 : vector<2x32xf32>
    %c0_7 = arith.constant 0 : index
    %c0_8 = arith.constant 0 : index
    %9 = vector.load %arg6[%c0_7, %c0_8] : memref<32x128xf32, #tpu.memory_space<vmem>>, vector<32x128xf32>
    %cst_9 = arith.constant dense<0.000000e+00> : vector<2x128xf32>
    %10 = tpu.matmul %8, %9, %cst_9 {dimension_numbers = #tpu.dot_dimension_numbers<[1], [0], [0], [1], [0, 0, 1, 1], [], []>} : vector<2x32xf32>, vector<32x128xf32>, vector<2x128xf32> -> vector<2x128xf32>
    %c0_10 = arith.constant 0 : index
    %c0_11 = arith.constant 0 : index
    %11 = vector.load %arg7[%c0_10, %c0_11] : memref<1x128xf32, #tpu.memory_space<vmem>>, vector<1x128xf32>
    %12 = vector.broadcast %11 : vector<1x128xf32> to vector<2x128xf32>
    %13 = arith.addf %10, %12 : vector<2x128xf32>
    %cst_12 = arith.constant dense<0xFF800000> : vector<2xf32>
    %14 = vector.multi_reduction <maximumf>, %13, %cst_12 [1] : vector<2x128xf32> to vector<2xf32>
    %15 = vector.shape_cast %14 : vector<2xf32> to vector<2x1xf32>
    %16 = vector.broadcast %15 : vector<2x1xf32> to vector<2x128xf32>
    %17 = arith.subf %13, %16 : vector<2x128xf32>
    %18 = math.exp %17 : vector<2x128xf32>
    %cst_13 = arith.constant dense<0.000000e+00> : vector<2xf32>
    %19 = vector.multi_reduction <add>, %18, %cst_13 [1] : vector<2x128xf32> to vector<2xf32>
    %20 = vector.shape_cast %19 : vector<2xf32> to vector<2x1xf32>
    %21 = vector.broadcast %20 : vector<2x1xf32> to vector<2x128xf32>
    %22 = arith.divf %18, %21 : vector<2x128xf32>
    %23 = vector.shape_cast %22 : vector<2x128xf32> to vector<1x2x128xf32>
    %cst_14 = arith.constant dense<0x7F800000> : vector<1xf32>
    %24 = vector.multi_reduction <minimumf>, %23, %cst_14 [1, 2] : vector<1x2x128xf32> to vector<1xf32>
    %25 = vector.shape_cast %24 : vector<1xf32> to vector<1x1x1xf32>
    %26 = vector.extract %25[0, 0, 0] : f32 from vector<1x1x1xf32>
    %27 = vector.broadcast %26 : f32 to vector<2x128xf32>
    %28 = arith.subf %22, %27 : vector<2x128xf32>
    %29 = vector.shape_cast %28 : vector<2x128xf32> to vector<1x2x128xf32>
    %cst_15 = arith.constant dense<0xFF800000> : vector<1xf32>
    %30 = vector.multi_reduction <maximumf>, %29, %cst_15 [1, 2] : vector<1x2x128xf32> to vector<1xf32>
    %31 = vector.shape_cast %30 : vector<1xf32> to vector<1x1x1xf32>
    %32 = vector.extract %31[0, 0, 0] : f32 from vector<1x1x1xf32>
    %33 = vector.broadcast %32 : f32 to vector<2x128xf32>
    %34 = arith.divf %28, %33 : vector<2x128xf32>
    %35 = tpu.iota {dimensions = array<i32: 0>} : vector<2x1xi32>
    %36 = vector.broadcast %arg0 : i32 to vector<2x1xi32>
    %37 = arith.cmpi eq, %35, %36 : vector<2x1xi32>
    %38 = arith.extui %37 : vector<2x1xi1> to vector<2x1xi32>
    %39 = arith.sitofp %38 : vector<2x1xi32> to vector<2x1xf32>
    %40 = vector.broadcast %39 : vector<2x1xf32> to vector<2x128xf32>
    %41 = arith.mulf %34, %40 : vector<2x128xf32>
    %cst_16 = arith.constant dense<0.000000e+00> : vector<128xf32>
    %42 = vector.multi_reduction <add>, %41, %cst_16 [0] : vector<2x128xf32> to vector<128xf32>
    %43 = vector.shape_cast %42 : vector<128xf32> to vector<1x128xf32>
    %44 = vector.shape_cast %43 : vector<1x128xf32> to vector<1x1x128xf32>
    %c0_17 = arith.constant 0 : index
    %c0_18 = arith.constant 0 : index
    %c0_19 = arith.constant 0 : index
    %45 = vector.load %arg12[%c0_17, %c0_18, %c0_19] : memref<1x1x128xf32, #tpu.memory_space<vmem>>, vector<1x1x128xf32>
    tpu.vector_store %arg12[%c0_17, %c0_18, %c0_19], %44 {strides = array<i32>} : memref<1x1x128xf32, #tpu.memory_space<vmem>>, vector<1x1x128xf32>,
    %c0_20 = arith.constant 0 : index
    %c0_21 = arith.constant 0 : index
    %c0_22 = arith.constant 0 : index
    %c0_23 = arith.constant 0 : index
    %46 = vector.load %arg2[%c0_20, %c0_21, %c0_22, %c0_23] : memref<1x16x16x128xf32, #tpu.memory_space<vmem>>, vector<1x16x16x128xf32>
    %47 = vector.shape_cast %46 : vector<1x16x16x128xf32> to vector<16x16x128xf32>
    %48 = vector.shape_cast %47 : vector<16x16x128xf32> to vector<256x128xf32>
    %49 = vector.broadcast %43 : vector<1x128xf32> to vector<256x128xf32>
    %50 = arith.mulf %48, %49 : vector<256x128xf32>
    %51 = vector.shape_cast %50 : vector<256x128xf32> to vector<16x16x128xf32>
    %52 = arith.truncf %51 : vector<16x16x128xf32> to vector<16x16x128xbf16>
    %cst_24 = arith.constant 0.000000e+00 : bf16
    %53 = vector.broadcast %cst_24 : bf16 to vector<18x18x128xbf16>
    %c0_25 = arith.constant 0 : index
    %c0_26 = arith.constant 0 : index
    %c0_27 = arith.constant 0 : index
    %54 = vector.load %arg13[%c0_25, %c0_26, %c0_27] : memref<18x18x128xbf16, #tpu.memory_space<vmem>>, vector<18x18x128xbf16>
    tpu.vector_store %arg13[%c0_25, %c0_26, %c0_27], %53 {strides = array<i32>} : memref<18x18x128xbf16, #tpu.memory_space<vmem>>, vector<18x18x128xbf16>,
    %c1 = arith.constant 1 : index
    %c1_28 = arith.constant 1 : index
    %c0_29 = arith.constant 0 : index
    %55 = vector.load %arg13[%c1, %c1_28, %c0_29] : memref<18x18x128xbf16, #tpu.memory_space<vmem>>, vector<16x16x128xbf16>
    tpu.vector_store %arg13[%c1, %c1_28, %c0_29], %52 {strides = array<i32>} : memref<18x18x128xbf16, #tpu.memory_space<vmem>>, vector<16x16x128xbf16>,
    %c0_30 = arith.constant 0 : index
    %c0_31 = arith.constant 0 : index
    %c0_32 = arith.constant 0 : index
    %56 = vector.load %arg13[%c0_30, %c0_31, %c0_32] : memref<18x18x128xbf16, #tpu.memory_space<vmem>>, vector<16x16x128xbf16>
    %57 = vector.shape_cast %56 : vector<16x16x128xbf16> to vector<256x128xbf16>
    %c0_33 = arith.constant 0 : index
    %c0_34 = arith.constant 0 : index
    %58 = vector.load %arg14[%c0_33, %c0_34] : memref<256x1152xbf16, #tpu.memory_space<vmem>>, vector<256x128xbf16>
    tpu.vector_store %arg14[%c0_33, %c0_34], %57 {strides = array<i32>} : memref<256x1152xbf16, #tpu.memory_space<vmem>>, vector<256x128xbf16>,
    %c0_35 = arith.constant 0 : index
    %c1_36 = arith.constant 1 : index
    %c0_37 = arith.constant 0 : index
    %59 = vector.load %arg13[%c0_35, %c1_36, %c0_37] : memref<18x18x128xbf16, #tpu.memory_space<vmem>>, vector<16x16x128xbf16>
    %60 = vector.shape_cast %59 : vector<16x16x128xbf16> to vector<256x128xbf16>
    %c0_38 = arith.constant 0 : index
    %c128 = arith.constant 128 : index
    %61 = vector.load %arg14[%c0_38, %c128] : memref<256x1152xbf16, #tpu.memory_space<vmem>>, vector<256x128xbf16>
    tpu.vector_store %arg14[%c0_38, %c128], %60 {strides = array<i32>} : memref<256x1152xbf16, #tpu.memory_space<vmem>>, vector<256x128xbf16>,
    %c0_39 = arith.constant 0 : index
    %c2 = arith.constant 2 : index
    %c0_40 = arith.constant 0 : index
    %62 = vector.load %arg13[%c0_39, %c2, %c0_40] : memref<18x18x128xbf16, #tpu.memory_space<vmem>>, vector<16x16x128xbf16>
    %63 = vector.shape_cast %62 : vector<16x16x128xbf16> to vector<256x128xbf16>
    %c0_41 = arith.constant 0 : index
    %c256 = arith.constant 256 : index
    %64 = vector.load %arg14[%c0_41, %c256] : memref<256x1152xbf16, #tpu.memory_space<vmem>>, vector<256x128xbf16>
    tpu.vector_store %arg14[%c0_41, %c256], %63 {strides = array<i32>} : memref<256x1152xbf16, #tpu.memory_space<vmem>>, vector<256x128xbf16>,
    %c1_42 = arith.constant 1 : index
    %c0_43 = arith.constant 0 : index
    %c0_44 = arith.constant 0 : index
    %65 = vector.load %arg13[%c1_42, %c0_43, %c0_44] : memref<18x18x128xbf16, #tpu.memory_space<vmem>>, vector<16x16x128xbf16>
    %66 = vector.shape_cast %65 : vector<16x16x128xbf16> to vector<256x128xbf16>
    %c0_45 = arith.constant 0 : index
    %c384 = arith.constant 384 : index
    %67 = vector.load %arg14[%c0_45, %c384] : memref<256x1152xbf16, #tpu.memory_space<vmem>>, vector<256x128xbf16>
    tpu.vector_store %arg14[%c0_45, %c384], %66 {strides = array<i32>} : memref<256x1152xbf16, #tpu.memory_space<vmem>>, vector<256x128xbf16>,
    %c1_46 = arith.constant 1 : index
    %c1_47 = arith.constant 1 : index
    %c0_48 = arith.constant 0 : index
    %68 = vector.load %arg13[%c1_46, %c1_47, %c0_48] : memref<18x18x128xbf16, #tpu.memory_space<vmem>>, vector<16x16x128xbf16>
    %69 = vector.shape_cast %68 : vector<16x16x128xbf16> to vector<256x128xbf16>
    %c0_49 = arith.constant 0 : index
    %c512 = arith.constant 512 : index
    %70 = vector.load %arg14[%c0_49, %c512] : memref<256x1152xbf16, #tpu.memory_space<vmem>>, vector<256x128xbf16>
    tpu.vector_store %arg14[%c0_49, %c512], %69 {strides = array<i32>} : memref<256x1152xbf16, #tpu.memory_space<vmem>>, vector<256x128xbf16>,
    %c1_50 = arith.constant 1 : index
    %c2_51 = arith.constant 2 : index
    %c0_52 = arith.constant 0 : index
    %71 = vector.load %arg13[%c1_50, %c2_51, %c0_52] : memref<18x18x128xbf16, #tpu.memory_space<vmem>>, vector<16x16x128xbf16>
    %72 = vector.shape_cast %71 : vector<16x16x128xbf16> to vector<256x128xbf16>
    %c0_53 = arith.constant 0 : index
    %c640 = arith.constant 640 : index
    %73 = vector.load %arg14[%c0_53, %c640] : memref<256x1152xbf16, #tpu.memory_space<vmem>>, vector<256x128xbf16>
    tpu.vector_store %arg14[%c0_53, %c640], %72 {strides = array<i32>} : memref<256x1152xbf16, #tpu.memory_space<vmem>>, vector<256x128xbf16>,
    %c2_54 = arith.constant 2 : index
    %c0_55 = arith.constant 0 : index
    %c0_56 = arith.constant 0 : index
    %74 = vector.load %arg13[%c2_54, %c0_55, %c0_56] : memref<18x18x128xbf16, #tpu.memory_space<vmem>>, vector<16x16x128xbf16>
    %75 = vector.shape_cast %74 : vector<16x16x128xbf16> to vector<256x128xbf16>
    %c0_57 = arith.constant 0 : index
    %c768 = arith.constant 768 : index
    %76 = vector.load %arg14[%c0_57, %c768] : memref<256x1152xbf16, #tpu.memory_space<vmem>>, vector<256x128xbf16>
    tpu.vector_store %arg14[%c0_57, %c768], %75 {strides = array<i32>} : memref<256x1152xbf16, #tpu.memory_space<vmem>>, vector<256x128xbf16>,
    %c2_58 = arith.constant 2 : index
    %c1_59 = arith.constant 1 : index
    %c0_60 = arith.constant 0 : index
    %77 = vector.load %arg13[%c2_58, %c1_59, %c0_60] : memref<18x18x128xbf16, #tpu.memory_space<vmem>>, vector<16x16x128xbf16>
    %78 = vector.shape_cast %77 : vector<16x16x128xbf16> to vector<256x128xbf16>
    %c0_61 = arith.constant 0 : index
    %c896 = arith.constant 896 : index
    %79 = vector.load %arg14[%c0_61, %c896] : memref<256x1152xbf16, #tpu.memory_space<vmem>>, vector<256x128xbf16>
    tpu.vector_store %arg14[%c0_61, %c896], %78 {strides = array<i32>} : memref<256x1152xbf16, #tpu.memory_space<vmem>>, vector<256x128xbf16>,
    %c2_62 = arith.constant 2 : index
    %c2_63 = arith.constant 2 : index
    %c0_64 = arith.constant 0 : index
    %80 = vector.load %arg13[%c2_62, %c2_63, %c0_64] : memref<18x18x128xbf16, #tpu.memory_space<vmem>>, vector<16x16x128xbf16>
    %81 = vector.shape_cast %80 : vector<16x16x128xbf16> to vector<256x128xbf16>
    %c0_65 = arith.constant 0 : index
    %c1024 = arith.constant 1024 : index
    %82 = vector.load %arg14[%c0_65, %c1024] : memref<256x1152xbf16, #tpu.memory_space<vmem>>, vector<256x128xbf16>
    tpu.vector_store %arg14[%c0_65, %c1024], %81 {strides = array<i32>} : memref<256x1152xbf16, #tpu.memory_space<vmem>>, vector<256x128xbf16>,
    %c0_66 = arith.constant 0 : index
    %c0_67 = arith.constant 0 : index
    %83 = vector.load %arg14[%c0_66, %c0_67] : memref<256x1152xbf16, #tpu.memory_space<vmem>>, vector<256x1152xbf16>
    %c0_68 = arith.constant 0 : index
    %c0_69 = arith.constant 0 : index
    %84 = vector.load %arg8[%c0_68, %c0_69] : memref<1152x64xbf16, #tpu.memory_space<vmem>>, vector<1152x64xbf16>
    %cst_70 = arith.constant dense<0.000000e+00> : vector<256x64xf32>
    %85 = tpu.matmul %83, %84, %cst_70 {dimension_numbers = #tpu.dot_dimension_numbers<[1], [0], [0], [1], [0, 0, 1, 1], [], []>} : vector<256x1152xbf16>, vector<1152x64xbf16>, vector<256x64xf32> -> vector<256x64xf32>
    %c0_71 = arith.constant 0 : index
    %c0_72 = arith.constant 0 : index
    %86 = vector.load %arg9[%c0_71, %c0_72] : memref<1x64xf32, #tpu.memory_space<vmem>>, vector<1x64xf32>
    %87 = vector.broadcast %86 : vector<1x64xf32> to vector<256x64xf32>
    %88 = arith.mulf %85, %87 : vector<256x64xf32>
    %c0_73 = arith.constant 0 : index
    %c0_74 = arith.constant 0 : index
    %89 = vector.load %arg10[%c0_73, %c0_74] : memref<1x64xf32, #tpu.memory_space<vmem>>, vector<1x64xf32>
    %90 = vector.broadcast %89 : vector<1x64xf32> to vector<256x64xf32>
    %91 = arith.addf %88, %90 : vector<256x64xf32>
    %c0_75 = arith.constant 0 : index
    %c0_76 = arith.constant 0 : index
    %c0_77 = arith.constant 0 : index
    %c0_78 = arith.constant 0 : index
    %92 = vector.load %arg3[%c0_75, %c0_76, %c0_77, %c0_78] : memref<1x16x16x64xf32, #tpu.memory_space<vmem>>, vector<1x16x16x64xf32>
    %93 = vector.shape_cast %92 : vector<1x16x16x64xf32> to vector<16x16x64xf32>
    %94 = vector.shape_cast %93 : vector<16x16x64xf32> to vector<256x64xf32>
    %95 = arith.addf %91, %94 : vector<256x64xf32>
    %cst_79 = arith.constant 0.000000e+00 : f32
    %96 = vector.broadcast %cst_79 : f32 to vector<256x64xf32>
    %97 = arith.maximumf %95, %96 : vector<256x64xf32>
    %98 = vector.shape_cast %97 : vector<256x64xf32> to vector<1x16x16x64xf32>
    %c0_80 = arith.constant 0 : index
    %c0_81 = arith.constant 0 : index
    %c0_82 = arith.constant 0 : index
    %c0_83 = arith.constant 0 : index
    %99 = vector.load %arg11[%c0_80, %c0_81, %c0_82, %c0_83] : memref<1x16x16x64xf32, #tpu.memory_space<vmem>>, vector<1x16x16x64xf32>
    tpu.vector_store %arg11[%c0_80, %c0_81, %c0_82, %c0_83], %98 {strides = array<i32>} : memref<1x16x16x64xf32, #tpu.memory_space<vmem>>, vector<1x16x16x64xf32>,
    return
  }
  func.func @transform_0(%arg0: i32) -> (i32, i32, i32) {
    %c0_i32 = arith.constant 0 : i32
    %c0_i32_0 = arith.constant 0 : i32
    %c0_i32_1 = arith.constant 0 : i32
    %c0_i32_2 = arith.constant 0 : i32
    return %c0_i32, %c0_i32_0, %c0_i32_1 : i32, i32, i32
  }
  func.func @transform_1(%arg0: i32) -> (i32, i32, i32, i32) {
    %c0_i32 = arith.constant 0 : i32
    %c0_i32_0 = arith.constant 0 : i32
    %c0_i32_1 = arith.constant 0 : i32
    %c0_i32_2 = arith.constant 0 : i32
    return %arg0, %c0_i32, %c0_i32_0, %c0_i32_1 : i32, i32, i32, i32
  }
  func.func @transform_2(%arg0: i32) -> (i32, i32, i32, i32) {
    %c0_i32 = arith.constant 0 : i32
    %c0_i32_0 = arith.constant 0 : i32
    %c0_i32_1 = arith.constant 0 : i32
    %c0_i32_2 = arith.constant 0 : i32
    return %arg0, %c0_i32, %c0_i32_0, %c0_i32_1 : i32, i32, i32, i32
  }
  func.func @transform_3(%arg0: i32) -> (i32, i32) {
    %c0_i32 = arith.constant 0 : i32
    %c0_i32_0 = arith.constant 0 : i32
    %c0_i32_1 = arith.constant 0 : i32
    return %c0_i32, %c0_i32_0 : i32, i32
  }
  func.func @transform_4(%arg0: i32) -> (i32, i32) {
    %c0_i32 = arith.constant 0 : i32
    %c0_i32_0 = arith.constant 0 : i32
    %c0_i32_1 = arith.constant 0 : i32
    return %c0_i32, %c0_i32_0 : i32, i32
  }
  func.func @transform_5(%arg0: i32) -> (i32, i32) {
    %c0_i32 = arith.constant 0 : i32
    %c0_i32_0 = arith.constant 0 : i32
    %c0_i32_1 = arith.constant 0 : i32
    return %c0_i32, %c0_i32_0 : i32, i32
  }
  func.func @transform_6(%arg0: i32) -> (i32, i32) {
    %c0_i32 = arith.constant 0 : i32
    %c0_i32_0 = arith.constant 0 : i32
    %c0_i32_1 = arith.constant 0 : i32
    return %c0_i32, %c0_i32_0 : i32, i32
  }
  func.func @transform_7(%arg0: i32) -> (i32, i32) {
    %c0_i32 = arith.constant 0 : i32
    %c0_i32_0 = arith.constant 0 : i32
    %c0_i32_1 = arith.constant 0 : i32
    return %c0_i32, %c0_i32_0 : i32, i32
  }
  func.func @transform_8(%arg0: i32) -> (i32, i32) {
    %c0_i32 = arith.constant 0 : i32
    %c0_i32_0 = arith.constant 0 : i32
    %c0_i32_1 = arith.constant 0 : i32
    return %c0_i32, %c0_i32_0 : i32, i32
  }
  func.func @transform_9(%arg0: i32) -> (i32, i32) {
    %c0_i32 = arith.constant 0 : i32
    %c0_i32_0 = arith.constant 0 : i32
    %c0_i32_1 = arith.constant 0 : i32
    return %c0_i32, %c0_i32_0 : i32, i32
  }
  func.func @transform_10(%arg0: i32) -> (i32, i32, i32, i32) {
    %c0_i32 = arith.constant 0 : i32
    %c0_i32_0 = arith.constant 0 : i32
    %c0_i32_1 = arith.constant 0 : i32
    %c0_i32_2 = arith.constant 0 : i32
    return %arg0, %c0_i32, %c0_i32_0, %c0_i32_1 : i32, i32, i32, i32
  }
  func.func @transform_11(%arg0: i32) -> (i32, i32, i32) {
    %c0_i32 = arith.constant 0 : i32
    %c0_i32_0 = arith.constant 0 : i32
    %c0_i32_1 = arith.constant 0 : i32
    return %arg0, %c0_i32, %c0_i32_0 : i32, i32, i32
  }
}

</mosaic_0001>

<llo_original>
// kernel: bdrm_forward.2
$region0: #{bdrm_forward.2}
  #allocation0 [shape = 'u32[]', space=smem, size = 0x4, offset = 0x4, fixed_abs, tag = 'smem constant byte address 0x4 - core index']
  #allocation1 [shape = 'u32[144,128]{1,0:T(1,128)}', space=vmem, size = 0x12000, scoped, tag = 'internal scratch']
  #allocation2 [shape = 'bf16[18,18,128]{2,1,0:T(8,128)(2,1)}', space=vmem, size = 0x1b000, scoped, tag = 'scratch operand']
  #allocation3 [shape = 'bf16[256,1152]{1,0:T(16,128)(2,1)}', space=vmem, size = 0x90000, scoped, tag = 'scratch operand']
  %s0 = inlined_call_operand.vmem [shape: f32[2,16,16,64], index: 0, kind: input, shape index: {}]
  %s1 = inlined_call_operand.vmem [shape: f32[2,16,16,64], index: 1, kind: input, shape index: {}]
  %s2 = inlined_call_operand.vmem [shape: bf16[1152,128], index: 2, kind: input, shape index: {}]
  %s3 = inlined_call_operand.vmem [shape: f32[1,128], index: 3, kind: input, shape index: {}]
  %s4 = inlined_call_operand.vmem [shape: f32[1,128], index: 4, kind: input, shape index: {}]
  %s5 = inlined_call_operand.vmem [shape: f32[2,16,16,128], index: 5, kind: output, shape index: {0}]
  %s6 = inlined_call_operand.vmem [shape: f32[2,1,128], index: 6, kind: output, shape index: {1}]
  %7 = xla_tuple %s5, %s6
  %s8 = sld [smem:[#allocation0]]
  $region61: #{bdrm_forward.2} parent=0
    _
  %s10 = ssub.s32 1, %s8
  %s11 = scalar_select 0, %s10, %s8
  loop: start=0, step=1, limit=4
  $region2: #{bdrm_forward.2} parent=0 // loop_pre_header
    _
  $region3: #{bdrm_forward.2} parent=0 // loop_header
    %s13 = sphi 0, %s17
    %p14 = scmp.ge.s32.totalorder %s13, 4
    %s23 = sphi 0, %s25
    %s26 = sphi 0, %s23
    %s27 = sphi 0, %s26
    %s43 = sphi 0, %s27
    %s49 = sphi 0, %s51
    %s52 = sphi 0, %s49
    %s53 = sphi 0, %s52
    %s69 = sphi 0, %s53
    %s73 = sphi 0, %s73
    %s75 = sphi 0, %s73
    %s76 = sphi 0, %s75
    %s90 = sphi 0, %s76
    %s94 = sphi 0, %s94
    %s96 = sphi 0, %s94
    %s97 = sphi 0, %s96
    %s111 = sphi 0, %s97
    %s115 = sphi 0, %s115
    %s117 = sphi 0, %s115
    %s118 = sphi 0, %s117
    %s132 = sphi 0, %s118
    %s138 = sphi 0, %s140
    %s141 = sphi 0, %s138
    %s142 = sphi 0, %s141
    %s158 = sphi 0, %s142
    %s164 = sphi 0, %s166
    %s167 = sphi 0, %s164
    %s168 = sphi 0, %s167
    %s184 = sphi 0, %s168
  $region4: #{bdrm_forward.2} parent=0 // loop_header_branch
    %16 = sbr.rel (%p14) target = $region8
  $region5: #{bdrm_forward.2} parent=0 // loop_body
    %s18 = ssub.s32 %s13, 1
    %s19 = ssub.s32 %s13, 2
    %s20 = sadd.s32 %s13, 1
    %s21 = ssub.s32 %s13, %s20
    %p22 = scmp.eq.s32.totalorder %s21, 0
    %s24 = sadd.s32 %s23, 1
    %s25 = scalar_select %p22, %s23, %s24
    %p28 = pneg %p22
    %p29 = scmp.eq.s32.totalorder %s13, 1
    %p30 = por %p28, %p29
    %p31 = scmp.ne.s32.totalorder %s23, %s26
    %p32 = scmp.eq.s32.totalorder %s13, 0
    %p33 = por %p31, %p32
    %p34 = scmp.ne.s32.totalorder %s23, %s26
    %p35 = scmp.eq.s32.totalorder %s18, 1
    %p36 = por %p34, %p35
    %p37 = scmp.ne.s32.totalorder %s26, %s27
    %p38 = scmp.eq.s32.totalorder %s18, 0
    %p39 = por %p37, %p38
    %p40 = scmp.ne.s32.totalorder %s26, %s27
    %p41 = scmp.eq.s32.totalorder %s19, 1
    %p42 = por %p40, %p41
    %p44 = scmp.ne.s32.totalorder %s27, %s43
    %p45 = scmp.eq.s32.totalorder %s19, 0
    %p46 = por %p44, %p45
    %s47 = ssub.s32 %s13, %s20
    %p48 = scmp.eq.s32.totalorder %s47, 0
    %s50 = sadd.s32 %s49, 1
    %s51 = scalar_select %p48, %s49, %s50
    %p54 = pneg %p48
    %p55 = scmp.eq.s32.totalorder %s13, 1
    %p56 = por %p54, %p55
    %p57 = scmp.ne.s32.totalorder %s49, %s52
    %p58 = scmp.eq.s32.totalorder %s13, 0
    %p59 = por %p57, %p58
    %p60 = scmp.ne.s32.totalorder %s49, %s52
    %p61 = scmp.eq.s32.totalorder %s18, 1
    %p62 = por %p60, %p61
    %p63 = scmp.ne.s32.totalorder %s52, %s53
    %p64 = scmp.eq.s32.totalorder %s18, 0
    %p65 = por %p63, %p64
    %p66 = scmp.ne.s32.totalorder %s52, %s53
    %p67 = scmp.eq.s32.totalorder %s19, 1
    %p68 = por %p66, %p67
    %p70 = scmp.ne.s32.totalorder %s53, %s69
    %p71 = scmp.eq.s32.totalorder %s19, 0
    %p72 = por %p70, %p71
    %s74 = sadd.s32 %s73, 1
    %p77 = scmp.eq.s32.totalorder %s13, 1
    %p78 = scmp.ne.s32.totalorder %s73, %s75
    %p79 = scmp.eq.s32.totalorder %s13, 0
    %p80 = por %p78, %p79
    %p81 = scmp.ne.s32.totalorder %s73, %s75
    %p82 = scmp.eq.s32.totalorder %s18, 1
    %p83 = por %p81, %p82
    %p84 = scmp.ne.s32.totalorder %s75, %s76
    %p85 = scmp.eq.s32.totalorder %s18, 0
    %p86 = por %p84, %p85
    %p87 = scmp.ne.s32.totalorder %s75, %s76
    %p88 = scmp.eq.s32.totalorder %s19, 1
    %p89 = por %p87, %p88
    %p91 = scmp.ne.s32.totalorder %s76, %s90
    %p92 = scmp.eq.s32.totalorder %s19, 0
    %p93 = por %p91, %p92
    %s95 = sadd.s32 %s94, 1
    %p98 = scmp.eq.s32.totalorder %s13, 1
    %p99 = scmp.ne.s32.totalorder %s94, %s96
    %p100 = scmp.eq.s32.totalorder %s13, 0
    %p101 = por %p99, %p100
    %p102 = scmp.ne.s32.totalorder %s94, %s96
    %p103 = scmp.eq.s32.totalorder %s18, 1
    %p104 = por %p102, %p103
    %p105 = scmp.ne.s32.totalorder %s96, %s97
    %p106 = scmp.eq.s32.totalorder %s18, 0
    %p107 = por %p105, %p106
    %p108 = scmp.ne.s32.totalorder %s96, %s97
    %p109 = scmp.eq.s32.totalorder %s19, 1
    %p110 = por %p108, %p109
    %p112 = scmp.ne.s32.totalorder %s97, %s111
    %p113 = scmp.eq.s32.totalorder %s19, 0
    %p114 = por %p112, %p113
    %s116 = sadd.s32 %s115, 1
    %p119 = scmp.eq.s32.totalorder %s13, 1
    %p120 = scmp.ne.s32.totalorder %s115, %s117
    %p121 = scmp.eq.s32.totalorder %s13, 0
    %p122 = por %p120, %p121
    %p123 = scmp.ne.s32.totalorder %s115, %s117
    %p124 = scmp.eq.s32.totalorder %s18, 1
    %p125 = por %p123, %p124
    %p126 = scmp.ne.s32.totalorder %s117, %s118
    %p127 = scmp.eq.s32.totalorder %s18, 0
    %p128 = por %p126, %p127
    %p129 = scmp.ne.s32.totalorder %s117, %s118
    %p130 = scmp.eq.s32.totalorder %s19, 1
    %p131 = por %p129, %p130
    %p133 = scmp.ne.s32.totalorder %s118, %s132
    %p134 = scmp.eq.s32.totalorder %s19, 0
    %p135 = por %p133, %p134
    %s136 = ssub.s32 %s13, %s20
    %p137 = scmp.eq.s32.totalorder %s136, 0
    %s139 = sadd.s32 %s138, 1
    %s140 = scalar_select %p137, %s138, %s139
    %p143 = pneg %p137
    %p144 = scmp.eq.s32.totalorder %s13, 1
    %p145 = por %p143, %p144
    %p146 = scmp.ne.s32.totalorder %s138, %s141
    %p147 = scmp.eq.s32.totalorder %s13, 0
    %p148 = por %p146, %p147
    %p149 = scmp.ne.s32.totalorder %s138, %s141
    %p150 = scmp.eq.s32.totalorder %s18, 1
    %p151 = por %p149, %p150
    %p152 = scmp.ne.s32.totalorder %s141, %s142
    %p153 = scmp.eq.s32.totalorder %s18, 0
    %p154 = por %p152, %p153
    %p155 = scmp.ne.s32.totalorder %s141, %s142
    %p156 = scmp.eq.s32.totalorder %s19, 1
    %p157 = por %p155, %p156
    %p159 = scmp.ne.s32.totalorder %s142, %s158
    %p160 = scmp.eq.s32.totalorder %s19, 0
    %p161 = por %p159, %p160
    %s162 = ssub.s32 %s13, %s20
    %p163 = scmp.eq.s32.totalorder %s162, 0
    %s165 = sadd.s32 %s164, 1
    %s166 = scalar_select %p163, %s164, %s165
    %p169 = pneg %p163
    %p170 = scmp.eq.s32.totalorder %s13, 1
    %p171 = por %p169, %p170
    %p172 = scmp.ne.s32.totalorder %s164, %s167
    %p173 = scmp.eq.s32.totalorder %s13, 0
    %p174 = por %p172, %p173
    %p175 = scmp.ne.s32.totalorder %s164, %s167
    %p176 = scmp.eq.s32.totalorder %s18, 1
    %p177 = por %p175, %p176
    %p178 = scmp.ne.s32.totalorder %s167, %s168
    %p179 = scmp.eq.s32.totalorder %s18, 0
    %p180 = por %p178, %p179
    %p181 = scmp.ne.s32.totalorder %s167, %s168
    %p182 = scmp.eq.s32.totalorder %s19, 1
    %p183 = por %p181, %p182
    %p185 = scmp.ne.s32.totalorder %s168, %s184
    %p186 = scmp.eq.s32.totalorder %s19, 0
    %p187 = por %p185, %p186
    %p188 = scmp.le.s32.totalorder 1, %s13
    %p189 = scmp.lt.s32.totalorder %s13, 3
    %p190 = pnand %p188, %p189
    %p191 = pneg %p190
    // Predicated region
    $region9: #{bdrm_forward.2} parent=5 // pred_check
      _
    $region10: #{bdrm_forward.2} parent=5 // pred_check_branch
      %193 = sbr.rel (%p190) target = $region12
    $region11: #{bdrm_forward.2} parent=5 // pred_region
      %s194 = ssub.s32 %s13, 1
      // Predicated region
      $region13: #{bdrm_forward.2} parent=11 // pred_check
        %p195 = pneg %p86
      $region14: #{bdrm_forward.2} parent=11 // pred_check_branch
        %197 = sbr.rel (%p195) target = $region16
      $region15: #{bdrm_forward.2} parent=11 // pred_region
        _
      $region16: #{bdrm_forward.2} parent=11 // pred_fallthru
        _
      // Predicated region
      $region17: #{bdrm_forward.2} parent=11 // pred_check
        %p198 = pneg %p107
      $region18: #{bdrm_forward.2} parent=11 // pred_check_branch
        %200 = sbr.rel (%p198) target = $region20
      $region19: #{bdrm_forward.2} parent=11 // pred_region
        _
      $region20: #{bdrm_forward.2} parent=11 // pred_fallthru
        _
      // Predicated region
      $region21: #{bdrm_forward.2} parent=11 // pred_check
        %p201 = pneg %p128
      $region22: #{bdrm_forward.2} parent=11 // pred_check_branch
        %203 = sbr.rel (%p201) target = $region24
      $region23: #{bdrm_forward.2} parent=11 // pred_region
        _
      $region24: #{bdrm_forward.2} parent=11 // pred_fallthru
        _
    $region12: #{bdrm_forward.2} parent=5 // pred_fallthru
      _
    %p204 = scmp.lt.s32.totalorder %s13, 2
    // Predicated region
    $region25: #{bdrm_forward.2} parent=5 // pred_check
      %p205 = pneg %p204
    $region26: #{bdrm_forward.2} parent=5 // pred_check_branch
      %207 = sbr.rel (%p205) target = $region28
    $region27: #{bdrm_forward.2} parent=5 // pred_region
      // Predicated region
      $region29: #{bdrm_forward.2} parent=27 // pred_check
        %p208 = pneg %p33
      $region30: #{bdrm_forward.2} parent=27 // pred_check_branch
        %210 = sbr.rel (%p208) target = $region32
      $region31: #{bdrm_forward.2} parent=27 // pred_region
        %p211 = scmp.lt.s32.totalorder %s13, 1
        %s212 = scalar_select %p211, %s13, 1
        %s213 = smul.addr %s212, 32
        %s214 = smul.addr %s213, 8
        %s215 = scalar_lea.vmem %s0, %s214
      $region32: #{bdrm_forward.2} parent=27 // pred_fallthru
        _
      // Predicated region
      $region33: #{bdrm_forward.2} parent=27 // pred_check
        %p216 = pneg %p59
      $region34: #{bdrm_forward.2} parent=27 // pred_check_branch
        %218 = sbr.rel (%p216) target = $region36
      $region35: #{bdrm_forward.2} parent=27 // pred_region
        %p219 = scmp.lt.s32.totalorder %s13, 1
        %s220 = scalar_select %p219, %s13, 1
        %s221 = smul.addr %s220, 32
        %s222 = smul.addr %s221, 8
        %s223 = scalar_lea.vmem %s1, %s222
      $region36: #{bdrm_forward.2} parent=27 // pred_fallthru
        _
    $region28: #{bdrm_forward.2} parent=5 // pred_fallthru
      _
    %p224 = scmp.le.s32.totalorder 1, %s13
    %p225 = scmp.lt.s32.totalorder %s13, 3
    %p226 = pnand %p224, %p225
    %p227 = pneg %p226
    // Predicated region
    $region37: #{bdrm_forward.2} parent=5 // pred_check
      _
    $region38: #{bdrm_forward.2} parent=5 // pred_check_branch
      %229 = sbr.rel (%p226) target = $region40
    $region39: #{bdrm_forward.2} parent=5 // pred_region
      %s230 = ssub.s32 %s13, 1
      %p231 = scmp.lt.s32.totalorder %s18, 1
      %s232 = scalar_select %p231, %s18, 1
      %s233 = smul.addr %s232, 32
      %s234 = smul.addr %s233, 8
      %s235 = scalar_lea.vmem %s0, %s234
      %p236 = pneg %p39
      %p237 = pneg %p36
      %p238 = scmp.lt.s32.totalorder %s18, 1
      %s239 = scalar_select %p238, %s18, 1
      %s240 = smul.addr %s239, 32
      %s241 = smul.addr %s240, 8
      %s242 = scalar_lea.vmem %s1, %s241
      %p243 = pneg %p65
      %p244 = pneg %p62
      %p245 = pneg %p86
      %p246 = pneg %p83
      %p247 = pneg %p107
      %p248 = pneg %p104
      %p249 = pneg %p128
      %p250 = pneg %p125
      %p251 = pneg %p154
      %p252 = pneg %p151
      %p253 = scmp.lt.s32.totalorder %s18, 1
      %s254 = scalar_select %p253, %s18, 1
      %s255 = smul.addr %s254, 32
      %s256 = smul.addr %s255, 8
      %s257 = scalar_lea.vmem %s5, %s256
      %p258 = pneg %p180
      %p259 = pneg %p177
      %p260 = scmp.lt.s32.totalorder %s18, 1
      %s261 = scalar_select %p260, %s18, 1
      %s262 = scalar_lea.vmem %s6, %s261
      %p263 = scmp.lt.s32.totalorder %s18, 1
      %s264 = scalar_select %p263, %s18, 1
      %s265 = smul.addr %s264, 32
      %s266 = smul.addr %s265, 8
      %s267 = scalar_lea.vmem %s0, %s266
      %p268 = scmp.lt.s32.totalorder %s18, 1
      %s269 = scalar_select %p268, %s18, 1
      %s270 = smul.addr %s269, 32
      %s271 = smul.addr %s270, 8
      %s272 = scalar_lea.vmem %s1, %s271
      %p273 = scmp.lt.s32.totalorder %s18, 1
      %s274 = scalar_select %p273, %s18, 1
      %s275 = smul.addr %s274, 32
      %s276 = smul.addr %s275, 8
      %s277 = scalar_lea.vmem %s5, %s276
      %p278 = scmp.lt.s32.totalorder %s18, 1
      %s279 = scalar_select %p278, %s18, 1
      %s280 = scalar_lea.vmem %s6, %s279
      %v282 = vld [vmem:[%s267] sm:$0xff]
      %v283 = vld [vmem:[%s267 + $0x8] sm:$0xff]
      %v284 = vld [vmem:[%s267 + $0x10] sm:$0xff]
      %v285 = vld [vmem:[%s267 + $0x18] sm:$0xff]
      %v286 = vld [vmem:[%s267 + $0x20] sm:$0xff]
      %v287 = vld [vmem:[%s267 + $0x28] sm:$0xff]
      %v288 = vld [vmem:[%s267 + $0x30] sm:$0xff]
      %v289 = vld [vmem:[%s267 + $0x38] sm:$0xff]
      %v290 = vld [vmem:[%s267 + $0x40] sm:$0xff]
      %v291 = vld [vmem:[%s267 + $0x48] sm:$0xff]
      %v292 = vld [vmem:[%s267 + $0x50] sm:$0xff]
      %v293 = vld [vmem:[%s267 + $0x58] sm:$0xff]
      %v294 = vld [vmem:[%s267 + $0x60] sm:$0xff]
      %v295 = vld [vmem:[%s267 + $0x68] sm:$0xff]
      %v296 = vld [vmem:[%s267 + $0x70] sm:$0xff]
      %v297 = vld [vmem:[%s267 + $0x78] sm:$0xff]
      %v298 = vld [vmem:[%s267 + $0x80] sm:$0xff]
      %v299 = vld [vmem:[%s267 + $0x88] sm:$0xff]
      %v300 = vld [vmem:[%s267 + $0x90] sm:$0xff]
      %v301 = vld [vmem:[%s267 + $0x98] sm:$0xff]
      %v302 = vld [vmem:[%s267 + $0xa0] sm:$0xff]
      %v303 = vld [vmem:[%s267 + $0xa8] sm:$0xff]
      %v304 = vld [vmem:[%s267 + $0xb0] sm:$0xff]
      %v305 = vld [vmem:[%s267 + $0xb8] sm:$0xff]
      %v306 = vld [vmem:[%s267 + $0xc0] sm:$0xff]
      %v307 = vld [vmem:[%s267 + $0xc8] sm:$0xff]
      %v308 = vld [vmem:[%s267 + $0xd0] sm:$0xff]
      %v309 = vld [vmem:[%s267 + $0xd8] sm:$0xff]
      %v310 = vld [vmem:[%s267 + $0xe0] sm:$0xff]
      %v311 = vld [vmem:[%s267 + $0xe8] sm:$0xff]
      %v312 = vld [vmem:[%s267 + $0xf0] sm:$0xff]
      %v313 = vld [vmem:[%s267 + $0xf8] sm:$0xff]
      %v314 = vld [vmem:[%s272] sm:$0xff]
      %v315 = vld [vmem:[%s272 + $0x8] sm:$0xff]
      %v316 = vld [vmem:[%s272 + $0x10] sm:$0xff]
      %v317 = vld [vmem:[%s272 + $0x18] sm:$0xff]
      %v318 = vld [vmem:[%s272 + $0x20] sm:$0xff]
      %v319 = vld [vmem:[%s272 + $0x28] sm:$0xff]
      %v320 = vld [vmem:[%s272 + $0x30] sm:$0xff]
      %v321 = vld [vmem:[%s272 + $0x38] sm:$0xff]
      %v322 = vld [vmem:[%s272 + $0x40] sm:$0xff]
      %v323 = vld [vmem:[%s272 + $0x48] sm:$0xff]
      %v324 = vld [vmem:[%s272 + $0x50] sm:$0xff]
      %v325 = vld [vmem:[%s272 + $0x58] sm:$0xff]
      %v326 = vld [vmem:[%s272 + $0x60] sm:$0xff]
      %v327 = vld [vmem:[%s272 + $0x68] sm:$0xff]
      %v328 = vld [vmem:[%s272 + $0x70] sm:$0xff]
      %v329 = vld [vmem:[%s272 + $0x78] sm:$0xff]
      %v330 = vld [vmem:[%s272 + $0x80] sm:$0xff]
      %v331 = vld [vmem:[%s272 + $0x88] sm:$0xff]
      %v332 = vld [vmem:[%s272 + $0x90] sm:$0xff]
      %v333 = vld [vmem:[%s272 + $0x98] sm:$0xff]
      %v334 = vld [vmem:[%s272 + $0xa0] sm:$0xff]
      %v335 = vld [vmem:[%s272 + $0xa8] sm:$0xff]
      %v336 = vld [vmem:[%s272 + $0xb0] sm:$0xff]
      %v337 = vld [vmem:[%s272 + $0xb8] sm:$0xff]
      %v338 = vld [vmem:[%s272 + $0xc0] sm:$0xff]
      %v339 = vld [vmem:[%s272 + $0xc8] sm:$0xff]
      %v340 = vld [vmem:[%s272 + $0xd0] sm:$0xff]
      %v341 = vld [vmem:[%s272 + $0xd8] sm:$0xff]
      %v342 = vld [vmem:[%s272 + $0xe0] sm:$0xff]
      %v343 = vld [vmem:[%s272 + $0xe8] sm:$0xff]
      %v344 = vld [vmem:[%s272 + $0xf0] sm:$0xff]
      %v345 = vld [vmem:[%s272 + $0xf8] sm:$0xff]
      %378 = vrot.lane.b32.xlu0 %v314, 64
      %v379 = vpop.permute.xlu0 %378
      %380 = vrot.lane.b32.xlu0 %v315, 64
      %v381 = vpop.permute.xlu0 %380
      %382 = vrot.lane.b32.xlu0 %v316, 64
      %v383 = vpop.permute.xlu0 %382
      %384 = vrot.lane.b32.xlu0 %v317, 64
      %v385 = vpop.permute.xlu0 %384
      %386 = vrot.lane.b32.xlu0 %v318, 64
      %v387 = vpop.permute.xlu0 %386
      %388 = vrot.lane.b32.xlu0 %v319, 64
      %v389 = vpop.permute.xlu0 %388
      %390 = vrot.lane.b32.xlu0 %v320, 64
      %v391 = vpop.permute.xlu0 %390
      %392 = vrot.lane.b32.xlu0 %v321, 64
      %v393 = vpop.permute.xlu0 %392
      %394 = vrot.lane.b32.xlu0 %v322, 64
      %v395 = vpop.permute.xlu0 %394
      %396 = vrot.lane.b32.xlu0 %v323, 64
      %v397 = vpop.permute.xlu0 %396
      %398 = vrot.lane.b32.xlu0 %v324, 64
      %v399 = vpop.permute.xlu0 %398
      %400 = vrot.lane.b32.xlu0 %v325, 64
      %v401 = vpop.permute.xlu0 %400
      %402 = vrot.lane.b32.xlu0 %v326, 64
      %v403 = vpop.permute.xlu0 %402
      %404 = vrot.lane.b32.xlu0 %v327, 64
      %v405 = vpop.permute.xlu0 %404
      %406 = vrot.lane.b32.xlu0 %v328, 64
      %v407 = vpop.permute.xlu0 %406
      %408 = vrot.lane.b32.xlu0 %v329, 64
      %v409 = vpop.permute.xlu0 %408
      %410 = vrot.lane.b32.xlu0 %v330, 64
      %v411 = vpop.permute.xlu0 %410
      %412 = vrot.lane.b32.xlu0 %v331, 64
      %v413 = vpop.permute.xlu0 %412
      %414 = vrot.lane.b32.xlu0 %v332, 64
      %v415 = vpop.permute.xlu0 %414
      %416 = vrot.lane.b32.xlu0 %v333, 64
      %v417 = vpop.permute.xlu0 %416
      %418 = vrot.lane.b32.xlu0 %v334, 64
      %v419 = vpop.permute.xlu0 %418
      %420 = vrot.lane.b32.xlu0 %v335, 64
      %v421 = vpop.permute.xlu0 %420
      %422 = vrot.lane.b32.xlu0 %v336, 64
      %v423 = vpop.permute.xlu0 %422
      %424 = vrot.lane.b32.xlu0 %v337, 64
      %v425 = vpop.permute.xlu0 %424
      %426 = vrot.lane.b32.xlu0 %v338, 64
      %v427 = vpop.permute.xlu0 %426
      %428 = vrot.lane.b32.xlu0 %v339, 64
      %v429 = vpop.permute.xlu0 %428
      %430 = vrot.lane.b32.xlu0 %v340, 64
      %v431 = vpop.permute.xlu0 %430
      %432 = vrot.lane.b32.xlu0 %v341, 64
      %v433 = vpop.permute.xlu0 %432
      %434 = vrot.lane.b32.xlu0 %v342, 64
      %v435 = vpop.permute.xlu0 %434
      %436 = vrot.lane.b32.xlu0 %v343, 64
      %v437 = vpop.permute.xlu0 %436
      %438 = vrot.lane.b32.xlu0 %v344, 64
      %v439 = vpop.permute.xlu0 %438
      %440 = vrot.lane.b32.xlu0 %v345, 64
      %v441 = vpop.permute.xlu0 %440
      %vm474 = vcmask 523264
      %v475 = vsel %vm474, %v282, %v379
      %v476 = vsel %vm474, %v283, %v381
      %v477 = vsel %vm474, %v284, %v383
      %v478 = vsel %vm474, %v285, %v385
      %v479 = vsel %vm474, %v286, %v387
      %v480 = vsel %vm474, %v287, %v389
      %v481 = vsel %vm474, %v288, %v391
      %v482 = vsel %vm474, %v289, %v393
      %v483 = vsel %vm474, %v290, %v395
      %v484 = vsel %vm474, %v291, %v397
      %v485 = vsel %vm474, %v292, %v399
      %v486 = vsel %vm474, %v293, %v401
      %v487 = vsel %vm474, %v294, %v403
      %v488 = vsel %vm474, %v295, %v405
      %v489 = vsel %vm474, %v296, %v407
      %v490 = vsel %vm474, %v297, %v409
      %v491 = vsel %vm474, %v298, %v411
      %v492 = vsel %vm474, %v299, %v413
      %v493 = vsel %vm474, %v300, %v415
      %v494 = vsel %vm474, %v301, %v417
      %v495 = vsel %vm474, %v302, %v419
      %v496 = vsel %vm474, %v303, %v421
      %v497 = vsel %vm474, %v304, %v423
      %v498 = vsel %vm474, %v305, %v425
      %v499 = vsel %vm474, %v306, %v427
      %v500 = vsel %vm474, %v307, %v429
      %v501 = vsel %vm474, %v308, %v431
      %v502 = vsel %vm474, %v309, %v433
      %v503 = vsel %vm474, %v310, %v435
      %v504 = vsel %vm474, %v311, %v437
      %v505 = vsel %vm474, %v312, %v439
      %v506 = vsel %vm474, %v313, %v441
      %v507 = vpack.c.bf16 %v476, %v475
      %v508 = vpack.c.bf16 %v478, %v477
      %v509 = vpack.c.bf16 %v480, %v479
      %v510 = vpack.c.bf16 %v482, %v481
      %v511 = vpack.c.bf16 %v484, %v483
      %v512 = vpack.c.bf16 %v486, %v485
      %v513 = vpack.c.bf16 %v488, %v487
      %v514 = vpack.c.bf16 %v490, %v489
      %v515 = vpack.c.bf16 %v492, %v491
      %v516 = vpack.c.bf16 %v494, %v493
      %v517 = vpack.c.bf16 %v496, %v495
      %v518 = vpack.c.bf16 %v498, %v497
      %v519 = vpack.c.bf16 %v500, %v499
      %v520 = vpack.c.bf16 %v502, %v501
      %v521 = vpack.c.bf16 %v504, %v503
      %v522 = vpack.c.bf16 %v506, %v505
      %523 = vst [vmem:[#allocation2] sm:$0xf] 0
      %524 = vst [vmem:[#allocation2 + $0x4] sm:$0xf] 0
      %525 = vst [vmem:[#allocation2 + $0x8] sm:$0x1] 0
      %526 = vst [vmem:[#allocation2 + $0xc] sm:$0xf] 0
      %527 = vst [vmem:[#allocation2 + $0x10] sm:$0xf] 0
      %528 = vst [vmem:[#allocation2 + $0x14] sm:$0x1] 0
      %529 = vst [vmem:[#allocation2 + $0x18] sm:$0xf] 0
      %530 = vst [vmem:[#allocation2 + $0x1c] sm:$0xf] 0
      %531 = vst [vmem:[#allocation2 + $0x20] sm:$0x1] 0
      %532 = vst [vmem:[#allocation2 + $0x24] sm:$0xf] 0
      %533 = vst [vmem:[#allocation2 + $0x28] sm:$0xf] 0
      %534 = vst [vmem:[#allocation2 + $0x2c] sm:$0x1] 0
      %535 = vst [vmem:[#allocation2 + $0x30] sm:$0xf] 0
      %536 = vst [vmem:[#allocation2 + $0x34] sm:$0xf] 0
      %537 = vst [vmem:[#allocation2 + $0x38] sm:$0x1] 0
      %538 = vst [vmem:[#allocation2 + $0x3c] sm:$0xf] 0
      %539 = vst [vmem:[#allocation2 + $0x40] sm:$0xf] 0
      %540 = vst [vmem:[#allocation2 + $0x44] sm:$0x1] 0
      %541 = vst [vmem:[#allocation2 + $0x48] sm:$0xf] 0
      %542 = vst [vmem:[#allocation2 + $0x4c] sm:$0xf] 0
      %543 = vst [vmem:[#allocation2 + $0x50] sm:$0x1] 0
      %544 = vst [vmem:[#allocation2 + $0x54] sm:$0xf] 0
      %545 = vst [vmem:[#allocation2 + $0x58] sm:$0xf] 0
      %546 = vst [vmem:[#allocation2 + $0x5c] sm:$0x1] 0
      %547 = vst [vmem:[#allocation2 + $0x60] sm:$0xf] 0
      %548 = vst [vmem:[#allocation2 + $0x64] sm:$0xf] 0
      %549 = vst [vmem:[#allocation2 + $0x68] sm:$0x1] 0
      %550 = vst [vmem:[#allocation2 + $0x6c] sm:$0xf] 0
      %551 = vst [vmem:[#allocation2 + $0x70] sm:$0xf] 0
      %552 = vst [vmem:[#allocation2 + $0x74] sm:$0x1] 0
      %553 = vst [vmem:[#allocation2 + $0x78] sm:$0xf] 0
      %554 = vst [vmem:[#allocation2 + $0x7c] sm:$0xf] 0
      %555 = vst [vmem:[#allocation2 + $0x80] sm:$0x1] 0
      %556 = vst [vmem:[#allocation2 + $0x84] sm:$0xf] 0
      %557 = vst [vmem:[#allocation2 + $0x88] sm:$0xf] 0
      %558 = vst [vmem:[#allocation2 + $0x8c] sm:$0x1] 0
      %559 = vst [vmem:[#allocation2 + $0x90] sm:$0xf] 0
      %560 = vst [vmem:[#allocation2 + $0x94] sm:$0xf] 0
      %561 = vst [vmem:[#allocation2 + $0x98] sm:$0x1] 0
      %562 = vst [vmem:[#allocation2 + $0x9c] sm:$0xf] 0
      %563 = vst [vmem:[#allocation2 + $0xa0] sm:$0xf] 0
      %564 = vst [vmem:[#allocation2 + $0xa4] sm:$0x1] 0
      %565 = vst [vmem:[#allocation2 + $0xa8] sm:$0xf] 0
      %566 = vst [vmem:[#allocation2 + $0xac] sm:$0xf] 0
      %567 = vst [vmem:[#allocation2 + $0xb0] sm:$0x1] 0
      %568 = vst [vmem:[#allocation2 + $0xb4] sm:$0xf] 0
      %569 = vst [vmem:[#allocation2 + $0xb8] sm:$0xf] 0
      %570 = vst [vmem:[#allocation2 + $0xbc] sm:$0x1] 0
      %571 = vst [vmem:[#allocation2 + $0xc0] sm:$0xf] 0
      %572 = vst [vmem:[#allocation2 + $0xc4] sm:$0xf] 0
      %573 = vst [vmem:[#allocation2 + $0xc8] sm:$0x1] 0
      %574 = vst [vmem:[#allocation2 + $0xcc] sm:$0xf] 0
      %575 = vst [vmem:[#allocation2 + $0xd0] sm:$0xf] 0
      %576 = vst [vmem:[#allocation2 + $0xd4] sm:$0x1] 0
      %v593 = vunpack.c.l.b16 %v507
      %v594 = vunpack.c.h.b16 %v507
      %v595 = vunpack.c.l.b16 %v508
      %v596 = vunpack.c.h.b16 %v508
      %v597 = vunpack.c.l.b16 %v509
      %v598 = vunpack.c.h.b16 %v509
      %v599 = vunpack.c.l.b16 %v510
      %v600 = vunpack.c.h.b16 %v510
      %v601 = vunpack.c.l.b16 %v511
      %v602 = vunpack.c.h.b16 %v511
      %v603 = vunpack.c.l.b16 %v512
      %v604 = vunpack.c.h.b16 %v512
      %v605 = vunpack.c.l.b16 %v513
      %v606 = vunpack.c.h.b16 %v513
      %v607 = vunpack.c.l.b16 %v514
      %v608 = vunpack.c.h.b16 %v514
      %v609 = vunpack.c.l.b16 %v515
      %v610 = vunpack.c.h.b16 %v515
      %v611 = vunpack.c.l.b16 %v516
      %v612 = vunpack.c.h.b16 %v516
      %v613 = vunpack.c.l.b16 %v517
      %v614 = vunpack.c.h.b16 %v517
      %v615 = vunpack.c.l.b16 %v518
      %v616 = vunpack.c.h.b16 %v518
      %v617 = vunpack.c.l.b16 %v519
      %v618 = vunpack.c.h.b16 %v519
      %v619 = vunpack.c.l.b16 %v520
      %v620 = vunpack.c.h.b16 %v520
      %v621 = vunpack.c.l.b16 %v521
      %v622 = vunpack.c.h.b16 %v521
      %v623 = vunpack.c.l.b16 %v522
      %v624 = vunpack.c.h.b16 %v522
      %v625 = vpack.c.b16 %v593, %v593
      %v626 = vpack.c.b16 %v594, %v594
      %v627 = vpack.c.b16 %v595, %v595
      %v628 = vpack.c.b16 %v596, %v596
      %v629 = vpack.c.b16 %v597, %v597
      %v630 = vpack.c.b16 %v598, %v598
      %v631 = vpack.c.b16 %v599, %v599
      %v632 = vpack.c.b16 %v600, %v600
      %v633 = vpack.c.b16 %v601, %v601
      %v634 = vpack.c.b16 %v602, %v602
      %v635 = vpack.c.b16 %v603, %v603
      %v636 = vpack.c.b16 %v604, %v604
      %v637 = vpack.c.b16 %v605, %v605
      %v638 = vpack.c.b16 %v606, %v606
      %v639 = vpack.c.b16 %v607, %v607
      %v640 = vpack.c.b16 %v608, %v608
      %v641 = vpack.c.b16 %v609, %v609
      %v642 = vpack.c.b16 %v610, %v610
      %v643 = vpack.c.b16 %v611, %v611
      %v644 = vpack.c.b16 %v612, %v612
      %v645 = vpack.c.b16 %v613, %v613
      %v646 = vpack.c.b16 %v614, %v614
      %v647 = vpack.c.b16 %v615, %v615
      %v648 = vpack.c.b16 %v616, %v616
      %v649 = vpack.c.b16 %v617, %v617
      %v650 = vpack.c.b16 %v618, %v618
      %v651 = vpack.c.b16 %v619, %v619
      %v652 = vpack.c.b16 %v620, %v620
      %v653 = vpack.c.b16 %v621, %v621
      %v654 = vpack.c.b16 %v622, %v622
      %v655 = vpack.c.b16 %v623, %v623
      %v656 = vpack.c.b16 %v624, %v624
      %vm657 = vsmask.f32 256
      %vm658 = vsmask.f32 4368
      %vm659 = vmor %vm657, %vm658
      %v661 = vshrl.u32 %v625, 16
      %v663 = vrot.slane %v661, 7
      %v664 = vshll.u32 %v625, 16
      %v666 = vor.u32 %v663, %v664
      %v667 = vrot.slane %v663, 4
      %v669 = vshrl.u32 %v626, 16
      %v671 = vrot.slane %v669, 7
      %v672 = vshll.u32 %v626, 16
      %v674 = vor.u32 %v671, %v672
      %v675 = vsel %vm659, %v667, %v674
      %v676 = vrot.slane %v671, 4
      %v678 = vshrl.u32 %v627, 16
      %v680 = vrot.slane %v678, 7
      %v681 = vshll.u32 %v627, 16
      %v683 = vor.u32 %v680, %v681
      %v684 = vrot.slane %v680, 4
      %v686 = vshrl.u32 %v628, 16
      %v688 = vrot.slane %v686, 7
      %v689 = vshll.u32 %v628, 16
      %v691 = vor.u32 %v688, %v689
      %v692 = vsel %vm659, %v684, %v691
      %v693 = vrot.slane %v688, 4
      %v695 = vshrl.u32 %v629, 16
      %v697 = vrot.slane %v695, 7
      %v698 = vshll.u32 %v629, 16
      %v700 = vor.u32 %v697, %v698
      %v701 = vrot.slane %v697, 4
      %v703 = vshrl.u32 %v630, 16
      %v705 = vrot.slane %v703, 7
      %v706 = vshll.u32 %v630, 16
      %v708 = vor.u32 %v705, %v706
      %v709 = vsel %vm659, %v701, %v708
      %v710 = vrot.slane %v705, 4
      %v712 = vshrl.u32 %v631, 16
      %v714 = vrot.slane %v712, 7
      %v715 = vshll.u32 %v631, 16
      %v717 = vor.u32 %v714, %v715
      %v718 = vrot.slane %v714, 4
      %v720 = vshrl.u32 %v632, 16
      %v722 = vrot.slane %v720, 7
      %v723 = vshll.u32 %v632, 16
      %v725 = vor.u32 %v722, %v723
      %v726 = vsel %vm659, %v718, %v725
      %v727 = vrot.slane %v722, 4
      %v729 = vshrl.u32 %v633, 16
      %v731 = vrot.slane %v729, 7
      %v732 = vshll.u32 %v633, 16
      %v734 = vor.u32 %v731, %v732
      %v735 = vrot.slane %v731, 4
      %v737 = vshrl.u32 %v634, 16
      %v739 = vrot.slane %v737, 7
      %v740 = vshll.u32 %v634, 16
      %v742 = vor.u32 %v739, %v740
      %v743 = vsel %vm659, %v735, %v742
      %v744 = vrot.slane %v739, 4
      %v746 = vshrl.u32 %v635, 16
      %v748 = vrot.slane %v746, 7
      %v749 = vshll.u32 %v635, 16
      %v751 = vor.u32 %v748, %v749
      %v752 = vrot.slane %v748, 4
      %v754 = vshrl.u32 %v636, 16
      %v756 = vrot.slane %v754, 7
      %v757 = vshll.u32 %v636, 16
      %v759 = vor.u32 %v756, %v757
      %v760 = vsel %vm659, %v752, %v759
      %v761 = vrot.slane %v756, 4
      %v763 = vshrl.u32 %v637, 16
      %v765 = vrot.slane %v763, 7
      %v766 = vshll.u32 %v637, 16
      %v768 = vor.u32 %v765, %v766
      %v769 = vrot.slane %v765, 4
      %v771 = vshrl.u32 %v638, 16
      %v773 = vrot.slane %v771, 7
      %v774 = vshll.u32 %v638, 16
      %v776 = vor.u32 %v773, %v774
      %v777 = vsel %vm659, %v769, %v776
      %v778 = vrot.slane %v773, 4
      %v780 = vshrl.u32 %v639, 16
      %v782 = vrot.slane %v780, 7
      %v783 = vshll.u32 %v639, 16
      %v785 = vor.u32 %v782, %v783
      %v786 = vrot.slane %v782, 4
      %v788 = vshrl.u32 %v640, 16
      %v790 = vrot.slane %v788, 7
      %v791 = vshll.u32 %v640, 16
      %v793 = vor.u32 %v790, %v791
      %v794 = vsel %vm659, %v786, %v793
      %v795 = vrot.slane %v790, 4
      %v797 = vshrl.u32 %v641, 16
      %v799 = vrot.slane %v797, 7
      %v800 = vshll.u32 %v641, 16
      %v802 = vor.u32 %v799, %v800
      %v803 = vrot.slane %v799, 4
      %v805 = vshrl.u32 %v642, 16
      %v807 = vrot.slane %v805, 7
      %v808 = vshll.u32 %v642, 16
      %v810 = vor.u32 %v807, %v808
      %v811 = vsel %vm659, %v803, %v810
      %v812 = vrot.slane %v807, 4
      %v814 = vshrl.u32 %v643, 16
      %v816 = vrot.slane %v814, 7
      %v817 = vshll.u32 %v643, 16
      %v819 = vor.u32 %v816, %v817
      %v820 = vrot.slane %v816, 4
      %v822 = vshrl.u32 %v644, 16
      %v824 = vrot.slane %v822, 7
      %v825 = vshll.u32 %v644, 16
      %v827 = vor.u32 %v824, %v825
      %v828 = vsel %vm659, %v820, %v827
      %v829 = vrot.slane %v824, 4
      %v831 = vshrl.u32 %v645, 16
      %v833 = vrot.slane %v831, 7
      %v834 = vshll.u32 %v645, 16
      %v836 = vor.u32 %v833, %v834
      %v837 = vrot.slane %v833, 4
      %v839 = vshrl.u32 %v646, 16
      %v841 = vrot.slane %v839, 7
      %v842 = vshll.u32 %v646, 16
      %v844 = vor.u32 %v841, %v842
      %v845 = vsel %vm659, %v837, %v844
      %v846 = vrot.slane %v841, 4
      %v848 = vshrl.u32 %v647, 16
      %v850 = vrot.slane %v848, 7
      %v851 = vshll.u32 %v647, 16
      %v853 = vor.u32 %v850, %v851
      %v854 = vrot.slane %v850, 4
      %v856 = vshrl.u32 %v648, 16
      %v858 = vrot.slane %v856, 7
      %v859 = vshll.u32 %v648, 16
      %v861 = vor.u32 %v858, %v859
      %v862 = vsel %vm659, %v854, %v861
      %v863 = vrot.slane %v858, 4
      %v865 = vshrl.u32 %v649, 16
      %v867 = vrot.slane %v865, 7
      %v868 = vshll.u32 %v649, 16
      %v870 = vor.u32 %v867, %v868
      %v871 = vrot.slane %v867, 4
      %v873 = vshrl.u32 %v650, 16
      %v875 = vrot.slane %v873, 7
      %v876 = vshll.u32 %v650, 16
      %v878 = vor.u32 %v875, %v876
      %v879 = vsel %vm659, %v871, %v878
      %v880 = vrot.slane %v875, 4
      %v882 = vshrl.u32 %v651, 16
      %v884 = vrot.slane %v882, 7
      %v885 = vshll.u32 %v651, 16
      %v887 = vor.u32 %v884, %v885
      %v888 = vrot.slane %v884, 4
      %v890 = vshrl.u32 %v652, 16
      %v892 = vrot.slane %v890, 7
      %v893 = vshll.u32 %v652, 16
      %v895 = vor.u32 %v892, %v893
      %v896 = vsel %vm659, %v888, %v895
      %v897 = vrot.slane %v892, 4
      %v899 = vshrl.u32 %v653, 16
      %v901 = vrot.slane %v899, 7
      %v902 = vshll.u32 %v653, 16
      %v904 = vor.u32 %v901, %v902
      %v905 = vrot.slane %v901, 4
      %v907 = vshrl.u32 %v654, 16
      %v909 = vrot.slane %v907, 7
      %v910 = vshll.u32 %v654, 16
      %v912 = vor.u32 %v909, %v910
      %v913 = vsel %vm659, %v905, %v912
      %v914 = vrot.slane %v909, 4
      %v916 = vshrl.u32 %v655, 16
      %v918 = vrot.slane %v916, 7
      %v919 = vshll.u32 %v655, 16
      %v921 = vor.u32 %v918, %v919
      %v922 = vrot.slane %v918, 4
      %v924 = vshrl.u32 %v656, 16
      %v926 = vrot.slane %v924, 7
      %v927 = vshll.u32 %v656, 16
      %v929 = vor.u32 %v926, %v927
      %v930 = vsel %vm659, %v922, %v929
      %v931 = vrot.slane %v926, 4
      %s980 = scalar_lea.vmem [#allocation2], 12
      %vm981 = vcmask 1043456
      %vm982 = vsmask.f32 7938
      %vm983 = vmand %vm981, %vm982
      %v984 = vld [vmem:[%s980] sm:$0xf]
      %v985 = vsel %vm983, %v666, %v984
      %986 = vst [vmem:[%s980] sm:$0xf] %v985
      %987 = vst [vmem:[%s980 + $0x4] sm:$0xf] %v675
      %vm988 = vcmask 1040384
      %vm989 = vmand %vm988, %vm657
      %v990 = vld [vmem:[%s980 + $0x8] sm:$0x1]
      %v991 = vsel %vm989, %v676, %v990
      %992 = vst [vmem:[%s980 + $0x8] sm:$0x1] %v991
      %v993 = vld [vmem:[%s980 + $0xc] sm:$0xf]
      %v994 = vsel %vm983, %v683, %v993
      %995 = vst [vmem:[%s980 + $0xc] sm:$0xf] %v994
      %996 = vst [vmem:[%s980 + $0x10] sm:$0xf] %v692
      %v997 = vld [vmem:[%s980 + $0x14] sm:$0x1]
      %v998 = vsel %vm989, %v693, %v997
      %999 = vst [vmem:[%s980 + $0x14] sm:$0x1] %v998
      %v1000 = vld [vmem:[%s980 + $0x18] sm:$0xf]
      %v1001 = vsel %vm983, %v700, %v1000
      %1002 = vst [vmem:[%s980 + $0x18] sm:$0xf] %v1001
      %1003 = vst [vmem:[%s980 + $0x1c] sm:$0xf] %v709
      %v1004 = vld [vmem:[%s980 + $0x20] sm:$0x1]
      %v1005 = vsel %vm989, %v710, %v1004
      %1006 = vst [vmem:[%s980 + $0x20] sm:$0x1] %v1005
      %v1007 = vld [vmem:[%s980 + $0x24] sm:$0xf]
      %v1008 = vsel %vm983, %v717, %v1007
      %1009 = vst [vmem:[%s980 + $0x24] sm:$0xf] %v1008
      %1010 = vst [vmem:[%s980 + $0x28] sm:$0xf] %v726
      %v1011 = vld [vmem:[%s980 + $0x2c] sm:$0x1]
      %v1012 = vsel %vm989, %v727, %v1011
      %1013 = vst [vmem:[%s980 + $0x2c] sm:$0x1] %v1012
      %v1014 = vld [vmem:[%s980 + $0x30] sm:$0xf]
      %v1015 = vsel %vm983, %v734, %v1014
      %1016 = vst [vmem:[%s980 + $0x30] sm:$0xf] %v1015
      %1017 = vst [vmem:[%s980 + $0x34] sm:$0xf] %v743
      %v1018 = vld [vmem:[%s980 + $0x38] sm:$0x1]
      %v1019 = vsel %vm989, %v744, %v1018
      %1020 = vst [vmem:[%s980 + $0x38] sm:$0x1] %v1019
      %v1021 = vld [vmem:[%s980 + $0x3c] sm:$0xf]
      %v1022 = vsel %vm983, %v751, %v1021
      %1023 = vst [vmem:[%s980 + $0x3c] sm:$0xf] %v1022
      %1024 = vst [vmem:[%s980 + $0x40] sm:$0xf] %v760
      %v1025 = vld [vmem:[%s980 + $0x44] sm:$0x1]
      %v1026 = vsel %vm989, %v761, %v1025
      %1027 = vst [vmem:[%s980 + $0x44] sm:$0x1] %v1026
      %v1028 = vld [vmem:[%s980 + $0x48] sm:$0xf]
      %v1029 = vsel %vm983, %v768, %v1028
      %1030 = vst [vmem:[%s980 + $0x48] sm:$0xf] %v1029
      %1031 = vst [vmem:[%s980 + $0x4c] sm:$0xf] %v777
      %v1032 = vld [vmem:[%s980 + $0x50] sm:$0x1]
      %v1033 = vsel %vm989, %v778, %v1032
      %1034 = vst [vmem:[%s980 + $0x50] sm:$0x1] %v1033
      %v1035 = vld [vmem:[%s980 + $0x54] sm:$0xf]
      %v1036 = vsel %vm983, %v785, %v1035
      %1037 = vst [vmem:[%s980 + $0x54] sm:$0xf] %v1036
      %1038 = vst [vmem:[%s980 + $0x58] sm:$0xf] %v794
      %v1039 = vld [vmem:[%s980 + $0x5c] sm:$0x1]
      %v1040 = vsel %vm989, %v795, %v1039
      %1041 = vst [vmem:[%s980 + $0x5c] sm:$0x1] %v1040
      %v1042 = vld [vmem:[%s980 + $0x60] sm:$0xf]
      %v1043 = vsel %vm983, %v802, %v1042
      %1044 = vst [vmem:[%s980 + $0x60] sm:$0xf] %v1043
      %1045 = vst [vmem:[%s980 + $0x64] sm:$0xf] %v811
      %v1046 = vld [vmem:[%s980 + $0x68] sm:$0x1]
      %v1047 = vsel %vm989, %v812, %v1046
      %1048 = vst [vmem:[%s980 + $0x68] sm:$0x1] %v1047
      %v1049 = vld [vmem:[%s980 + $0x6c] sm:$0xf]
      %v1050 = vsel %vm983, %v819, %v1049
      %1051 = vst [vmem:[%s980 + $0x6c] sm:$0xf] %v1050
      %1052 = vst [vmem:[%s980 + $0x70] sm:$0xf] %v828
      %v1053 = vld [vmem:[%s980 + $0x74] sm:$0x1]
      %v1054 = vsel %vm989, %v829, %v1053
      %1055 = vst [vmem:[%s980 + $0x74] sm:$0x1] %v1054
      %v1056 = vld [vmem:[%s980 + $0x78] sm:$0xf]
      %v1057 = vsel %vm983, %v836, %v1056
      %1058 = vst [vmem:[%s980 + $0x78] sm:$0xf] %v1057
      %1059 = vst [vmem:[%s980 + $0x7c] sm:$0xf] %v845
      %v1060 = vld [vmem:[%s980 + $0x80] sm:$0x1]
      %v1061 = vsel %vm989, %v846, %v1060
      %1062 = vst [vmem:[%s980 + $0x80] sm:$0x1] %v1061
      %v1063 = vld [vmem:[%s980 + $0x84] sm:$0xf]
      %v1064 = vsel %vm983, %v853, %v1063
      %1065 = vst [vmem:[%s980 + $0x84] sm:$0xf] %v1064
      %1066 = vst [vmem:[%s980 + $0x88] sm:$0xf] %v862
      %v1067 = vld [vmem:[%s980 + $0x8c] sm:$0x1]
      %v1068 = vsel %vm989, %v863, %v1067
      %1069 = vst [vmem:[%s980 + $0x8c] sm:$0x1] %v1068
      %v1070 = vld [vmem:[%s980 + $0x90] sm:$0xf]
      %v1071 = vsel %vm983, %v870, %v1070
      %1072 = vst [vmem:[%s980 + $0x90] sm:$0xf] %v1071
      %1073 = vst [vmem:[%s980 + $0x94] sm:$0xf] %v879
      %v1074 = vld [vmem:[%s980 + $0x98] sm:$0x1]
      %v1075 = vsel %vm989, %v880, %v1074
      %1076 = vst [vmem:[%s980 + $0x98] sm:$0x1] %v1075
      %v1077 = vld [vmem:[%s980 + $0x9c] sm:$0xf]
      %v1078 = vsel %vm983, %v887, %v1077
      %1079 = vst [vmem:[%s980 + $0x9c] sm:$0xf] %v1078
      %1080 = vst [vmem:[%s980 + $0xa0] sm:$0xf] %v896
      %v1081 = vld [vmem:[%s980 + $0xa4] sm:$0x1]
      %v1082 = vsel %vm989, %v897, %v1081
      %1083 = vst [vmem:[%s980 + $0xa4] sm:$0x1] %v1082
      %v1084 = vld [vmem:[%s980 + $0xa8] sm:$0xf]
      %v1085 = vsel %vm983, %v904, %v1084
      %1086 = vst [vmem:[%s980 + $0xa8] sm:$0xf] %v1085
      %1087 = vst [vmem:[%s980 + $0xac] sm:$0xf] %v913
      %v1088 = vld [vmem:[%s980 + $0xb0] sm:$0x1]
      %v1089 = vsel %vm989, %v914, %v1088
      %1090 = vst [vmem:[%s980 + $0xb0] sm:$0x1] %v1089
      %v1091 = vld [vmem:[%s980 + $0xb4] sm:$0xf]
      %v1092 = vsel %vm983, %v921, %v1091
      %1093 = vst [vmem:[%s980 + $0xb4] sm:$0xf] %v1092
      %1094 = vst [vmem:[%s980 + $0xb8] sm:$0xf] %v930
      %v1095 = vld [vmem:[%s980 + $0xbc] sm:$0x1]
      %v1096 = vsel %vm989, %v931, %v1095
      %1097 = vst [vmem:[%s980 + $0xbc] sm:$0x1] %v1096
      %v1098 = vld [vmem:[#allocation2] sm:$0xf]
      %v1099 = vld [vmem:[#allocation2 + $0x4] sm:$0xf]
      %v1100 = vld [vmem:[#allocation2 + $0xc] sm:$0xf]
      %v1101 = vld [vmem:[#allocation2 + $0x10] sm:$0xf]
      %v1102 = vld [vmem:[#allocation2 + $0x18] sm:$0xf]
      %v1103 = vld [vmem:[#allocation2 + $0x1c] sm:$0xf]
      %v1104 = vld [vmem:[#allocation2 + $0x24] sm:$0xf]
      %v1105 = vld [vmem:[#allocation2 + $0x28] sm:$0xf]
      %v1106 = vld [vmem:[#allocation2 + $0x30] sm:$0xf]
      %v1107 = vld [vmem:[#allocation2 + $0x34] sm:$0xf]
      %v1108 = vld [vmem:[#allocation2 + $0x3c] sm:$0xf]
      %v1109 = vld [vmem:[#allocation2 + $0x40] sm:$0xf]
      %v1110 = vld [vmem:[#allocation2 + $0x48] sm:$0xf]
      %v1111 = vld [vmem:[#allocation2 + $0x4c] sm:$0xf]
      %v1112 = vld [vmem:[#allocation2 + $0x54] sm:$0xf]
      %v1113 = vld [vmem:[#allocation2 + $0x58] sm:$0xf]
      %v1114 = vld [vmem:[#allocation2 + $0x60] sm:$0xf]
      %v1115 = vld [vmem:[#allocation2 + $0x64] sm:$0xf]
      %v1116 = vld [vmem:[#allocation2 + $0x6c] sm:$0xf]
      %v1117 = vld [vmem:[#allocation2 + $0x70] sm:$0xf]
      %v1118 = vld [vmem:[#allocation2 + $0x78] sm:$0xf]
      %v1119 = vld [vmem:[#allocation2 + $0x7c] sm:$0xf]
      %v1120 = vld [vmem:[#allocation2 + $0x84] sm:$0xf]
      %v1121 = vld [vmem:[#allocation2 + $0x88] sm:$0xf]
      %v1122 = vld [vmem:[#allocation2 + $0x90] sm:$0xf]
      %v1123 = vld [vmem:[#allocation2 + $0x94] sm:$0xf]
      %v1124 = vld [vmem:[#allocation2 + $0x9c] sm:$0xf]
      %v1125 = vld [vmem:[#allocation2 + $0xa0] sm:$0xf]
      %v1126 = vld [vmem:[#allocation2 + $0xa8] sm:$0xf]
      %v1127 = vld [vmem:[#allocation2 + $0xac] sm:$0xf]
      %v1128 = vld [vmem:[#allocation2 + $0xb4] sm:$0xf]
      %v1129 = vld [vmem:[#allocation2 + $0xb8] sm:$0xf]
      %v1162 = vunpack.c.l.b16 %v1098
      %v1163 = vunpack.c.l.b16 %v1099
      %v1164 = vunpack.c.l.b16 %v1100
      %v1165 = vunpack.c.l.b16 %v1101
      %v1166 = vunpack.c.l.b16 %v1102
      %v1167 = vunpack.c.l.b16 %v1103
      %v1168 = vunpack.c.l.b16 %v1104
      %v1169 = vunpack.c.l.b16 %v1105
      %v1170 = vunpack.c.l.b16 %v1106
      %v1171 = vunpack.c.l.b16 %v1107
      %v1172 = vunpack.c.l.b16 %v1108
      %v1173 = vunpack.c.l.b16 %v1109
      %v1174 = vunpack.c.l.b16 %v1110
      %v1175 = vunpack.c.l.b16 %v1111
      %v1176 = vunpack.c.l.b16 %v1112
      %v1177 = vunpack.c.l.b16 %v1113
      %v1178 = vunpack.c.l.b16 %v1114
      %v1179 = vunpack.c.l.b16 %v1115
      %v1180 = vunpack.c.l.b16 %v1116
      %v1181 = vunpack.c.l.b16 %v1117
      %v1182 = vunpack.c.l.b16 %v1118
      %v1183 = vunpack.c.l.b16 %v1119
      %v1184 = vunpack.c.l.b16 %v1120
      %v1185 = vunpack.c.l.b16 %v1121
      %v1186 = vunpack.c.l.b16 %v1122
      %v1187 = vunpack.c.l.b16 %v1123
      %v1188 = vunpack.c.l.b16 %v1124
      %v1189 = vunpack.c.l.b16 %v1125
      %v1190 = vunpack.c.l.b16 %v1126
      %v1191 = vunpack.c.l.b16 %v1127
      %v1192 = vunpack.c.l.b16 %v1128
      %v1193 = vunpack.c.l.b16 %v1129
      %v1194 = vpack.c.b16 %v1163, %v1162
      %v1195 = vpack.c.b16 %v1165, %v1164
      %v1196 = vpack.c.b16 %v1167, %v1166
      %v1197 = vpack.c.b16 %v1169, %v1168
      %v1198 = vpack.c.b16 %v1171, %v1170
      %v1199 = vpack.c.b16 %v1173, %v1172
      %v1200 = vpack.c.b16 %v1175, %v1174
      %v1201 = vpack.c.b16 %v1177, %v1176
      %v1202 = vpack.c.b16 %v1179, %v1178
      %v1203 = vpack.c.b16 %v1181, %v1180
      %v1204 = vpack.c.b16 %v1183, %v1182
      %v1205 = vpack.c.b16 %v1185, %v1184
      %v1206 = vpack.c.b16 %v1187, %v1186
      %v1207 = vpack.c.b16 %v1189, %v1188
      %v1208 = vpack.c.b16 %v1191, %v1190
      %v1209 = vpack.c.b16 %v1193, %v1192
      %1226 = vst [vmem:[#allocation3] sm:$0xff] %v1194
      %1227 = vst [vmem:[#allocation3 + $0x48] sm:$0xff] %v1195
      %1228 = vst [vmem:[#allocation3 + $0x90] sm:$0xff] %v1196
      %1229 = vst [vmem:[#allocation3 + $0xd8] sm:$0xff] %v1197
      %1230 = vst [vmem:[#allocation3 + $0x120] sm:$0xff] %v1198
      %1231 = vst [vmem:[#allocation3 + $0x168] sm:$0xff] %v1199
      %1232 = vst [vmem:[#allocation3 + $0x1b0] sm:$0xff] %v1200
      %1233 = vst [vmem:[#allocation3 + $0x1f8] sm:$0xff] %v1201
      %1234 = vst [vmem:[#allocation3 + $0x240] sm:$0xff] %v1202
      %1235 = vst [vmem:[#allocation3 + $0x288] sm:$0xff] %v1203
      %1236 = vst [vmem:[#allocation3 + $0x2d0] sm:$0xff] %v1204
      %1237 = vst [vmem:[#allocation3 + $0x318] sm:$0xff] %v1205
      %1238 = vst [vmem:[#allocation3 + $0x360] sm:$0xff] %v1206
      %1239 = vst [vmem:[#allocation3 + $0x3a8] sm:$0xff] %v1207
      %1240 = vst [vmem:[#allocation3 + $0x3f0] sm:$0xff] %v1208
      %1241 = vst [vmem:[#allocation3 + $0x438] sm:$0xff] %v1209
      %v1242 = vld [vmem:[#allocation2] sm:$0xf]
      %v1243 = vld [vmem:[#allocation2 + $0x4] sm:$0xf]
      %v1244 = vld [vmem:[#allocation2 + $0x8] sm:$0x1]
      %v1245 = vld [vmem:[#allocation2 + $0xc] sm:$0xf]
      %v1246 = vld [vmem:[#allocation2 + $0x10] sm:$0xf]
      %v1247 = vld [vmem:[#allocation2 + $0x14] sm:$0x1]
      %v1248 = vld [vmem:[#allocation2 + $0x18] sm:$0xf]
      %v1249 = vld [vmem:[#allocation2 + $0x1c] sm:$0xf]
      %v1250 = vld [vmem:[#allocation2 + $0x20] sm:$0x1]
      %v1251 = vld [vmem:[#allocation2 + $0x24] sm:$0xf]
      %v1252 = vld [vmem:[#allocation2 + $0x28] sm:$0xf]
      %v1253 = vld [vmem:[#allocation2 + $0x2c] sm:$0x1]
      %v1254 = vld [vmem:[#allocation2 + $0x30] sm:$0xf]
      %v1255 = vld [vmem:[#allocation2 + $0x34] sm:$0xf]
      %v1256 = vld [vmem:[#allocation2 + $0x38] sm:$0x1]
      %v1257 = vld [vmem:[#allocation2 + $0x3c] sm:$0xf]
      %v1258 = vld [vmem:[#allocation2 + $0x40] sm:$0xf]
      %v1259 = vld [vmem:[#allocation2 + $0x44] sm:$0x1]
      %v1260 = vld [vmem:[#allocation2 + $0x48] sm:$0xf]
      %v1261 = vld [vmem:[#allocation2 + $0x4c] sm:$0xf]
      %v1262 = vld [vmem:[#allocation2 + $0x50] sm:$0x1]
      %v1263 = vld [vmem:[#allocation2 + $0x54] sm:$0xf]
      %v1264 = vld [vmem:[#allocation2 + $0x58] sm:$0xf]
      %v1265 = vld [vmem:[#allocation2 + $0x5c] sm:$0x1]
      %v1266 = vld [vmem:[#allocation2 + $0x60] sm:$0xf]
      %v1267 = vld [vmem:[#allocation2 + $0x64] sm:$0xf]
      %v1268 = vld [vmem:[#allocation2 + $0x68] sm:$0x1]
      %v1269 = vld [vmem:[#allocation2 + $0x6c] sm:$0xf]
      %v1270 = vld [vmem:[#allocation2 + $0x70] sm:$0xf]
      %v1271 = vld [vmem:[#allocation2 + $0x74] sm:$0x1]
      %v1272 = vld [vmem:[#allocation2 + $0x78] sm:$0xf]
      %v1273 = vld [vmem:[#allocation2 + $0x7c] sm:$0xf]
      %v1274 = vld [vmem:[#allocation2 + $0x80] sm:$0x1]
      %v1275 = vld [vmem:[#allocation2 + $0x84] sm:$0xf]
      %v1276 = vld [vmem:[#allocation2 + $0x88] sm:$0xf]
      %v1277 = vld [vmem:[#allocation2 + $0x8c] sm:$0x1]
      %v1278 = vld [vmem:[#allocation2 + $0x90] sm:$0xf]
      %v1279 = vld [vmem:[#allocation2 + $0x94] sm:$0xf]
      %v1280 = vld [vmem:[#allocation2 + $0x98] sm:$0x1]
      %v1281 = vld [vmem:[#allocation2 + $0x9c] sm:$0xf]
      %v1282 = vld [vmem:[#allocation2 + $0xa0] sm:$0xf]
      %v1283 = vld [vmem:[#allocation2 + $0xa4] sm:$0x1]
      %v1284 = vld [vmem:[#allocation2 + $0xa8] sm:$0xf]
      %v1285 = vld [vmem:[#allocation2 + $0xac] sm:$0xf]
      %v1286 = vld [vmem:[#allocation2 + $0xb0] sm:$0x1]
      %v1287 = vld [vmem:[#allocation2 + $0xb4] sm:$0xf]
      %v1288 = vld [vmem:[#allocation2 + $0xb8] sm:$0xf]
      %v1289 = vld [vmem:[#allocation2 + $0xbc] sm:$0x1]
      %vm1290 = vsmask.f32 3328
      %vm1291 = vsmask.f32 7440
      %vm1292 = vmor %vm1290, %vm1291
      %v1294 = vshrl.u32 %v1242, 16
      %v1296 = vrot.slane %v1294, 4
      %v1297 = vshll.u32 %v1242, 16
      %v1299 = vrot.slane %v1297, 5
      %v1300 = vor.u32 %v1296, %v1299
      %v1301 = vrot.slane %v1300, 4
      %v1303 = vshll.u32 %v1243, 16
      %v1305 = vrot.slane %v1303, 5
      %v1306 = vsel %vm1292, %v1301, %v1305
      %v1307 = vshrl.u32 %v1243, 16
      %v1309 = vrot.slane %v1307, 4
      %v1310 = vor.u32 %v1309, %v1305
      %v1311 = vrot.slane %v1310, 4
      %v1313 = vshll.u32 %v1244, 16
      %v1315 = vrot.slane %v1313, 5
      %v1316 = vsel %vm1292, %v1311, %v1315
      %v1318 = vshrl.u32 %v1245, 16
      %v1320 = vrot.slane %v1318, 4
      %v1321 = vshll.u32 %v1245, 16
      %v1323 = vrot.slane %v1321, 5
      %v1324 = vor.u32 %v1320, %v1323
      %v1325 = vrot.slane %v1324, 4
      %v1327 = vshll.u32 %v1246, 16
      %v1329 = vrot.slane %v1327, 5
      %v1330 = vsel %vm1292, %v1325, %v1329
      %v1331 = vshrl.u32 %v1246, 16
      %v1333 = vrot.slane %v1331, 4
      %v1334 = vor.u32 %v1333, %v1329
      %v1335 = vrot.slane %v1334, 4
      %v1337 = vshll.u32 %v1247, 16
      %v1339 = vrot.slane %v1337, 5
      %v1340 = vsel %vm1292, %v1335, %v1339
      %v1342 = vshrl.u32 %v1248, 16
      %v1344 = vrot.slane %v1342, 4
      %v1345 = vshll.u32 %v1248, 16
      %v1347 = vrot.slane %v1345, 5
      %v1348 = vor.u32 %v1344, %v1347
      %v1349 = vrot.slane %v1348, 4
      %v1351 = vshll.u32 %v1249, 16
      %v1353 = vrot.slane %v1351, 5
      %v1354 = vsel %vm1292, %v1349, %v1353
      %v1355 = vshrl.u32 %v1249, 16
      %v1357 = vrot.slane %v1355, 4
      %v1358 = vor.u32 %v1357, %v1353
      %v1359 = vrot.slane %v1358, 4
      %v1361 = vshll.u32 %v1250, 16
      %v1363 = vrot.slane %v1361, 5
      %v1364 = vsel %vm1292, %v1359, %v1363
      %v1366 = vshrl.u32 %v1251, 16
      %v1368 = vrot.slane %v1366, 4
      %v1369 = vshll.u32 %v1251, 16
      %v1371 = vrot.slane %v1369, 5
      %v1372 = vor.u32 %v1368, %v1371
      %v1373 = vrot.slane %v1372, 4
      %v1375 = vshll.u32 %v1252, 16
      %v1377 = vrot.slane %v1375, 5
      %v1378 = vsel %vm1292, %v1373, %v1377
      %v1379 = vshrl.u32 %v1252, 16
      %v1381 = vrot.slane %v1379, 4
      %v1382 = vor.u32 %v1381, %v1377
      %v1383 = vrot.slane %v1382, 4
      %v1385 = vshll.u32 %v1253, 16
      %v1387 = vrot.slane %v1385, 5
      %v1388 = vsel %vm1292, %v1383, %v1387
      %v1390 = vshrl.u32 %v1254, 16
      %v1392 = vrot.slane %v1390, 4
      %v1393 = vshll.u32 %v1254, 16
      %v1395 = vrot.slane %v1393, 5
      %v1396 = vor.u32 %v1392, %v1395
      %v1397 = vrot.slane %v1396, 4
      %v1399 = vshll.u32 %v1255, 16
      %v1401 = vrot.slane %v1399, 5
      %v1402 = vsel %vm1292, %v1397, %v1401
      %v1403 = vshrl.u32 %v1255, 16
      %v1405 = vrot.slane %v1403, 4
      %v1406 = vor.u32 %v1405, %v1401
      %v1407 = vrot.slane %v1406, 4
      %v1409 = vshll.u32 %v1256, 16
      %v1411 = vrot.slane %v1409, 5
      %v1412 = vsel %vm1292, %v1407, %v1411
      %v1414 = vshrl.u32 %v1257, 16
      %v1416 = vrot.slane %v1414, 4
      %v1417 = vshll.u32 %v1257, 16
      %v1419 = vrot.slane %v1417, 5
      %v1420 = vor.u32 %v1416, %v1419
      %v1421 = vrot.slane %v1420, 4
      %v1423 = vshll.u32 %v1258, 16
      %v1425 = vrot.slane %v1423, 5
      %v1426 = vsel %vm1292, %v1421, %v1425
      %v1427 = vshrl.u32 %v1258, 16
      %v1429 = vrot.slane %v1427, 4
      %v1430 = vor.u32 %v1429, %v1425
      %v1431 = vrot.slane %v1430, 4
      %v1433 = vshll.u32 %v1259, 16
      %v1435 = vrot.slane %v1433, 5
      %v1436 = vsel %vm1292, %v1431, %v1435
      %v1438 = vshrl.u32 %v1260, 16
      %v1440 = vrot.slane %v1438, 4
      %v1441 = vshll.u32 %v1260, 16
      %v1443 = vrot.slane %v1441, 5
      %v1444 = vor.u32 %v1440, %v1443
      %v1445 = vrot.slane %v1444, 4
      %v1447 = vshll.u32 %v1261, 16
      %v1449 = vrot.slane %v1447, 5
      %v1450 = vsel %vm1292, %v1445, %v1449
      %v1451 = vshrl.u32 %v1261, 16
      %v1453 = vrot.slane %v1451, 4
      %v1454 = vor.u32 %v1453, %v1449
      %v1455 = vrot.slane %v1454, 4
      %v1457 = vshll.u32 %v1262, 16
      %v1459 = vrot.slane %v1457, 5
      %v1460 = vsel %vm1292, %v1455, %v1459
      %v1462 = vshrl.u32 %v1263, 16
      %v1464 = vrot.slane %v1462, 4
      %v1465 = vshll.u32 %v1263, 16
      %v1467 = vrot.slane %v1465, 5
      %v1468 = vor.u32 %v1464, %v1467
      %v1469 = vrot.slane %v1468, 4
      %v1471 = vshll.u32 %v1264, 16
      %v1473 = vrot.slane %v1471, 5
      %v1474 = vsel %vm1292, %v1469, %v1473
      %v1475 = vshrl.u32 %v1264, 16
      %v1477 = vrot.slane %v1475, 4
      %v1478 = vor.u32 %v1477, %v1473
      %v1479 = vrot.slane %v1478, 4
      %v1481 = vshll.u32 %v1265, 16
      %v1483 = vrot.slane %v1481, 5
      %v1484 = vsel %vm1292, %v1479, %v1483
      %v1486 = vshrl.u32 %v1266, 16
      %v1488 = vrot.slane %v1486, 4
      %v1489 = vshll.u32 %v1266, 16
      %v1491 = vrot.slane %v1489, 5
      %v1492 = vor.u32 %v1488, %v1491
      %v1493 = vrot.slane %v1492, 4
      %v1495 = vshll.u32 %v1267, 16
      %v1497 = vrot.slane %v1495, 5
      %v1498 = vsel %vm1292, %v1493, %v1497
      %v1499 = vshrl.u32 %v1267, 16
      %v1501 = vrot.slane %v1499, 4
      %v1502 = vor.u32 %v1501, %v1497
      %v1503 = vrot.slane %v1502, 4
      %v1505 = vshll.u32 %v1268, 16
      %v1507 = vrot.slane %v1505, 5
      %v1508 = vsel %vm1292, %v1503, %v1507
      %v1510 = vshrl.u32 %v1269, 16
      %v1512 = vrot.slane %v1510, 4
      %v1513 = vshll.u32 %v1269, 16
      %v1515 = vrot.slane %v1513, 5
      %v1516 = vor.u32 %v1512, %v1515
      %v1517 = vrot.slane %v1516, 4
      %v1519 = vshll.u32 %v1270, 16
      %v1521 = vrot.slane %v1519, 5
      %v1522 = vsel %vm1292, %v1517, %v1521
      %v1523 = vshrl.u32 %v1270, 16
      %v1525 = vrot.slane %v1523, 4
      %v1526 = vor.u32 %v1525, %v1521
      %v1527 = vrot.slane %v1526, 4
      %v1529 = vshll.u32 %v1271, 16
      %v1531 = vrot.slane %v1529, 5
      %v1532 = vsel %vm1292, %v1527, %v1531
      %v1534 = vshrl.u32 %v1272, 16
      %v1536 = vrot.slane %v1534, 4
      %v1537 = vshll.u32 %v1272, 16
      %v1539 = vrot.slane %v1537, 5
      %v1540 = vor.u32 %v1536, %v1539
      %v1541 = vrot.slane %v1540, 4
      %v1543 = vshll.u32 %v1273, 16
      %v1545 = vrot.slane %v1543, 5
      %v1546 = vsel %vm1292, %v1541, %v1545
      %v1547 = vshrl.u32 %v1273, 16
      %v1549 = vrot.slane %v1547, 4
      %v1550 = vor.u32 %v1549, %v1545
      %v1551 = vrot.slane %v1550, 4
      %v1553 = vshll.u32 %v1274, 16
      %v1555 = vrot.slane %v1553, 5
      %v1556 = vsel %vm1292, %v1551, %v1555
      %v1558 = vshrl.u32 %v1275, 16
      %v1560 = vrot.slane %v1558, 4
      %v1561 = vshll.u32 %v1275, 16
      %v1563 = vrot.slane %v1561, 5
      %v1564 = vor.u32 %v1560, %v1563
      %v1565 = vrot.slane %v1564, 4
      %v1567 = vshll.u32 %v1276, 16
      %v1569 = vrot.slane %v1567, 5
      %v1570 = vsel %vm1292, %v1565, %v1569
      %v1571 = vshrl.u32 %v1276, 16
      %v1573 = vrot.slane %v1571, 4
      %v1574 = vor.u32 %v1573, %v1569
      %v1575 = vrot.slane %v1574, 4
      %v1577 = vshll.u32 %v1277, 16
      %v1579 = vrot.slane %v1577, 5
      %v1580 = vsel %vm1292, %v1575, %v1579
      %v1582 = vshrl.u32 %v1278, 16
      %v1584 = vrot.slane %v1582, 4
      %v1585 = vshll.u32 %v1278, 16
      %v1587 = vrot.slane %v1585, 5
      %v1588 = vor.u32 %v1584, %v1587
      %v1589 = vrot.slane %v1588, 4
      %v1591 = vshll.u32 %v1279, 16
      %v1593 = vrot.slane %v1591, 5
      %v1594 = vsel %vm1292, %v1589, %v1593
      %v1595 = vshrl.u32 %v1279, 16
      %v1597 = vrot.slane %v1595, 4
      %v1598 = vor.u32 %v1597, %v1593
      %v1599 = vrot.slane %v1598, 4
      %v1601 = vshll.u32 %v1280, 16
      %v1603 = vrot.slane %v1601, 5
      %v1604 = vsel %vm1292, %v1599, %v1603
      %v1606 = vshrl.u32 %v1281, 16
      %v1608 = vrot.slane %v1606, 4
      %v1609 = vshll.u32 %v1281, 16
      %v1611 = vrot.slane %v1609, 5
      %v1612 = vor.u32 %v1608, %v1611
      %v1613 = vrot.slane %v1612, 4
      %v1615 = vshll.u32 %v1282, 16
      %v1617 = vrot.slane %v1615, 5
      %v1618 = vsel %vm1292, %v1613, %v1617
      %v1619 = vshrl.u32 %v1282, 16
      %v1621 = vrot.slane %v1619, 4
      %v1622 = vor.u32 %v1621, %v1617
      %v1623 = vrot.slane %v1622, 4
      %v1625 = vshll.u32 %v1283, 16
      %v1627 = vrot.slane %v1625, 5
      %v1628 = vsel %vm1292, %v1623, %v1627
      %v1630 = vshrl.u32 %v1284, 16
      %v1632 = vrot.slane %v1630, 4
      %v1633 = vshll.u32 %v1284, 16
      %v1635 = vrot.slane %v1633, 5
      %v1636 = vor.u32 %v1632, %v1635
      %v1637 = vrot.slane %v1636, 4
      %v1639 = vshll.u32 %v1285, 16
      %v1641 = vrot.slane %v1639, 5
      %v1642 = vsel %vm1292, %v1637, %v1641
      %v1643 = vshrl.u32 %v1285, 16
      %v1645 = vrot.slane %v1643, 4
      %v1646 = vor.u32 %v1645, %v1641
      %v1647 = vrot.slane %v1646, 4
      %v1649 = vshll.u32 %v1286, 16
      %v1651 = vrot.slane %v1649, 5
      %v1652 = vsel %vm1292, %v1647, %v1651
      %v1654 = vshrl.u32 %v1287, 16
      %v1656 = vrot.slane %v1654, 4
      %v1657 = vshll.u32 %v1287, 16
      %v1659 = vrot.slane %v1657, 5
      %v1660 = vor.u32 %v1656, %v1659
      %v1661 = vrot.slane %v1660, 4
      %v1663 = vshll.u32 %v1288, 16
      %v1665 = vrot.slane %v1663, 5
      %v1666 = vsel %vm1292, %v1661, %v1665
      %v1667 = vshrl.u32 %v1288, 16
      %v1669 = vrot.slane %v1667, 4
      %v1670 = vor.u32 %v1669, %v1665
      %v1671 = vrot.slane %v1670, 4
      %v1673 = vshll.u32 %v1289, 16
      %v1675 = vrot.slane %v1673, 5
      %v1676 = vsel %vm1292, %v1671, %v1675
      %v1677 = vunpack.c.l.b16 %v1306
      %v1678 = vunpack.c.l.b16 %v1316
      %v1679 = vunpack.c.l.b16 %v1330
      %v1680 = vunpack.c.l.b16 %v1340
      %v1681 = vunpack.c.l.b16 %v1354
      %v1682 = vunpack.c.l.b16 %v1364
      %v1683 = vunpack.c.l.b16 %v1378
      %v1684 = vunpack.c.l.b16 %v1388
      %v1685 = vunpack.c.l.b16 %v1402
      %v1686 = vunpack.c.l.b16 %v1412
      %v1687 = vunpack.c.l.b16 %v1426
      %v1688 = vunpack.c.l.b16 %v1436
      %v1689 = vunpack.c.l.b16 %v1450
      %v1690 = vunpack.c.l.b16 %v1460
      %v1691 = vunpack.c.l.b16 %v1474
      %v1692 = vunpack.c.l.b16 %v1484
      %v1693 = vunpack.c.l.b16 %v1498
      %v1694 = vunpack.c.l.b16 %v1508
      %v1695 = vunpack.c.l.b16 %v1522
      %v1696 = vunpack.c.l.b16 %v1532
      %v1697 = vunpack.c.l.b16 %v1546
      %v1698 = vunpack.c.l.b16 %v1556
      %v1699 = vunpack.c.l.b16 %v1570
      %v1700 = vunpack.c.l.b16 %v1580
      %v1701 = vunpack.c.l.b16 %v1594
      %v1702 = vunpack.c.l.b16 %v1604
      %v1703 = vunpack.c.l.b16 %v1618
      %v1704 = vunpack.c.l.b16 %v1628
      %v1705 = vunpack.c.l.b16 %v1642
      %v1706 = vunpack.c.l.b16 %v1652
      %v1707 = vunpack.c.l.b16 %v1666
      %v1708 = vunpack.c.l.b16 %v1676
      %v1709 = vpack.c.b16 %v1678, %v1677
      %v1710 = vpack.c.b16 %v1680, %v1679
      %v1711 = vpack.c.b16 %v1682, %v1681
      %v1712 = vpack.c.b16 %v1684, %v1683
      %v1713 = vpack.c.b16 %v1686, %v1685
      %v1714 = vpack.c.b16 %v1688, %v1687
      %v1715 = vpack.c.b16 %v1690, %v1689
      %v1716 = vpack.c.b16 %v1692, %v1691
      %v1717 = vpack.c.b16 %v1694, %v1693
      %v1718 = vpack.c.b16 %v1696, %v1695
      %v1719 = vpack.c.b16 %v1698, %v1697
      %v1720 = vpack.c.b16 %v1700, %v1699
      %v1721 = vpack.c.b16 %v1702, %v1701
      %v1722 = vpack.c.b16 %v1704, %v1703
      %v1723 = vpack.c.b16 %v1706, %v1705
      %v1724 = vpack.c.b16 %v1708, %v1707
      %1741 = vst [vmem:[#allocation3 + $0x8] sm:$0xff] %v1709
      %1742 = vst [vmem:[#allocation3 + $0x50] sm:$0xff] %v1710
      %1743 = vst [vmem:[#allocation3 + $0x98] sm:$0xff] %v1711
      %1744 = vst [vmem:[#allocation3 + $0xe0] sm:$0xff] %v1712
      %1745 = vst [vmem:[#allocation3 + $0x128] sm:$0xff] %v1713
      %1746 = vst [vmem:[#allocation3 + $0x170] sm:$0xff] %v1714
      %1747 = vst [vmem:[#allocation3 + $0x1b8] sm:$0xff] %v1715
      %1748 = vst [vmem:[#allocation3 + $0x200] sm:$0xff] %v1716
      %1749 = vst [vmem:[#allocation3 + $0x248] sm:$0xff] %v1717
      %1750 = vst [vmem:[#allocation3 + $0x290] sm:$0xff] %v1718
      %1751 = vst [vmem:[#allocation3 + $0x2d8] sm:$0xff] %v1719
      %1752 = vst [vmem:[#allocation3 + $0x320] sm:$0xff] %v1720
      %1753 = vst [vmem:[#allocation3 + $0x368] sm:$0xff] %v1721
      %1754 = vst [vmem:[#allocation3 + $0x3b0] sm:$0xff] %v1722
      %1755 = vst [vmem:[#allocation3 + $0x3f8] sm:$0xff] %v1723
      %1756 = vst [vmem:[#allocation3 + $0x440] sm:$0xff] %v1724
      %v1757 = vld [vmem:[#allocation2] sm:$0xe]
      %v1758 = vld [vmem:[#allocation2 + $0x4] sm:$0xf]
      %v1759 = vld [vmem:[#allocation2 + $0x8] sm:$0x1]
      %v1760 = vld [vmem:[#allocation2 + $0xc] sm:$0xe]
      %v1761 = vld [vmem:[#allocation2 + $0x10] sm:$0xf]
      %v1762 = vld [vmem:[#allocation2 + $0x14] sm:$0x1]
      %v1763 = vld [vmem:[#allocation2 + $0x18] sm:$0xe]
      %v1764 = vld [vmem:[#allocation2 + $0x1c] sm:$0xf]
      %v1765 = vld [vmem:[#allocation2 + $0x20] sm:$0x1]
      %v1766 = vld [vmem:[#allocation2 + $0x24] sm:$0xe]
      %v1767 = vld [vmem:[#allocation2 + $0x28] sm:$0xf]
      %v1768 = vld [vmem:[#allocation2 + $0x2c] sm:$0x1]
      %v1769 = vld [vmem:[#allocation2 + $0x30] sm:$0xe]
      %v1770 = vld [vmem:[#allocation2 + $0x34] sm:$0xf]
      %v1771 = vld [vmem:[#allocation2 + $0x38] sm:$0x1]
      %v1772 = vld [vmem:[#allocation2 + $0x3c] sm:$0xe]
      %v1773 = vld [vmem:[#allocation2 + $0x40] sm:$0xf]
      %v1774 = vld [vmem:[#allocation2 + $0x44] sm:$0x1]
      %v1775 = vld [vmem:[#allocation2 + $0x48] sm:$0xe]
      %v1776 = vld [vmem:[#allocation2 + $0x4c] sm:$0xf]
      %v1777 = vld [vmem:[#allocation2 + $0x50] sm:$0x1]
      %v1778 = vld [vmem:[#allocation2 + $0x54] sm:$0xe]
      %v1779 = vld [vmem:[#allocation2 + $0x58] sm:$0xf]
      %v1780 = vld [vmem:[#allocation2 + $0x5c] sm:$0x1]
      %v1781 = vld [vmem:[#allocation2 + $0x60] sm:$0xe]
      %v1782 = vld [vmem:[#allocation2 + $0x64] sm:$0xf]
      %v1783 = vld [vmem:[#allocation2 + $0x68] sm:$0x1]
      %v1784 = vld [vmem:[#allocation2 + $0x6c] sm:$0xe]
      %v1785 = vld [vmem:[#allocation2 + $0x70] sm:$0xf]
      %v1786 = vld [vmem:[#allocation2 + $0x74] sm:$0x1]
      %v1787 = vld [vmem:[#allocation2 + $0x78] sm:$0xe]
      %v1788 = vld [vmem:[#allocation2 + $0x7c] sm:$0xf]
      %v1789 = vld [vmem:[#allocation2 + $0x80] sm:$0x1]
      %v1790 = vld [vmem:[#allocation2 + $0x84] sm:$0xe]
      %v1791 = vld [vmem:[#allocation2 + $0x88] sm:$0xf]
      %v1792 = vld [vmem:[#allocation2 + $0x8c] sm:$0x1]
      %v1793 = vld [vmem:[#allocation2 + $0x90] sm:$0xe]
      %v1794 = vld [vmem:[#allocation2 + $0x94] sm:$0xf]
      %v1795 = vld [vmem:[#allocation2 + $0x98] sm:$0x1]
      %v1796 = vld [vmem:[#allocation2 + $0x9c] sm:$0xe]
      %v1797 = vld [vmem:[#allocation2 + $0xa0] sm:$0xf]
      %v1798 = vld [vmem:[#allocation2 + $0xa4] sm:$0x1]
      %v1799 = vld [vmem:[#allocation2 + $0xa8] sm:$0xe]
      %v1800 = vld [vmem:[#allocation2 + $0xac] sm:$0xf]
      %v1801 = vld [vmem:[#allocation2 + $0xb0] sm:$0x1]
      %v1802 = vld [vmem:[#allocation2 + $0xb4] sm:$0xe]
      %v1803 = vld [vmem:[#allocation2 + $0xb8] sm:$0xf]
      %v1804 = vld [vmem:[#allocation2 + $0xbc] sm:$0x1]
      %vm1853 = vcmask 1042432
      %vm1854 = vcmask 1046532
      %vm1855 = vmor %vm1853, %vm1854
      %v1856 = vrot.slane %v1757, 5
      %v1857 = vrot.slane %v1856, 4
      %v1858 = vrot.slane %v1758, 5
      %v1859 = vsel %vm1855, %v1857, %v1858
      %v1860 = vrot.slane %v1858, 4
      %v1861 = vrot.slane %v1759, 5
      %v1862 = vsel %vm1855, %v1860, %v1861
      %v1863 = vrot.slane %v1760, 5
      %v1864 = vrot.slane %v1863, 4
      %v1865 = vrot.slane %v1761, 5
      %v1866 = vsel %vm1855, %v1864, %v1865
      %v1867 = vrot.slane %v1865, 4
      %v1868 = vrot.slane %v1762, 5
      %v1869 = vsel %vm1855, %v1867, %v1868
      %v1870 = vrot.slane %v1763, 5
      %v1871 = vrot.slane %v1870, 4
      %v1872 = vrot.slane %v1764, 5
      %v1873 = vsel %vm1855, %v1871, %v1872
      %v1874 = vrot.slane %v1872, 4
      %v1875 = vrot.slane %v1765, 5
      %v1876 = vsel %vm1855, %v1874, %v1875
      %v1877 = vrot.slane %v1766, 5
      %v1878 = vrot.slane %v1877, 4
      %v1879 = vrot.slane %v1767, 5
      %v1880 = vsel %vm1855, %v1878, %v1879
      %v1881 = vrot.slane %v1879, 4
      %v1882 = vrot.slane %v1768, 5
      %v1883 = vsel %vm1855, %v1881, %v1882
      %v1884 = vrot.slane %v1769, 5
      %v1885 = vrot.slane %v1884, 4
      %v1886 = vrot.slane %v1770, 5
      %v1887 = vsel %vm1855, %v1885, %v1886
      %v1888 = vrot.slane %v1886, 4
      %v1889 = vrot.slane %v1771, 5
      %v1890 = vsel %vm1855, %v1888, %v1889
      %v1891 = vrot.slane %v1772, 5
      %v1892 = vrot.slane %v1891, 4
      %v1893 = vrot.slane %v1773, 5
      %v1894 = vsel %vm1855, %v1892, %v1893
      %v1895 = vrot.slane %v1893, 4
      %v1896 = vrot.slane %v1774, 5
      %v1897 = vsel %vm1855, %v1895, %v1896
      %v1898 = vrot.slane %v1775, 5
      %v1899 = vrot.slane %v1898, 4
      %v1900 = vrot.slane %v1776, 5
      %v1901 = vsel %vm1855, %v1899, %v1900
      %v1902 = vrot.slane %v1900, 4
      %v1903 = vrot.slane %v1777, 5
      %v1904 = vsel %vm1855, %v1902, %v1903
      %v1905 = vrot.slane %v1778, 5
      %v1906 = vrot.slane %v1905, 4
      %v1907 = vrot.slane %v1779, 5
      %v1908 = vsel %vm1855, %v1906, %v1907
      %v1909 = vrot.slane %v1907, 4
      %v1910 = vrot.slane %v1780, 5
      %v1911 = vsel %vm1855, %v1909, %v1910
      %v1912 = vrot.slane %v1781, 5
      %v1913 = vrot.slane %v1912, 4
      %v1914 = vrot.slane %v1782, 5
      %v1915 = vsel %vm1855, %v1913, %v1914
      %v1916 = vrot.slane %v1914, 4
      %v1917 = vrot.slane %v1783, 5
      %v1918 = vsel %vm1855, %v1916, %v1917
      %v1919 = vrot.slane %v1784, 5
      %v1920 = vrot.slane %v1919, 4
      %v1921 = vrot.slane %v1785, 5
      %v1922 = vsel %vm1855, %v1920, %v1921
      %v1923 = vrot.slane %v1921, 4
      %v1924 = vrot.slane %v1786, 5
      %v1925 = vsel %vm1855, %v1923, %v1924
      %v1926 = vrot.slane %v1787, 5
      %v1927 = vrot.slane %v1926, 4
      %v1928 = vrot.slane %v1788, 5
      %v1929 = vsel %vm1855, %v1927, %v1928
      %v1930 = vrot.slane %v1928, 4
      %v1931 = vrot.slane %v1789, 5
      %v1932 = vsel %vm1855, %v1930, %v1931
      %v1933 = vrot.slane %v1790, 5
      %v1934 = vrot.slane %v1933, 4
      %v1935 = vrot.slane %v1791, 5
      %v1936 = vsel %vm1855, %v1934, %v1935
      %v1937 = vrot.slane %v1935, 4
      %v1938 = vrot.slane %v1792, 5
      %v1939 = vsel %vm1855, %v1937, %v1938
      %v1940 = vrot.slane %v1793, 5
      %v1941 = vrot.slane %v1940, 4
      %v1942 = vrot.slane %v1794, 5
      %v1943 = vsel %vm1855, %v1941, %v1942
      %v1944 = vrot.slane %v1942, 4
      %v1945 = vrot.slane %v1795, 5
      %v1946 = vsel %vm1855, %v1944, %v1945
      %v1947 = vrot.slane %v1796, 5
      %v1948 = vrot.slane %v1947, 4
      %v1949 = vrot.slane %v1797, 5
      %v1950 = vsel %vm1855, %v1948, %v1949
      %v1951 = vrot.slane %v1949, 4
      %v1952 = vrot.slane %v1798, 5
      %v1953 = vsel %vm1855, %v1951, %v1952
      %v1954 = vrot.slane %v1799, 5
      %v1955 = vrot.slane %v1954, 4
      %v1956 = vrot.slane %v1800, 5
      %v1957 = vsel %vm1855, %v1955, %v1956
      %v1958 = vrot.slane %v1956, 4
      %v1959 = vrot.slane %v1801, 5
      %v1960 = vsel %vm1855, %v1958, %v1959
      %v1961 = vrot.slane %v1802, 5
      %v1962 = vrot.slane %v1961, 4
      %v1963 = vrot.slane %v1803, 5
      %v1964 = vsel %vm1855, %v1962, %v1963
      %v1965 = vrot.slane %v1963, 4
      %v1966 = vrot.slane %v1804, 5
      %v1967 = vsel %vm1855, %v1965, %v1966
      %v1968 = vunpack.c.l.b16 %v1859
      %v1969 = vunpack.c.l.b16 %v1862
      %v1970 = vunpack.c.l.b16 %v1866
      %v1971 = vunpack.c.l.b16 %v1869
      %v1972 = vunpack.c.l.b16 %v1873
      %v1973 = vunpack.c.l.b16 %v1876
      %v1974 = vunpack.c.l.b16 %v1880
      %v1975 = vunpack.c.l.b16 %v1883
      %v1976 = vunpack.c.l.b16 %v1887
      %v1977 = vunpack.c.l.b16 %v1890
      %v1978 = vunpack.c.l.b16 %v1894
      %v1979 = vunpack.c.l.b16 %v1897
      %v1980 = vunpack.c.l.b16 %v1901
      %v1981 = vunpack.c.l.b16 %v1904
      %v1982 = vunpack.c.l.b16 %v1908
      %v1983 = vunpack.c.l.b16 %v1911
      %v1984 = vunpack.c.l.b16 %v1915
      %v1985 = vunpack.c.l.b16 %v1918
      %v1986 = vunpack.c.l.b16 %v1922
      %v1987 = vunpack.c.l.b16 %v1925
      %v1988 = vunpack.c.l.b16 %v1929
      %v1989 = vunpack.c.l.b16 %v1932
      %v1990 = vunpack.c.l.b16 %v1936
      %v1991 = vunpack.c.l.b16 %v1939
      %v1992 = vunpack.c.l.b16 %v1943
      %v1993 = vunpack.c.l.b16 %v1946
      %v1994 = vunpack.c.l.b16 %v1950
      %v1995 = vunpack.c.l.b16 %v1953
      %v1996 = vunpack.c.l.b16 %v1957
      %v1997 = vunpack.c.l.b16 %v1960
      %v1998 = vunpack.c.l.b16 %v1964
      %v1999 = vunpack.c.l.b16 %v1967
      %v2000 = vpack.c.b16 %v1969, %v1968
      %v2001 = vpack.c.b16 %v1971, %v1970
      %v2002 = vpack.c.b16 %v1973, %v1972
      %v2003 = vpack.c.b16 %v1975, %v1974
      %v2004 = vpack.c.b16 %v1977, %v1976
      %v2005 = vpack.c.b16 %v1979, %v1978
      %v2006 = vpack.c.b16 %v1981, %v1980
      %v2007 = vpack.c.b16 %v1983, %v1982
      %v2008 = vpack.c.b16 %v1985, %v1984
      %v2009 = vpack.c.b16 %v1987, %v1986
      %v2010 = vpack.c.b16 %v1989, %v1988
      %v2011 = vpack.c.b16 %v1991, %v1990
      %v2012 = vpack.c.b16 %v1993, %v1992
      %v2013 = vpack.c.b16 %v1995, %v1994
      %v2014 = vpack.c.b16 %v1997, %v1996
      %v2015 = vpack.c.b16 %v1999, %v1998
      %2032 = vst [vmem:[#allocation3 + $0x10] sm:$0xff] %v2000
      %2033 = vst [vmem:[#allocation3 + $0x58] sm:$0xff] %v2001
      %2034 = vst [vmem:[#allocation3 + $0xa0] sm:$0xff] %v2002
      %2035 = vst [vmem:[#allocation3 + $0xe8] sm:$0xff] %v2003
      %2036 = vst [vmem:[#allocation3 + $0x130] sm:$0xff] %v2004
      %2037 = vst [vmem:[#allocation3 + $0x178] sm:$0xff] %v2005
      %2038 = vst [vmem:[#allocation3 + $0x1c0] sm:$0xff] %v2006
      %2039 = vst [vmem:[#allocation3 + $0x208] sm:$0xff] %v2007
      %2040 = vst [vmem:[#allocation3 + $0x250] sm:$0xff] %v2008
      %2041 = vst [vmem:[#allocation3 + $0x298] sm:$0xff] %v2009
      %2042 = vst [vmem:[#allocation3 + $0x2e0] sm:$0xff] %v2010
      %2043 = vst [vmem:[#allocation3 + $0x328] sm:$0xff] %v2011
      %2044 = vst [vmem:[#allocation3 + $0x370] sm:$0xff] %v2012
      %2045 = vst [vmem:[#allocation3 + $0x3b8] sm:$0xff] %v2013
      %2046 = vst [vmem:[#allocation3 + $0x400] sm:$0xff] %v2014
      %2047 = vst [vmem:[#allocation3 + $0x448] sm:$0xff] %v2015
      %v2048 = vld [vmem:[%s980] sm:$0xf]
      %v2049 = vld [vmem:[%s980 + $0x4] sm:$0xf]
      %v2050 = vld [vmem:[%s980 + $0xc] sm:$0xf]
      %v2051 = vld [vmem:[%s980 + $0x10] sm:$0xf]
      %v2052 = vld [vmem:[%s980 + $0x18] sm:$0xf]
      %v2053 = vld [vmem:[%s980 + $0x1c] sm:$0xf]
      %v2054 = vld [vmem:[%s980 + $0x24] sm:$0xf]
      %v2055 = vld [vmem:[%s980 + $0x28] sm:$0xf]
      %v2056 = vld [vmem:[%s980 + $0x30] sm:$0xf]
      %v2057 = vld [vmem:[%s980 + $0x34] sm:$0xf]
      %v2058 = vld [vmem:[%s980 + $0x3c] sm:$0xf]
      %v2059 = vld [vmem:[%s980 + $0x40] sm:$0xf]
      %v2060 = vld [vmem:[%s980 + $0x48] sm:$0xf]
      %v2061 = vld [vmem:[%s980 + $0x4c] sm:$0xf]
      %v2062 = vld [vmem:[%s980 + $0x54] sm:$0xf]
      %v2063 = vld [vmem:[%s980 + $0x58] sm:$0xf]
      %v2064 = vld [vmem:[%s980 + $0x60] sm:$0xf]
      %v2065 = vld [vmem:[%s980 + $0x64] sm:$0xf]
      %v2066 = vld [vmem:[%s980 + $0x6c] sm:$0xf]
      %v2067 = vld [vmem:[%s980 + $0x70] sm:$0xf]
      %v2068 = vld [vmem:[%s980 + $0x78] sm:$0xf]
      %v2069 = vld [vmem:[%s980 + $0x7c] sm:$0xf]
      %v2070 = vld [vmem:[%s980 + $0x84] sm:$0xf]
      %v2071 = vld [vmem:[%s980 + $0x88] sm:$0xf]
      %v2072 = vld [vmem:[%s980 + $0x90] sm:$0xf]
      %v2073 = vld [vmem:[%s980 + $0x94] sm:$0xf]
      %v2074 = vld [vmem:[%s980 + $0x9c] sm:$0xf]
      %v2075 = vld [vmem:[%s980 + $0xa0] sm:$0xf]
      %v2076 = vld [vmem:[%s980 + $0xa8] sm:$0xf]
      %v2077 = vld [vmem:[%s980 + $0xac] sm:$0xf]
      %v2078 = vld [vmem:[%s980 + $0xb4] sm:$0xf]
      %v2079 = vld [vmem:[%s980 + $0xb8] sm:$0xf]
      %v2112 = vunpack.c.l.b16 %v2048
      %v2113 = vunpack.c.l.b16 %v2049
      %v2114 = vunpack.c.l.b16 %v2050
      %v2115 = vunpack.c.l.b16 %v2051
      %v2116 = vunpack.c.l.b16 %v2052
      %v2117 = vunpack.c.l.b16 %v2053
      %v2118 = vunpack.c.l.b16 %v2054
      %v2119 = vunpack.c.l.b16 %v2055
      %v2120 = vunpack.c.l.b16 %v2056
      %v2121 = vunpack.c.l.b16 %v2057
      %v2122 = vunpack.c.l.b16 %v2058
      %v2123 = vunpack.c.l.b16 %v2059
      %v2124 = vunpack.c.l.b16 %v2060
      %v2125 = vunpack.c.l.b16 %v2061
      %v2126 = vunpack.c.l.b16 %v2062
      %v2127 = vunpack.c.l.b16 %v2063
      %v2128 = vunpack.c.l.b16 %v2064
      %v2129 = vunpack.c.l.b16 %v2065
      %v2130 = vunpack.c.l.b16 %v2066
      %v2131 = vunpack.c.l.b16 %v2067
      %v2132 = vunpack.c.l.b16 %v2068
      %v2133 = vunpack.c.l.b16 %v2069
      %v2134 = vunpack.c.l.b16 %v2070
      %v2135 = vunpack.c.l.b16 %v2071
      %v2136 = vunpack.c.l.b16 %v2072
      %v2137 = vunpack.c.l.b16 %v2073
      %v2138 = vunpack.c.l.b16 %v2074
      %v2139 = vunpack.c.l.b16 %v2075
      %v2140 = vunpack.c.l.b16 %v2076
      %v2141 = vunpack.c.l.b16 %v2077
      %v2142 = vunpack.c.l.b16 %v2078
      %v2143 = vunpack.c.l.b16 %v2079
      %v2144 = vpack.c.b16 %v2113, %v2112
      %v2145 = vpack.c.b16 %v2115, %v2114
      %v2146 = vpack.c.b16 %v2117, %v2116
      %v2147 = vpack.c.b16 %v2119, %v2118
      %v2148 = vpack.c.b16 %v2121, %v2120
      %v2149 = vpack.c.b16 %v2123, %v2122
      %v2150 = vpack.c.b16 %v2125, %v2124
      %v2151 = vpack.c.b16 %v2127, %v2126
      %v2152 = vpack.c.b16 %v2129, %v2128
      %v2153 = vpack.c.b16 %v2131, %v2130
      %v2154 = vpack.c.b16 %v2133, %v2132
      %v2155 = vpack.c.b16 %v2135, %v2134
      %v2156 = vpack.c.b16 %v2137, %v2136
      %v2157 = vpack.c.b16 %v2139, %v2138
      %v2158 = vpack.c.b16 %v2141, %v2140
      %v2159 = vpack.c.b16 %v2143, %v2142
      %2176 = vst [vmem:[#allocation3 + $0x18] sm:$0xff] %v2144
      %2177 = vst [vmem:[#allocation3 + $0x60] sm:$0xff] %v2145
      %2178 = vst [vmem:[#allocation3 + $0xa8] sm:$0xff] %v2146
      %2179 = vst [vmem:[#allocation3 + $0xf0] sm:$0xff] %v2147
      %2180 = vst [vmem:[#allocation3 + $0x138] sm:$0xff] %v2148
      %2181 = vst [vmem:[#allocation3 + $0x180] sm:$0xff] %v2149
      %2182 = vst [vmem:[#allocation3 + $0x1c8] sm:$0xff] %v2150
      %2183 = vst [vmem:[#allocation3 + $0x210] sm:$0xff] %v2151
      %2184 = vst [vmem:[#allocation3 + $0x258] sm:$0xff] %v2152
      %2185 = vst [vmem:[#allocation3 + $0x2a0] sm:$0xff] %v2153
      %2186 = vst [vmem:[#allocation3 + $0x2e8] sm:$0xff] %v2154
      %2187 = vst [vmem:[#allocation3 + $0x330] sm:$0xff] %v2155
      %2188 = vst [vmem:[#allocation3 + $0x378] sm:$0xff] %v2156
      %2189 = vst [vmem:[#allocation3 + $0x3c0] sm:$0xff] %v2157
      %2190 = vst [vmem:[#allocation3 + $0x408] sm:$0xff] %v2158
      %2191 = vst [vmem:[#allocation3 + $0x450] sm:$0xff] %v2159
      %v2192 = vld [vmem:[%s980] sm:$0xf]
      %v2193 = vld [vmem:[%s980 + $0x4] sm:$0xf]
      %v2194 = vld [vmem:[%s980 + $0x8] sm:$0x1]
      %v2195 = vld [vmem:[%s980 + $0xc] sm:$0xf]
      %v2196 = vld [vmem:[%s980 + $0x10] sm:$0xf]
      %v2197 = vld [vmem:[%s980 + $0x14] sm:$0x1]
      %v2198 = vld [vmem:[%s980 + $0x18] sm:$0xf]
      %v2199 = vld [vmem:[%s980 + $0x1c] sm:$0xf]
      %v2200 = vld [vmem:[%s980 + $0x20] sm:$0x1]
      %v2201 = vld [vmem:[%s980 + $0x24] sm:$0xf]
      %v2202 = vld [vmem:[%s980 + $0x28] sm:$0xf]
      %v2203 = vld [vmem:[%s980 + $0x2c] sm:$0x1]
      %v2204 = vld [vmem:[%s980 + $0x30] sm:$0xf]
      %v2205 = vld [vmem:[%s980 + $0x34] sm:$0xf]
      %v2206 = vld [vmem:[%s980 + $0x38] sm:$0x1]
      %v2207 = vld [vmem:[%s980 + $0x3c] sm:$0xf]
      %v2208 = vld [vmem:[%s980 + $0x40] sm:$0xf]
      %v2209 = vld [vmem:[%s980 + $0x44] sm:$0x1]
      %v2210 = vld [vmem:[%s980 + $0x48] sm:$0xf]
      %v2211 = vld [vmem:[%s980 + $0x4c] sm:$0xf]
      %v2212 = vld [vmem:[%s980 + $0x50] sm:$0x1]
      %v2213 = vld [vmem:[%s980 + $0x54] sm:$0xf]
      %v2214 = vld [vmem:[%s980 + $0x58] sm:$0xf]
      %v2215 = vld [vmem:[%s980 + $0x5c] sm:$0x1]
      %v2216 = vld [vmem:[%s980 + $0x60] sm:$0xf]
      %v2217 = vld [vmem:[%s980 + $0x64] sm:$0xf]
      %v2218 = vld [vmem:[%s980 + $0x68] sm:$0x1]
      %v2219 = vld [vmem:[%s980 + $0x6c] sm:$0xf]
      %v2220 = vld [vmem:[%s980 + $0x70] sm:$0xf]
      %v2221 = vld [vmem:[%s980 + $0x74] sm:$0x1]
      %v2222 = vld [vmem:[%s980 + $0x78] sm:$0xf]
      %v2223 = vld [vmem:[%s980 + $0x7c] sm:$0xf]
      %v2224 = vld [vmem:[%s980 + $0x80] sm:$0x1]
      %v2225 = vld [vmem:[%s980 + $0x84] sm:$0xf]
      %v2226 = vld [vmem:[%s980 + $0x88] sm:$0xf]
      %v2227 = vld [vmem:[%s980 + $0x8c] sm:$0x1]
      %v2228 = vld [vmem:[%s980 + $0x90] sm:$0xf]
      %v2229 = vld [vmem:[%s980 + $0x94] sm:$0xf]
      %v2230 = vld [vmem:[%s980 + $0x98] sm:$0x1]
      %v2231 = vld [vmem:[%s980 + $0x9c] sm:$0xf]
      %v2232 = vld [vmem:[%s980 + $0xa0] sm:$0xf]
      %v2233 = vld [vmem:[%s980 + $0xa4] sm:$0x1]
      %v2234 = vld [vmem:[%s980 + $0xa8] sm:$0xf]
      %v2235 = vld [vmem:[%s980 + $0xac] sm:$0xf]
      %v2236 = vld [vmem:[%s980 + $0xb0] sm:$0x1]
      %v2237 = vld [vmem:[%s980 + $0xb4] sm:$0xf]
      %v2238 = vld [vmem:[%s980 + $0xb8] sm:$0xf]
      %v2239 = vld [vmem:[%s980 + $0xbc] sm:$0x1]
      %v2241 = vshrl.u32 %v2192, 16
      %v2243 = vrot.slane %v2241, 4
      %v2244 = vshll.u32 %v2192, 16
      %v2246 = vrot.slane %v2244, 5
      %v2247 = vor.u32 %v2243, %v2246
      %v2248 = vrot.slane %v2247, 4
      %v2250 = vshll.u32 %v2193, 16
      %v2252 = vrot.slane %v2250, 5
      %v2253 = vsel %vm1292, %v2248, %v2252
      %v2254 = vshrl.u32 %v2193, 16
      %v2256 = vrot.slane %v2254, 4
      %v2257 = vor.u32 %v2256, %v2252
      %v2258 = vrot.slane %v2257, 4
      %v2260 = vshll.u32 %v2194, 16
      %v2262 = vrot.slane %v2260, 5
      %v2263 = vsel %vm1292, %v2258, %v2262
      %v2265 = vshrl.u32 %v2195, 16
      %v2267 = vrot.slane %v2265, 4
      %v2268 = vshll.u32 %v2195, 16
      %v2270 = vrot.slane %v2268, 5
      %v2271 = vor.u32 %v2267, %v2270
      %v2272 = vrot.slane %v2271, 4
      %v2274 = vshll.u32 %v2196, 16
      %v2276 = vrot.slane %v2274, 5
      %v2277 = vsel %vm1292, %v2272, %v2276
      %v2278 = vshrl.u32 %v2196, 16
      %v2280 = vrot.slane %v2278, 4
      %v2281 = vor.u32 %v2280, %v2276
      %v2282 = vrot.slane %v2281, 4
      %v2284 = vshll.u32 %v2197, 16
      %v2286 = vrot.slane %v2284, 5
      %v2287 = vsel %vm1292, %v2282, %v2286
      %v2289 = vshrl.u32 %v2198, 16
      %v2291 = vrot.slane %v2289, 4
      %v2292 = vshll.u32 %v2198, 16
      %v2294 = vrot.slane %v2292, 5
      %v2295 = vor.u32 %v2291, %v2294
      %v2296 = vrot.slane %v2295, 4
      %v2298 = vshll.u32 %v2199, 16
      %v2300 = vrot.slane %v2298, 5
      %v2301 = vsel %vm1292, %v2296, %v2300
      %v2302 = vshrl.u32 %v2199, 16
      %v2304 = vrot.slane %v2302, 4
      %v2305 = vor.u32 %v2304, %v2300
      %v2306 = vrot.slane %v2305, 4
      %v2308 = vshll.u32 %v2200, 16
      %v2310 = vrot.slane %v2308, 5
      %v2311 = vsel %vm1292, %v2306, %v2310
      %v2313 = vshrl.u32 %v2201, 16
      %v2315 = vrot.slane %v2313, 4
      %v2316 = vshll.u32 %v2201, 16
      %v2318 = vrot.slane %v2316, 5
      %v2319 = vor.u32 %v2315, %v2318
      %v2320 = vrot.slane %v2319, 4
      %v2322 = vshll.u32 %v2202, 16
      %v2324 = vrot.slane %v2322, 5
      %v2325 = vsel %vm1292, %v2320, %v2324
      %v2326 = vshrl.u32 %v2202, 16
      %v2328 = vrot.slane %v2326, 4
      %v2329 = vor.u32 %v2328, %v2324
      %v2330 = vrot.slane %v2329, 4
      %v2332 = vshll.u32 %v2203, 16
      %v2334 = vrot.slane %v2332, 5
      %v2335 = vsel %vm1292, %v2330, %v2334
      %v2337 = vshrl.u32 %v2204, 16
      %v2339 = vrot.slane %v2337, 4
      %v2340 = vshll.u32 %v2204, 16
      %v2342 = vrot.slane %v2340, 5
      %v2343 = vor.u32 %v2339, %v2342
      %v2344 = vrot.slane %v2343, 4
      %v2346 = vshll.u32 %v2205, 16
      %v2348 = vrot.slane %v2346, 5
      %v2349 = vsel %vm1292, %v2344, %v2348
      %v2350 = vshrl.u32 %v2205, 16
      %v2352 = vrot.slane %v2350, 4
      %v2353 = vor.u32 %v2352, %v2348
      %v2354 = vrot.slane %v2353, 4
      %v2356 = vshll.u32 %v2206, 16
      %v2358 = vrot.slane %v2356, 5
      %v2359 = vsel %vm1292, %v2354, %v2358
      %v2361 = vshrl.u32 %v2207, 16
      %v2363 = vrot.slane %v2361, 4
      %v2364 = vshll.u32 %v2207, 16
      %v2366 = vrot.slane %v2364, 5
      %v2367 = vor.u32 %v2363, %v2366
      %v2368 = vrot.slane %v2367, 4
      %v2370 = vshll.u32 %v2208, 16
      %v2372 = vrot.slane %v2370, 5
      %v2373 = vsel %vm1292, %v2368, %v2372
      %v2374 = vshrl.u32 %v2208, 16
      %v2376 = vrot.slane %v2374, 4
      %v2377 = vor.u32 %v2376, %v2372
      %v2378 = vrot.slane %v2377, 4
      %v2380 = vshll.u32 %v2209, 16
      %v2382 = vrot.slane %v2380, 5
      %v2383 = vsel %vm1292, %v2378, %v2382
      %v2385 = vshrl.u32 %v2210, 16
      %v2387 = vrot.slane %v2385, 4
      %v2388 = vshll.u32 %v2210, 16
      %v2390 = vrot.slane %v2388, 5
      %v2391 = vor.u32 %v2387, %v2390
      %v2392 = vrot.slane %v2391, 4
      %v2394 = vshll.u32 %v2211, 16
      %v2396 = vrot.slane %v2394, 5
      %v2397 = vsel %vm1292, %v2392, %v2396
      %v2398 = vshrl.u32 %v2211, 16
      %v2400 = vrot.slane %v2398, 4
      %v2401 = vor.u32 %v2400, %v2396
      %v2402 = vrot.slane %v2401, 4
      %v2404 = vshll.u32 %v2212, 16
      %v2406 = vrot.slane %v2404, 5
      %v2407 = vsel %vm1292, %v2402, %v2406
      %v2409 = vshrl.u32 %v2213, 16
      %v2411 = vrot.slane %v2409, 4
      %v2412 = vshll.u32 %v2213, 16
      %v2414 = vrot.slane %v2412, 5
      %v2415 = vor.u32 %v2411, %v2414
      %v2416 = vrot.slane %v2415, 4
      %v2418 = vshll.u32 %v2214, 16
      %v2420 = vrot.slane %v2418, 5
      %v2421 = vsel %vm1292, %v2416, %v2420
      %v2422 = vshrl.u32 %v2214, 16
      %v2424 = vrot.slane %v2422, 4
      %v2425 = vor.u32 %v2424, %v2420
      %v2426 = vrot.slane %v2425, 4
      %v2428 = vshll.u32 %v2215, 16
      %v2430 = vrot.slane %v2428, 5
      %v2431 = vsel %vm1292, %v2426, %v2430
      %v2433 = vshrl.u32 %v2216, 16
      %v2435 = vrot.slane %v2433, 4
      %v2436 = vshll.u32 %v2216, 16
      %v2438 = vrot.slane %v2436, 5
      %v2439 = vor.u32 %v2435, %v2438
      %v2440 = vrot.slane %v2439, 4
      %v2442 = vshll.u32 %v2217, 16
      %v2444 = vrot.slane %v2442, 5
      %v2445 = vsel %vm1292, %v2440, %v2444
      %v2446 = vshrl.u32 %v2217, 16
      %v2448 = vrot.slane %v2446, 4
      %v2449 = vor.u32 %v2448, %v2444
      %v2450 = vrot.slane %v2449, 4
      %v2452 = vshll.u32 %v2218, 16
      %v2454 = vrot.slane %v2452, 5
      %v2455 = vsel %vm1292, %v2450, %v2454
      %v2457 = vshrl.u32 %v2219, 16
      %v2459 = vrot.slane %v2457, 4
      %v2460 = vshll.u32 %v2219, 16
      %v2462 = vrot.slane %v2460, 5
      %v2463 = vor.u32 %v2459, %v2462
      %v2464 = vrot.slane %v2463, 4
      %v2466 = vshll.u32 %v2220, 16
      %v2468 = vrot.slane %v2466, 5
      %v2469 = vsel %vm1292, %v2464, %v2468
      %v2470 = vshrl.u32 %v2220, 16
      %v2472 = vrot.slane %v2470, 4
      %v2473 = vor.u32 %v2472, %v2468
      %v2474 = vrot.slane %v2473, 4
      %v2476 = vshll.u32 %v2221, 16
      %v2478 = vrot.slane %v2476, 5
      %v2479 = vsel %vm1292, %v2474, %v2478
      %v2481 = vshrl.u32 %v2222, 16
      %v2483 = vrot.slane %v2481, 4
      %v2484 = vshll.u32 %v2222, 16
      %v2486 = vrot.slane %v2484, 5
      %v2487 = vor.u32 %v2483, %v2486
      %v2488 = vrot.slane %v2487, 4
      %v2490 = vshll.u32 %v2223, 16
      %v2492 = vrot.slane %v2490, 5
      %v2493 = vsel %vm1292, %v2488, %v2492
      %v2494 = vshrl.u32 %v2223, 16
      %v2496 = vrot.slane %v2494, 4
      %v2497 = vor.u32 %v2496, %v2492
      %v2498 = vrot.slane %v2497, 4
      %v2500 = vshll.u32 %v2224, 16
      %v2502 = vrot.slane %v2500, 5
      %v2503 = vsel %vm1292, %v2498, %v2502
      %v2505 = vshrl.u32 %v2225, 16
      %v2507 = vrot.slane %v2505, 4
      %v2508 = vshll.u32 %v2225, 16
      %v2510 = vrot.slane %v2508, 5
      %v2511 = vor.u32 %v2507, %v2510
      %v2512 = vrot.slane %v2511, 4
      %v2514 = vshll.u32 %v2226, 16
      %v2516 = vrot.slane %v2514, 5
      %v2517 = vsel %vm1292, %v2512, %v2516
      %v2518 = vshrl.u32 %v2226, 16
      %v2520 = vrot.slane %v2518, 4
      %v2521 = vor.u32 %v2520, %v2516
      %v2522 = vrot.slane %v2521, 4
      %v2524 = vshll.u32 %v2227, 16
      %v2526 = vrot.slane %v2524, 5
      %v2527 = vsel %vm1292, %v2522, %v2526
      %v2529 = vshrl.u32 %v2228, 16
      %v2531 = vrot.slane %v2529, 4
      %v2532 = vshll.u32 %v2228, 16
      %v2534 = vrot.slane %v2532, 5
      %v2535 = vor.u32 %v2531, %v2534
      %v2536 = vrot.slane %v2535, 4
      %v2538 = vshll.u32 %v2229, 16
      %v2540 = vrot.slane %v2538, 5
      %v2541 = vsel %vm1292, %v2536, %v2540
      %v2542 = vshrl.u32 %v2229, 16
      %v2544 = vrot.slane %v2542, 4
      %v2545 = vor.u32 %v2544, %v2540
      %v2546 = vrot.slane %v2545, 4
      %v2548 = vshll.u32 %v2230, 16
      %v2550 = vrot.slane %v2548, 5
      %v2551 = vsel %vm1292, %v2546, %v2550
      %v2553 = vshrl.u32 %v2231, 16
      %v2555 = vrot.slane %v2553, 4
      %v2556 = vshll.u32 %v2231, 16
      %v2558 = vrot.slane %v2556, 5
      %v2559 = vor.u32 %v2555, %v2558
      %v2560 = vrot.slane %v2559, 4
      %v2562 = vshll.u32 %v2232, 16
      %v2564 = vrot.slane %v2562, 5
      %v2565 = vsel %vm1292, %v2560, %v2564
      %v2566 = vshrl.u32 %v2232, 16
      %v2568 = vrot.slane %v2566, 4
      %v2569 = vor.u32 %v2568, %v2564
      %v2570 = vrot.slane %v2569, 4
      %v2572 = vshll.u32 %v2233, 16
      %v2574 = vrot.slane %v2572, 5
      %v2575 = vsel %vm1292, %v2570, %v2574
      %v2577 = vshrl.u32 %v2234, 16
      %v2579 = vrot.slane %v2577, 4
      %v2580 = vshll.u32 %v2234, 16
      %v2582 = vrot.slane %v2580, 5
      %v2583 = vor.u32 %v2579, %v2582
      %v2584 = vrot.slane %v2583, 4
      %v2586 = vshll.u32 %v2235, 16
      %v2588 = vrot.slane %v2586, 5
      %v2589 = vsel %vm1292, %v2584, %v2588
      %v2590 = vshrl.u32 %v2235, 16
      %v2592 = vrot.slane %v2590, 4
      %v2593 = vor.u32 %v2592, %v2588
      %v2594 = vrot.slane %v2593, 4
      %v2596 = vshll.u32 %v2236, 16
      %v2598 = vrot.slane %v2596, 5
      %v2599 = vsel %vm1292, %v2594, %v2598
      %v2601 = vshrl.u32 %v2237, 16
      %v2603 = vrot.slane %v2601, 4
      %v2604 = vshll.u32 %v2237, 16
      %v2606 = vrot.slane %v2604, 5
      %v2607 = vor.u32 %v2603, %v2606
      %v2608 = vrot.slane %v2607, 4
      %v2610 = vshll.u32 %v2238, 16
      %v2612 = vrot.slane %v2610, 5
      %v2613 = vsel %vm1292, %v2608, %v2612
      %v2614 = vshrl.u32 %v2238, 16
      %v2616 = vrot.slane %v2614, 4
      %v2617 = vor.u32 %v2616, %v2612
      %v2618 = vrot.slane %v2617, 4
      %v2620 = vshll.u32 %v2239, 16
      %v2622 = vrot.slane %v2620, 5
      %v2623 = vsel %vm1292, %v2618, %v2622
      %v2624 = vunpack.c.l.b16 %v2253
      %v2625 = vunpack.c.l.b16 %v2263
      %v2626 = vunpack.c.l.b16 %v2277
      %v2627 = vunpack.c.l.b16 %v2287
      %v2628 = vunpack.c.l.b16 %v2301
      %v2629 = vunpack.c.l.b16 %v2311
      %v2630 = vunpack.c.l.b16 %v2325
      %v2631 = vunpack.c.l.b16 %v2335
      %v2632 = vunpack.c.l.b16 %v2349
      %v2633 = vunpack.c.l.b16 %v2359
      %v2634 = vunpack.c.l.b16 %v2373
      %v2635 = vunpack.c.l.b16 %v2383
      %v2636 = vunpack.c.l.b16 %v2397
      %v2637 = vunpack.c.l.b16 %v2407
      %v2638 = vunpack.c.l.b16 %v2421
      %v2639 = vunpack.c.l.b16 %v2431
      %v2640 = vunpack.c.l.b16 %v2445
      %v2641 = vunpack.c.l.b16 %v2455
      %v2642 = vunpack.c.l.b16 %v2469
      %v2643 = vunpack.c.l.b16 %v2479
      %v2644 = vunpack.c.l.b16 %v2493
      %v2645 = vunpack.c.l.b16 %v2503
      %v2646 = vunpack.c.l.b16 %v2517
      %v2647 = vunpack.c.l.b16 %v2527
      %v2648 = vunpack.c.l.b16 %v2541
      %v2649 = vunpack.c.l.b16 %v2551
      %v2650 = vunpack.c.l.b16 %v2565
      %v2651 = vunpack.c.l.b16 %v2575
      %v2652 = vunpack.c.l.b16 %v2589
      %v2653 = vunpack.c.l.b16 %v2599
      %v2654 = vunpack.c.l.b16 %v2613
      %v2655 = vunpack.c.l.b16 %v2623
      %v2656 = vpack.c.b16 %v2625, %v2624
      %v2657 = vpack.c.b16 %v2627, %v2626
      %v2658 = vpack.c.b16 %v2629, %v2628
      %v2659 = vpack.c.b16 %v2631, %v2630
      %v2660 = vpack.c.b16 %v2633, %v2632
      %v2661 = vpack.c.b16 %v2635, %v2634
      %v2662 = vpack.c.b16 %v2637, %v2636
      %v2663 = vpack.c.b16 %v2639, %v2638
      %v2664 = vpack.c.b16 %v2641, %v2640
      %v2665 = vpack.c.b16 %v2643, %v2642
      %v2666 = vpack.c.b16 %v2645, %v2644
      %v2667 = vpack.c.b16 %v2647, %v2646
      %v2668 = vpack.c.b16 %v2649, %v2648
      %v2669 = vpack.c.b16 %v2651, %v2650
      %v2670 = vpack.c.b16 %v2653, %v2652
      %v2671 = vpack.c.b16 %v2655, %v2654
      %2688 = vst [vmem:[#allocation3 + $0x20] sm:$0xff] %v2656
      %2689 = vst [vmem:[#allocation3 + $0x68] sm:$0xff] %v2657
      %2690 = vst [vmem:[#allocation3 + $0xb0] sm:$0xff] %v2658
      %2691 = vst [vmem:[#allocation3 + $0xf8] sm:$0xff] %v2659
      %2692 = vst [vmem:[#allocation3 + $0x140] sm:$0xff] %v2660
      %2693 = vst [vmem:[#allocation3 + $0x188] sm:$0xff] %v2661
      %2694 = vst [vmem:[#allocation3 + $0x1d0] sm:$0xff] %v2662
      %2695 = vst [vmem:[#allocation3 + $0x218] sm:$0xff] %v2663
      %2696 = vst [vmem:[#allocation3 + $0x260] sm:$0xff] %v2664
      %2697 = vst [vmem:[#allocation3 + $0x2a8] sm:$0xff] %v2665
      %2698 = vst [vmem:[#allocation3 + $0x2f0] sm:$0xff] %v2666
      %2699 = vst [vmem:[#allocation3 + $0x338] sm:$0xff] %v2667
      %2700 = vst [vmem:[#allocation3 + $0x380] sm:$0xff] %v2668
      %2701 = vst [vmem:[#allocation3 + $0x3c8] sm:$0xff] %v2669
      %2702 = vst [vmem:[#allocation3 + $0x410] sm:$0xff] %v2670
      %2703 = vst [vmem:[#allocation3 + $0x458] sm:$0xff] %v2671
      %v2704 = vld [vmem:[%s980] sm:$0xe]
      %v2705 = vld [vmem:[%s980 + $0x4] sm:$0xf]
      %v2706 = vld [vmem:[%s980 + $0x8] sm:$0x1]
      %v2707 = vld [vmem:[%s980 + $0xc] sm:$0xe]
      %v2708 = vld [vmem:[%s980 + $0x10] sm:$0xf]
      %v2709 = vld [vmem:[%s980 + $0x14] sm:$0x1]
      %v2710 = vld [vmem:[%s980 + $0x18] sm:$0xe]
      %v2711 = vld [vmem:[%s980 + $0x1c] sm:$0xf]
      %v2712 = vld [vmem:[%s980 + $0x20] sm:$0x1]
      %v2713 = vld [vmem:[%s980 + $0x24] sm:$0xe]
      %v2714 = vld [vmem:[%s980 + $0x28] sm:$0xf]
      %v2715 = vld [vmem:[%s980 + $0x2c] sm:$0x1]
      %v2716 = vld [vmem:[%s980 + $0x30] sm:$0xe]
      %v2717 = vld [vmem:[%s980 + $0x34] sm:$0xf]
      %v2718 = vld [vmem:[%s980 + $0x38] sm:$0x1]
      %v2719 = vld [vmem:[%s980 + $0x3c] sm:$0xe]
      %v2720 = vld [vmem:[%s980 + $0x40] sm:$0xf]
      %v2721 = vld [vmem:[%s980 + $0x44] sm:$0x1]
      %v2722 = vld [vmem:[%s980 + $0x48] sm:$0xe]
      %v2723 = vld [vmem:[%s980 + $0x4c] sm:$0xf]
      %v2724 = vld [vmem:[%s980 + $0x50] sm:$0x1]
      %v2725 = vld [vmem:[%s980 + $0x54] sm:$0xe]
      %v2726 = vld [vmem:[%s980 + $0x58] sm:$0xf]
      %v2727 = vld [vmem:[%s980 + $0x5c] sm:$0x1]
      %v2728 = vld [vmem:[%s980 + $0x60] sm:$0xe]
      %v2729 = vld [vmem:[%s980 + $0x64] sm:$0xf]
      %v2730 = vld [vmem:[%s980 + $0x68] sm:$0x1]
      %v2731 = vld [vmem:[%s980 + $0x6c] sm:$0xe]
      %v2732 = vld [vmem:[%s980 + $0x70] sm:$0xf]
      %v2733 = vld [vmem:[%s980 + $0x74] sm:$0x1]
      %v2734 = vld [vmem:[%s980 + $0x78] sm:$0xe]
      %v2735 = vld [vmem:[%s980 + $0x7c] sm:$0xf]
      %v2736 = vld [vmem:[%s980 + $0x80] sm:$0x1]
      %v2737 = vld [vmem:[%s980 + $0x84] sm:$0xe]
      %v2738 = vld [vmem:[%s980 + $0x88] sm:$0xf]
      %v2739 = vld [vmem:[%s980 + $0x8c] sm:$0x1]
      %v2740 = vld [vmem:[%s980 + $0x90] sm:$0xe]
      %v2741 = vld [vmem:[%s980 + $0x94] sm:$0xf]
      %v2742 = vld [vmem:[%s980 + $0x98] sm:$0x1]
      %v2743 = vld [vmem:[%s980 + $0x9c] sm:$0xe]
      %v2744 = vld [vmem:[%s980 + $0xa0] sm:$0xf]
      %v2745 = vld [vmem:[%s980 + $0xa4] sm:$0x1]
      %v2746 = vld [vmem:[%s980 + $0xa8] sm:$0xe]
      %v2747 = vld [vmem:[%s980 + $0xac] sm:$0xf]
      %v2748 = vld [vmem:[%s980 + $0xb0] sm:$0x1]
      %v2749 = vld [vmem:[%s980 + $0xb4] sm:$0xe]
      %v2750 = vld [vmem:[%s980 + $0xb8] sm:$0xf]
      %v2751 = vld [vmem:[%s980 + $0xbc] sm:$0x1]
      %v2800 = vrot.slane %v2704, 5
      %v2801 = vrot.slane %v2800, 4
      %v2802 = vrot.slane %v2705, 5
      %v2803 = vsel %vm1855, %v2801, %v2802
      %v2804 = vrot.slane %v2802, 4
      %v2805 = vrot.slane %v2706, 5
      %v2806 = vsel %vm1855, %v2804, %v2805
      %v2807 = vrot.slane %v2707, 5
      %v2808 = vrot.slane %v2807, 4
      %v2809 = vrot.slane %v2708, 5
      %v2810 = vsel %vm1855, %v2808, %v2809
      %v2811 = vrot.slane %v2809, 4
      %v2812 = vrot.slane %v2709, 5
      %v2813 = vsel %vm1855, %v2811, %v2812
      %v2814 = vrot.slane %v2710, 5
      %v2815 = vrot.slane %v2814, 4
      %v2816 = vrot.slane %v2711, 5
      %v2817 = vsel %vm1855, %v2815, %v2816
      %v2818 = vrot.slane %v2816, 4
      %v2819 = vrot.slane %v2712, 5
      %v2820 = vsel %vm1855, %v2818, %v2819
      %v2821 = vrot.slane %v2713, 5
      %v2822 = vrot.slane %v2821, 4
      %v2823 = vrot.slane %v2714, 5
      %v2824 = vsel %vm1855, %v2822, %v2823
      %v2825 = vrot.slane %v2823, 4
      %v2826 = vrot.slane %v2715, 5
      %v2827 = vsel %vm1855, %v2825, %v2826
      %v2828 = vrot.slane %v2716, 5
      %v2829 = vrot.slane %v2828, 4
      %v2830 = vrot.slane %v2717, 5
      %v2831 = vsel %vm1855, %v2829, %v2830
      %v2832 = vrot.slane %v2830, 4
      %v2833 = vrot.slane %v2718, 5
      %v2834 = vsel %vm1855, %v2832, %v2833
      %v2835 = vrot.slane %v2719, 5
      %v2836 = vrot.slane %v2835, 4
      %v2837 = vrot.slane %v2720, 5
      %v2838 = vsel %vm1855, %v2836, %v2837
      %v2839 = vrot.slane %v2837, 4
      %v2840 = vrot.slane %v2721, 5
      %v2841 = vsel %vm1855, %v2839, %v2840
      %v2842 = vrot.slane %v2722, 5
      %v2843 = vrot.slane %v2842, 4
      %v2844 = vrot.slane %v2723, 5
      %v2845 = vsel %vm1855, %v2843, %v2844
      %v2846 = vrot.slane %v2844, 4
      %v2847 = vrot.slane %v2724, 5
      %v2848 = vsel %vm1855, %v2846, %v2847
      %v2849 = vrot.slane %v2725, 5
      %v2850 = vrot.slane %v2849, 4
      %v2851 = vrot.slane %v2726, 5
      %v2852 = vsel %vm1855, %v2850, %v2851
      %v2853 = vrot.slane %v2851, 4
      %v2854 = vrot.slane %v2727, 5
      %v2855 = vsel %vm1855, %v2853, %v2854
      %v2856 = vrot.slane %v2728, 5
      %v2857 = vrot.slane %v2856, 4
      %v2858 = vrot.slane %v2729, 5
      %v2859 = vsel %vm1855, %v2857, %v2858
      %v2860 = vrot.slane %v2858, 4
      %v2861 = vrot.slane %v2730, 5
      %v2862 = vsel %vm1855, %v2860, %v2861
      %v2863 = vrot.slane %v2731, 5
      %v2864 = vrot.slane %v2863, 4
      %v2865 = vrot.slane %v2732, 5
      %v2866 = vsel %vm1855, %v2864, %v2865
      %v2867 = vrot.slane %v2865, 4
      %v2868 = vrot.slane %v2733, 5
      %v2869 = vsel %vm1855, %v2867, %v2868
      %v2870 = vrot.slane %v2734, 5
      %v2871 = vrot.slane %v2870, 4
      %v2872 = vrot.slane %v2735, 5
      %v2873 = vsel %vm1855, %v2871, %v2872
      %v2874 = vrot.slane %v2872, 4
      %v2875 = vrot.slane %v2736, 5
      %v2876 = vsel %vm1855, %v2874, %v2875
      %v2877 = vrot.slane %v2737, 5
      %v2878 = vrot.slane %v2877, 4
      %v2879 = vrot.slane %v2738, 5
      %v2880 = vsel %vm1855, %v2878, %v2879
      %v2881 = vrot.slane %v2879, 4
      %v2882 = vrot.slane %v2739, 5
      %v2883 = vsel %vm1855, %v2881, %v2882
      %v2884 = vrot.slane %v2740, 5
      %v2885 = vrot.slane %v2884, 4
      %v2886 = vrot.slane %v2741, 5
      %v2887 = vsel %vm1855, %v2885, %v2886
      %v2888 = vrot.slane %v2886, 4
      %v2889 = vrot.slane %v2742, 5
      %v2890 = vsel %vm1855, %v2888, %v2889
      %v2891 = vrot.slane %v2743, 5
      %v2892 = vrot.slane %v2891, 4
      %v2893 = vrot.slane %v2744, 5
      %v2894 = vsel %vm1855, %v2892, %v2893
      %v2895 = vrot.slane %v2893, 4
      %v2896 = vrot.slane %v2745, 5
      %v2897 = vsel %vm1855, %v2895, %v2896
      %v2898 = vrot.slane %v2746, 5
      %v2899 = vrot.slane %v2898, 4
      %v2900 = vrot.slane %v2747, 5
      %v2901 = vsel %vm1855, %v2899, %v2900
      %v2902 = vrot.slane %v2900, 4
      %v2903 = vrot.slane %v2748, 5
      %v2904 = vsel %vm1855, %v2902, %v2903
      %v2905 = vrot.slane %v2749, 5
      %v2906 = vrot.slane %v2905, 4
      %v2907 = vrot.slane %v2750, 5
      %v2908 = vsel %vm1855, %v2906, %v2907
      %v2909 = vrot.slane %v2907, 4
      %v2910 = vrot.slane %v2751, 5
      %v2911 = vsel %vm1855, %v2909, %v2910
      %v2912 = vunpack.c.l.b16 %v2803
      %v2913 = vunpack.c.l.b16 %v2806
      %v2914 = vunpack.c.l.b16 %v2810
      %v2915 = vunpack.c.l.b16 %v2813
      %v2916 = vunpack.c.l.b16 %v2817
      %v2917 = vunpack.c.l.b16 %v2820
      %v2918 = vunpack.c.l.b16 %v2824
      %v2919 = vunpack.c.l.b16 %v2827
      %v2920 = vunpack.c.l.b16 %v2831
      %v2921 = vunpack.c.l.b16 %v2834
      %v2922 = vunpack.c.l.b16 %v2838
      %v2923 = vunpack.c.l.b16 %v2841
      %v2924 = vunpack.c.l.b16 %v2845
      %v2925 = vunpack.c.l.b16 %v2848
      %v2926 = vunpack.c.l.b16 %v2852
      %v2927 = vunpack.c.l.b16 %v2855
      %v2928 = vunpack.c.l.b16 %v2859
      %v2929 = vunpack.c.l.b16 %v2862
      %v2930 = vunpack.c.l.b16 %v2866
      %v2931 = vunpack.c.l.b16 %v2869
      %v2932 = vunpack.c.l.b16 %v2873
      %v2933 = vunpack.c.l.b16 %v2876
      %v2934 = vunpack.c.l.b16 %v2880
      %v2935 = vunpack.c.l.b16 %v2883
      %v2936 = vunpack.c.l.b16 %v2887
      %v2937 = vunpack.c.l.b16 %v2890
      %v2938 = vunpack.c.l.b16 %v2894
      %v2939 = vunpack.c.l.b16 %v2897
      %v2940 = vunpack.c.l.b16 %v2901
      %v2941 = vunpack.c.l.b16 %v2904
      %v2942 = vunpack.c.l.b16 %v2908
      %v2943 = vunpack.c.l.b16 %v2911
      %v2944 = vpack.c.b16 %v2913, %v2912
      %v2945 = vpack.c.b16 %v2915, %v2914
      %v2946 = vpack.c.b16 %v2917, %v2916
      %v2947 = vpack.c.b16 %v2919, %v2918
      %v2948 = vpack.c.b16 %v2921, %v2920
      %v2949 = vpack.c.b16 %v2923, %v2922
      %v2950 = vpack.c.b16 %v2925, %v2924
      %v2951 = vpack.c.b16 %v2927, %v2926
      %v2952 = vpack.c.b16 %v2929, %v2928
      %v2953 = vpack.c.b16 %v2931, %v2930
      %v2954 = vpack.c.b16 %v2933, %v2932
      %v2955 = vpack.c.b16 %v2935, %v2934
      %v2956 = vpack.c.b16 %v2937, %v2936
      %v2957 = vpack.c.b16 %v2939, %v2938
      %v2958 = vpack.c.b16 %v2941, %v2940
      %v2959 = vpack.c.b16 %v2943, %v2942
      %2976 = vst [vmem:[#allocation3 + $0x28] sm:$0xff] %v2944
      %2977 = vst [vmem:[#allocation3 + $0x70] sm:$0xff] %v2945
      %2978 = vst [vmem:[#allocation3 + $0xb8] sm:$0xff] %v2946
      %2979 = vst [vmem:[#allocation3 + $0x100] sm:$0xff] %v2947
      %2980 = vst [vmem:[#allocation3 + $0x148] sm:$0xff] %v2948
      %2981 = vst [vmem:[#allocation3 + $0x190] sm:$0xff] %v2949
      %2982 = vst [vmem:[#allocation3 + $0x1d8] sm:$0xff] %v2950
      %2983 = vst [vmem:[#allocation3 + $0x220] sm:$0xff] %v2951
      %2984 = vst [vmem:[#allocation3 + $0x268] sm:$0xff] %v2952
      %2985 = vst [vmem:[#allocation3 + $0x2b0] sm:$0xff] %v2953
      %2986 = vst [vmem:[#allocation3 + $0x2f8] sm:$0xff] %v2954
      %2987 = vst [vmem:[#allocation3 + $0x340] sm:$0xff] %v2955
      %2988 = vst [vmem:[#allocation3 + $0x388] sm:$0xff] %v2956
      %2989 = vst [vmem:[#allocation3 + $0x3d0] sm:$0xff] %v2957
      %2990 = vst [vmem:[#allocation3 + $0x418] sm:$0xff] %v2958
      %2991 = vst [vmem:[#allocation3 + $0x460] sm:$0xff] %v2959
      %s2992 = scalar_lea.vmem [#allocation2], 24
      %v2993 = vld [vmem:[%s2992] sm:$0xf]
      %v2994 = vld [vmem:[%s2992 + $0x4] sm:$0xf]
      %v2995 = vld [vmem:[%s2992 + $0xc] sm:$0xf]
      %v2996 = vld [vmem:[%s2992 + $0x10] sm:$0xf]
      %v2997 = vld [vmem:[%s2992 + $0x18] sm:$0xf]
      %v2998 = vld [vmem:[%s2992 + $0x1c] sm:$0xf]
      %v2999 = vld [vmem:[%s2992 + $0x24] sm:$0xf]
      %v3000 = vld [vmem:[%s2992 + $0x28] sm:$0xf]
      %v3001 = vld [vmem:[%s2992 + $0x30] sm:$0xf]
      %v3002 = vld [vmem:[%s2992 + $0x34] sm:$0xf]
      %v3003 = vld [vmem:[%s2992 + $0x3c] sm:$0xf]
      %v3004 = vld [vmem:[%s2992 + $0x40] sm:$0xf]
      %v3005 = vld [vmem:[%s2992 + $0x48] sm:$0xf]
      %v3006 = vld [vmem:[%s2992 + $0x4c] sm:$0xf]
      %v3007 = vld [vmem:[%s2992 + $0x54] sm:$0xf]
      %v3008 = vld [vmem:[%s2992 + $0x58] sm:$0xf]
      %v3009 = vld [vmem:[%s2992 + $0x60] sm:$0xf]
      %v3010 = vld [vmem:[%s2992 + $0x64] sm:$0xf]
      %v3011 = vld [vmem:[%s2992 + $0x6c] sm:$0xf]
      %v3012 = vld [vmem:[%s2992 + $0x70] sm:$0xf]
      %v3013 = vld [vmem:[%s2992 + $0x78] sm:$0xf]
      %v3014 = vld [vmem:[%s2992 + $0x7c] sm:$0xf]
      %v3015 = vld [vmem:[%s2992 + $0x84] sm:$0xf]
      %v3016 = vld [vmem:[%s2992 + $0x88] sm:$0xf]
      %v3017 = vld [vmem:[%s2992 + $0x90] sm:$0xf]
      %v3018 = vld [vmem:[%s2992 + $0x94] sm:$0xf]
      %v3019 = vld [vmem:[%s2992 + $0x9c] sm:$0xf]
      %v3020 = vld [vmem:[%s2992 + $0xa0] sm:$0xf]
      %v3021 = vld [vmem:[%s2992 + $0xa8] sm:$0xf]
      %v3022 = vld [vmem:[%s2992 + $0xac] sm:$0xf]
      %v3023 = vld [vmem:[%s2992 + $0xb4] sm:$0xf]
      %v3024 = vld [vmem:[%s2992 + $0xb8] sm:$0xf]
      %v3057 = vunpack.c.l.b16 %v2993
      %v3058 = vunpack.c.l.b16 %v2994
      %v3059 = vunpack.c.l.b16 %v2995
      %v3060 = vunpack.c.l.b16 %v2996
      %v3061 = vunpack.c.l.b16 %v2997
      %v3062 = vunpack.c.l.b16 %v2998
      %v3063 = vunpack.c.l.b16 %v2999
      %v3064 = vunpack.c.l.b16 %v3000
      %v3065 = vunpack.c.l.b16 %v3001
      %v3066 = vunpack.c.l.b16 %v3002
      %v3067 = vunpack.c.l.b16 %v3003
      %v3068 = vunpack.c.l.b16 %v3004
      %v3069 = vunpack.c.l.b16 %v3005
      %v3070 = vunpack.c.l.b16 %v3006
      %v3071 = vunpack.c.l.b16 %v3007
      %v3072 = vunpack.c.l.b16 %v3008
      %v3073 = vunpack.c.l.b16 %v3009
      %v3074 = vunpack.c.l.b16 %v3010
      %v3075 = vunpack.c.l.b16 %v3011
      %v3076 = vunpack.c.l.b16 %v3012
      %v3077 = vunpack.c.l.b16 %v3013
      %v3078 = vunpack.c.l.b16 %v3014
      %v3079 = vunpack.c.l.b16 %v3015
      %v3080 = vunpack.c.l.b16 %v3016
      %v3081 = vunpack.c.l.b16 %v3017
      %v3082 = vunpack.c.l.b16 %v3018
      %v3083 = vunpack.c.l.b16 %v3019
      %v3084 = vunpack.c.l.b16 %v3020
      %v3085 = vunpack.c.l.b16 %v3021
      %v3086 = vunpack.c.l.b16 %v3022
      %v3087 = vunpack.c.l.b16 %v3023
      %v3088 = vunpack.c.l.b16 %v3024
      %v3089 = vpack.c.b16 %v3058, %v3057
      %v3090 = vpack.c.b16 %v3060, %v3059
      %v3091 = vpack.c.b16 %v3062, %v3061
      %v3092 = vpack.c.b16 %v3064, %v3063
      %v3093 = vpack.c.b16 %v3066, %v3065
      %v3094 = vpack.c.b16 %v3068, %v3067
      %v3095 = vpack.c.b16 %v3070, %v3069
      %v3096 = vpack.c.b16 %v3072, %v3071
      %v3097 = vpack.c.b16 %v3074, %v3073
      %v3098 = vpack.c.b16 %v3076, %v3075
      %v3099 = vpack.c.b16 %v3078, %v3077
      %v3100 = vpack.c.b16 %v3080, %v3079
      %v3101 = vpack.c.b16 %v3082, %v3081
      %v3102 = vpack.c.b16 %v3084, %v3083
      %v3103 = vpack.c.b16 %v3086, %v3085
      %v3104 = vpack.c.b16 %v3088, %v3087
      %3121 = vst [vmem:[#allocation3 + $0x30] sm:$0xff] %v3089
      %3122 = vst [vmem:[#allocation3 + $0x78] sm:$0xff] %v3090
      %3123 = vst [vmem:[#allocation3 + $0xc0] sm:$0xff] %v3091
      %3124 = vst [vmem:[#allocation3 + $0x108] sm:$0xff] %v3092
      %3125 = vst [vmem:[#allocation3 + $0x150] sm:$0xff] %v3093
      %3126 = vst [vmem:[#allocation3 + $0x198] sm:$0xff] %v3094
      %3127 = vst [vmem:[#allocation3 + $0x1e0] sm:$0xff] %v3095
      %3128 = vst [vmem:[#allocation3 + $0x228] sm:$0xff] %v3096
      %3129 = vst [vmem:[#allocation3 + $0x270] sm:$0xff] %v3097
      %3130 = vst [vmem:[#allocation3 + $0x2b8] sm:$0xff] %v3098
      %3131 = vst [vmem:[#allocation3 + $0x300] sm:$0xff] %v3099
      %3132 = vst [vmem:[#allocation3 + $0x348] sm:$0xff] %v3100
      %3133 = vst [vmem:[#allocation3 + $0x390] sm:$0xff] %v3101
      %3134 = vst [vmem:[#allocation3 + $0x3d8] sm:$0xff] %v3102
      %3135 = vst [vmem:[#allocation3 + $0x420] sm:$0xff] %v3103
      %3136 = vst [vmem:[#allocation3 + $0x468] sm:$0xff] %v3104
      %v3137 = vld [vmem:[%s2992] sm:$0xf]
      %v3138 = vld [vmem:[%s2992 + $0x4] sm:$0xf]
      %v3139 = vld [vmem:[%s2992 + $0x8] sm:$0x1]
      %v3140 = vld [vmem:[%s2992 + $0xc] sm:$0xf]
      %v3141 = vld [vmem:[%s2992 + $0x10] sm:$0xf]
      %v3142 = vld [vmem:[%s2992 + $0x14] sm:$0x1]
      %v3143 = vld [vmem:[%s2992 + $0x18] sm:$0xf]
      %v3144 = vld [vmem:[%s2992 + $0x1c] sm:$0xf]
      %v3145 = vld [vmem:[%s2992 + $0x20] sm:$0x1]
      %v3146 = vld [vmem:[%s2992 + $0x24] sm:$0xf]
      %v3147 = vld [vmem:[%s2992 + $0x28] sm:$0xf]
      %v3148 = vld [vmem:[%s2992 + $0x2c] sm:$0x1]
      %v3149 = vld [vmem:[%s2992 + $0x30] sm:$0xf]
      %v3150 = vld [vmem:[%s2992 + $0x34] sm:$0xf]
      %v3151 = vld [vmem:[%s2992 + $0x38] sm:$0x1]
      %v3152 = vld [vmem:[%s2992 + $0x3c] sm:$0xf]
      %v3153 = vld [vmem:[%s2992 + $0x40] sm:$0xf]
      %v3154 = vld [vmem:[%s2992 + $0x44] sm:$0x1]
      %v3155 = vld [vmem:[%s2992 + $0x48] sm:$0xf]
      %v3156 = vld [vmem:[%s2992 + $0x4c] sm:$0xf]
      %v3157 = vld [vmem:[%s2992 + $0x50] sm:$0x1]
      %v3158 = vld [vmem:[%s2992 + $0x54] sm:$0xf]
      %v3159 = vld [vmem:[%s2992 + $0x58] sm:$0xf]
      %v3160 = vld [vmem:[%s2992 + $0x5c] sm:$0x1]
      %v3161 = vld [vmem:[%s2992 + $0x60] sm:$0xf]
      %v3162 = vld [vmem:[%s2992 + $0x64] sm:$0xf]
      %v3163 = vld [vmem:[%s2992 + $0x68] sm:$0x1]
      %v3164 = vld [vmem:[%s2992 + $0x6c] sm:$0xf]
      %v3165 = vld [vmem:[%s2992 + $0x70] sm:$0xf]
      %v3166 = vld [vmem:[%s2992 + $0x74] sm:$0x1]
      %v3167 = vld [vmem:[%s2992 + $0x78] sm:$0xf]
      %v3168 = vld [vmem:[%s2992 + $0x7c] sm:$0xf]
      %v3169 = vld [vmem:[%s2992 + $0x80] sm:$0x1]
      %v3170 = vld [vmem:[%s2992 + $0x84] sm:$0xf]
      %v3171 = vld [vmem:[%s2992 + $0x88] sm:$0xf]
      %v3172 = vld [vmem:[%s2992 + $0x8c] sm:$0x1]
      %v3173 = vld [vmem:[%s2992 + $0x90] sm:$0xf]
      %v3174 = vld [vmem:[%s2992 + $0x94] sm:$0xf]
      %v3175 = vld [vmem:[%s2992 + $0x98] sm:$0x1]
      %v3176 = vld [vmem:[%s2992 + $0x9c] sm:$0xf]
      %v3177 = vld [vmem:[%s2992 + $0xa0] sm:$0xf]
      %v3178 = vld [vmem:[%s2992 + $0xa4] sm:$0x1]
      %v3179 = vld [vmem:[%s2992 + $0xa8] sm:$0xf]
      %v3180 = vld [vmem:[%s2992 + $0xac] sm:$0xf]
      %v3181 = vld [vmem:[%s2992 + $0xb0] sm:$0x1]
      %v3182 = vld [vmem:[%s2992 + $0xb4] sm:$0xf]
      %v3183 = vld [vmem:[%s2992 + $0xb8] sm:$0xf]
      %v3184 = vld [vmem:[%s2992 + $0xbc] sm:$0x1]
      %v3186 = vshrl.u32 %v3137, 16
      %v3188 = vrot.slane %v3186, 4
      %v3189 = vshll.u32 %v3137, 16
      %v3191 = vrot.slane %v3189, 5
      %v3192 = vor.u32 %v3188, %v3191
      %v3193 = vrot.slane %v3192, 4
      %v3195 = vshll.u32 %v3138, 16
      %v3197 = vrot.slane %v3195, 5
      %v3198 = vsel %vm1292, %v3193, %v3197
      %v3199 = vshrl.u32 %v3138, 16
      %v3201 = vrot.slane %v3199, 4
      %v3202 = vor.u32 %v3201, %v3197
      %v3203 = vrot.slane %v3202, 4
      %v3205 = vshll.u32 %v3139, 16
      %v3207 = vrot.slane %v3205, 5
      %v3208 = vsel %vm1292, %v3203, %v3207
      %v3210 = vshrl.u32 %v3140, 16
      %v3212 = vrot.slane %v3210, 4
      %v3213 = vshll.u32 %v3140, 16
      %v3215 = vrot.slane %v3213, 5
      %v3216 = vor.u32 %v3212, %v3215
      %v3217 = vrot.slane %v3216, 4
      %v3219 = vshll.u32 %v3141, 16
      %v3221 = vrot.slane %v3219, 5
      %v3222 = vsel %vm1292, %v3217, %v3221
      %v3223 = vshrl.u32 %v3141, 16
      %v3225 = vrot.slane %v3223, 4
      %v3226 = vor.u32 %v3225, %v3221
      %v3227 = vrot.slane %v3226, 4
      %v3229 = vshll.u32 %v3142, 16
      %v3231 = vrot.slane %v3229, 5
      %v3232 = vsel %vm1292, %v3227, %v3231
      %v3234 = vshrl.u32 %v3143, 16
      %v3236 = vrot.slane %v3234, 4
      %v3237 = vshll.u32 %v3143, 16
      %v3239 = vrot.slane %v3237, 5
      %v3240 = vor.u32 %v3236, %v3239
      %v3241 = vrot.slane %v3240, 4
      %v3243 = vshll.u32 %v3144, 16
      %v3245 = vrot.slane %v3243, 5
      %v3246 = vsel %vm1292, %v3241, %v3245
      %v3247 = vshrl.u32 %v3144, 16
      %v3249 = vrot.slane %v3247, 4
      %v3250 = vor.u32 %v3249, %v3245
      %v3251 = vrot.slane %v3250, 4
      %v3253 = vshll.u32 %v3145, 16
      %v3255 = vrot.slane %v3253, 5
      %v3256 = vsel %vm1292, %v3251, %v3255
      %v3258 = vshrl.u32 %v3146, 16
      %v3260 = vrot.slane %v3258, 4
      %v3261 = vshll.u32 %v3146, 16
      %v3263 = vrot.slane %v3261, 5
      %v3264 = vor.u32 %v3260, %v3263
      %v3265 = vrot.slane %v3264, 4
      %v3267 = vshll.u32 %v3147, 16
      %v3269 = vrot.slane %v3267, 5
      %v3270 = vsel %vm1292, %v3265, %v3269
      %v3271 = vshrl.u32 %v3147, 16
      %v3273 = vrot.slane %v3271, 4
      %v3274 = vor.u32 %v3273, %v3269
      %v3275 = vrot.slane %v3274, 4
      %v3277 = vshll.u32 %v3148, 16
      %v3279 = vrot.slane %v3277, 5
      %v3280 = vsel %vm1292, %v3275, %v3279
      %v3282 = vshrl.u32 %v3149, 16
      %v3284 = vrot.slane %v3282, 4
      %v3285 = vshll.u32 %v3149, 16
      %v3287 = vrot.slane %v3285, 5
      %v3288 = vor.u32 %v3284, %v3287
      %v3289 = vrot.slane %v3288, 4
      %v3291 = vshll.u32 %v3150, 16
      %v3293 = vrot.slane %v3291, 5
      %v3294 = vsel %vm1292, %v3289, %v3293
      %v3295 = vshrl.u32 %v3150, 16
      %v3297 = vrot.slane %v3295, 4
      %v3298 = vor.u32 %v3297, %v3293
      %v3299 = vrot.slane %v3298, 4
      %v3301 = vshll.u32 %v3151, 16
      %v3303 = vrot.slane %v3301, 5
      %v3304 = vsel %vm1292, %v3299, %v3303
      %v3306 = vshrl.u32 %v3152, 16
      %v3308 = vrot.slane %v3306, 4
      %v3309 = vshll.u32 %v3152, 16
      %v3311 = vrot.slane %v3309, 5
      %v3312 = vor.u32 %v3308, %v3311
      %v3313 = vrot.slane %v3312, 4
      %v3315 = vshll.u32 %v3153, 16
      %v3317 = vrot.slane %v3315, 5
      %v3318 = vsel %vm1292, %v3313, %v3317
      %v3319 = vshrl.u32 %v3153, 16
      %v3321 = vrot.slane %v3319, 4
      %v3322 = vor.u32 %v3321, %v3317
      %v3323 = vrot.slane %v3322, 4
      %v3325 = vshll.u32 %v3154, 16
      %v3327 = vrot.slane %v3325, 5
      %v3328 = vsel %vm1292, %v3323, %v3327
      %v3330 = vshrl.u32 %v3155, 16
      %v3332 = vrot.slane %v3330, 4
      %v3333 = vshll.u32 %v3155, 16
      %v3335 = vrot.slane %v3333, 5
      %v3336 = vor.u32 %v3332, %v3335
      %v3337 = vrot.slane %v3336, 4
      %v3339 = vshll.u32 %v3156, 16
      %v3341 = vrot.slane %v3339, 5
      %v3342 = vsel %vm1292, %v3337, %v3341
      %v3343 = vshrl.u32 %v3156, 16
      %v3345 = vrot.slane %v3343, 4
      %v3346 = vor.u32 %v3345, %v3341
      %v3347 = vrot.slane %v3346, 4
      %v3349 = vshll.u32 %v3157, 16
      %v3351 = vrot.slane %v3349, 5
      %v3352 = vsel %vm1292, %v3347, %v3351
      %v3354 = vshrl.u32 %v3158, 16
      %v3356 = vrot.slane %v3354, 4
      %v3357 = vshll.u32 %v3158, 16
      %v3359 = vrot.slane %v3357, 5
      %v3360 = vor.u32 %v3356, %v3359
      %v3361 = vrot.slane %v3360, 4
      %v3363 = vshll.u32 %v3159, 16
      %v3365 = vrot.slane %v3363, 5
      %v3366 = vsel %vm1292, %v3361, %v3365
      %v3367 = vshrl.u32 %v3159, 16
      %v3369 = vrot.slane %v3367, 4
      %v3370 = vor.u32 %v3369, %v3365
      %v3371 = vrot.slane %v3370, 4
      %v3373 = vshll.u32 %v3160, 16
      %v3375 = vrot.slane %v3373, 5
      %v3376 = vsel %vm1292, %v3371, %v3375
      %v3378 = vshrl.u32 %v3161, 16
      %v3380 = vrot.slane %v3378, 4
      %v3381 = vshll.u32 %v3161, 16
      %v3383 = vrot.slane %v3381, 5
      %v3384 = vor.u32 %v3380, %v3383
      %v3385 = vrot.slane %v3384, 4
      %v3387 = vshll.u32 %v3162, 16
      %v3389 = vrot.slane %v3387, 5
      %v3390 = vsel %vm1292, %v3385, %v3389
      %v3391 = vshrl.u32 %v3162, 16
      %v3393 = vrot.slane %v3391, 4
      %v3394 = vor.u32 %v3393, %v3389
      %v3395 = vrot.slane %v3394, 4
      %v3397 = vshll.u32 %v3163, 16
      %v3399 = vrot.slane %v3397, 5
      %v3400 = vsel %vm1292, %v3395, %v3399
      %v3402 = vshrl.u32 %v3164, 16
      %v3404 = vrot.slane %v3402, 4
      %v3405 = vshll.u32 %v3164, 16
      %v3407 = vrot.slane %v3405, 5
      %v3408 = vor.u32 %v3404, %v3407
      %v3409 = vrot.slane %v3408, 4
      %v3411 = vshll.u32 %v3165, 16
      %v3413 = vrot.slane %v3411, 5
      %v3414 = vsel %vm1292, %v3409, %v3413
      %v3415 = vshrl.u32 %v3165, 16
      %v3417 = vrot.slane %v3415, 4
      %v3418 = vor.u32 %v3417, %v3413
      %v3419 = vrot.slane %v3418, 4
      %v3421 = vshll.u32 %v3166, 16
      %v3423 = vrot.slane %v3421, 5
      %v3424 = vsel %vm1292, %v3419, %v3423
      %v3426 = vshrl.u32 %v3167, 16
      %v3428 = vrot.slane %v3426, 4
      %v3429 = vshll.u32 %v3167, 16
      %v3431 = vrot.slane %v3429, 5
      %v3432 = vor.u32 %v3428, %v3431
      %v3433 = vrot.slane %v3432, 4
      %v3435 = vshll.u32 %v3168, 16
      %v3437 = vrot.slane %v3435, 5
      %v3438 = vsel %vm1292, %v3433, %v3437
      %v3439 = vshrl.u32 %v3168, 16
      %v3441 = vrot.slane %v3439, 4
      %v3442 = vor.u32 %v3441, %v3437
      %v3443 = vrot.slane %v3442, 4
      %v3445 = vshll.u32 %v3169, 16
      %v3447 = vrot.slane %v3445, 5
      %v3448 = vsel %vm1292, %v3443, %v3447
      %v3450 = vshrl.u32 %v3170, 16
      %v3452 = vrot.slane %v3450, 4
      %v3453 = vshll.u32 %v3170, 16
      %v3455 = vrot.slane %v3453, 5
      %v3456 = vor.u32 %v3452, %v3455
      %v3457 = vrot.slane %v3456, 4
      %v3459 = vshll.u32 %v3171, 16
      %v3461 = vrot.slane %v3459, 5
      %v3462 = vsel %vm1292, %v3457, %v3461
      %v3463 = vshrl.u32 %v3171, 16
      %v3465 = vrot.slane %v3463, 4
      %v3466 = vor.u32 %v3465, %v3461
      %v3467 = vrot.slane %v3466, 4
      %v3469 = vshll.u32 %v3172, 16
      %v3471 = vrot.slane %v3469, 5
      %v3472 = vsel %vm1292, %v3467, %v3471
      %v3474 = vshrl.u32 %v3173, 16
      %v3476 = vrot.slane %v3474, 4
      %v3477 = vshll.u32 %v3173, 16
      %v3479 = vrot.slane %v3477, 5
      %v3480 = vor.u32 %v3476, %v3479
      %v3481 = vrot.slane %v3480, 4
      %v3483 = vshll.u32 %v3174, 16
      %v3485 = vrot.slane %v3483, 5
      %v3486 = vsel %vm1292, %v3481, %v3485
      %v3487 = vshrl.u32 %v3174, 16
      %v3489 = vrot.slane %v3487, 4
      %v3490 = vor.u32 %v3489, %v3485
      %v3491 = vrot.slane %v3490, 4
      %v3493 = vshll.u32 %v3175, 16
      %v3495 = vrot.slane %v3493, 5
      %v3496 = vsel %vm1292, %v3491, %v3495
      %v3498 = vshrl.u32 %v3176, 16
      %v3500 = vrot.slane %v3498, 4
      %v3501 = vshll.u32 %v3176, 16
      %v3503 = vrot.slane %v3501, 5
      %v3504 = vor.u32 %v3500, %v3503
      %v3505 = vrot.slane %v3504, 4
      %v3507 = vshll.u32 %v3177, 16
      %v3509 = vrot.slane %v3507, 5
      %v3510 = vsel %vm1292, %v3505, %v3509
      %v3511 = vshrl.u32 %v3177, 16
      %v3513 = vrot.slane %v3511, 4
      %v3514 = vor.u32 %v3513, %v3509
      %v3515 = vrot.slane %v3514, 4
      %v3517 = vshll.u32 %v3178, 16
      %v3519 = vrot.slane %v3517, 5
      %v3520 = vsel %vm1292, %v3515, %v3519
      %v3522 = vshrl.u32 %v3179, 16
      %v3524 = vrot.slane %v3522, 4
      %v3525 = vshll.u32 %v3179, 16
      %v3527 = vrot.slane %v3525, 5
      %v3528 = vor.u32 %v3524, %v3527
      %v3529 = vrot.slane %v3528, 4
      %v3531 = vshll.u32 %v3180, 16
      %v3533 = vrot.slane %v3531, 5
      %v3534 = vsel %vm1292, %v3529, %v3533
      %v3535 = vshrl.u32 %v3180, 16
      %v3537 = vrot.slane %v3535, 4
      %v3538 = vor.u32 %v3537, %v3533
      %v3539 = vrot.slane %v3538, 4
      %v3541 = vshll.u32 %v3181, 16
      %v3543 = vrot.slane %v3541, 5
      %v3544 = vsel %vm1292, %v3539, %v3543
      %v3546 = vshrl.u32 %v3182, 16
      %v3548 = vrot.slane %v3546, 4
      %v3549 = vshll.u32 %v3182, 16
      %v3551 = vrot.slane %v3549, 5
      %v3552 = vor.u32 %v3548, %v3551
      %v3553 = vrot.slane %v3552, 4
      %v3555 = vshll.u32 %v3183, 16
      %v3557 = vrot.slane %v3555, 5
      %v3558 = vsel %vm1292, %v3553, %v3557
      %v3559 = vshrl.u32 %v3183, 16
      %v3561 = vrot.slane %v3559, 4
      %v3562 = vor.u32 %v3561, %v3557
      %v3563 = vrot.slane %v3562, 4
      %v3565 = vshll.u32 %v3184, 16
      %v3567 = vrot.slane %v3565, 5
      %v3568 = vsel %vm1292, %v3563, %v3567
      %v3569 = vunpack.c.l.b16 %v3198
      %v3570 = vunpack.c.l.b16 %v3208
      %v3571 = vunpack.c.l.b16 %v3222
      %v3572 = vunpack.c.l.b16 %v3232
      %v3573 = vunpack.c.l.b16 %v3246
      %v3574 = vunpack.c.l.b16 %v3256
      %v3575 = vunpack.c.l.b16 %v3270
      %v3576 = vunpack.c.l.b16 %v3280
      %v3577 = vunpack.c.l.b16 %v3294
      %v3578 = vunpack.c.l.b16 %v3304
      %v3579 = vunpack.c.l.b16 %v3318
      %v3580 = vunpack.c.l.b16 %v3328
      %v3581 = vunpack.c.l.b16 %v3342
      %v3582 = vunpack.c.l.b16 %v3352
      %v3583 = vunpack.c.l.b16 %v3366
      %v3584 = vunpack.c.l.b16 %v3376
      %v3585 = vunpack.c.l.b16 %v3390
      %v3586 = vunpack.c.l.b16 %v3400
      %v3587 = vunpack.c.l.b16 %v3414
      %v3588 = vunpack.c.l.b16 %v3424
      %v3589 = vunpack.c.l.b16 %v3438
      %v3590 = vunpack.c.l.b16 %v3448
      %v3591 = vunpack.c.l.b16 %v3462
      %v3592 = vunpack.c.l.b16 %v3472
      %v3593 = vunpack.c.l.b16 %v3486
      %v3594 = vunpack.c.l.b16 %v3496
      %v3595 = vunpack.c.l.b16 %v3510
      %v3596 = vunpack.c.l.b16 %v3520
      %v3597 = vunpack.c.l.b16 %v3534
      %v3598 = vunpack.c.l.b16 %v3544
      %v3599 = vunpack.c.l.b16 %v3558
      %v3600 = vunpack.c.l.b16 %v3568
      %v3601 = vpack.c.b16 %v3570, %v3569
      %v3602 = vpack.c.b16 %v3572, %v3571
      %v3603 = vpack.c.b16 %v3574, %v3573
      %v3604 = vpack.c.b16 %v3576, %v3575
      %v3605 = vpack.c.b16 %v3578, %v3577
      %v3606 = vpack.c.b16 %v3580, %v3579
      %v3607 = vpack.c.b16 %v3582, %v3581
      %v3608 = vpack.c.b16 %v3584, %v3583
      %v3609 = vpack.c.b16 %v3586, %v3585
      %v3610 = vpack.c.b16 %v3588, %v3587
      %v3611 = vpack.c.b16 %v3590, %v3589
      %v3612 = vpack.c.b16 %v3592, %v3591
      %v3613 = vpack.c.b16 %v3594, %v3593
      %v3614 = vpack.c.b16 %v3596, %v3595
      %v3615 = vpack.c.b16 %v3598, %v3597
      %v3616 = vpack.c.b16 %v3600, %v3599
      %3633 = vst [vmem:[#allocation3 + $0x38] sm:$0xff] %v3601
      %3634 = vst [vmem:[#allocation3 + $0x80] sm:$0xff] %v3602
      %3635 = vst [vmem:[#allocation3 + $0xc8] sm:$0xff] %v3603
      %3636 = vst [vmem:[#allocation3 + $0x110] sm:$0xff] %v3604
      %3637 = vst [vmem:[#allocation3 + $0x158] sm:$0xff] %v3605
      %3638 = vst [vmem:[#allocation3 + $0x1a0] sm:$0xff] %v3606
      %3639 = vst [vmem:[#allocation3 + $0x1e8] sm:$0xff] %v3607
      %3640 = vst [vmem:[#allocation3 + $0x230] sm:$0xff] %v3608
      %3641 = vst [vmem:[#allocation3 + $0x278] sm:$0xff] %v3609
      %3642 = vst [vmem:[#allocation3 + $0x2c0] sm:$0xff] %v3610
      %3643 = vst [vmem:[#allocation3 + $0x308] sm:$0xff] %v3611
      %3644 = vst [vmem:[#allocation3 + $0x350] sm:$0xff] %v3612
      %3645 = vst [vmem:[#allocation3 + $0x398] sm:$0xff] %v3613
      %3646 = vst [vmem:[#allocation3 + $0x3e0] sm:$0xff] %v3614
      %3647 = vst [vmem:[#allocation3 + $0x428] sm:$0xff] %v3615
      %3648 = vst [vmem:[#allocation3 + $0x470] sm:$0xff] %v3616
      %v3649 = vld [vmem:[%s2992] sm:$0xe]
      %v3650 = vld [vmem:[%s2992 + $0x4] sm:$0xf]
      %v3651 = vld [vmem:[%s2992 + $0x8] sm:$0x1]
      %v3652 = vld [vmem:[%s2992 + $0xc] sm:$0xe]
      %v3653 = vld [vmem:[%s2992 + $0x10] sm:$0xf]
      %v3654 = vld [vmem:[%s2992 + $0x14] sm:$0x1]
      %v3655 = vld [vmem:[%s2992 + $0x18] sm:$0xe]
      %v3656 = vld [vmem:[%s2992 + $0x1c] sm:$0xf]
      %v3657 = vld [vmem:[%s2992 + $0x20] sm:$0x1]
      %v3658 = vld [vmem:[%s2992 + $0x24] sm:$0xe]
      %v3659 = vld [vmem:[%s2992 + $0x28] sm:$0xf]
      %v3660 = vld [vmem:[%s2992 + $0x2c] sm:$0x1]
      %v3661 = vld [vmem:[%s2992 + $0x30] sm:$0xe]
      %v3662 = vld [vmem:[%s2992 + $0x34] sm:$0xf]
      %v3663 = vld [vmem:[%s2992 + $0x38] sm:$0x1]
      %v3664 = vld [vmem:[%s2992 + $0x3c] sm:$0xe]
      %v3665 = vld [vmem:[%s2992 + $0x40] sm:$0xf]
      %v3666 = vld [vmem:[%s2992 + $0x44] sm:$0x1]
      %v3667 = vld [vmem:[%s2992 + $0x48] sm:$0xe]
      %v3668 = vld [vmem:[%s2992 + $0x4c] sm:$0xf]
      %v3669 = vld [vmem:[%s2992 + $0x50] sm:$0x1]
      %v3670 = vld [vmem:[%s2992 + $0x54] sm:$0xe]
      %v3671 = vld [vmem:[%s2992 + $0x58] sm:$0xf]
      %v3672 = vld [vmem:[%s2992 + $0x5c] sm:$0x1]
      %v3673 = vld [vmem:[%s2992 + $0x60] sm:$0xe]
      %v3674 = vld [vmem:[%s2992 + $0x64] sm:$0xf]
      %v3675 = vld [vmem:[%s2992 + $0x68] sm:$0x1]
      %v3676 = vld [vmem:[%s2992 + $0x6c] sm:$0xe]
      %v3677 = vld [vmem:[%s2992 + $0x70] sm:$0xf]
      %v3678 = vld [vmem:[%s2992 + $0x74] sm:$0x1]
      %v3679 = vld [vmem:[%s2992 + $0x78] sm:$0xe]
      %v3680 = vld [vmem:[%s2992 + $0x7c] sm:$0xf]
      %v3681 = vld [vmem:[%s2992 + $0x80] sm:$0x1]
      %v3682 = vld [vmem:[%s2992 + $0x84] sm:$0xe]
      %v3683 = vld [vmem:[%s2992 + $0x88] sm:$0xf]
      %v3684 = vld [vmem:[%s2992 + $0x8c] sm:$0x1]
      %v3685 = vld [vmem:[%s2992 + $0x90] sm:$0xe]
      %v3686 = vld [vmem:[%s2992 + $0x94] sm:$0xf]
      %v3687 = vld [vmem:[%s2992 + $0x98] sm:$0x1]
      %v3688 = vld [vmem:[%s2992 + $0x9c] sm:$0xe]
      %v3689 = vld [vmem:[%s2992 + $0xa0] sm:$0xf]
      %v3690 = vld [vmem:[%s2992 + $0xa4] sm:$0x1]
      %v3691 = vld [vmem:[%s2992 + $0xa8] sm:$0xe]
      %v3692 = vld [vmem:[%s2992 + $0xac] sm:$0xf]
      %v3693 = vld [vmem:[%s2992 + $0xb0] sm:$0x1]
      %v3694 = vld [vmem:[%s2992 + $0xb4] sm:$0xe]
      %v3695 = vld [vmem:[%s2992 + $0xb8] sm:$0xf]
      %v3696 = vld [vmem:[%s2992 + $0xbc] sm:$0x1]
      %v3745 = vrot.slane %v3649, 5
      %v3746 = vrot.slane %v3745, 4
      %v3747 = vrot.slane %v3650, 5
      %v3748 = vsel %vm1855, %v3746, %v3747
      %v3749 = vrot.slane %v3747, 4
      %v3750 = vrot.slane %v3651, 5
      %v3751 = vsel %vm1855, %v3749, %v3750
      %v3752 = vrot.slane %v3652, 5
      %v3753 = vrot.slane %v3752, 4
      %v3754 = vrot.slane %v3653, 5
      %v3755 = vsel %vm1855, %v3753, %v3754
      %v3756 = vrot.slane %v3754, 4
      %v3757 = vrot.slane %v3654, 5
      %v3758 = vsel %vm1855, %v3756, %v3757
      %v3759 = vrot.slane %v3655, 5
      %v3760 = vrot.slane %v3759, 4
      %v3761 = vrot.slane %v3656, 5
      %v3762 = vsel %vm1855, %v3760, %v3761
      %v3763 = vrot.slane %v3761, 4
      %v3764 = vrot.slane %v3657, 5
      %v3765 = vsel %vm1855, %v3763, %v3764
      %v3766 = vrot.slane %v3658, 5
      %v3767 = vrot.slane %v3766, 4
      %v3768 = vrot.slane %v3659, 5
      %v3769 = vsel %vm1855, %v3767, %v3768
      %v3770 = vrot.slane %v3768, 4
      %v3771 = vrot.slane %v3660, 5
      %v3772 = vsel %vm1855, %v3770, %v3771
      %v3773 = vrot.slane %v3661, 5
      %v3774 = vrot.slane %v3773, 4
      %v3775 = vrot.slane %v3662, 5
      %v3776 = vsel %vm1855, %v3774, %v3775
      %v3777 = vrot.slane %v3775, 4
      %v3778 = vrot.slane %v3663, 5
      %v3779 = vsel %vm1855, %v3777, %v3778
      %v3780 = vrot.slane %v3664, 5
      %v3781 = vrot.slane %v3780, 4
      %v3782 = vrot.slane %v3665, 5
      %v3783 = vsel %vm1855, %v3781, %v3782
      %v3784 = vrot.slane %v3782, 4
      %v3785 = vrot.slane %v3666, 5
      %v3786 = vsel %vm1855, %v3784, %v3785
      %v3787 = vrot.slane %v3667, 5
      %v3788 = vrot.slane %v3787, 4
      %v3789 = vrot.slane %v3668, 5
      %v3790 = vsel %vm1855, %v3788, %v3789
      %v3791 = vrot.slane %v3789, 4
      %v3792 = vrot.slane %v3669, 5
      %v3793 = vsel %vm1855, %v3791, %v3792
      %v3794 = vrot.slane %v3670, 5
      %v3795 = vrot.slane %v3794, 4
      %v3796 = vrot.slane %v3671, 5
      %v3797 = vsel %vm1855, %v3795, %v3796
      %v3798 = vrot.slane %v3796, 4
      %v3799 = vrot.slane %v3672, 5
      %v3800 = vsel %vm1855, %v3798, %v3799
      %v3801 = vrot.slane %v3673, 5
      %v3802 = vrot.slane %v3801, 4
      %v3803 = vrot.slane %v3674, 5
      %v3804 = vsel %vm1855, %v3802, %v3803
      %v3805 = vrot.slane %v3803, 4
      %v3806 = vrot.slane %v3675, 5
      %v3807 = vsel %vm1855, %v3805, %v3806
      %v3808 = vrot.slane %v3676, 5
      %v3809 = vrot.slane %v3808, 4
      %v3810 = vrot.slane %v3677, 5
      %v3811 = vsel %vm1855, %v3809, %v3810
      %v3812 = vrot.slane %v3810, 4
      %v3813 = vrot.slane %v3678, 5
      %v3814 = vsel %vm1855, %v3812, %v3813
      %v3815 = vrot.slane %v3679, 5
      %v3816 = vrot.slane %v3815, 4
      %v3817 = vrot.slane %v3680, 5
      %v3818 = vsel %vm1855, %v3816, %v3817
      %v3819 = vrot.slane %v3817, 4
      %v3820 = vrot.slane %v3681, 5
      %v3821 = vsel %vm1855, %v3819, %v3820
      %v3822 = vrot.slane %v3682, 5
      %v3823 = vrot.slane %v3822, 4
      %v3824 = vrot.slane %v3683, 5
      %v3825 = vsel %vm1855, %v3823, %v3824
      %v3826 = vrot.slane %v3824, 4
      %v3827 = vrot.slane %v3684, 5
      %v3828 = vsel %vm1855, %v3826, %v3827
      %v3829 = vrot.slane %v3685, 5
      %v3830 = vrot.slane %v3829, 4
      %v3831 = vrot.slane %v3686, 5
      %v3832 = vsel %vm1855, %v3830, %v3831
      %v3833 = vrot.slane %v3831, 4
      %v3834 = vrot.slane %v3687, 5
      %v3835 = vsel %vm1855, %v3833, %v3834
      %v3836 = vrot.slane %v3688, 5
      %v3837 = vrot.slane %v3836, 4
      %v3838 = vrot.slane %v3689, 5
      %v3839 = vsel %vm1855, %v3837, %v3838
      %v3840 = vrot.slane %v3838, 4
      %v3841 = vrot.slane %v3690, 5
      %v3842 = vsel %vm1855, %v3840, %v3841
      %v3843 = vrot.slane %v3691, 5
      %v3844 = vrot.slane %v3843, 4
      %v3845 = vrot.slane %v3692, 5
      %v3846 = vsel %vm1855, %v3844, %v3845
      %v3847 = vrot.slane %v3845, 4
      %v3848 = vrot.slane %v3693, 5
      %v3849 = vsel %vm1855, %v3847, %v3848
      %v3850 = vrot.slane %v3694, 5
      %v3851 = vrot.slane %v3850, 4
      %v3852 = vrot.slane %v3695, 5
      %v3853 = vsel %vm1855, %v3851, %v3852
      %v3854 = vrot.slane %v3852, 4
      %v3855 = vrot.slane %v3696, 5
      %v3856 = vsel %vm1855, %v3854, %v3855
      %v3857 = vunpack.c.l.b16 %v3748
      %v3858 = vunpack.c.l.b16 %v3751
      %v3859 = vunpack.c.l.b16 %v3755
      %v3860 = vunpack.c.l.b16 %v3758
      %v3861 = vunpack.c.l.b16 %v3762
      %v3862 = vunpack.c.l.b16 %v3765
      %v3863 = vunpack.c.l.b16 %v3769
      %v3864 = vunpack.c.l.b16 %v3772
      %v3865 = vunpack.c.l.b16 %v3776
      %v3866 = vunpack.c.l.b16 %v3779
      %v3867 = vunpack.c.l.b16 %v3783
      %v3868 = vunpack.c.l.b16 %v3786
      %v3869 = vunpack.c.l.b16 %v3790
      %v3870 = vunpack.c.l.b16 %v3793
      %v3871 = vunpack.c.l.b16 %v3797
      %v3872 = vunpack.c.l.b16 %v3800
      %v3873 = vunpack.c.l.b16 %v3804
      %v3874 = vunpack.c.l.b16 %v3807
      %v3875 = vunpack.c.l.b16 %v3811
      %v3876 = vunpack.c.l.b16 %v3814
      %v3877 = vunpack.c.l.b16 %v3818
      %v3878 = vunpack.c.l.b16 %v3821
      %v3879 = vunpack.c.l.b16 %v3825
      %v3880 = vunpack.c.l.b16 %v3828
      %v3881 = vunpack.c.l.b16 %v3832
      %v3882 = vunpack.c.l.b16 %v3835
      %v3883 = vunpack.c.l.b16 %v3839
      %v3884 = vunpack.c.l.b16 %v3842
      %v3885 = vunpack.c.l.b16 %v3846
      %v3886 = vunpack.c.l.b16 %v3849
      %v3887 = vunpack.c.l.b16 %v3853
      %v3888 = vunpack.c.l.b16 %v3856
      %v3889 = vpack.c.b16 %v3858, %v3857
      %v3890 = vpack.c.b16 %v3860, %v3859
      %v3891 = vpack.c.b16 %v3862, %v3861
      %v3892 = vpack.c.b16 %v3864, %v3863
      %v3893 = vpack.c.b16 %v3866, %v3865
      %v3894 = vpack.c.b16 %v3868, %v3867
      %v3895 = vpack.c.b16 %v3870, %v3869
      %v3896 = vpack.c.b16 %v3872, %v3871
      %v3897 = vpack.c.b16 %v3874, %v3873
      %v3898 = vpack.c.b16 %v3876, %v3875
      %v3899 = vpack.c.b16 %v3878, %v3877
      %v3900 = vpack.c.b16 %v3880, %v3879
      %v3901 = vpack.c.b16 %v3882, %v3881
      %v3902 = vpack.c.b16 %v3884, %v3883
      %v3903 = vpack.c.b16 %v3886, %v3885
      %v3904 = vpack.c.b16 %v3888, %v3887
      %3921 = vst [vmem:[#allocation3 + $0x40] sm:$0xff] %v3889
      %3922 = vst [vmem:[#allocation3 + $0x88] sm:$0xff] %v3890
      %3923 = vst [vmem:[#allocation3 + $0xd0] sm:$0xff] %v3891
      %3924 = vst [vmem:[#allocation3 + $0x118] sm:$0xff] %v3892
      %3925 = vst [vmem:[#allocation3 + $0x160] sm:$0xff] %v3893
      %3926 = vst [vmem:[#allocation3 + $0x1a8] sm:$0xff] %v3894
      %3927 = vst [vmem:[#allocation3 + $0x1f0] sm:$0xff] %v3895
      %3928 = vst [vmem:[#allocation3 + $0x238] sm:$0xff] %v3896
      %3929 = vst [vmem:[#allocation3 + $0x280] sm:$0xff] %v3897
      %3930 = vst [vmem:[#allocation3 + $0x2c8] sm:$0xff] %v3898
      %3931 = vst [vmem:[#allocation3 + $0x310] sm:$0xff] %v3899
      %3932 = vst [vmem:[#allocation3 + $0x358] sm:$0xff] %v3900
      %3933 = vst [vmem:[#allocation3 + $0x3a0] sm:$0xff] %v3901
      %3934 = vst [vmem:[#allocation3 + $0x3e8] sm:$0xff] %v3902
      %3935 = vst [vmem:[#allocation3 + $0x430] sm:$0xff] %v3903
      %3936 = vst [vmem:[#allocation3 + $0x478] sm:$0xff] %v3904
      %v3937 = vld [vmem:[#allocation3] sm:$0xff]
      %v3938 = vld [vmem:[#allocation3 + $0x8] sm:$0xff]
      %v3939 = vld [vmem:[#allocation3 + $0x10] sm:$0xff]
      %v3940 = vld [vmem:[#allocation3 + $0x18] sm:$0xff]
      %v3941 = vld [vmem:[#allocation3 + $0x20] sm:$0xff]
      %v3942 = vld [vmem:[#allocation3 + $0x28] sm:$0xff]
      %v3943 = vld [vmem:[#allocation3 + $0x30] sm:$0xff]
      %v3944 = vld [vmem:[#allocation3 + $0x38] sm:$0xff]
      %v3945 = vld [vmem:[#allocation3 + $0x40] sm:$0xff]
      %v3946 = vld [vmem:[#allocation3 + $0x48] sm:$0xff]
      %v3947 = vld [vmem:[#allocation3 + $0x50] sm:$0xff]
      %v3948 = vld [vmem:[#allocation3 + $0x58] sm:$0xff]
      %v3949 = vld [vmem:[#allocation3 + $0x60] sm:$0xff]
      %v3950 = vld [vmem:[#allocation3 + $0x68] sm:$0xff]
      %v3951 = vld [vmem:[#allocation3 + $0x70] sm:$0xff]
      %v3952 = vld [vmem:[#allocation3 + $0x78] sm:$0xff]
      %v3953 = vld [vmem:[#allocation3 + $0x80] sm:$0xff]
      %v3954 = vld [vmem:[#allocation3 + $0x88] sm:$0xff]
      %v3955 = vld [vmem:[#allocation3 + $0x90] sm:$0xff]
      %v3956 = vld [vmem:[#allocation3 + $0x98] sm:$0xff]
      %v3957 = vld [vmem:[#allocation3 + $0xa0] sm:$0xff]
      %v3958 = vld [vmem:[#allocation3 + $0xa8] sm:$0xff]
      %v3959 = vld [vmem:[#allocation3 + $0xb0] sm:$0xff]
      %v3960 = vld [vmem:[#allocation3 + $0xb8] sm:$0xff]
      %v3961 = vld [vmem:[#allocation3 + $0xc0] sm:$0xff]
      %v3962 = vld [vmem:[#allocation3 + $0xc8] sm:$0xff]
      %v3963 = vld [vmem:[#allocation3 + $0xd0] sm:$0xff]
      %v3964 = vld [vmem:[#allocation3 + $0xd8] sm:$0xff]
      %v3965 = vld [vmem:[#allocation3 + $0xe0] sm:$0xff]
      %v3966 = vld [vmem:[#allocation3 + $0xe8] sm:$0xff]
      %v3967 = vld [vmem:[#allocation3 + $0xf0] sm:$0xff]
      %v3968 = vld [vmem:[#allocation3 + $0xf8] sm:$0xff]
      %v3969 = vld [vmem:[#allocation3 + $0x100] sm:$0xff]
      %v3970 = vld [vmem:[#allocation3 + $0x108] sm:$0xff]
      %v3971 = vld [vmem:[#allocation3 + $0x110] sm:$0xff]
      %v3972 = vld [vmem:[#allocation3 + $0x118] sm:$0xff]
      %v3973 = vld [vmem:[#allocation3 + $0x120] sm:$0xff]
      %v3974 = vld [vmem:[#allocation3 + $0x128] sm:$0xff]
      %v3975 = vld [vmem:[#allocation3 + $0x130] sm:$0xff]
      %v3976 = vld [vmem:[#allocation3 + $0x138] sm:$0xff]
      %v3977 = vld [vmem:[#allocation3 + $0x140] sm:$0xff]
      %v3978 = vld [vmem:[#allocation3 + $0x148] sm:$0xff]
      %v3979 = vld [vmem:[#allocation3 + $0x150] sm:$0xff]
      %v3980 = vld [vmem:[#allocation3 + $0x158] sm:$0xff]
      %v3981 = vld [vmem:[#allocation3 + $0x160] sm:$0xff]
      %v3982 = vld [vmem:[#allocation3 + $0x168] sm:$0xff]
      %v3983 = vld [vmem:[#allocation3 + $0x170] sm:$0xff]
      %v3984 = vld [vmem:[#allocation3 + $0x178] sm:$0xff]
      %v3985 = vld [vmem:[#allocation3 + $0x180] sm:$0xff]
      %v3986 = vld [vmem:[#allocation3 + $0x188] sm:$0xff]
      %v3987 = vld [vmem:[#allocation3 + $0x190] sm:$0xff]
      %v3988 = vld [vmem:[#allocation3 + $0x198] sm:$0xff]
      %v3989 = vld [vmem:[#allocation3 + $0x1a0] sm:$0xff]
      %v3990 = vld [vmem:[#allocation3 + $0x1a8] sm:$0xff]
      %v3991 = vld [vmem:[#allocation3 + $0x1b0] sm:$0xff]
      %v3992 = vld [vmem:[#allocation3 + $0x1b8] sm:$0xff]
      %v3993 = vld [vmem:[#allocation3 + $0x1c0] sm:$0xff]
      %v3994 = vld [vmem:[#allocation3 + $0x1c8] sm:$0xff]
      %v3995 = vld [vmem:[#allocation3 + $0x1d0] sm:$0xff]
      %v3996 = vld [vmem:[#allocation3 + $0x1d8] sm:$0xff]
      %v3997 = vld [vmem:[#allocation3 + $0x1e0] sm:$0xff]
      %v3998 = vld [vmem:[#allocation3 + $0x1e8] sm:$0xff]
      %v3999 = vld [vmem:[#allocation3 + $0x1f0] sm:$0xff]
      %v4000 = vld [vmem:[#allocation3 + $0x1f8] sm:$0xff]
      %v4001 = vld [vmem:[#allocation3 + $0x200] sm:$0xff]
      %v4002 = vld [vmem:[#allocation3 + $0x208] sm:$0xff]
      %v4003 = vld [vmem:[#allocation3 + $0x210] sm:$0xff]
      %v4004 = vld [vmem:[#allocation3 + $0x218] sm:$0xff]
      %v4005 = vld [vmem:[#allocation3 + $0x220] sm:$0xff]
      %v4006 = vld [vmem:[#allocation3 + $0x228] sm:$0xff]
      %v4007 = vld [vmem:[#allocation3 + $0x230] sm:$0xff]
      %v4008 = vld [vmem:[#allocation3 + $0x238] sm:$0xff]
      %v4009 = vld [vmem:[#allocation3 + $0x240] sm:$0xff]
      %v4010 = vld [vmem:[#allocation3 + $0x248] sm:$0xff]
      %v4011 = vld [vmem:[#allocation3 + $0x250] sm:$0xff]
      %v4012 = vld [vmem:[#allocation3 + $0x258] sm:$0xff]
      %v4013 = vld [vmem:[#allocation3 + $0x260] sm:$0xff]
      %v4014 = vld [vmem:[#allocation3 + $0x268] sm:$0xff]
      %v4015 = vld [vmem:[#allocation3 + $0x270] sm:$0xff]
      %v4016 = vld [vmem:[#allocation3 + $0x278] sm:$0xff]
      %v4017 = vld [vmem:[#allocation3 + $0x280] sm:$0xff]
      %v4018 = vld [vmem:[#allocation3 + $0x288] sm:$0xff]
      %v4019 = vld [vmem:[#allocation3 + $0x290] sm:$0xff]
      %v4020 = vld [vmem:[#allocation3 + $0x298] sm:$0xff]
      %v4021 = vld [vmem:[#allocation3 + $0x2a0] sm:$0xff]
      %v4022 = vld [vmem:[#allocation3 + $0x2a8] sm:$0xff]
      %v4023 = vld [vmem:[#allocation3 + $0x2b0] sm:$0xff]
      %v4024 = vld [vmem:[#allocation3 + $0x2b8] sm:$0xff]
      %v4025 = vld [vmem:[#allocation3 + $0x2c0] sm:$0xff]
      %v4026 = vld [vmem:[#allocation3 + $0x2c8] sm:$0xff]
      %v4027 = vld [vmem:[#allocation3 + $0x2d0] sm:$0xff]
      %v4028 = vld [vmem:[#allocation3 + $0x2d8] sm:$0xff]
      %v4029 = vld [vmem:[#allocation3 + $0x2e0] sm:$0xff]
      %v4030 = vld [vmem:[#allocation3 + $0x2e8] sm:$0xff]
      %v4031 = vld [vmem:[#allocation3 + $0x2f0] sm:$0xff]
      %v4032 = vld [vmem:[#allocation3 + $0x2f8] sm:$0xff]
      %v4033 = vld [vmem:[#allocation3 + $0x300] sm:$0xff]
      %v4034 = vld [vmem:[#allocation3 + $0x308] sm:$0xff]
      %v4035 = vld [vmem:[#allocation3 + $0x310] sm:$0xff]
      %v4036 = vld [vmem:[#allocation3 + $0x318] sm:$0xff]
      %v4037 = vld [vmem:[#allocation3 + $0x320] sm:$0xff]
      %v4038 = vld [vmem:[#allocation3 + $0x328] sm:$0xff]
      %v4039 = vld [vmem:[#allocation3 + $0x330] sm:$0xff]
      %v4040 = vld [vmem:[#allocation3 + $0x338] sm:$0xff]
      %v4041 = vld [vmem:[#allocation3 + $0x340] sm:$0xff]
      %v4042 = vld [vmem:[#allocation3 + $0x348] sm:$0xff]
      %v4043 = vld [vmem:[#allocation3 + $0x350] sm:$0xff]
      %v4044 = vld [vmem:[#allocation3 + $0x358] sm:$0xff]
      %v4045 = vld [vmem:[#allocation3 + $0x360] sm:$0xff]
      %v4046 = vld [vmem:[#allocation3 + $0x368] sm:$0xff]
      %v4047 = vld [vmem:[#allocation3 + $0x370] sm:$0xff]
      %v4048 = vld [vmem:[#allocation3 + $0x378] sm:$0xff]
      %v4049 = vld [vmem:[#allocation3 + $0x380] sm:$0xff]
      %v4050 = vld [vmem:[#allocation3 + $0x388] sm:$0xff]
      %v4051 = vld [vmem:[#allocation3 + $0x390] sm:$0xff]
      %v4052 = vld [vmem:[#allocation3 + $0x398] sm:$0xff]
      %v4053 = vld [vmem:[#allocation3 + $0x3a0] sm:$0xff]
      %v4054 = vld [vmem:[#allocation3 + $0x3a8] sm:$0xff]
      %v4055 = vld [vmem:[#allocation3 + $0x3b0] sm:$0xff]
      %v4056 = vld [vmem:[#allocation3 + $0x3b8] sm:$0xff]
      %v4057 = vld [vmem:[#allocation3 + $0x3c0] sm:$0xff]
      %v4058 = vld [vmem:[#allocation3 + $0x3c8] sm:$0xff]
      %v4059 = vld [vmem:[#allocation3 + $0x3d0] sm:$0xff]
      %v4060 = vld [vmem:[#allocation3 + $0x3d8] sm:$0xff]
      %v4061 = vld [vmem:[#allocation3 + $0x3e0] sm:$0xff]
      %v4062 = vld [vmem:[#allocation3 + $0x3e8] sm:$0xff]
      %v4063 = vld [vmem:[#allocation3 + $0x3f0] sm:$0xff]
      %v4064 = vld [vmem:[#allocation3 + $0x3f8] sm:$0xff]
      %v4065 = vld [vmem:[#allocation3 + $0x400] sm:$0xff]
      %v4066 = vld [vmem:[#allocation3 + $0x408] sm:$0xff]
      %v4067 = vld [vmem:[#allocation3 + $0x410] sm:$0xff]
      %v4068 = vld [vmem:[#allocation3 + $0x418] sm:$0xff]
      %v4069 = vld [vmem:[#allocation3 + $0x420] sm:$0xff]
      %v4070 = vld [vmem:[#allocation3 + $0x428] sm:$0xff]
      %v4071 = vld [vmem:[#allocation3 + $0x430] sm:$0xff]
      %v4072 = vld [vmem:[#allocation3 + $0x438] sm:$0xff]
      %v4073 = vld [vmem:[#allocation3 + $0x440] sm:$0xff]
      %v4074 = vld [vmem:[#allocation3 + $0x448] sm:$0xff]
      %v4075 = vld [vmem:[#allocation3 + $0x450] sm:$0xff]
      %v4076 = vld [vmem:[#allocation3 + $0x458] sm:$0xff]
      %v4077 = vld [vmem:[#allocation3 + $0x460] sm:$0xff]
      %v4078 = vld [vmem:[#allocation3 + $0x468] sm:$0xff]
      %v4079 = vld [vmem:[#allocation3 + $0x470] sm:$0xff]
      %v4080 = vld [vmem:[#allocation3 + $0x478] sm:$0xff]
      %v4081 = vld [vmem:[%s2] sm:$0xf]
      %v4082 = vld [vmem:[%s2 + $0x4] sm:$0xf]
      %v4083 = vld [vmem:[%s2 + $0x8] sm:$0xf]
      %v4084 = vld [vmem:[%s2 + $0xc] sm:$0xf]
      %v4085 = vld [vmem:[%s2 + $0x10] sm:$0xf]
      %v4086 = vld [vmem:[%s2 + $0x14] sm:$0xf]
      %v4087 = vld [vmem:[%s2 + $0x18] sm:$0xf]
      %v4088 = vld [vmem:[%s2 + $0x1c] sm:$0xf]
      %v4089 = vld [vmem:[%s2 + $0x20] sm:$0xf]
      %v4090 = vld [vmem:[%s2 + $0x24] sm:$0xf]
      %v4091 = vld [vmem:[%s2 + $0x28] sm:$0xf]
      %v4092 = vld [vmem:[%s2 + $0x2c] sm:$0xf]
      %v4093 = vld [vmem:[%s2 + $0x30] sm:$0xf]
      %v4094 = vld [vmem:[%s2 + $0x34] sm:$0xf]
      %v4095 = vld [vmem:[%s2 + $0x38] sm:$0xf]
      %v4096 = vld [vmem:[%s2 + $0x3c] sm:$0xf]
      %v4097 = vld [vmem:[%s2 + $0x40] sm:$0xf]
      %v4098 = vld [vmem:[%s2 + $0x44] sm:$0xf]
      %v4099 = vld [vmem:[%s2 + $0x48] sm:$0xf]
      %v4100 = vld [vmem:[%s2 + $0x4c] sm:$0xf]
      %v4101 = vld [vmem:[%s2 + $0x50] sm:$0xf]
      %v4102 = vld [vmem:[%s2 + $0x54] sm:$0xf]
      %v4103 = vld [vmem:[%s2 + $0x58] sm:$0xf]
      %v4104 = vld [vmem:[%s2 + $0x5c] sm:$0xf]
      %v4105 = vld [vmem:[%s2 + $0x60] sm:$0xf]
      %v4106 = vld [vmem:[%s2 + $0x64] sm:$0xf]
      %v4107 = vld [vmem:[%s2 + $0x68] sm:$0xf]
      %v4108 = vld [vmem:[%s2 + $0x6c] sm:$0xf]
      %v4109 = vld [vmem:[%s2 + $0x70] sm:$0xf]
      %v4110 = vld [vmem:[%s2 + $0x74] sm:$0xf]
      %v4111 = vld [vmem:[%s2 + $0x78] sm:$0xf]
      %v4112 = vld [vmem:[%s2 + $0x7c] sm:$0xf]
      %v4113 = vld [vmem:[%s2 + $0x80] sm:$0xf]
      %v4114 = vld [vmem:[%s2 + $0x84] sm:$0xf]
      %v4115 = vld [vmem:[%s2 + $0x88] sm:$0xf]
      %v4116 = vld [vmem:[%s2 + $0x8c] sm:$0xf]
      %v4117 = vld [vmem:[%s2 + $0x90] sm:$0xf]
      %v4118 = vld [vmem:[%s2 + $0x94] sm:$0xf]
      %v4119 = vld [vmem:[%s2 + $0x98] sm:$0xf]
      %v4120 = vld [vmem:[%s2 + $0x9c] sm:$0xf]
      %v4121 = vld [vmem:[%s2 + $0xa0] sm:$0xf]
      %v4122 = vld [vmem:[%s2 + $0xa4] sm:$0xf]
      %v4123 = vld [vmem:[%s2 + $0xa8] sm:$0xf]
      %v4124 = vld [vmem:[%s2 + $0xac] sm:$0xf]
      %v4125 = vld [vmem:[%s2 + $0xb0] sm:$0xf]
      %v4126 = vld [vmem:[%s2 + $0xb4] sm:$0xf]
      %v4127 = vld [vmem:[%s2 + $0xb8] sm:$0xf]
      %v4128 = vld [vmem:[%s2 + $0xbc] sm:$0xf]
      %v4129 = vld [vmem:[%s2 + $0xc0] sm:$0xf]
      %v4130 = vld [vmem:[%s2 + $0xc4] sm:$0xf]
      %v4131 = vld [vmem:[%s2 + $0xc8] sm:$0xf]
      %v4132 = vld [vmem:[%s2 + $0xcc] sm:$0xf]
      %v4133 = vld [vmem:[%s2 + $0xd0] sm:$0xf]
      %v4134 = vld [vmem:[%s2 + $0xd4] sm:$0xf]
      %v4135 = vld [vmem:[%s2 + $0xd8] sm:$0xf]
      %v4136 = vld [vmem:[%s2 + $0xdc] sm:$0xf]
      %v4137 = vld [vmem:[%s2 + $0xe0] sm:$0xf]
      %v4138 = vld [vmem:[%s2 + $0xe4] sm:$0xf]
      %v4139 = vld [vmem:[%s2 + $0xe8] sm:$0xf]
      %v4140 = vld [vmem:[%s2 + $0xec] sm:$0xf]
      %v4141 = vld [vmem:[%s2 + $0xf0] sm:$0xf]
      %v4142 = vld [vmem:[%s2 + $0xf4] sm:$0xf]
      %v4143 = vld [vmem:[%s2 + $0xf8] sm:$0xf]
      %v4144 = vld [vmem:[%s2 + $0xfc] sm:$0xf]
      %v4145 = vld [vmem:[%s2 + $0x100] sm:$0xf]
      %v4146 = vld [vmem:[%s2 + $0x104] sm:$0xf]
      %v4147 = vld [vmem:[%s2 + $0x108] sm:$0xf]
      %v4148 = vld [vmem:[%s2 + $0x10c] sm:$0xf]
      %v4149 = vld [vmem:[%s2 + $0x110] sm:$0xf]
      %v4150 = vld [vmem:[%s2 + $0x114] sm:$0xf]
      %v4151 = vld [vmem:[%s2 + $0x118] sm:$0xf]
      %v4152 = vld [vmem:[%s2 + $0x11c] sm:$0xf]
      %v4153 = vld [vmem:[%s2 + $0x120] sm:$0xf]
      %v4154 = vld [vmem:[%s2 + $0x124] sm:$0xf]
      %v4155 = vld [vmem:[%s2 + $0x128] sm:$0xf]
      %v4156 = vld [vmem:[%s2 + $0x12c] sm:$0xf]
      %v4157 = vld [vmem:[%s2 + $0x130] sm:$0xf]
      %v4158 = vld [vmem:[%s2 + $0x134] sm:$0xf]
      %v4159 = vld [vmem:[%s2 + $0x138] sm:$0xf]
      %v4160 = vld [vmem:[%s2 + $0x13c] sm:$0xf]
      %v4161 = vld [vmem:[%s2 + $0x140] sm:$0xf]
      %v4162 = vld [vmem:[%s2 + $0x144] sm:$0xf]
      %v4163 = vld [vmem:[%s2 + $0x148] sm:$0xf]
      %v4164 = vld [vmem:[%s2 + $0x14c] sm:$0xf]
      %v4165 = vld [vmem:[%s2 + $0x150] sm:$0xf]
      %v4166 = vld [vmem:[%s2 + $0x154] sm:$0xf]
      %v4167 = vld [vmem:[%s2 + $0x158] sm:$0xf]
      %v4168 = vld [vmem:[%s2 + $0x15c] sm:$0xf]
      %v4169 = vld [vmem:[%s2 + $0x160] sm:$0xf]
      %v4170 = vld [vmem:[%s2 + $0x164] sm:$0xf]
      %v4171 = vld [vmem:[%s2 + $0x168] sm:$0xf]
      %v4172 = vld [vmem:[%s2 + $0x16c] sm:$0xf]
      %v4173 = vld [vmem:[%s2 + $0x170] sm:$0xf]
      %v4174 = vld [vmem:[%s2 + $0x174] sm:$0xf]
      %v4175 = vld [vmem:[%s2 + $0x178] sm:$0xf]
      %v4176 = vld [vmem:[%s2 + $0x17c] sm:$0xf]
      %v4177 = vld [vmem:[%s2 + $0x180] sm:$0xf]
      %v4178 = vld [vmem:[%s2 + $0x184] sm:$0xf]
      %v4179 = vld [vmem:[%s2 + $0x188] sm:$0xf]
      %v4180 = vld [vmem:[%s2 + $0x18c] sm:$0xf]
      %v4181 = vld [vmem:[%s2 + $0x190] sm:$0xf]
      %v4182 = vld [vmem:[%s2 + $0x194] sm:$0xf]
      %v4183 = vld [vmem:[%s2 + $0x198] sm:$0xf]
      %v4184 = vld [vmem:[%s2 + $0x19c] sm:$0xf]
      %v4185 = vld [vmem:[%s2 + $0x1a0] sm:$0xf]
      %v4186 = vld [vmem:[%s2 + $0x1a4] sm:$0xf]
      %v4187 = vld [vmem:[%s2 + $0x1a8] sm:$0xf]
      %v4188 = vld [vmem:[%s2 + $0x1ac] sm:$0xf]
      %v4189 = vld [vmem:[%s2 + $0x1b0] sm:$0xf]
      %v4190 = vld [vmem:[%s2 + $0x1b4] sm:$0xf]
      %v4191 = vld [vmem:[%s2 + $0x1b8] sm:$0xf]
      %v4192 = vld [vmem:[%s2 + $0x1bc] sm:$0xf]
      %v4193 = vld [vmem:[%s2 + $0x1c0] sm:$0xf]
      %v4194 = vld [vmem:[%s2 + $0x1c4] sm:$0xf]
      %v4195 = vld [vmem:[%s2 + $0x1c8] sm:$0xf]
      %v4196 = vld [vmem:[%s2 + $0x1cc] sm:$0xf]
      %v4197 = vld [vmem:[%s2 + $0x1d0] sm:$0xf]
      %v4198 = vld [vmem:[%s2 + $0x1d4] sm:$0xf]
      %v4199 = vld [vmem:[%s2 + $0x1d8] sm:$0xf]
      %v4200 = vld [vmem:[%s2 + $0x1dc] sm:$0xf]
      %v4201 = vld [vmem:[%s2 + $0x1e0] sm:$0xf]
      %v4202 = vld [vmem:[%s2 + $0x1e4] sm:$0xf]
      %v4203 = vld [vmem:[%s2 + $0x1e8] sm:$0xf]
      %v4204 = vld [vmem:[%s2 + $0x1ec] sm:$0xf]
      %v4205 = vld [vmem:[%s2 + $0x1f0] sm:$0xf]
      %v4206 = vld [vmem:[%s2 + $0x1f4] sm:$0xf]
      %v4207 = vld [vmem:[%s2 + $0x1f8] sm:$0xf]
      %v4208 = vld [vmem:[%s2 + $0x1fc] sm:$0xf]
      %v4209 = vld [vmem:[%s2 + $0x200] sm:$0xf]
      %v4210 = vld [vmem:[%s2 + $0x204] sm:$0xf]
      %v4211 = vld [vmem:[%s2 + $0x208] sm:$0xf]
      %v4212 = vld [vmem:[%s2 + $0x20c] sm:$0xf]
      %v4213 = vld [vmem:[%s2 + $0x210] sm:$0xf]
      %v4214 = vld [vmem:[%s2 + $0x214] sm:$0xf]
      %v4215 = vld [vmem:[%s2 + $0x218] sm:$0xf]
      %v4216 = vld [vmem:[%s2 + $0x21c] sm:$0xf]
      %v4217 = vld [vmem:[%s2 + $0x220] sm:$0xf]
      %v4218 = vld [vmem:[%s2 + $0x224] sm:$0xf]
      %v4219 = vld [vmem:[%s2 + $0x228] sm:$0xf]
      %v4220 = vld [vmem:[%s2 + $0x22c] sm:$0xf]
      %v4221 = vld [vmem:[%s2 + $0x230] sm:$0xf]
      %v4222 = vld [vmem:[%s2 + $0x234] sm:$0xf]
      %v4223 = vld [vmem:[%s2 + $0x238] sm:$0xf]
      %v4224 = vld [vmem:[%s2 + $0x23c] sm:$0xf]
      %v4369 = vunpack.c.l.b16 %v4081
      %v4370 = vunpack.c.l.b16 %v4082
      %v4371 = vunpack.c.l.b16 %v4083
      %v4372 = vunpack.c.l.b16 %v4084
      %v4373 = vunpack.c.l.b16 %v4085
      %v4374 = vunpack.c.l.b16 %v4086
      %v4375 = vunpack.c.l.b16 %v4087
      %v4376 = vunpack.c.l.b16 %v4088
      %v4377 = vunpack.c.l.b16 %v4089
      %v4378 = vunpack.c.l.b16 %v4090
      %v4379 = vunpack.c.l.b16 %v4091
      %v4380 = vunpack.c.l.b16 %v4092
      %v4381 = vunpack.c.l.b16 %v4093
      %v4382 = vunpack.c.l.b16 %v4094
      %v4383 = vunpack.c.l.b16 %v4095
      %v4384 = vunpack.c.l.b16 %v4096
      %v4385 = vunpack.c.l.b16 %v4097
      %v4386 = vunpack.c.l.b16 %v4098
      %v4387 = vunpack.c.l.b16 %v4099
      %v4388 = vunpack.c.l.b16 %v4100
      %v4389 = vunpack.c.l.b16 %v4101
      %v4390 = vunpack.c.l.b16 %v4102
      %v4391 = vunpack.c.l.b16 %v4103
      %v4392 = vunpack.c.l.b16 %v4104
      %v4393 = vunpack.c.l.b16 %v4105
      %v4394 = vunpack.c.l.b16 %v4106
      %v4395 = vunpack.c.l.b16 %v4107
      %v4396 = vunpack.c.l.b16 %v4108
      %v4397 = vunpack.c.l.b16 %v4109
      %v4398 = vunpack.c.l.b16 %v4110
      %v4399 = vunpack.c.l.b16 %v4111
      %v4400 = vunpack.c.l.b16 %v4112
      %v4401 = vunpack.c.l.b16 %v4113
      %v4402 = vunpack.c.l.b16 %v4114
      %v4403 = vunpack.c.l.b16 %v4115
      %v4404 = vunpack.c.l.b16 %v4116
      %v4405 = vunpack.c.l.b16 %v4117
      %v4406 = vunpack.c.l.b16 %v4118
      %v4407 = vunpack.c.l.b16 %v4119
      %v4408 = vunpack.c.l.b16 %v4120
      %v4409 = vunpack.c.l.b16 %v4121
      %v4410 = vunpack.c.l.b16 %v4122
      %v4411 = vunpack.c.l.b16 %v4123
      %v4412 = vunpack.c.l.b16 %v4124
      %v4413 = vunpack.c.l.b16 %v4125
      %v4414 = vunpack.c.l.b16 %v4126
      %v4415 = vunpack.c.l.b16 %v4127
      %v4416 = vunpack.c.l.b16 %v4128
      %v4417 = vunpack.c.l.b16 %v4129
      %v4418 = vunpack.c.l.b16 %v4130
      %v4419 = vunpack.c.l.b16 %v4131
      %v4420 = vunpack.c.l.b16 %v4132
      %v4421 = vunpack.c.l.b16 %v4133
      %v4422 = vunpack.c.l.b16 %v4134
      %v4423 = vunpack.c.l.b16 %v4135
      %v4424 = vunpack.c.l.b16 %v4136
      %v4425 = vunpack.c.l.b16 %v4137
      %v4426 = vunpack.c.l.b16 %v4138
      %v4427 = vunpack.c.l.b16 %v4139
      %v4428 = vunpack.c.l.b16 %v4140
      %v4429 = vunpack.c.l.b16 %v4141
      %v4430 = vunpack.c.l.b16 %v4142
      %v4431 = vunpack.c.l.b16 %v4143
      %v4432 = vunpack.c.l.b16 %v4144
      %v4433 = vunpack.c.l.b16 %v4145
      %v4434 = vunpack.c.l.b16 %v4146
      %v4435 = vunpack.c.l.b16 %v4147
      %v4436 = vunpack.c.l.b16 %v4148
      %v4437 = vunpack.c.l.b16 %v4149
      %v4438 = vunpack.c.l.b16 %v4150
      %v4439 = vunpack.c.l.b16 %v4151
      %v4440 = vunpack.c.l.b16 %v4152
      %v4441 = vunpack.c.l.b16 %v4153
      %v4442 = vunpack.c.l.b16 %v4154
      %v4443 = vunpack.c.l.b16 %v4155
      %v4444 = vunpack.c.l.b16 %v4156
      %v4445 = vunpack.c.l.b16 %v4157
      %v4446 = vunpack.c.l.b16 %v4158
      %v4447 = vunpack.c.l.b16 %v4159
      %v4448 = vunpack.c.l.b16 %v4160
      %v4449 = vunpack.c.l.b16 %v4161
      %v4450 = vunpack.c.l.b16 %v4162
      %v4451 = vunpack.c.l.b16 %v4163
      %v4452 = vunpack.c.l.b16 %v4164
      %v4453 = vunpack.c.l.b16 %v4165
      %v4454 = vunpack.c.l.b16 %v4166
      %v4455 = vunpack.c.l.b16 %v4167
      %v4456 = vunpack.c.l.b16 %v4168
      %v4457 = vunpack.c.l.b16 %v4169
      %v4458 = vunpack.c.l.b16 %v4170
      %v4459 = vunpack.c.l.b16 %v4171
      %v4460 = vunpack.c.l.b16 %v4172
      %v4461 = vunpack.c.l.b16 %v4173
      %v4462 = vunpack.c.l.b16 %v4174
      %v4463 = vunpack.c.l.b16 %v4175
      %v4464 = vunpack.c.l.b16 %v4176
      %v4465 = vunpack.c.l.b16 %v4177
      %v4466 = vunpack.c.l.b16 %v4178
      %v4467 = vunpack.c.l.b16 %v4179
      %v4468 = vunpack.c.l.b16 %v4180
      %v4469 = vunpack.c.l.b16 %v4181
      %v4470 = vunpack.c.l.b16 %v4182
      %v4471 = vunpack.c.l.b16 %v4183
      %v4472 = vunpack.c.l.b16 %v4184
      %v4473 = vunpack.c.l.b16 %v4185
      %v4474 = vunpack.c.l.b16 %v4186
      %v4475 = vunpack.c.l.b16 %v4187
      %v4476 = vunpack.c.l.b16 %v4188
      %v4477 = vunpack.c.l.b16 %v4189
      %v4478 = vunpack.c.l.b16 %v4190
      %v4479 = vunpack.c.l.b16 %v4191
      %v4480 = vunpack.c.l.b16 %v4192
      %v4481 = vunpack.c.l.b16 %v4193
      %v4482 = vunpack.c.l.b16 %v4194
      %v4483 = vunpack.c.l.b16 %v4195
      %v4484 = vunpack.c.l.b16 %v4196
      %v4485 = vunpack.c.l.b16 %v4197
      %v4486 = vunpack.c.l.b16 %v4198
      %v4487 = vunpack.c.l.b16 %v4199
      %v4488 = vunpack.c.l.b16 %v4200
      %v4489 = vunpack.c.l.b16 %v4201
      %v4490 = vunpack.c.l.b16 %v4202
      %v4491 = vunpack.c.l.b16 %v4203
      %v4492 = vunpack.c.l.b16 %v4204
      %v4493 = vunpack.c.l.b16 %v4205
      %v4494 = vunpack.c.l.b16 %v4206
      %v4495 = vunpack.c.l.b16 %v4207
      %v4496 = vunpack.c.l.b16 %v4208
      %v4497 = vunpack.c.l.b16 %v4209
      %v4498 = vunpack.c.l.b16 %v4210
      %v4499 = vunpack.c.l.b16 %v4211
      %v4500 = vunpack.c.l.b16 %v4212
      %v4501 = vunpack.c.l.b16 %v4213
      %v4502 = vunpack.c.l.b16 %v4214
      %v4503 = vunpack.c.l.b16 %v4215
      %v4504 = vunpack.c.l.b16 %v4216
      %v4505 = vunpack.c.l.b16 %v4217
      %v4506 = vunpack.c.l.b16 %v4218
      %v4507 = vunpack.c.l.b16 %v4219
      %v4508 = vunpack.c.l.b16 %v4220
      %v4509 = vunpack.c.l.b16 %v4221
      %v4510 = vunpack.c.l.b16 %v4222
      %v4511 = vunpack.c.l.b16 %v4223
      %v4512 = vunpack.c.l.b16 %v4224
      %v4513 = vpack.c.b16 %v4370, %v4369
      %v4514 = vpack.c.b16 %v4372, %v4371
      %v4515 = vpack.c.b16 %v4374, %v4373
      %v4516 = vpack.c.b16 %v4376, %v4375
      %v4517 = vpack.c.b16 %v4378, %v4377
      %v4518 = vpack.c.b16 %v4380, %v4379
      %v4519 = vpack.c.b16 %v4382, %v4381
      %v4520 = vpack.c.b16 %v4384, %v4383
      %v4521 = vpack.c.b16 %v4386, %v4385
      %v4522 = vpack.c.b16 %v4388, %v4387
      %v4523 = vpack.c.b16 %v4390, %v4389
      %v4524 = vpack.c.b16 %v4392, %v4391
      %v4525 = vpack.c.b16 %v4394, %v4393
      %v4526 = vpack.c.b16 %v4396, %v4395
      %v4527 = vpack.c.b16 %v4398, %v4397
      %v4528 = vpack.c.b16 %v4400, %v4399
      %v4529 = vpack.c.b16 %v4402, %v4401
      %v4530 = vpack.c.b16 %v4404, %v4403
      %v4531 = vpack.c.b16 %v4406, %v4405
      %v4532 = vpack.c.b16 %v4408, %v4407
      %v4533 = vpack.c.b16 %v4410, %v4409
      %v4534 = vpack.c.b16 %v4412, %v4411
      %v4535 = vpack.c.b16 %v4414, %v4413
      %v4536 = vpack.c.b16 %v4416, %v4415
      %v4537 = vpack.c.b16 %v4418, %v4417
      %v4538 = vpack.c.b16 %v4420, %v4419
      %v4539 = vpack.c.b16 %v4422, %v4421
      %v4540 = vpack.c.b16 %v4424, %v4423
      %v4541 = vpack.c.b16 %v4426, %v4425
      %v4542 = vpack.c.b16 %v4428, %v4427
      %v4543 = vpack.c.b16 %v4430, %v4429
      %v4544 = vpack.c.b16 %v4432, %v4431
      %v4545 = vpack.c.b16 %v4434, %v4433
      %v4546 = vpack.c.b16 %v4436, %v4435
      %v4547 = vpack.c.b16 %v4438, %v4437
      %v4548 = vpack.c.b16 %v4440, %v4439
      %v4549 = vpack.c.b16 %v4442, %v4441
      %v4550 = vpack.c.b16 %v4444, %v4443
      %v4551 = vpack.c.b16 %v4446, %v4445
      %v4552 = vpack.c.b16 %v4448, %v4447
      %v4553 = vpack.c.b16 %v4450, %v4449
      %v4554 = vpack.c.b16 %v4452, %v4451
      %v4555 = vpack.c.b16 %v4454, %v4453
      %v4556 = vpack.c.b16 %v4456, %v4455
      %v4557 = vpack.c.b16 %v4458, %v4457
      %v4558 = vpack.c.b16 %v4460, %v4459
      %v4559 = vpack.c.b16 %v4462, %v4461
      %v4560 = vpack.c.b16 %v4464, %v4463
      %v4561 = vpack.c.b16 %v4466, %v4465
      %v4562 = vpack.c.b16 %v4468, %v4467
      %v4563 = vpack.c.b16 %v4470, %v4469
      %v4564 = vpack.c.b16 %v4472, %v4471
      %v4565 = vpack.c.b16 %v4474, %v4473
      %v4566 = vpack.c.b16 %v4476, %v4475
      %v4567 = vpack.c.b16 %v4478, %v4477
      %v4568 = vpack.c.b16 %v4480, %v4479
      %v4569 = vpack.c.b16 %v4482, %v4481
      %v4570 = vpack.c.b16 %v4484, %v4483
      %v4571 = vpack.c.b16 %v4486, %v4485
      %v4572 = vpack.c.b16 %v4488, %v4487
      %v4573 = vpack.c.b16 %v4490, %v4489
      %v4574 = vpack.c.b16 %v4492, %v4491
      %v4575 = vpack.c.b16 %v4494, %v4493
      %v4576 = vpack.c.b16 %v4496, %v4495
      %v4577 = vpack.c.b16 %v4498, %v4497
      %v4578 = vpack.c.b16 %v4500, %v4499
      %v4579 = vpack.c.b16 %v4502, %v4501
      %v4580 = vpack.c.b16 %v4504, %v4503
      %v4581 = vpack.c.b16 %v4506, %v4505
      %v4582 = vpack.c.b16 %v4508, %v4507
      %v4583 = vpack.c.b16 %v4510, %v4509
      %v4584 = vpack.c.b16 %v4512, %v4511
      %4657 = vmatprep.subr.bf16.mxu0 0
      %4658 = vmatpush1.bf16.msra.mxu0 %v4513
      %4659 = vmatprep.subr.bf16.mxu0 0
      %4660 = vmatpush1.bf16.msra.mxu0 %v4514
      %4661 = vmatprep.subr.bf16.mxu0 0
      %4662 = vmatpush1.bf16.msra.mxu0 %v4515
      %4663 = vmatprep.subr.bf16.mxu0 0
      %4664 = vmatpush1.bf16.msra.mxu0 %v4516
      %4665 = vmatprep.subr.bf16.mxu0 0
      %4666 = vmatpush1.bf16.msra.mxu0 %v4517
      %4667 = vmatprep.subr.bf16.mxu0 0
      %4668 = vmatpush1.bf16.msra.mxu0 %v4518
      %4669 = vmatprep.subr.bf16.mxu0 0
      %4670 = vmatpush1.bf16.msra.mxu0 %v4519
      %4671 = vmatprep.subr.bf16.mxu0 0
      %4672 = vmatpush1.bf16.msra.mxu0 %v4520
      %4673 = vmatprep.subr.bf16.mxu0 0
      %4674 = vmatpush1.bf16.msra.mxu0 %v4521
      %4675 = vmatprep.subr.bf16.mxu0 0
      %4676 = vmatpush1.bf16.msra.mxu0 %v4522
      %4677 = vmatprep.subr.bf16.mxu0 0
      %4678 = vmatpush1.bf16.msra.mxu0 %v4523
      %4679 = vmatprep.subr.bf16.mxu0 0
      %4680 = vmatpush1.bf16.msra.mxu0 %v4524
      %4681 = vmatprep.subr.bf16.mxu0 0
      %4682 = vmatpush1.bf16.msra.mxu0 %v4525
      %4683 = vmatprep.subr.bf16.mxu0 0
      %4684 = vmatpush1.bf16.msra.mxu0 %v4526
      %4685 = vmatprep.subr.bf16.mxu0 0
      %4686 = vmatpush1.bf16.msra.mxu0 %v4527
      %4687 = vmatprep.subr.bf16.mxu0 0
      %4688 = vmatpush1.bf16.msra.mxu0 %v4528
      %4689 = vmatprep.mubr.bf16.mxu0 %v3938
      %4690 = vmatmul.mubr.bf16.gmra.mrb[0].mxu0 %v3937
      %v4691 = vpop.f32.mrb[0].mxu0
      %v4692 = vadd.f32 0.0, %v4691
      %v4693 = vpop.f32.mrb[0].mxu0
      %v4694 = vpop.f32.mrb[0].mxu0
      %v4695 = vadd.f32 0.0, %v4694
      %v4696 = vpop.f32.mrb[0].mxu0
      %4697 = vmatprep.mubr.bf16.mxu0 %v3947
      %4698 = vmatmul.mubr.bf16.gmra.mrb[0].mxu0 %v3946
      %v4699 = vpop.f32.mrb[0].mxu0
      %v4700 = vadd.f32 0.0, %v4699
      %v4701 = vpop.f32.mrb[0].mxu0
      %v4702 = vpop.f32.mrb[0].mxu0
      %v4703 = vadd.f32 0.0, %v4702
      %v4704 = vpop.f32.mrb[0].mxu0
      %4705 = vmatprep.mubr.bf16.mxu0 %v3956
      %4706 = vmatmul.mubr.bf16.gmra.mrb[0].mxu0 %v3955
      %v4707 = vpop.f32.mrb[0].mxu0
      %v4708 = vadd.f32 0.0, %v4707
      %v4709 = vpop.f32.mrb[0].mxu0
      %v4710 = vpop.f32.mrb[0].mxu0
      %v4711 = vadd.f32 0.0, %v4710
      %v4712 = vpop.f32.mrb[0].mxu0
      %4713 = vmatprep.mubr.bf16.mxu0 %v3965
      %4714 = vmatmul.mubr.bf16.gmra.mrb[0].mxu0 %v3964
      %v4715 = vpop.f32.mrb[0].mxu0
      %v4716 = vadd.f32 0.0, %v4715
      %v4717 = vpop.f32.mrb[0].mxu0
      %v4718 = vpop.f32.mrb[0].mxu0
      %v4719 = vadd.f32 0.0, %v4718
      %v4720 = vpop.f32.mrb[0].mxu0
      %4721 = vmatprep.mubr.bf16.mxu0 %v3974
      %4722 = vmatmul.mubr.bf16.gmra.mrb[0].mxu0 %v3973
      %v4723 = vpop.f32.mrb[0].mxu0
      %v4724 = vadd.f32 0.0, %v4723
      %v4725 = vpop.f32.mrb[0].mxu0
      %v4726 = vpop.f32.mrb[0].mxu0
      %v4727 = vadd.f32 0.0, %v4726
      %v4728 = vpop.f32.mrb[0].mxu0
      %4729 = vmatprep.mubr.bf16.mxu0 %v3983
      %4730 = vmatmul.mubr.bf16.gmra.mrb[0].mxu0 %v3982
      %v4731 = vpop.f32.mrb[0].mxu0
      %v4732 = vadd.f32 0.0, %v4731
      %v4733 = vpop.f32.mrb[0].mxu0
      %v4734 = vpop.f32.mrb[0].mxu0
      %v4735 = vadd.f32 0.0, %v4734
      %v4736 = vpop.f32.mrb[0].mxu0
      %4737 = vmatprep.mubr.bf16.mxu0 %v3992
      %4738 = vmatmul.mubr.bf16.gmra.mrb[0].mxu0 %v3991
      %v4739 = vpop.f32.mrb[0].mxu0
      %v4740 = vadd.f32 0.0, %v4739
      %v4741 = vpop.f32.mrb[0].mxu0
      %v4742 = vpop.f32.mrb[0].mxu0
      %v4743 = vadd.f32 0.0, %v4742
      %v4744 = vpop.f32.mrb[0].mxu0
      %4745 = vmatprep.mubr.bf16.mxu0 %v4001
      %4746 = vmatmul.mubr.bf16.gmra.mrb[0].mxu0 %v4000
      %v4747 = vpop.f32.mrb[0].mxu0
      %v4748 = vadd.f32 0.0, %v4747
      %v4749 = vpop.f32.mrb[0].mxu0
      %v4750 = vpop.f32.mrb[0].mxu0
      %v4751 = vadd.f32 0.0, %v4750
      %v4752 = vpop.f32.mrb[0].mxu0
      %4753 = vmatprep.mubr.bf16.mxu0 %v4010
      %4754 = vmatmul.mubr.bf16.gmra.mrb[0].mxu0 %v4009
      %v4755 = vpop.f32.mrb[0].mxu0
      %v4756 = vadd.f32 0.0, %v4755
      %v4757 = vpop.f32.mrb[0].mxu0
      %v4758 = vpop.f32.mrb[0].mxu0
      %v4759 = vadd.f32 0.0, %v4758
      %v4760 = vpop.f32.mrb[0].mxu0
      %4761 = vmatprep.mubr.bf16.mxu0 %v4019
      %4762 = vmatmul.mubr.bf16.gmra.mrb[0].mxu0 %v4018
      %v4763 = vpop.f32.mrb[0].mxu0
      %v4764 = vadd.f32 0.0, %v4763
      %v4765 = vpop.f32.mrb[0].mxu0
      %v4766 = vpop.f32.mrb[0].mxu0
      %v4767 = vadd.f32 0.0, %v4766
      %v4768 = vpop.f32.mrb[0].mxu0
      %4769 = vmatprep.mubr.bf16.mxu0 %v4028
      %4770 = vmatmul.mubr.bf16.gmra.mrb[0].mxu0 %v4027
      %v4771 = vpop.f32.mrb[0].mxu0
      %v4772 = vadd.f32 0.0, %v4771
      %v4773 = vpop.f32.mrb[0].mxu0
      %v4774 = vpop.f32.mrb[0].mxu0
      %v4775 = vadd.f32 0.0, %v4774
      %v4776 = vpop.f32.mrb[0].mxu0
      %4777 = vmatprep.mubr.bf16.mxu0 %v4037
      %4778 = vmatmul.mubr.bf16.gmra.mrb[0].mxu0 %v4036
      %v4779 = vpop.f32.mrb[0].mxu0
      %v4780 = vadd.f32 0.0, %v4779
      %v4781 = vpop.f32.mrb[0].mxu0
      %v4782 = vpop.f32.mrb[0].mxu0
      %v4783 = vadd.f32 0.0, %v4782
      %v4784 = vpop.f32.mrb[0].mxu0
      %4785 = vmatprep.mubr.bf16.mxu0 %v4046
      %4786 = vmatmul.mubr.bf16.gmra.mrb[0].mxu0 %v4045
      %v4787 = vpop.f32.mrb[0].mxu0
      %v4788 = vadd.f32 0.0, %v4787
      %v4789 = vpop.f32.mrb[0].mxu0
      %v4790 = vpop.f32.mrb[0].mxu0
      %v4791 = vadd.f32 0.0, %v4790
      %v4792 = vpop.f32.mrb[0].mxu0
      %4793 = vmatprep.mubr.bf16.mxu0 %v4055
      %4794 = vmatmul.mubr.bf16.gmra.mrb[0].mxu0 %v4054
      %v4795 = vpop.f32.mrb[0].mxu0
      %v4796 = vadd.f32 0.0, %v4795
      %v4797 = vpop.f32.mrb[0].mxu0
      %v4798 = vpop.f32.mrb[0].mxu0
      %v4799 = vadd.f32 0.0, %v4798
      %v4800 = vpop.f32.mrb[0].mxu0
      %4801 = vmatprep.mubr.bf16.mxu0 %v4064
      %4802 = vmatmul.mubr.bf16.gmra.mrb[0].mxu0 %v4063
      %v4803 = vpop.f32.mrb[0].mxu0
      %v4804 = vadd.f32 0.0, %v4803
      %v4805 = vpop.f32.mrb[0].mxu0
      %v4806 = vpop.f32.mrb[0].mxu0
      %v4807 = vadd.f32 0.0, %v4806
      %v4808 = vpop.f32.mrb[0].mxu0
      %4809 = vmatprep.mubr.bf16.mxu0 %v4073
      %4810 = vmatmul.mubr.bf16.gmra.mrb[0].mxu0 %v4072
      %v4811 = vpop.f32.mrb[0].mxu0
      %v4812 = vadd.f32 0.0, %v4811
      %v4813 = vpop.f32.mrb[0].mxu0
      %v4814 = vpop.f32.mrb[0].mxu0
      %v4815 = vadd.f32 0.0, %v4814
      %v4816 = vpop.f32.mrb[0].mxu0
      %4817 = vdwg.mxu0
      %4818 = vmatprep.subr.bf16.mxu0 0
      %4819 = vmatpush1.bf16.msra.mxu0 %v4529
      %4820 = vmatprep.subr.bf16.mxu0 0
      %4821 = vmatpush1.bf16.msra.mxu0 %v4530
      %4822 = vmatprep.subr.bf16.mxu0 0
      %4823 = vmatpush1.bf16.msra.mxu0 %v4531
      %4824 = vmatprep.subr.bf16.mxu0 0
      %4825 = vmatpush1.bf16.msra.mxu0 %v4532
      %4826 = vmatprep.subr.bf16.mxu0 0
      %4827 = vmatpush1.bf16.msra.mxu0 %v4533
      %4828 = vmatprep.subr.bf16.mxu0 0
      %4829 = vmatpush1.bf16.msra.mxu0 %v4534
      %4830 = vmatprep.subr.bf16.mxu0 0
      %4831 = vmatpush1.bf16.msra.mxu0 %v4535
      %4832 = vmatprep.subr.bf16.mxu0 0
      %4833 = vmatpush1.bf16.msra.mxu0 %v4536
      %4834 = vmatprep.subr.bf16.mxu0 0
      %4835 = vmatpush1.bf16.msra.mxu0 %v4537
      %4836 = vmatprep.subr.bf16.mxu0 0
      %4837 = vmatpush1.bf16.msra.mxu0 %v4538
      %4838 = vmatprep.subr.bf16.mxu0 0
      %4839 = vmatpush1.bf16.msra.mxu0 %v4539
      %4840 = vmatprep.subr.bf16.mxu0 0
      %4841 = vmatpush1.bf16.msra.mxu0 %v4540
      %4842 = vmatprep.subr.bf16.mxu0 0
      %4843 = vmatpush1.bf16.msra.mxu0 %v4541
      %4844 = vmatprep.subr.bf16.mxu0 0
      %4845 = vmatpush1.bf16.msra.mxu0 %v4542
      %4846 = vmatprep.subr.bf16.mxu0 0
      %4847 = vmatpush1.bf16.msra.mxu0 %v4543
      %4848 = vmatprep.subr.bf16.mxu0 0
      %4849 = vmatpush1.bf16.msra.mxu0 %v4544
      %4850 = vmatprep.mubr.bf16.mxu0 %v3940
      %4851 = vmatmul.mubr.bf16.gmra.mrb[0].mxu0 %v3939
      %v4852 = vpop.f32.mrb[0].mxu0
      %v4853 = vadd.f32 %v4692, %v4852
      %v4854 = vpop.f32.mrb[0].mxu0
      %v4855 = vpop.f32.mrb[0].mxu0
      %v4856 = vadd.f32 %v4695, %v4855
      %v4857 = vpop.f32.mrb[0].mxu0
      %4858 = vmatprep.mubr.bf16.mxu0 %v3949
      %4859 = vmatmul.mubr.bf16.gmra.mrb[0].mxu0 %v3948
      %v4860 = vpop.f32.mrb[0].mxu0
      %v4861 = vadd.f32 %v4700, %v4860
      %v4862 = vpop.f32.mrb[0].mxu0
      %v4863 = vpop.f32.mrb[0].mxu0
      %v4864 = vadd.f32 %v4703, %v4863
      %v4865 = vpop.f32.mrb[0].mxu0
      %4866 = vmatprep.mubr.bf16.mxu0 %v3958
      %4867 = vmatmul.mubr.bf16.gmra.mrb[0].mxu0 %v3957
      %v4868 = vpop.f32.mrb[0].mxu0
      %v4869 = vadd.f32 %v4708, %v4868
      %v4870 = vpop.f32.mrb[0].mxu0
      %v4871 = vpop.f32.mrb[0].mxu0
      %v4872 = vadd.f32 %v4711, %v4871
      %v4873 = vpop.f32.mrb[0].mxu0
      %4874 = vmatprep.mubr.bf16.mxu0 %v3967
      %4875 = vmatmul.mubr.bf16.gmra.mrb[0].mxu0 %v3966
      %v4876 = vpop.f32.mrb[0].mxu0
      %v4877 = vadd.f32 %v4716, %v4876
      %v4878 = vpop.f32.mrb[0].mxu0
      %v4879 = vpop.f32.mrb[0].mxu0
      %v4880 = vadd.f32 %v4719, %v4879
      %v4881 = vpop.f32.mrb[0].mxu0
      %4882 = vmatprep.mubr.bf16.mxu0 %v3976
      %4883 = vmatmul.mubr.bf16.gmra.mrb[0].mxu0 %v3975
      %v4884 = vpop.f32.mrb[0].mxu0
      %v4885 = vadd.f32 %v4724, %v4884
      %v4886 = vpop.f32.mrb[0].mxu0
      %v4887 = vpop.f32.mrb[0].mxu0
      %v4888 = vadd.f32 %v4727, %v4887
      %v4889 = vpop.f32.mrb[0].mxu0
      %4890 = vmatprep.mubr.bf16.mxu0 %v3985
      %4891 = vmatmul.mubr.bf16.gmra.mrb[0].mxu0 %v3984
      %v4892 = vpop.f32.mrb[0].mxu0
      %v4893 = vadd.f32 %v4732, %v4892
      %v4894 = vpop.f32.mrb[0].mxu0
      %v4895 = vpop.f32.mrb[0].mxu0
      %v4896 = vadd.f32 %v4735, %v4895
      %v4897 = vpop.f32.mrb[0].mxu0
      %4898 = vmatprep.mubr.bf16.mxu0 %v3994
      %4899 = vmatmul.mubr.bf16.gmra.mrb[0].mxu0 %v3993
      %v4900 = vpop.f32.mrb[0].mxu0
      %v4901 = vadd.f32 %v4740, %v4900
      %v4902 = vpop.f32.mrb[0].mxu0
      %v4903 = vpop.f32.mrb[0].mxu0
      %v4904 = vadd.f32 %v4743, %v4903
      %v4905 = vpop.f32.mrb[0].mxu0
      %4906 = vmatprep.mubr.bf16.mxu0 %v4003
      %4907 = vmatmul.mubr.bf16.gmra.mrb[0].mxu0 %v4002
      %v4908 = vpop.f32.mrb[0].mxu0
      %v4909 = vadd.f32 %v4748, %v4908
      %v4910 = vpop.f32.mrb[0].mxu0
      %v4911 = vpop.f32.mrb[0].mxu0
      %v4912 = vadd.f32 %v4751, %v4911
      %v4913 = vpop.f32.mrb[0].mxu0
      %4914 = vmatprep.mubr.bf16.mxu0 %v4012
      %4915 = vmatmul.mubr.bf16.gmra.mrb[0].mxu0 %v4011
      %v4916 = vpop.f32.mrb[0].mxu0
      %v4917 = vadd.f32 %v4756, %v4916
      %v4918 = vpop.f32.mrb[0].mxu0
      %v4919 = vpop.f32.mrb[0].mxu0
      %v4920 = vadd.f32 %v4759, %v4919
      %v4921 = vpop.f32.mrb[0].mxu0
      %4922 = vmatprep.mubr.bf16.mxu0 %v4021
      %4923 = vmatmul.mubr.bf16.gmra.mrb[0].mxu0 %v4020
      %v4924 = vpop.f32.mrb[0].mxu0
      %v4925 = vadd.f32 %v4764, %v4924
      %v4926 = vpop.f32.mrb[0].mxu0
      %v4927 = vpop.f32.mrb[0].mxu0
      %v4928 = vadd.f32 %v4767, %v4927
      %v4929 = vpop.f32.mrb[0].mxu0
      %4930 = vmatprep.mubr.bf16.mxu0 %v4030
      %4931 = vmatmul.mubr.bf16.gmra.mrb[0].mxu0 %v4029
      %v4932 = vpop.f32.mrb[0].mxu0
      %v4933 = vadd.f32 %v4772, %v4932
      %v4934 = vpop.f32.mrb[0].mxu0
      %v4935 = vpop.f32.mrb[0].mxu0
      %v4936 = vadd.f32 %v4775, %v4935
      %v4937 = vpop.f32.mrb[0].mxu0
      %4938 = vmatprep.mubr.bf16.mxu0 %v4039
      %4939 = vmatmul.mubr.bf16.gmra.mrb[0].mxu0 %v4038
      %v4940 = vpop.f32.mrb[0].mxu0
      %v4941 = vadd.f32 %v4780, %v4940
      %v4942 = vpop.f32.mrb[0].mxu0
      %v4943 = vpop.f32.mrb[0].mxu0
      %v4944 = vadd.f32 %v4783, %v4943
      %v4945 = vpop.f32.mrb[0].mxu0
      %4946 = vmatprep.mubr.bf16.mxu0 %v4048
      %4947 = vmatmul.mubr.bf16.gmra.mrb[0].mxu0 %v4047
      %v4948 = vpop.f32.mrb[0].mxu0
      %v4949 = vadd.f32 %v4788, %v4948
      %v4950 = vpop.f32.mrb[0].mxu0
      %v4951 = vpop.f32.mrb[0].mxu0
      %v4952 = vadd.f32 %v4791, %v4951
      %v4953 = vpop.f32.mrb[0].mxu0
      %4954 = vmatprep.mubr.bf16.mxu0 %v4057
      %4955 = vmatmul.mubr.bf16.gmra.mrb[0].mxu0 %v4056
      %v4956 = vpop.f32.mrb[0].mxu0
      %v4957 = vadd.f32 %v4796, %v4956
      %v4958 = vpop.f32.mrb[0].mxu0
      %v4959 = vpop.f32.mrb[0].mxu0
      %v4960 = vadd.f32 %v4799, %v4959
      %v4961 = vpop.f32.mrb[0].mxu0
      %4962 = vmatprep.mubr.bf16.mxu0 %v4066
      %4963 = vmatmul.mubr.bf16.gmra.mrb[0].mxu0 %v4065
      %v4964 = vpop.f32.mrb[0].mxu0
      %v4965 = vadd.f32 %v4804, %v4964
      %v4966 = vpop.f32.mrb[0].mxu0
      %v4967 = vpop.f32.mrb[0].mxu0
      %v4968 = vadd.f32 %v4807, %v4967
      %v4969 = vpop.f32.mrb[0].mxu0
      %4970 = vmatprep.mubr.bf16.mxu0 %v4075
      %4971 = vmatmul.mubr.bf16.gmra.mrb[0].mxu0 %v4074
      %v4972 = vpop.f32.mrb[0].mxu0
      %v4973 = vadd.f32 %v4812, %v4972
      %v4974 = vpop.f32.mrb[0].mxu0
      %v4975 = vpop.f32.mrb[0].mxu0
      %v4976 = vadd.f32 %v4815, %v4975
      %v4977 = vpop.f32.mrb[0].mxu0
      %4978 = vdwg.mxu0
      %4979 = vmatprep.subr.bf16.mxu0 0
      %4980 = vmatpush1.bf16.msra.mxu0 %v4545
      %4981 = vmatprep.subr.bf16.mxu0 0
      %4982 = vmatpush1.bf16.msra.mxu0 %v4546
      %4983 = vmatprep.subr.bf16.mxu0 0
      %4984 = vmatpush1.bf16.msra.mxu0 %v4547
      %4985 = vmatprep.subr.bf16.mxu0 0
      %4986 = vmatpush1.bf16.msra.mxu0 %v4548
      %4987 = vmatprep.subr.bf16.mxu0 0
      %4988 = vmatpush1.bf16.msra.mxu0 %v4549
      %4989 = vmatprep.subr.bf16.mxu0 0
      %4990 = vmatpush1.bf16.msra.mxu0 %v4550
      %4991 = vmatprep.subr.bf16.mxu0 0
      %4992 = vmatpush1.bf16.msra.mxu0 %v4551
      %4993 = vmatprep.subr.bf16.mxu0 0
      %4994 = vmatpush1.bf16.msra.mxu0 %v4552
      %4995 = vmatprep.subr.bf16.mxu0 0
      %4996 = vmatpush1.bf16.msra.mxu0 %v4553
      %4997 = vmatprep.subr.bf16.mxu0 0
      %4998 = vmatpush1.bf16.msra.mxu0 %v4554
      %4999 = vmatprep.subr.bf16.mxu0 0
      %5000 = vmatpush1.bf16.msra.mxu0 %v4555
      %5001 = vmatprep.subr.bf16.mxu0 0
      %5002 = vmatpush1.bf16.msra.mxu0 %v4556
      %5003 = vmatprep.subr.bf16.mxu0 0
      %5004 = vmatpush1.bf16.msra.mxu0 %v4557
      %5005 = vmatprep.subr.bf16.mxu0 0
      %5006 = vmatpush1.bf16.msra.mxu0 %v4558
      %5007 = vmatprep.subr.bf16.mxu0 0
      %5008 = vmatpush1.bf16.msra.mxu0 %v4559
      %5009 = vmatprep.subr.bf16.mxu0 0
      %5010 = vmatpush1.bf16.msra.mxu0 %v4560
      %5011 = vmatprep.mubr.bf16.mxu0 %v3942
      %5012 = vmatmul.mubr.bf16.gmra.mrb[0].mxu0 %v3941
      %v5013 = vpop.f32.mrb[0].mxu0
      %v5014 = vadd.f32 %v4853, %v5013
      %v5015 = vpop.f32.mrb[0].mxu0
      %v5016 = vpop.f32.mrb[0].mxu0
      %v5017 = vadd.f32 %v4856, %v5016
      %v5018 = vpop.f32.mrb[0].mxu0
      %5019 = vmatprep.mubr.bf16.mxu0 %v3951
      %5020 = vmatmul.mubr.bf16.gmra.mrb[0].mxu0 %v3950
      %v5021 = vpop.f32.mrb[0].mxu0
      %v5022 = vadd.f32 %v4861, %v5021
      %v5023 = vpop.f32.mrb[0].mxu0
      %v5024 = vpop.f32.mrb[0].mxu0
      %v5025 = vadd.f32 %v4864, %v5024
      %v5026 = vpop.f32.mrb[0].mxu0
      %5027 = vmatprep.mubr.bf16.mxu0 %v3960
      %5028 = vmatmul.mubr.bf16.gmra.mrb[0].mxu0 %v3959
      %v5029 = vpop.f32.mrb[0].mxu0
      %v5030 = vadd.f32 %v4869, %v5029
      %v5031 = vpop.f32.mrb[0].mxu0
      %v5032 = vpop.f32.mrb[0].mxu0
      %v5033 = vadd.f32 %v4872, %v5032
      %v5034 = vpop.f32.mrb[0].mxu0
      %5035 = vmatprep.mubr.bf16.mxu0 %v3969
      %5036 = vmatmul.mubr.bf16.gmra.mrb[0].mxu0 %v3968
      %v5037 = vpop.f32.mrb[0].mxu0
      %v5038 = vadd.f32 %v4877, %v5037
      %v5039 = vpop.f32.mrb[0].mxu0
      %v5040 = vpop.f32.mrb[0].mxu0
      %v5041 = vadd.f32 %v4880, %v5040
      %v5042 = vpop.f32.mrb[0].mxu0
      %5043 = vmatprep.mubr.bf16.mxu0 %v3978
      %5044 = vmatmul.mubr.bf16.gmra.mrb[0].mxu0 %v3977
      %v5045 = vpop.f32.mrb[0].mxu0
      %v5046 = vadd.f32 %v4885, %v5045
      %v5047 = vpop.f32.mrb[0].mxu0
      %v5048 = vpop.f32.mrb[0].mxu0
      %v5049 = vadd.f32 %v4888, %v5048
      %v5050 = vpop.f32.mrb[0].mxu0
      %5051 = vmatprep.mubr.bf16.mxu0 %v3987
      %5052 = vmatmul.mubr.bf16.gmra.mrb[0].mxu0 %v3986
      %v5053 = vpop.f32.mrb[0].mxu0
      %v5054 = vadd.f32 %v4893, %v5053
      %v5055 = vpop.f32.mrb[0].mxu0
      %v5056 = vpop.f32.mrb[0].mxu0
      %v5057 = vadd.f32 %v4896, %v5056
      %v5058 = vpop.f32.mrb[0].mxu0
      %5059 = vmatprep.mubr.bf16.mxu0 %v3996
      %5060 = vmatmul.mubr.bf16.gmra.mrb[0].mxu0 %v3995
      %v5061 = vpop.f32.mrb[0].mxu0
      %v5062 = vadd.f32 %v4901, %v5061
      %v5063 = vpop.f32.mrb[0].mxu0
      %v5064 = vpop.f32.mrb[0].mxu0
      %v5065 = vadd.f32 %v4904, %v5064
      %v5066 = vpop.f32.mrb[0].mxu0
      %5067 = vmatprep.mubr.bf16.mxu0 %v4005
      %5068 = vmatmul.mubr.bf16.gmra.mrb[0].mxu0 %v4004
      %v5069 = vpop.f32.mrb[0].mxu0
      %v5070 = vadd.f32 %v4909, %v5069
      %v5071 = vpop.f32.mrb[0].mxu0
      %v5072 = vpop.f32.mrb[0].mxu0
      %v5073 = vadd.f32 %v4912, %v5072
      %v5074 = vpop.f32.mrb[0].mxu0
      %5075 = vmatprep.mubr.bf16.mxu0 %v4014
      %5076 = vmatmul.mubr.bf16.gmra.mrb[0].mxu0 %v4013
      %v5077 = vpop.f32.mrb[0].mxu0
      %v5078 = vadd.f32 %v4917, %v5077
      %v5079 = vpop.f32.mrb[0].mxu0
      %v5080 = vpop.f32.mrb[0].mxu0
      %v5081 = vadd.f32 %v4920, %v5080
      %v5082 = vpop.f32.mrb[0].mxu0
      %5083 = vmatprep.mubr.bf16.mxu0 %v4023
      %5084 = vmatmul.mubr.bf16.gmra.mrb[0].mxu0 %v4022
      %v5085 = vpop.f32.mrb[0].mxu0
      %v5086 = vadd.f32 %v4925, %v5085
      %v5087 = vpop.f32.mrb[0].mxu0
      %v5088 = vpop.f32.mrb[0].mxu0
      %v5089 = vadd.f32 %v4928, %v5088
      %v5090 = vpop.f32.mrb[0].mxu0
      %5091 = vmatprep.mubr.bf16.mxu0 %v4032
      %5092 = vmatmul.mubr.bf16.gmra.mrb[0].mxu0 %v4031
      %v5093 = vpop.f32.mrb[0].mxu0
      %v5094 = vadd.f32 %v4933, %v5093
      %v5095 = vpop.f32.mrb[0].mxu0
      %v5096 = vpop.f32.mrb[0].mxu0
      %v5097 = vadd.f32 %v4936, %v5096
      %v5098 = vpop.f32.mrb[0].mxu0
      %5099 = vmatprep.mubr.bf16.mxu0 %v4041
      %5100 = vmatmul.mubr.bf16.gmra.mrb[0].mxu0 %v4040
      %v5101 = vpop.f32.mrb[0].mxu0
      %v5102 = vadd.f32 %v4941, %v5101
      %v5103 = vpop.f32.mrb[0].mxu0
      %v5104 = vpop.f32.mrb[0].mxu0
      %v5105 = vadd.f32 %v4944, %v5104
      %v5106 = vpop.f32.mrb[0].mxu0
      %5107 = vmatprep.mubr.bf16.mxu0 %v4050
      %5108 = vmatmul.mubr.bf16.gmra.mrb[0].mxu0 %v4049
      %v5109 = vpop.f32.mrb[0].mxu0
      %v5110 = vadd.f32 %v4949, %v5109
      %v5111 = vpop.f32.mrb[0].mxu0
      %v5112 = vpop.f32.mrb[0].mxu0
      %v5113 = vadd.f32 %v4952, %v5112
      %v5114 = vpop.f32.mrb[0].mxu0
      %5115 = vmatprep.mubr.bf16.mxu0 %v4059
      %5116 = vmatmul.mubr.bf16.gmra.mrb[0].mxu0 %v4058
      %v5117 = vpop.f32.mrb[0].mxu0
      %v5118 = vadd.f32 %v4957, %v5117
      %v5119 = vpop.f32.mrb[0].mxu0
      %v5120 = vpop.f32.mrb[0].mxu0
      %v5121 = vadd.f32 %v4960, %v5120
      %v5122 = vpop.f32.mrb[0].mxu0
      %5123 = vmatprep.mubr.bf16.mxu0 %v4068
      %5124 = vmatmul.mubr.bf16.gmra.mrb[0].mxu0 %v4067
      %v5125 = vpop.f32.mrb[0].mxu0
      %v5126 = vadd.f32 %v4965, %v5125
      %v5127 = vpop.f32.mrb[0].mxu0
      %v5128 = vpop.f32.mrb[0].mxu0
      %v5129 = vadd.f32 %v4968, %v5128
      %v5130 = vpop.f32.mrb[0].mxu0
      %5131 = vmatprep.mubr.bf16.mxu0 %v4077
      %5132 = vmatmul.mubr.bf16.gmra.mrb[0].mxu0 %v4076
      %v5133 = vpop.f32.mrb[0].mxu0
      %v5134 = vadd.f32 %v4973, %v5133
      %v5135 = vpop.f32.mrb[0].mxu0
      %v5136 = vpop.f32.mrb[0].mxu0
      %v5137 = vadd.f32 %v4976, %v5136
      %v5138 = vpop.f32.mrb[0].mxu0
      %5139 = vdwg.mxu0
      %5140 = vmatprep.subr.bf16.mxu0 0
      %5141 = vmatpush1.bf16.msra.mxu0 %v4561
      %5142 = vmatprep.subr.bf16.mxu0 0
      %5143 = vmatpush1.bf16.msra.mxu0 %v4562
      %5144 = vmatprep.subr.bf16.mxu0 0
      %5145 = vmatpush1.bf16.msra.mxu0 %v4563
      %5146 = vmatprep.subr.bf16.mxu0 0
      %5147 = vmatpush1.bf16.msra.mxu0 %v4564
      %5148 = vmatprep.subr.bf16.mxu0 0
      %5149 = vmatpush1.bf16.msra.mxu0 %v4565
      %5150 = vmatprep.subr.bf16.mxu0 0
      %5151 = vmatpush1.bf16.msra.mxu0 %v4566
      %5152 = vmatprep.subr.bf16.mxu0 0
      %5153 = vmatpush1.bf16.msra.mxu0 %v4567
      %5154 = vmatprep.subr.bf16.mxu0 0
      %5155 = vmatpush1.bf16.msra.mxu0 %v4568
      %5156 = vmatprep.subr.bf16.mxu0 0
      %5157 = vmatpush1.bf16.msra.mxu0 %v4569
      %5158 = vmatprep.subr.bf16.mxu0 0
      %5159 = vmatpush1.bf16.msra.mxu0 %v4570
      %5160 = vmatprep.subr.bf16.mxu0 0
      %5161 = vmatpush1.bf16.msra.mxu0 %v4571
      %5162 = vmatprep.subr.bf16.mxu0 0
      %5163 = vmatpush1.bf16.msra.mxu0 %v4572
      %5164 = vmatprep.subr.bf16.mxu0 0
      %5165 = vmatpush1.bf16.msra.mxu0 %v4573
      %5166 = vmatprep.subr.bf16.mxu0 0
      %5167 = vmatpush1.bf16.msra.mxu0 %v4574
      %5168 = vmatprep.subr.bf16.mxu0 0
      %5169 = vmatpush1.bf16.msra.mxu0 %v4575
      %5170 = vmatprep.subr.bf16.mxu0 0
      %5171 = vmatpush1.bf16.msra.mxu0 %v4576
      %5172 = vmatprep.mubr.bf16.mxu0 %v3944
      %5173 = vmatmul.mubr.bf16.gmra.mrb[0].mxu0 %v3943
      %v5174 = vpop.f32.mrb[0].mxu0
      %v5175 = vadd.f32 %v5014, %v5174
      %v5176 = vpop.f32.mrb[0].mxu0
      %v5177 = vpop.f32.mrb[0].mxu0
      %v5178 = vadd.f32 %v5017, %v5177
      %v5179 = vpop.f32.mrb[0].mxu0
      %5180 = vmatprep.mubr.bf16.mxu0 %v3953
      %5181 = vmatmul.mubr.bf16.gmra.mrb[0].mxu0 %v3952
      %v5182 = vpop.f32.mrb[0].mxu0
      %v5183 = vadd.f32 %v5022, %v5182
      %v5184 = vpop.f32.mrb[0].mxu0
      %v5185 = vpop.f32.mrb[0].mxu0
      %v5186 = vadd.f32 %v5025, %v5185
      %v5187 = vpop.f32.mrb[0].mxu0
      %5188 = vmatprep.mubr.bf16.mxu0 %v3962
      %5189 = vmatmul.mubr.bf16.gmra.mrb[0].mxu0 %v3961
      %v5190 = vpop.f32.mrb[0].mxu0
      %v5191 = vadd.f32 %v5030, %v5190
      %v5192 = vpop.f32.mrb[0].mxu0
      %v5193 = vpop.f32.mrb[0].mxu0
      %v5194 = vadd.f32 %v5033, %v5193
      %v5195 = vpop.f32.mrb[0].mxu0
      %5196 = vmatprep.mubr.bf16.mxu0 %v3971
      %5197 = vmatmul.mubr.bf16.gmra.mrb[0].mxu0 %v3970
      %v5198 = vpop.f32.mrb[0].mxu0
      %v5199 = vadd.f32 %v5038, %v5198
      %v5200 = vpop.f32.mrb[0].mxu0
      %v5201 = vpop.f32.mrb[0].mxu0
      %v5202 = vadd.f32 %v5041, %v5201
      %v5203 = vpop.f32.mrb[0].mxu0
      %5204 = vmatprep.mubr.bf16.mxu0 %v3980
      %5205 = vmatmul.mubr.bf16.gmra.mrb[0].mxu0 %v3979
      %v5206 = vpop.f32.mrb[0].mxu0
      %v5207 = vadd.f32 %v5046, %v5206
      %v5208 = vpop.f32.mrb[0].mxu0
      %v5209 = vpop.f32.mrb[0].mxu0
      %v5210 = vadd.f32 %v5049, %v5209
      %v5211 = vpop.f32.mrb[0].mxu0
      %5212 = vmatprep.mubr.bf16.mxu0 %v3989
      %5213 = vmatmul.mubr.bf16.gmra.mrb[0].mxu0 %v3988
      %v5214 = vpop.f32.mrb[0].mxu0
      %v5215 = vadd.f32 %v5054, %v5214
      %v5216 = vpop.f32.mrb[0].mxu0
      %v5217 = vpop.f32.mrb[0].mxu0
      %v5218 = vadd.f32 %v5057, %v5217
      %v5219 = vpop.f32.mrb[0].mxu0
      %5220 = vmatprep.mubr.bf16.mxu0 %v3998
      %5221 = vmatmul.mubr.bf16.gmra.mrb[0].mxu0 %v3997
      %v5222 = vpop.f32.mrb[0].mxu0
      %v5223 = vadd.f32 %v5062, %v5222
      %v5224 = vpop.f32.mrb[0].mxu0
      %v5225 = vpop.f32.mrb[0].mxu0
      %v5226 = vadd.f32 %v5065, %v5225
      %v5227 = vpop.f32.mrb[0].mxu0
      %5228 = vmatprep.mubr.bf16.mxu0 %v4007
      %5229 = vmatmul.mubr.bf16.gmra.mrb[0].mxu0 %v4006
      %v5230 = vpop.f32.mrb[0].mxu0
      %v5231 = vadd.f32 %v5070, %v5230
      %v5232 = vpop.f32.mrb[0].mxu0
      %v5233 = vpop.f32.mrb[0].mxu0
      %v5234 = vadd.f32 %v5073, %v5233
      %v5235 = vpop.f32.mrb[0].mxu0
      %5236 = vmatprep.mubr.bf16.mxu0 %v4016
      %5237 = vmatmul.mubr.bf16.gmra.mrb[0].mxu0 %v4015
      %v5238 = vpop.f32.mrb[0].mxu0
      %v5239 = vadd.f32 %v5078, %v5238
      %v5240 = vpop.f32.mrb[0].mxu0
      %v5241 = vpop.f32.mrb[0].mxu0
      %v5242 = vadd.f32 %v5081, %v5241
      %v5243 = vpop.f32.mrb[0].mxu0
      %5244 = vmatprep.mubr.bf16.mxu0 %v4025
      %5245 = vmatmul.mubr.bf16.gmra.mrb[0].mxu0 %v4024
      %v5246 = vpop.f32.mrb[0].mxu0
      %v5247 = vadd.f32 %v5086, %v5246
      %v5248 = vpop.f32.mrb[0].mxu0
      %v5249 = vpop.f32.mrb[0].mxu0
      %v5250 = vadd.f32 %v5089, %v5249
      %v5251 = vpop.f32.mrb[0].mxu0
      %5252 = vmatprep.mubr.bf16.mxu0 %v4034
      %5253 = vmatmul.mubr.bf16.gmra.mrb[0].mxu0 %v4033
      %v5254 = vpop.f32.mrb[0].mxu0
      %v5255 = vadd.f32 %v5094, %v5254
      %v5256 = vpop.f32.mrb[0].mxu0
      %v5257 = vpop.f32.mrb[0].mxu0
      %v5258 = vadd.f32 %v5097, %v5257
      %v5259 = vpop.f32.mrb[0].mxu0
      %5260 = vmatprep.mubr.bf16.mxu0 %v4043
      %5261 = vmatmul.mubr.bf16.gmra.mrb[0].mxu0 %v4042
      %v5262 = vpop.f32.mrb[0].mxu0
      %v5263 = vadd.f32 %v5102, %v5262
      %v5264 = vpop.f32.mrb[0].mxu0
      %v5265 = vpop.f32.mrb[0].mxu0
      %v5266 = vadd.f32 %v5105, %v5265
      %v5267 = vpop.f32.mrb[0].mxu0
      %5268 = vmatprep.mubr.bf16.mxu0 %v4052
      %5269 = vmatmul.mubr.bf16.gmra.mrb[0].mxu0 %v4051
      %v5270 = vpop.f32.mrb[0].mxu0
      %v5271 = vadd.f32 %v5110, %v5270
      %v5272 = vpop.f32.mrb[0].mxu0
      %v5273 = vpop.f32.mrb[0].mxu0
      %v5274 = vadd.f32 %v5113, %v5273
      %v5275 = vpop.f32.mrb[0].mxu0
      %5276 = vmatprep.mubr.bf16.mxu0 %v4061
      %5277 = vmatmul.mubr.bf16.gmra.mrb[0].mxu0 %v4060
      %v5278 = vpop.f32.mrb[0].mxu0
      %v5279 = vadd.f32 %v5118, %v5278
      %v5280 = vpop.f32.mrb[0].mxu0
      %v5281 = vpop.f32.mrb[0].mxu0
      %v5282 = vadd.f32 %v5121, %v5281
      %v5283 = vpop.f32.mrb[0].mxu0
      %5284 = vmatprep.mubr.bf16.mxu0 %v4070
      %5285 = vmatmul.mubr.bf16.gmra.mrb[0].mxu0 %v4069
      %v5286 = vpop.f32.mrb[0].mxu0
      %v5287 = vadd.f32 %v5126, %v5286
      %v5288 = vpop.f32.mrb[0].mxu0
      %v5289 = vpop.f32.mrb[0].mxu0
      %v5290 = vadd.f32 %v5129, %v5289
      %v5291 = vpop.f32.mrb[0].mxu0
      %5292 = vmatprep.mubr.bf16.mxu0 %v4079
      %5293 = vmatmul.mubr.bf16.gmra.mrb[0].mxu0 %v4078
      %v5294 = vpop.f32.mrb[0].mxu0
      %v5295 = vadd.f32 %v5134, %v5294
      %v5296 = vpop.f32.mrb[0].mxu0
      %v5297 = vpop.f32.mrb[0].mxu0
      %v5298 = vadd.f32 %v5137, %v5297
      %v5299 = vpop.f32.mrb[0].mxu0
      %5300 = vdwg.mxu0
      %5301 = vmatprep.subr.bf16.mxu0 0
      %5302 = vmatpush1.bf16.msra.mxu0 %v4577
      %5303 = vmatprep.subr.bf16.mxu0 0
      %5304 = vmatpush1.bf16.msra.mxu0 %v4578
      %5305 = vmatprep.subr.bf16.mxu0 0
      %5306 = vmatpush1.bf16.msra.mxu0 %v4579
      %5307 = vmatprep.subr.bf16.mxu0 0
      %5308 = vmatpush1.bf16.msra.mxu0 %v4580
      %5309 = vmatprep.subr.bf16.mxu0 0
      %5310 = vmatpush1.bf16.msra.mxu0 %v4581
      %5311 = vmatprep.subr.bf16.mxu0 0
      %5312 = vmatpush1.bf16.msra.mxu0 %v4582
      %5313 = vmatprep.subr.bf16.mxu0 0
      %5314 = vmatpush1.bf16.msra.mxu0 %v4583
      %5315 = vmatprep.subr.bf16.mxu0 0
      %5316 = vmatpush1.bf16.msra.mxu0 %v4584
      %5317 = vmatprep.subr.bf16.mxu0 0
      %5318 = vmatpush1.bf16.msra.mxu0 0
      %5319 = vmatprep.subr.bf16.mxu0 0
      %5320 = vmatpush1.bf16.msra.mxu0 0
      %5321 = vmatprep.subr.bf16.mxu0 0
      %5322 = vmatpush1.bf16.msra.mxu0 0
      %5323 = vmatprep.subr.bf16.mxu0 0
      %5324 = vmatpush1.bf16.msra.mxu0 0
      %5325 = vmatprep.subr.bf16.mxu0 0
      %5326 = vmatpush1.bf16.msra.mxu0 0
      %5327 = vmatprep.subr.bf16.mxu0 0
      %5328 = vmatpush1.bf16.msra.mxu0 0
      %5329 = vmatprep.subr.bf16.mxu0 0
      %5330 = vmatpush1.bf16.msra.mxu0 0
      %5331 = vmatprep.subr.bf16.mxu0 0
      %5332 = vmatpush1.bf16.msra.mxu0 0
      %5333 = vmatprep.mubr.bf16.mxu0 0
      %5334 = vmatmul.mubr.bf16.gmra.mrb[0].mxu0 %v3945
      %v5335 = vpop.f32.mrb[0].mxu0
      %v5336 = vadd.f32 %v5175, %v5335
      %v5337 = vpop.f32.mrb[0].mxu0
      %v5338 = vpop.f32.mrb[0].mxu0
      %v5339 = vadd.f32 %v5178, %v5338
      %v5340 = vpop.f32.mrb[0].mxu0
      %5341 = vmatprep.mubr.bf16.mxu0 0
      %5342 = vmatmul.mubr.bf16.gmra.mrb[0].mxu0 %v3954
      %v5343 = vpop.f32.mrb[0].mxu0
      %v5344 = vadd.f32 %v5183, %v5343
      %v5345 = vpop.f32.mrb[0].mxu0
      %v5346 = vpop.f32.mrb[0].mxu0
      %v5347 = vadd.f32 %v5186, %v5346
      %v5348 = vpop.f32.mrb[0].mxu0
      %5349 = vmatprep.mubr.bf16.mxu0 0
      %5350 = vmatmul.mubr.bf16.gmra.mrb[0].mxu0 %v3963
      %v5351 = vpop.f32.mrb[0].mxu0
      %v5352 = vadd.f32 %v5191, %v5351
      %v5353 = vpop.f32.mrb[0].mxu0
      %v5354 = vpop.f32.mrb[0].mxu0
      %v5355 = vadd.f32 %v5194, %v5354
      %v5356 = vpop.f32.mrb[0].mxu0
      %5357 = vmatprep.mubr.bf16.mxu0 0
      %5358 = vmatmul.mubr.bf16.gmra.mrb[0].mxu0 %v3972
      %v5359 = vpop.f32.mrb[0].mxu0
      %v5360 = vadd.f32 %v5199, %v5359
      %v5361 = vpop.f32.mrb[0].mxu0
      %v5362 = vpop.f32.mrb[0].mxu0
      %v5363 = vadd.f32 %v5202, %v5362
      %v5364 = vpop.f32.mrb[0].mxu0
      %5365 = vmatprep.mubr.bf16.mxu0 0
      %5366 = vmatmul.mubr.bf16.gmra.mrb[0].mxu0 %v3981
      %v5367 = vpop.f32.mrb[0].mxu0
      %v5368 = vadd.f32 %v5207, %v5367
      %v5369 = vpop.f32.mrb[0].mxu0
      %v5370 = vpop.f32.mrb[0].mxu0
      %v5371 = vadd.f32 %v5210, %v5370
      %v5372 = vpop.f32.mrb[0].mxu0
      %5373 = vmatprep.mubr.bf16.mxu0 0
      %5374 = vmatmul.mubr.bf16.gmra.mrb[0].mxu0 %v3990
      %v5375 = vpop.f32.mrb[0].mxu0
      %v5376 = vadd.f32 %v5215, %v5375
      %v5377 = vpop.f32.mrb[0].mxu0
      %v5378 = vpop.f32.mrb[0].mxu0
      %v5379 = vadd.f32 %v5218, %v5378
      %v5380 = vpop.f32.mrb[0].mxu0
      %5381 = vmatprep.mubr.bf16.mxu0 0
      %5382 = vmatmul.mubr.bf16.gmra.mrb[0].mxu0 %v3999
      %v5383 = vpop.f32.mrb[0].mxu0
      %v5384 = vadd.f32 %v5223, %v5383
      %v5385 = vpop.f32.mrb[0].mxu0
      %v5386 = vpop.f32.mrb[0].mxu0
      %v5387 = vadd.f32 %v5226, %v5386
      %v5388 = vpop.f32.mrb[0].mxu0
      %5389 = vmatprep.mubr.bf16.mxu0 0
      %5390 = vmatmul.mubr.bf16.gmra.mrb[0].mxu0 %v4008
      %v5391 = vpop.f32.mrb[0].mxu0
      %v5392 = vadd.f32 %v5231, %v5391
      %v5393 = vpop.f32.mrb[0].mxu0
      %v5394 = vpop.f32.mrb[0].mxu0
      %v5395 = vadd.f32 %v5234, %v5394
      %v5396 = vpop.f32.mrb[0].mxu0
      %5397 = vmatprep.mubr.bf16.mxu0 0
      %5398 = vmatmul.mubr.bf16.gmra.mrb[0].mxu0 %v4017
      %v5399 = vpop.f32.mrb[0].mxu0
      %v5400 = vadd.f32 %v5239, %v5399
      %v5401 = vpop.f32.mrb[0].mxu0
      %v5402 = vpop.f32.mrb[0].mxu0
      %v5403 = vadd.f32 %v5242, %v5402
      %v5404 = vpop.f32.mrb[0].mxu0
      %5405 = vmatprep.mubr.bf16.mxu0 0
      %5406 = vmatmul.mubr.bf16.gmra.mrb[0].mxu0 %v4026
      %v5407 = vpop.f32.mrb[0].mxu0
      %v5408 = vadd.f32 %v5247, %v5407
      %v5409 = vpop.f32.mrb[0].mxu0
      %v5410 = vpop.f32.mrb[0].mxu0
      %v5411 = vadd.f32 %v5250, %v5410
      %v5412 = vpop.f32.mrb[0].mxu0
      %5413 = vmatprep.mubr.bf16.mxu0 0
      %5414 = vmatmul.mubr.bf16.gmra.mrb[0].mxu0 %v4035
      %v5415 = vpop.f32.mrb[0].mxu0
      %v5416 = vadd.f32 %v5255, %v5415
      %v5417 = vpop.f32.mrb[0].mxu0
      %v5418 = vpop.f32.mrb[0].mxu0
      %v5419 = vadd.f32 %v5258, %v5418
      %v5420 = vpop.f32.mrb[0].mxu0
      %5421 = vmatprep.mubr.bf16.mxu0 0
      %5422 = vmatmul.mubr.bf16.gmra.mrb[0].mxu0 %v4044
      %v5423 = vpop.f32.mrb[0].mxu0
      %v5424 = vadd.f32 %v5263, %v5423
      %v5425 = vpop.f32.mrb[0].mxu0
      %v5426 = vpop.f32.mrb[0].mxu0
      %v5427 = vadd.f32 %v5266, %v5426
      %v5428 = vpop.f32.mrb[0].mxu0
      %5429 = vmatprep.mubr.bf16.mxu0 0
      %5430 = vmatmul.mubr.bf16.gmra.mrb[0].mxu0 %v4053
      %v5431 = vpop.f32.mrb[0].mxu0
      %v5432 = vadd.f32 %v5271, %v5431
      %v5433 = vpop.f32.mrb[0].mxu0
      %v5434 = vpop.f32.mrb[0].mxu0
      %v5435 = vadd.f32 %v5274, %v5434
      %v5436 = vpop.f32.mrb[0].mxu0
      %5437 = vmatprep.mubr.bf16.mxu0 0
      %5438 = vmatmul.mubr.bf16.gmra.mrb[0].mxu0 %v4062
      %v5439 = vpop.f32.mrb[0].mxu0
      %v5440 = vadd.f32 %v5279, %v5439
      %v5441 = vpop.f32.mrb[0].mxu0
      %v5442 = vpop.f32.mrb[0].mxu0
      %v5443 = vadd.f32 %v5282, %v5442
      %v5444 = vpop.f32.mrb[0].mxu0
      %5445 = vmatprep.mubr.bf16.mxu0 0
      %5446 = vmatmul.mubr.bf16.gmra.mrb[0].mxu0 %v4071
      %v5447 = vpop.f32.mrb[0].mxu0
      %v5448 = vadd.f32 %v5287, %v5447
      %v5449 = vpop.f32.mrb[0].mxu0
      %v5450 = vpop.f32.mrb[0].mxu0
      %v5451 = vadd.f32 %v5290, %v5450
      %v5452 = vpop.f32.mrb[0].mxu0
      %5453 = vmatprep.mubr.bf16.mxu0 0
      %5454 = vmatmul.mubr.bf16.gmra.mrb[0].mxu0 %v4080
      %v5455 = vpop.f32.mrb[0].mxu0
      %v5456 = vadd.f32 %v5295, %v5455
      %v5457 = vpop.f32.mrb[0].mxu0
      %v5458 = vpop.f32.mrb[0].mxu0
      %v5459 = vadd.f32 %v5298, %v5458
      %v5460 = vpop.f32.mrb[0].mxu0
      %5461 = vdwg.mxu0
      %v5462 = vld [vmem:[%s3] sm:$0x1]
      %v5464 = vlaneseq
      %v5465 = vshrl.u32 %v5464, 7
      %v5466 = vsub.s32 0, %v5465
      %v5467 = vrot.slane %v5462, %v5466
      %v5469 = vmul.f32 %v5336, %v5467
      %v5470 = vmul.f32 %v5339, %v5467
      %v5471 = vmul.f32 %v5344, %v5467
      %v5472 = vmul.f32 %v5347, %v5467
      %v5473 = vmul.f32 %v5352, %v5467
      %v5474 = vmul.f32 %v5355, %v5467
      %v5475 = vmul.f32 %v5360, %v5467
      %v5476 = vmul.f32 %v5363, %v5467
      %v5477 = vmul.f32 %v5368, %v5467
      %v5478 = vmul.f32 %v5371, %v5467
      %v5479 = vmul.f32 %v5376, %v5467
      %v5480 = vmul.f32 %v5379, %v5467
      %v5481 = vmul.f32 %v5384, %v5467
      %v5482 = vmul.f32 %v5387, %v5467
      %v5483 = vmul.f32 %v5392, %v5467
      %v5484 = vmul.f32 %v5395, %v5467
      %v5485 = vmul.f32 %v5400, %v5467
      %v5486 = vmul.f32 %v5403, %v5467
      %v5487 = vmul.f32 %v5408, %v5467
      %v5488 = vmul.f32 %v5411, %v5467
      %v5489 = vmul.f32 %v5416, %v5467
      %v5490 = vmul.f32 %v5419, %v5467
      %v5491 = vmul.f32 %v5424, %v5467
      %v5492 = vmul.f32 %v5427, %v5467
      %v5493 = vmul.f32 %v5432, %v5467
      %v5494 = vmul.f32 %v5435, %v5467
      %v5495 = vmul.f32 %v5440, %v5467
      %v5496 = vmul.f32 %v5443, %v5467
      %v5497 = vmul.f32 %v5448, %v5467
      %v5498 = vmul.f32 %v5451, %v5467
      %v5499 = vmul.f32 %v5456, %v5467
      %v5500 = vmul.f32 %v5459, %v5467
      %v5501 = vld [vmem:[%s4] sm:$0x1]
      %v5503 = vlaneseq
      %v5504 = vshrl.u32 %v5503, 7
      %v5505 = vsub.s32 0, %v5504
      %v5506 = vrot.slane %v5501, %v5505
      %v5508 = vadd.f32 %v5469, %v5506
      %v5509 = vadd.f32 %v5470, %v5506
      %v5510 = vadd.f32 %v5471, %v5506
      %v5511 = vadd.f32 %v5472, %v5506
      %v5512 = vadd.f32 %v5473, %v5506
      %v5513 = vadd.f32 %v5474, %v5506
      %v5514 = vadd.f32 %v5475, %v5506
      %v5515 = vadd.f32 %v5476, %v5506
      %v5516 = vadd.f32 %v5477, %v5506
      %v5517 = vadd.f32 %v5478, %v5506
      %v5518 = vadd.f32 %v5479, %v5506
      %v5519 = vadd.f32 %v5480, %v5506
      %v5520 = vadd.f32 %v5481, %v5506
      %v5521 = vadd.f32 %v5482, %v5506
      %v5522 = vadd.f32 %v5483, %v5506
      %v5523 = vadd.f32 %v5484, %v5506
      %v5524 = vadd.f32 %v5485, %v5506
      %v5525 = vadd.f32 %v5486, %v5506
      %v5526 = vadd.f32 %v5487, %v5506
      %v5527 = vadd.f32 %v5488, %v5506
      %v5528 = vadd.f32 %v5489, %v5506
      %v5529 = vadd.f32 %v5490, %v5506
      %v5530 = vadd.f32 %v5491, %v5506
      %v5531 = vadd.f32 %v5492, %v5506
      %v5532 = vadd.f32 %v5493, %v5506
      %v5533 = vadd.f32 %v5494, %v5506
      %v5534 = vadd.f32 %v5495, %v5506
      %v5535 = vadd.f32 %v5496, %v5506
      %v5536 = vadd.f32 %v5497, %v5506
      %v5537 = vadd.f32 %v5498, %v5506
      %v5538 = vadd.f32 %v5499, %v5506
      %v5539 = vadd.f32 %v5500, %v5506
      %v5540 = vmax.f32 %v5508, 0.0
      %v5541 = vmax.f32 %v5509, 0.0
      %v5542 = vmax.f32 %v5510, 0.0
      %v5543 = vmax.f32 %v5511, 0.0
      %v5544 = vmax.f32 %v5512, 0.0
      %v5545 = vmax.f32 %v5513, 0.0
      %v5546 = vmax.f32 %v5514, 0.0
      %v5547 = vmax.f32 %v5515, 0.0
      %v5548 = vmax.f32 %v5516, 0.0
      %v5549 = vmax.f32 %v5517, 0.0
      %v5550 = vmax.f32 %v5518, 0.0
      %v5551 = vmax.f32 %v5519, 0.0
      %v5552 = vmax.f32 %v5520, 0.0
      %v5553 = vmax.f32 %v5521, 0.0
      %v5554 = vmax.f32 %v5522, 0.0
      %v5555 = vmax.f32 %v5523, 0.0
      %v5556 = vmax.f32 %v5524, 0.0
      %v5557 = vmax.f32 %v5525, 0.0
      %v5558 = vmax.f32 %v5526, 0.0
      %v5559 = vmax.f32 %v5527, 0.0
      %v5560 = vmax.f32 %v5528, 0.0
      %v5561 = vmax.f32 %v5529, 0.0
      %v5562 = vmax.f32 %v5530, 0.0
      %v5563 = vmax.f32 %v5531, 0.0
      %v5564 = vmax.f32 %v5532, 0.0
      %v5565 = vmax.f32 %v5533, 0.0
      %v5566 = vmax.f32 %v5534, 0.0
      %v5567 = vmax.f32 %v5535, 0.0
      %v5568 = vmax.f32 %v5536, 0.0
      %v5569 = vmax.f32 %v5537, 0.0
      %v5570 = vmax.f32 %v5538, 0.0
      %v5571 = vmax.f32 %v5539, 0.0
      %5572 = vst [vmem:[%s277] sm:$0xff] %v5540
      %5573 = vst [vmem:[%s277 + $0x8] sm:$0xff] %v5541
      %5574 = vst [vmem:[%s277 + $0x10] sm:$0xff] %v5542
      %5575 = vst [vmem:[%s277 + $0x18] sm:$0xff] %v5543
      %5576 = vst [vmem:[%s277 + $0x20] sm:$0xff] %v5544
      %5577 = vst [vmem:[%s277 + $0x28] sm:$0xff] %v5545
      %5578 = vst [vmem:[%s277 + $0x30] sm:$0xff] %v5546
      %5579 = vst [vmem:[%s277 + $0x38] sm:$0xff] %v5547
      %5580 = vst [vmem:[%s277 + $0x40] sm:$0xff] %v5548
      %5581 = vst [vmem:[%s277 + $0x48] sm:$0xff] %v5549
      %5582 = vst [vmem:[%s277 + $0x50] sm:$0xff] %v5550
      %5583 = vst [vmem:[%s277 + $0x58] sm:$0xff] %v5551
      %5584 = vst [vmem:[%s277 + $0x60] sm:$0xff] %v5552
      %5585 = vst [vmem:[%s277 + $0x68] sm:$0xff] %v5553
      %5586 = vst [vmem:[%s277 + $0x70] sm:$0xff] %v5554
      %5587 = vst [vmem:[%s277 + $0x78] sm:$0xff] %v5555
      %5588 = vst [vmem:[%s277 + $0x80] sm:$0xff] %v5556
      %5589 = vst [vmem:[%s277 + $0x88] sm:$0xff] %v5557
      %5590 = vst [vmem:[%s277 + $0x90] sm:$0xff] %v5558
      %5591 = vst [vmem:[%s277 + $0x98] sm:$0xff] %v5559
      %5592 = vst [vmem:[%s277 + $0xa0] sm:$0xff] %v5560
      %5593 = vst [vmem:[%s277 + $0xa8] sm:$0xff] %v5561
      %5594 = vst [vmem:[%s277 + $0xb0] sm:$0xff] %v5562
      %5595 = vst [vmem:[%s277 + $0xb8] sm:$0xff] %v5563
      %5596 = vst [vmem:[%s277 + $0xc0] sm:$0xff] %v5564
      %5597 = vst [vmem:[%s277 + $0xc8] sm:$0xff] %v5565
      %5598 = vst [vmem:[%s277 + $0xd0] sm:$0xff] %v5566
      %5599 = vst [vmem:[%s277 + $0xd8] sm:$0xff] %v5567
      %5600 = vst [vmem:[%s277 + $0xe0] sm:$0xff] %v5568
      %5601 = vst [vmem:[%s277 + $0xe8] sm:$0xff] %v5569
      %5602 = vst [vmem:[%s277 + $0xf0] sm:$0xff] %v5570
      %5603 = vst [vmem:[%s277 + $0xf8] sm:$0xff] %v5571
      %v5604 = vadd.f32 %v5540, %v5541
      %v5605 = vadd.f32 %v5604, %v5542
      %v5606 = vadd.f32 %v5605, %v5543
      %v5607 = vadd.f32 %v5606, %v5544
      %v5608 = vadd.f32 %v5607, %v5545
      %v5609 = vadd.f32 %v5608, %v5546
      %v5610 = vadd.f32 %v5609, %v5547
      %v5611 = vadd.f32 %v5610, %v5548
      %v5612 = vadd.f32 %v5611, %v5549
      %v5613 = vadd.f32 %v5612, %v5550
      %v5614 = vadd.f32 %v5613, %v5551
      %v5615 = vadd.f32 %v5614, %v5552
      %v5616 = vadd.f32 %v5615, %v5553
      %v5617 = vadd.f32 %v5616, %v5554
      %v5618 = vadd.f32 %v5617, %v5555
      %v5619 = vadd.f32 %v5618, %v5556
      %v5620 = vadd.f32 %v5619, %v5557
      %v5621 = vadd.f32 %v5620, %v5558
      %v5622 = vadd.f32 %v5621, %v5559
      %v5623 = vadd.f32 %v5622, %v5560
      %v5624 = vadd.f32 %v5623, %v5561
      %v5625 = vadd.f32 %v5624, %v5562
      %v5626 = vadd.f32 %v5625, %v5563
      %v5627 = vadd.f32 %v5626, %v5564
      %v5628 = vadd.f32 %v5627, %v5565
      %v5629 = vadd.f32 %v5628, %v5566
      %v5630 = vadd.f32 %v5629, %v5567
      %v5631 = vadd.f32 %v5630, %v5568
      %v5632 = vadd.f32 %v5631, %v5569
      %v5633 = vadd.f32 %v5632, %v5570
      %v5634 = vadd.f32 %v5633, %v5571
      %v5635 = vrot.slane %v5634, 4
      %v5636 = vadd.f32 %v5634, %v5635
      %v5637 = vrot.slane %v5636, 2
      %v5638 = vadd.f32 %v5636, %v5637
      %v5639 = vrot.slane %v5638, 1
      %v5640 = vadd.f32 %v5638, %v5639
      %v5641 = vrcp.pop 256.0
      %v5642 = vmul.f32 %v5640, %v5641
      %5643 = vst [vmem:[%s280] sm:$0x1] %v5642
      %p5644 = scmp.lt.s32.totalorder %s18, 1
      %s5645 = scalar_select %p5644, %s18, 1
      %s5646 = smul.addr %s5645, 32
      %s5647 = smul.addr %s5646, 8
      %s5648 = scalar_lea.vmem %s5, %s5647
      %p5649 = scmp.lt.s32.totalorder %s18, 1
      %s5650 = scalar_select %p5649, %s18, 1
      %s5651 = scalar_lea.vmem %s6, %s5650
      // Predicated region
      $region41: #{bdrm_forward.2} parent=39 // pred_check
        %p5652 = pneg %p151
      $region42: #{bdrm_forward.2} parent=39 // pred_check_branch
        %5654 = sbr.rel (%p5652) target = $region44
      $region43: #{bdrm_forward.2} parent=39 // pred_region
        _
      $region44: #{bdrm_forward.2} parent=39 // pred_fallthru
        _
      // Predicated region
      $region45: #{bdrm_forward.2} parent=39 // pred_check
        %p5655 = pneg %p177
      $region46: #{bdrm_forward.2} parent=39 // pred_check_branch
        %5657 = sbr.rel (%p5655) target = $region48
      $region47: #{bdrm_forward.2} parent=39 // pred_region
        _
      $region48: #{bdrm_forward.2} parent=39 // pred_fallthru
        _
    $region40: #{bdrm_forward.2} parent=5 // pred_fallthru
      _
    %p5658 = scmp.le.s32.totalorder 2, %s13
    // Predicated region
    $region49: #{bdrm_forward.2} parent=5 // pred_check
      %p5659 = pneg %p5658
    $region50: #{bdrm_forward.2} parent=5 // pred_check_branch
      %5661 = sbr.rel (%p5659) target = $region52
    $region51: #{bdrm_forward.2} parent=5 // pred_region
      %s5662 = ssub.s32 %s13, 2
      // Predicated region
      $region53: #{bdrm_forward.2} parent=51 // pred_check
        %p5663 = pneg %p157
      $region54: #{bdrm_forward.2} parent=51 // pred_check_branch
        %5665 = sbr.rel (%p5663) target = $region56
      $region55: #{bdrm_forward.2} parent=51 // pred_region
        %p5666 = scmp.lt.s32.totalorder %s19, 1
        %s5667 = scalar_select %p5666, %s19, 1
        %s5668 = smul.addr %s5667, 32
        %s5669 = smul.addr %s5668, 8
        %s5670 = scalar_lea.vmem %s5, %s5669
      $region56: #{bdrm_forward.2} parent=51 // pred_fallthru
        _
      // Predicated region
      $region57: #{bdrm_forward.2} parent=51 // pred_check
        %p5671 = pneg %p183
      $region58: #{bdrm_forward.2} parent=51 // pred_check_branch
        %5673 = sbr.rel (%p5671) target = $region60
      $region59: #{bdrm_forward.2} parent=51 // pred_region
        %p5674 = scmp.lt.s32.totalorder %s19, 1
        %s5675 = scalar_select %p5674, %s19, 1
        %s5676 = scalar_lea.vmem %s6, %s5675
      $region60: #{bdrm_forward.2} parent=51 // pred_fallthru
        _
    $region52: #{bdrm_forward.2} parent=5 // pred_fallthru
      _
  $region6: #{bdrm_forward.2} parent=0 // loop_footer
    %s17 = sadd.s32 1, %s13
  $region7: #{bdrm_forward.2} parent=0 // loop_footer_branch
    %12 = sbr.rel target = $region3
  $region8: #{bdrm_forward.2} parent=0 // loop_exit
    _

// kernel: bdrm_forward.3
$region0: #{bdrm_forward.3}
  #allocation0 [shape = 'u32[]', space=smem, size = 0x4, offset = 0x4, fixed_abs, tag = 'smem constant byte address 0x4 - core index']
  #allocation1 [shape = 'u32[144,128]{1,0:T(1,128)}', space=vmem, size = 0x12000, scoped, tag = 'internal scratch']
  #allocation2 [shape = 'bf16[18,18,128]{2,1,0:T(8,128)(2,1)}', space=vmem, size = 0x1b000, scoped, tag = 'scratch operand']
  #allocation3 [shape = 'bf16[256,1152]{1,0:T(16,128)(2,1)}', space=vmem, size = 0x90000, scoped, tag = 'scratch operand']
  %s0 = inlined_call_operand.vmem [shape: f32[2,1,128], index: 0, kind: input, shape index: {}]
  %s1 = inlined_call_operand.vmem [shape: f32[2,16,16,128], index: 1, kind: input, shape index: {}]
  %s2 = inlined_call_operand.vmem [shape: f32[2,16,16,64], index: 2, kind: input, shape index: {}]
  %s3 = inlined_call_operand.vmem [shape: f32[128,32], index: 3, kind: input, shape index: {}]
  %s4 = inlined_call_operand.vmem [shape: f32[1,32], index: 4, kind: input, shape index: {}]
  %s5 = inlined_call_operand.vmem [shape: f32[32,128], index: 5, kind: input, shape index: {}]
  %s6 = inlined_call_operand.vmem [shape: f32[1,128], index: 6, kind: input, shape index: {}]
  %s7 = inlined_call_operand.vmem [shape: bf16[1152,64], index: 7, kind: input, shape index: {}]
  %s8 = inlined_call_operand.vmem [shape: f32[1,64], index: 8, kind: input, shape index: {}]
  %s9 = inlined_call_operand.vmem [shape: f32[1,64], index: 9, kind: input, shape index: {}]
  %s10 = inlined_call_operand.hbm [shape: f32[2,16,16,64], index: 10, kind: output, shape index: {0}]
  %s11 = inlined_call_operand.hbm [shape: f32[2,1,128], index: 11, kind: output, shape index: {1}]
  %12 = xla_tuple %s10, %s11
  %s13 = sld [smem:[#allocation0]]
  $region81: #{bdrm_forward.3} parent=0
    _
  %s15 = ssub.s32 1, %s13
  %s16 = scalar_select 0, %s15, %s13
  $region1: #{bdrm_forward.3} parent=0
    #allocation4 [shape = 'u8[262144]{0}', space=vmem, size = 0x40000, scoped, tag = 'output window, operand 0']
    #allocation5 [shape = 's32[2]{0}', space=sflag, size = 0x8, scoped, tag = 'scoped memory for bdrm_forward.3']
    #allocation6 [shape = 'u8[1024]{0}', space=vmem, size = 0x400, scoped, tag = 'output window, operand 1']
    #allocation7 [shape = 's32[2]{0}', space=sflag, size = 0x8, scoped, tag = 'scoped memory for bdrm_forward.3']
    %17 = vsyncpa [#allocation5], 0
    %s18 = scalar_lea.sflag [#allocation5], 1
    %19 = vsyncpa %s18, 0
    %20 = vsyncpa [#allocation7], 0
    %s21 = scalar_lea.sflag [#allocation7], 1
    %22 = vsyncpa %s21, 0
    loop: start=0, step=1, limit=4
    $region2: #{bdrm_forward.3} parent=1 // loop_pre_header
      _
    $region3: #{bdrm_forward.3} parent=1 // loop_header
      %s24 = sphi 0, %s28
      %p25 = scmp.ge.s32.totalorder %s24, 4
      %s32 = sphi 0, %s32
      %s34 = sphi 0, %s32
      %s35 = sphi 0, %s34
      %s49 = sphi 0, %s35
      %s55 = sphi 0, %s57
      %s58 = sphi 0, %s55
      %s59 = sphi 0, %s58
      %s75 = sphi 0, %s59
      %s81 = sphi 0, %s83
      %s84 = sphi 0, %s81
      %s85 = sphi 0, %s84
      %s101 = sphi 0, %s85
      %s105 = sphi 0, %s105
      %s107 = sphi 0, %s105
      %s108 = sphi 0, %s107
      %s122 = sphi 0, %s108
      %s126 = sphi 0, %s126
      %s128 = sphi 0, %s126
      %s129 = sphi 0, %s128
      %s143 = sphi 0, %s129
      %s147 = sphi 0, %s147
      %s149 = sphi 0, %s147
      %s150 = sphi 0, %s149
      %s164 = sphi 0, %s150
      %s168 = sphi 0, %s168
      %s170 = sphi 0, %s168
      %s171 = sphi 0, %s170
      %s185 = sphi 0, %s171
      %s189 = sphi 0, %s189
      %s191 = sphi 0, %s189
      %s192 = sphi 0, %s191
      %s206 = sphi 0, %s192
      %s210 = sphi 0, %s210
      %s212 = sphi 0, %s210
      %s213 = sphi 0, %s212
      %s227 = sphi 0, %s213
      %s231 = sphi 0, %s231
      %s233 = sphi 0, %s231
      %s234 = sphi 0, %s233
      %s248 = sphi 0, %s234
      %s254 = sphi 0, %s256
      %s257 = sphi 0, %s254
      %s258 = sphi 0, %s257
      %s274 = sphi 0, %s258
      %s280 = sphi 0, %s282
      %s283 = sphi 0, %s280
      %s284 = sphi 0, %s283
      %s300 = sphi 0, %s284
    $region4: #{bdrm_forward.3} parent=1 // loop_header_branch
      %27 = sbr.rel (%p25) target = $region8
    $region5: #{bdrm_forward.3} parent=1 // loop_body
      %s29 = ssub.s32 %s24, 1
      %s30 = ssub.s32 %s24, 2
      %s31 = sadd.s32 %s24, 1
      %s33 = sadd.s32 %s32, 1
      %p36 = scmp.eq.s32.totalorder %s24, 1
      %p37 = scmp.ne.s32.totalorder %s32, %s34
      %p38 = scmp.eq.s32.totalorder %s24, 0
      %p39 = por %p37, %p38
      %p40 = scmp.ne.s32.totalorder %s32, %s34
      %p41 = scmp.eq.s32.totalorder %s29, 1
      %p42 = por %p40, %p41
      %p43 = scmp.ne.s32.totalorder %s34, %s35
      %p44 = scmp.eq.s32.totalorder %s29, 0
      %p45 = por %p43, %p44
      %p46 = scmp.ne.s32.totalorder %s34, %s35
      %p47 = scmp.eq.s32.totalorder %s30, 1
      %p48 = por %p46, %p47
      %p50 = scmp.ne.s32.totalorder %s35, %s49
      %p51 = scmp.eq.s32.totalorder %s30, 0
      %p52 = por %p50, %p51
      %s53 = ssub.s32 %s24, %s31
      %p54 = scmp.eq.s32.totalorder %s53, 0
      %s56 = sadd.s32 %s55, 1
      %s57 = scalar_select %p54, %s55, %s56
      %p60 = pneg %p54
      %p61 = scmp.eq.s32.totalorder %s24, 1
      %p62 = por %p60, %p61
      %p63 = scmp.ne.s32.totalorder %s55, %s58
      %p64 = scmp.eq.s32.totalorder %s24, 0
      %p65 = por %p63, %p64
      %p66 = scmp.ne.s32.totalorder %s55, %s58
      %p67 = scmp.eq.s32.totalorder %s29, 1
      %p68 = por %p66, %p67
      %p69 = scmp.ne.s32.totalorder %s58, %s59
      %p70 = scmp.eq.s32.totalorder %s29, 0
      %p71 = por %p69, %p70
      %p72 = scmp.ne.s32.totalorder %s58, %s59
      %p73 = scmp.eq.s32.totalorder %s30, 1
      %p74 = por %p72, %p73
      %p76 = scmp.ne.s32.totalorder %s59, %s75
      %p77 = scmp.eq.s32.totalorder %s30, 0
      %p78 = por %p76, %p77
      %s79 = ssub.s32 %s24, %s31
      %p80 = scmp.eq.s32.totalorder %s79, 0
      %s82 = sadd.s32 %s81, 1
      %s83 = scalar_select %p80, %s81, %s82
      %p86 = pneg %p80
      %p87 = scmp.eq.s32.totalorder %s24, 1
      %p88 = por %p86, %p87
      %p89 = scmp.ne.s32.totalorder %s81, %s84
      %p90 = scmp.eq.s32.totalorder %s24, 0
      %p91 = por %p89, %p90
      %p92 = scmp.ne.s32.totalorder %s81, %s84
      %p93 = scmp.eq.s32.totalorder %s29, 1
      %p94 = por %p92, %p93
      %p95 = scmp.ne.s32.totalorder %s84, %s85
      %p96 = scmp.eq.s32.totalorder %s29, 0
      %p97 = por %p95, %p96
      %p98 = scmp.ne.s32.totalorder %s84, %s85
      %p99 = scmp.eq.s32.totalorder %s30, 1
      %p100 = por %p98, %p99
      %p102 = scmp.ne.s32.totalorder %s85, %s101
      %p103 = scmp.eq.s32.totalorder %s30, 0
      %p104 = por %p102, %p103
      %s106 = sadd.s32 %s105, 1
      %p109 = scmp.eq.s32.totalorder %s24, 1
      %p110 = scmp.ne.s32.totalorder %s105, %s107
      %p111 = scmp.eq.s32.totalorder %s24, 0
      %p112 = por %p110, %p111
      %p113 = scmp.ne.s32.totalorder %s105, %s107
      %p114 = scmp.eq.s32.totalorder %s29, 1
      %p115 = por %p113, %p114
      %p116 = scmp.ne.s32.totalorder %s107, %s108
      %p117 = scmp.eq.s32.totalorder %s29, 0
      %p118 = por %p116, %p117
      %p119 = scmp.ne.s32.totalorder %s107, %s108
      %p120 = scmp.eq.s32.totalorder %s30, 1
      %p121 = por %p119, %p120
      %p123 = scmp.ne.s32.totalorder %s108, %s122
      %p124 = scmp.eq.s32.totalorder %s30, 0
      %p125 = por %p123, %p124
      %s127 = sadd.s32 %s126, 1
      %p130 = scmp.eq.s32.totalorder %s24, 1
      %p131 = scmp.ne.s32.totalorder %s126, %s128
      %p132 = scmp.eq.s32.totalorder %s24, 0
      %p133 = por %p131, %p132
      %p134 = scmp.ne.s32.totalorder %s126, %s128
      %p135 = scmp.eq.s32.totalorder %s29, 1
      %p136 = por %p134, %p135
      %p137 = scmp.ne.s32.totalorder %s128, %s129
      %p138 = scmp.eq.s32.totalorder %s29, 0
      %p139 = por %p137, %p138
      %p140 = scmp.ne.s32.totalorder %s128, %s129
      %p141 = scmp.eq.s32.totalorder %s30, 1
      %p142 = por %p140, %p141
      %p144 = scmp.ne.s32.totalorder %s129, %s143
      %p145 = scmp.eq.s32.totalorder %s30, 0
      %p146 = por %p144, %p145
      %s148 = sadd.s32 %s147, 1
      %p151 = scmp.eq.s32.totalorder %s24, 1
      %p152 = scmp.ne.s32.totalorder %s147, %s149
      %p153 = scmp.eq.s32.totalorder %s24, 0
      %p154 = por %p152, %p153
      %p155 = scmp.ne.s32.totalorder %s147, %s149
      %p156 = scmp.eq.s32.totalorder %s29, 1
      %p157 = por %p155, %p156
      %p158 = scmp.ne.s32.totalorder %s149, %s150
      %p159 = scmp.eq.s32.totalorder %s29, 0
      %p160 = por %p158, %p159
      %p161 = scmp.ne.s32.totalorder %s149, %s150
      %p162 = scmp.eq.s32.totalorder %s30, 1
      %p163 = por %p161, %p162
      %p165 = scmp.ne.s32.totalorder %s150, %s164
      %p166 = scmp.eq.s32.totalorder %s30, 0
      %p167 = por %p165, %p166
      %s169 = sadd.s32 %s168, 1
      %p172 = scmp.eq.s32.totalorder %s24, 1
      %p173 = scmp.ne.s32.totalorder %s168, %s170
      %p174 = scmp.eq.s32.totalorder %s24, 0
      %p175 = por %p173, %p174
      %p176 = scmp.ne.s32.totalorder %s168, %s170
      %p177 = scmp.eq.s32.totalorder %s29, 1
      %p178 = por %p176, %p177
      %p179 = scmp.ne.s32.totalorder %s170, %s171
      %p180 = scmp.eq.s32.totalorder %s29, 0
      %p181 = por %p179, %p180
      %p182 = scmp.ne.s32.totalorder %s170, %s171
      %p183 = scmp.eq.s32.totalorder %s30, 1
      %p184 = por %p182, %p183
      %p186 = scmp.ne.s32.totalorder %s171, %s185
      %p187 = scmp.eq.s32.totalorder %s30, 0
      %p188 = por %p186, %p187
      %s190 = sadd.s32 %s189, 1
      %p193 = scmp.eq.s32.totalorder %s24, 1
      %p194 = scmp.ne.s32.totalorder %s189, %s191
      %p195 = scmp.eq.s32.totalorder %s24, 0
      %p196 = por %p194, %p195
      %p197 = scmp.ne.s32.totalorder %s189, %s191
      %p198 = scmp.eq.s32.totalorder %s29, 1
      %p199 = por %p197, %p198
      %p200 = scmp.ne.s32.totalorder %s191, %s192
      %p201 = scmp.eq.s32.totalorder %s29, 0
      %p202 = por %p200, %p201
      %p203 = scmp.ne.s32.totalorder %s191, %s192
      %p204 = scmp.eq.s32.totalorder %s30, 1
      %p205 = por %p203, %p204
      %p207 = scmp.ne.s32.totalorder %s192, %s206
      %p208 = scmp.eq.s32.totalorder %s30, 0
      %p209 = por %p207, %p208
      %s211 = sadd.s32 %s210, 1
      %p214 = scmp.eq.s32.totalorder %s24, 1
      %p215 = scmp.ne.s32.totalorder %s210, %s212
      %p216 = scmp.eq.s32.totalorder %s24, 0
      %p217 = por %p215, %p216
      %p218 = scmp.ne.s32.totalorder %s210, %s212
      %p219 = scmp.eq.s32.totalorder %s29, 1
      %p220 = por %p218, %p219
      %p221 = scmp.ne.s32.totalorder %s212, %s213
      %p222 = scmp.eq.s32.totalorder %s29, 0
      %p223 = por %p221, %p222
      %p224 = scmp.ne.s32.totalorder %s212, %s213
      %p225 = scmp.eq.s32.totalorder %s30, 1
      %p226 = por %p224, %p225
      %p228 = scmp.ne.s32.totalorder %s213, %s227
      %p229 = scmp.eq.s32.totalorder %s30, 0
      %p230 = por %p228, %p229
      %s232 = sadd.s32 %s231, 1
      %p235 = scmp.eq.s32.totalorder %s24, 1
      %p236 = scmp.ne.s32.totalorder %s231, %s233
      %p237 = scmp.eq.s32.totalorder %s24, 0
      %p238 = por %p236, %p237
      %p239 = scmp.ne.s32.totalorder %s231, %s233
      %p240 = scmp.eq.s32.totalorder %s29, 1
      %p241 = por %p239, %p240
      %p242 = scmp.ne.s32.totalorder %s233, %s234
      %p243 = scmp.eq.s32.totalorder %s29, 0
      %p244 = por %p242, %p243
      %p245 = scmp.ne.s32.totalorder %s233, %s234
      %p246 = scmp.eq.s32.totalorder %s30, 1
      %p247 = por %p245, %p246
      %p249 = scmp.ne.s32.totalorder %s234, %s248
      %p250 = scmp.eq.s32.totalorder %s30, 0
      %p251 = por %p249, %p250
      %s252 = ssub.s32 %s24, %s31
      %p253 = scmp.eq.s32.totalorder %s252, 0
      %s255 = sadd.s32 %s254, 1
      %s256 = scalar_select %p253, %s254, %s255
      %p259 = pneg %p253
      %p260 = scmp.eq.s32.totalorder %s24, 1
      %p261 = por %p259, %p260
      %p262 = scmp.ne.s32.totalorder %s254, %s257
      %p263 = scmp.eq.s32.totalorder %s24, 0
      %p264 = por %p262, %p263
      %p265 = scmp.ne.s32.totalorder %s254, %s257
      %p266 = scmp.eq.s32.totalorder %s29, 1
      %p267 = por %p265, %p266
      %p268 = scmp.ne.s32.totalorder %s257, %s258
      %p269 = scmp.eq.s32.totalorder %s29, 0
      %p270 = por %p268, %p269
      %p271 = scmp.ne.s32.totalorder %s257, %s258
      %p272 = scmp.eq.s32.totalorder %s30, 1
      %p273 = por %p271, %p272
      %p275 = scmp.ne.s32.totalorder %s258, %s274
      %p276 = scmp.eq.s32.totalorder %s30, 0
      %p277 = por %p275, %p276
      %s278 = ssub.s32 %s24, %s31
      %p279 = scmp.eq.s32.totalorder %s278, 0
      %s281 = sadd.s32 %s280, 1
      %s282 = scalar_select %p279, %s280, %s281
      %p285 = pneg %p279
      %p286 = scmp.eq.s32.totalorder %s24, 1
      %p287 = por %p285, %p286
      %p288 = scmp.ne.s32.totalorder %s280, %s283
      %p289 = scmp.eq.s32.totalorder %s24, 0
      %p290 = por %p288, %p289
      %p291 = scmp.ne.s32.totalorder %s280, %s283
      %p292 = scmp.eq.s32.totalorder %s29, 1
      %p293 = por %p291, %p292
      %p294 = scmp.ne.s32.totalorder %s283, %s284
      %p295 = scmp.eq.s32.totalorder %s29, 0
      %p296 = por %p294, %p295
      %p297 = scmp.ne.s32.totalorder %s283, %s284
      %p298 = scmp.eq.s32.totalorder %s30, 1
      %p299 = por %p297, %p298
      %p301 = scmp.ne.s32.totalorder %s284, %s300
      %p302 = scmp.eq.s32.totalorder %s30, 0
      %p303 = por %p301, %p302
      %p304 = scmp.le.s32.totalorder 1, %s24
      %p305 = scmp.lt.s32.totalorder %s24, 3
      %p306 = pnand %p304, %p305
      %p307 = pneg %p306
      // Predicated region
      $region9: #{bdrm_forward.3} parent=5 // pred_check
        _
      $region10: #{bdrm_forward.3} parent=5 // pred_check_branch
        %309 = sbr.rel (%p306) target = $region12
      $region11: #{bdrm_forward.3} parent=5 // pred_region
        %s310 = ssub.s32 %s24, 1
        // Predicated region
        $region13: #{bdrm_forward.3} parent=11 // pred_check
          %p311 = pneg %p45
        $region14: #{bdrm_forward.3} parent=11 // pred_check_branch
          %313 = sbr.rel (%p311) target = $region16
        $region15: #{bdrm_forward.3} parent=11 // pred_region
          _
        $region16: #{bdrm_forward.3} parent=11 // pred_fallthru
          _
        // Predicated region
        $region17: #{bdrm_forward.3} parent=11 // pred_check
          %p314 = pneg %p118
        $region18: #{bdrm_forward.3} parent=11 // pred_check_branch
          %316 = sbr.rel (%p314) target = $region20
        $region19: #{bdrm_forward.3} parent=11 // pred_region
          _
        $region20: #{bdrm_forward.3} parent=11 // pred_fallthru
          _
        // Predicated region
        $region21: #{bdrm_forward.3} parent=11 // pred_check
          %p317 = pneg %p139
        $region22: #{bdrm_forward.3} parent=11 // pred_check_branch
          %319 = sbr.rel (%p317) target = $region24
        $region23: #{bdrm_forward.3} parent=11 // pred_region
          _
        $region24: #{bdrm_forward.3} parent=11 // pred_fallthru
          _
        // Predicated region
        $region25: #{bdrm_forward.3} parent=11 // pred_check
          %p320 = pneg %p160
        $region26: #{bdrm_forward.3} parent=11 // pred_check_branch
          %322 = sbr.rel (%p320) target = $region28
        $region27: #{bdrm_forward.3} parent=11 // pred_region
          _
        $region28: #{bdrm_forward.3} parent=11 // pred_fallthru
          _
        // Predicated region
        $region29: #{bdrm_forward.3} parent=11 // pred_check
          %p323 = pneg %p181
        $region30: #{bdrm_forward.3} parent=11 // pred_check_branch
          %325 = sbr.rel (%p323) target = $region32
        $region31: #{bdrm_forward.3} parent=11 // pred_region
          _
        $region32: #{bdrm_forward.3} parent=11 // pred_fallthru
          _
        // Predicated region
        $region33: #{bdrm_forward.3} parent=11 // pred_check
          %p326 = pneg %p202
        $region34: #{bdrm_forward.3} parent=11 // pred_check_branch
          %328 = sbr.rel (%p326) target = $region36
        $region35: #{bdrm_forward.3} parent=11 // pred_region
          _
        $region36: #{bdrm_forward.3} parent=11 // pred_fallthru
          _
        // Predicated region
        $region37: #{bdrm_forward.3} parent=11 // pred_check
          %p329 = pneg %p223
        $region38: #{bdrm_forward.3} parent=11 // pred_check_branch
          %331 = sbr.rel (%p329) target = $region40
        $region39: #{bdrm_forward.3} parent=11 // pred_region
          _
        $region40: #{bdrm_forward.3} parent=11 // pred_fallthru
          _
        // Predicated region
        $region41: #{bdrm_forward.3} parent=11 // pred_check
          %p332 = pneg %p244
        $region42: #{bdrm_forward.3} parent=11 // pred_check_branch
          %334 = sbr.rel (%p332) target = $region44
        $region43: #{bdrm_forward.3} parent=11 // pred_region
          _
        $region44: #{bdrm_forward.3} parent=11 // pred_fallthru
          _
      $region12: #{bdrm_forward.3} parent=5 // pred_fallthru
        _
      %p335 = scmp.lt.s32.totalorder %s24, 2
      // Predicated region
      $region45: #{bdrm_forward.3} parent=5 // pred_check
        %p336 = pneg %p335
      $region46: #{bdrm_forward.3} parent=5 // pred_check_branch
        %338 = sbr.rel (%p336) target = $region48
      $region47: #{bdrm_forward.3} parent=5 // pred_region
        // Predicated region
        $region49: #{bdrm_forward.3} parent=47 // pred_check
          %p339 = pneg %p65
        $region50: #{bdrm_forward.3} parent=47 // pred_check_branch
          %341 = sbr.rel (%p339) target = $region52
        $region51: #{bdrm_forward.3} parent=47 // pred_region
          %p342 = scmp.lt.s32.totalorder %s24, 1
          %s343 = scalar_select %p342, %s24, 1
          %s344 = smul.addr %s343, 32
          %s345 = smul.addr %s344, 8
          %s346 = scalar_lea.vmem %s1, %s345
        $region52: #{bdrm_forward.3} parent=47 // pred_fallthru
          _
        // Predicated region
        $region53: #{bdrm_forward.3} parent=47 // pred_check
          %p347 = pneg %p91
        $region54: #{bdrm_forward.3} parent=47 // pred_check_branch
          %349 = sbr.rel (%p347) target = $region56
        $region55: #{bdrm_forward.3} parent=47 // pred_region
          %p350 = scmp.lt.s32.totalorder %s24, 1
          %s351 = scalar_select %p350, %s24, 1
          %s352 = smul.addr %s351, 32
          %s353 = smul.addr %s352, 8
          %s354 = scalar_lea.vmem %s2, %s353
        $region56: #{bdrm_forward.3} parent=47 // pred_fallthru
          _
      $region48: #{bdrm_forward.3} parent=5 // pred_fallthru
        _
      %p355 = scmp.le.s32.totalorder 1, %s24
      %p356 = scmp.lt.s32.totalorder %s24, 3
      %p357 = pnand %p355, %p356
      %p358 = pneg %p357
      // Predicated region
      $region57: #{bdrm_forward.3} parent=5 // pred_check
        _
      $region58: #{bdrm_forward.3} parent=5 // pred_check_branch
        %360 = sbr.rel (%p357) target = $region60
      $region59: #{bdrm_forward.3} parent=5 // pred_region
        %s361 = ssub.s32 %s24, 1
        %p362 = pneg %p45
        %p363 = pneg %p42
        %p364 = scmp.lt.s32.totalorder %s29, 1
        %s365 = scalar_select %p364, %s29, 1
        %s366 = smul.addr %s365, 32
        %s367 = smul.addr %s366, 8
        %s368 = scalar_lea.vmem %s1, %s367
        %p369 = pneg %p71
        %p370 = pneg %p68
        %p371 = scmp.lt.s32.totalorder %s29, 1
        %s372 = scalar_select %p371, %s29, 1
        %s373 = smul.addr %s372, 32
        %s374 = smul.addr %s373, 8
        %s375 = scalar_lea.vmem %s2, %s374
        %p376 = pneg %p97
        %p377 = pneg %p94
        %p378 = pneg %p118
        %p379 = pneg %p115
        %p380 = pneg %p139
        %p381 = pneg %p136
        %p382 = pneg %p160
        %p383 = pneg %p157
        %p384 = pneg %p181
        %p385 = pneg %p178
        %p386 = pneg %p202
        %p387 = pneg %p199
        %p388 = pneg %p223
        %p389 = pneg %p220
        %p390 = pneg %p244
        %p391 = pneg %p241
        %p392 = pneg %p270
        %p393 = pneg %p267
        %s394 = sand.u32 %s257, 1
        %s395 = scalar_lea.sflag [#allocation5], %s394
        %s396 = sand.u32 %s257, 1
        %s397 = smul.addr %s396, 256
        %s398 = scalar_lea.vmem [#allocation4], %s397
        %p399 = pneg %p296
        %p400 = pneg %p293
        %s401 = sand.u32 %s283, 1
        %s402 = scalar_lea.sflag [#allocation7], %s401
        %s403 = sand.u32 %s283, 1
        %s404 = scalar_lea.vmem [#allocation6], %s403
        %p405 = scmp.lt.s32.totalorder %s29, 1
        %s406 = scalar_select %p405, %s29, 1
        %s407 = smul.addr %s406, 32
        %s408 = smul.addr %s407, 8
        %s409 = scalar_lea.vmem %s1, %s408
        %p410 = scmp.lt.s32.totalorder %s29, 1
        %s411 = scalar_select %p410, %s29, 1
        %s412 = smul.addr %s411, 32
        %s413 = smul.addr %s412, 8
        %s414 = scalar_lea.vmem %s2, %s413
        %v416 = vld [vmem:[%s0] sm:$0x1]
        %v417 = vld [vmem:[%s0 + $0x1] sm:$0x1]
        %v418 = vld [vmem:[%s3] sm:$0xff]
        %v419 = vld [vmem:[%s3 + $0x8] sm:$0xff]
        %v420 = vld [vmem:[%s3 + $0x10] sm:$0xff]
        %v421 = vld [vmem:[%s3 + $0x18] sm:$0xff]
        %v422 = vld [vmem:[%s3 + $0x20] sm:$0xff]
        %v423 = vld [vmem:[%s3 + $0x28] sm:$0xff]
        %v424 = vld [vmem:[%s3 + $0x30] sm:$0xff]
        %v425 = vld [vmem:[%s3 + $0x38] sm:$0xff]
        %v426 = vld [vmem:[%s3 + $0x40] sm:$0xff]
        %v427 = vld [vmem:[%s3 + $0x48] sm:$0xff]
        %v428 = vld [vmem:[%s3 + $0x50] sm:$0xff]
        %v429 = vld [vmem:[%s3 + $0x58] sm:$0xff]
        %v430 = vld [vmem:[%s3 + $0x60] sm:$0xff]
        %v431 = vld [vmem:[%s3 + $0x68] sm:$0xff]
        %v432 = vld [vmem:[%s3 + $0x70] sm:$0xff]
        %v433 = vld [vmem:[%s3 + $0x78] sm:$0xff]
        %v434 = vld [vmem:[%s4] sm:$0x1]
        %v436 = vlaneseq
        %v437 = vshrl.u32 %v436, 7
        %v438 = vsub.s32 0, %v437
        %v439 = vrot.slane %v434, %v438
        %v443 = vcombine.low %v416, %v417
        %v445 = vunpack.c.l.s4 1966171168
        %v446 = vunpack.c.0.s8 %v445
        %v447 = vlaneseq
        %v448 = vshrl.u32 %v447, 7
        %v449 = vsub.s32 %v446, %v448
        %v450 = vrot.slane %v443, %v449
        %v452 = vunpack.c.l.s4 1966171168
        %v453 = vunpack.c.0.s8 %v452
        %v454 = vlaneseq
        %v455 = vshrl.u32 %v454, 7
        %v456 = vsub.s32 %v453, %v455
        %v457 = vrot.slane %v450, %v456
        %459 = vmatprep.subr.mxu0 0.0
        %460 = vmatpush1.msra.mxu0 %v418
        %461 = vmatprep.subr.mxu0 0.0
        %462 = vmatpush1.msra.mxu0 %v419
        %463 = vmatprep.subr.mxu0 0.0
        %464 = vmatpush1.msra.mxu0 %v420
        %465 = vmatprep.subr.mxu0 0.0
        %466 = vmatpush1.msra.mxu0 %v421
        %467 = vmatprep.subr.mxu0 0.0
        %468 = vmatpush1.msra.mxu0 %v422
        %469 = vmatprep.subr.mxu0 0.0
        %470 = vmatpush1.msra.mxu0 %v423
        %471 = vmatprep.subr.mxu0 0.0
        %472 = vmatpush1.msra.mxu0 %v424
        %473 = vmatprep.subr.mxu0 0.0
        %474 = vmatpush1.msra.mxu0 %v425
        %475 = vmatprep.subr.mxu0 0.0
        %476 = vmatpush1.msra.mxu0 %v426
        %477 = vmatprep.subr.mxu0 0.0
        %478 = vmatpush1.msra.mxu0 %v427
        %479 = vmatprep.subr.mxu0 0.0
        %480 = vmatpush1.msra.mxu0 %v428
        %481 = vmatprep.subr.mxu0 0.0
        %482 = vmatpush1.msra.mxu0 %v429
        %483 = vmatprep.subr.mxu0 0.0
        %484 = vmatpush1.msra.mxu0 %v430
        %485 = vmatprep.subr.mxu0 0.0
        %486 = vmatpush1.msra.mxu0 %v431
        %487 = vmatprep.subr.mxu0 0.0
        %488 = vmatpush1.msra.mxu0 %v432
        %489 = vmatprep.subr.mxu0 0.0
        %490 = vmatpush1.msra.mxu0 %v433
        %491 = vmatprep.subr.mxu0 0.0
        %492 = vmatpush1.msra.mxu0 0.0
        %493 = vmatprep.subr.mxu0 0.0
        %494 = vmatpush1.msra.mxu0 0.0
        %495 = vmatprep.subr.mxu0 0.0
        %496 = vmatpush1.msra.mxu0 0.0
        %497 = vmatprep.subr.mxu0 0.0
        %498 = vmatpush1.msra.mxu0 0.0
        %499 = vmatprep.subr.mxu0 0.0
        %500 = vmatpush1.msra.mxu0 0.0
        %501 = vmatprep.subr.mxu0 0.0
        %502 = vmatpush1.msra.mxu0 0.0
        %503 = vmatprep.subr.mxu0 0.0
        %504 = vmatpush1.msra.mxu0 0.0
        %505 = vmatprep.subr.mxu0 0.0
        %506 = vmatpush1.msra.mxu0 0.0
        %507 = vmatprep.subr.mxu0 0.0
        %508 = vmatpush1.msra.mxu0 0.0
        %509 = vmatprep.subr.mxu0 0.0
        %510 = vmatpush1.msra.mxu0 0.0
        %511 = vmatprep.subr.mxu0 0.0
        %512 = vmatpush1.msra.mxu0 0.0
        %513 = vmatprep.subr.mxu0 0.0
        %514 = vmatpush1.msra.mxu0 0.0
        %515 = vmatprep.subr.mxu0 0.0
        %516 = vmatpush1.msra.mxu0 0.0
        %517 = vmatprep.subr.mxu0 0.0
        %518 = vmatpush1.msra.mxu0 0.0
        %519 = vmatprep.subr.mxu0 0.0
        %520 = vmatpush1.msra.mxu0 0.0
        %521 = vmatprep.subr.mxu0 0.0
        %522 = vmatpush1.msra.mxu0 0.0
        %523 = vmatprep.mubr.f32.mxu0 0.0
        %524 = vmatmul.mubr.f32.gmra.mrb[0].mxu0 %v457
        %v525 = vpop.f32.mrb[0].mxu0
        %v526 = vadd.f32 %v439, %v525
        %v527 = vpop.f32.mrb[0].mxu0
        %528 = vdwg.mxu0
        %v529 = vmax.f32 %v526, 0.0
        %v530 = vld [vmem:[%s5] sm:$0xff]
        %v531 = vld [vmem:[%s5 + $0x8] sm:$0xff]
        %v532 = vld [vmem:[%s5 + $0x10] sm:$0xff]
        %v533 = vld [vmem:[%s5 + $0x18] sm:$0xff]
        %v534 = vld [vmem:[%s6] sm:$0x1]
        %v536 = vlaneseq
        %v537 = vshrl.u32 %v536, 7
        %v538 = vsub.s32 0, %v537
        %v539 = vrot.slane %v534, %v538
        %vm541 = vcmask 261120
        %v543 = vsel %vm541, %v529, 0
        %545 = vmatprep.subr.mxu0 0.0
        %546 = vmatpush1.msra.mxu0 %v530
        %547 = vmatprep.subr.mxu0 0.0
        %548 = vmatpush1.msra.mxu0 %v531
        %549 = vmatprep.subr.mxu0 0.0
        %550 = vmatpush1.msra.mxu0 %v532
        %551 = vmatprep.subr.mxu0 0.0
        %552 = vmatpush1.msra.mxu0 %v533
        %553 = vmatprep.subr.mxu0 0.0
        %554 = vmatpush1.msra.mxu0 0.0
        %555 = vmatprep.subr.mxu0 0.0
        %556 = vmatpush1.msra.mxu0 0.0
        %557 = vmatprep.subr.mxu0 0.0
        %558 = vmatpush1.msra.mxu0 0.0
        %559 = vmatprep.subr.mxu0 0.0
        %560 = vmatpush1.msra.mxu0 0.0
        %561 = vmatprep.subr.mxu0 0.0
        %562 = vmatpush1.msra.mxu0 0.0
        %563 = vmatprep.subr.mxu0 0.0
        %564 = vmatpush1.msra.mxu0 0.0
        %565 = vmatprep.subr.mxu0 0.0
        %566 = vmatpush1.msra.mxu0 0.0
        %567 = vmatprep.subr.mxu0 0.0
        %568 = vmatpush1.msra.mxu0 0.0
        %569 = vmatprep.subr.mxu0 0.0
        %570 = vmatpush1.msra.mxu0 0.0
        %571 = vmatprep.subr.mxu0 0.0
        %572 = vmatpush1.msra.mxu0 0.0
        %573 = vmatprep.subr.mxu0 0.0
        %574 = vmatpush1.msra.mxu0 0.0
        %575 = vmatprep.subr.mxu0 0.0
        %576 = vmatpush1.msra.mxu0 0.0
        %577 = vmatprep.subr.mxu0 0.0
        %578 = vmatpush1.msra.mxu0 0.0
        %579 = vmatprep.subr.mxu0 0.0
        %580 = vmatpush1.msra.mxu0 0.0
        %581 = vmatprep.subr.mxu0 0.0
        %582 = vmatpush1.msra.mxu0 0.0
        %583 = vmatprep.subr.mxu0 0.0
        %584 = vmatpush1.msra.mxu0 0.0
        %585 = vmatprep.subr.mxu0 0.0
        %586 = vmatpush1.msra.mxu0 0.0
        %587 = vmatprep.subr.mxu0 0.0
        %588 = vmatpush1.msra.mxu0 0.0
        %589 = vmatprep.subr.mxu0 0.0
        %590 = vmatpush1.msra.mxu0 0.0
        %591 = vmatprep.subr.mxu0 0.0
        %592 = vmatpush1.msra.mxu0 0.0
        %593 = vmatprep.subr.mxu0 0.0
        %594 = vmatpush1.msra.mxu0 0.0
        %595 = vmatprep.subr.mxu0 0.0
        %596 = vmatpush1.msra.mxu0 0.0
        %597 = vmatprep.subr.mxu0 0.0
        %598 = vmatpush1.msra.mxu0 0.0
        %599 = vmatprep.subr.mxu0 0.0
        %600 = vmatpush1.msra.mxu0 0.0
        %601 = vmatprep.subr.mxu0 0.0
        %602 = vmatpush1.msra.mxu0 0.0
        %603 = vmatprep.subr.mxu0 0.0
        %604 = vmatpush1.msra.mxu0 0.0
        %605 = vmatprep.subr.mxu0 0.0
        %606 = vmatpush1.msra.mxu0 0.0
        %607 = vmatprep.subr.mxu0 0.0
        %608 = vmatpush1.msra.mxu0 0.0
        %609 = vmatprep.mubr.f32.mxu0 0.0
        %610 = vmatmul.mubr.f32.gmra.mrb[0].mxu0 %v543
        %v611 = vpop.f32.mrb[0].mxu0
        %v612 = vadd.f32 %v539, %v611
        %v613 = vpop.f32.mrb[0].mxu0
        %614 = vdwg.mxu0
        %vm615 = vcmask 1041408
        %v616 = vsel %vm615, %v612, -inf
        %617 = vmax.xlane.f32.xlu0 %v616
        %v618 = vpop.xlane.xlu0 %617
        %v619 = vsub.f32 %v612, %v618
        %v620 = vmul.f32 %v619, 1.442695
        %v621 = vpow.pop %v620
        %v622 = vsel %vm615, %v621, 0.0
        %623 = vadd.xlane.f32.xlu0 %v622
        %v624 = vpop.xlane.xlu0 %623
        %v625 = vrcp.pop %v624
        %v626 = vmul.f32 %v621, %v625
        %v627 = vsel %vm615, %v626, inf
        %628 = vmin.xlane.f32.xlu0 %v627
        %v629 = vpop.xlane.xlu0 %628
        %v630 = vrot.slane %v629, 4
        %v631 = vmin.f32 %v629, %v630
        %v632 = vrot.slane %v631, 2
        %v633 = vmin.f32 %v631, %v632
        %v634 = vrot.slane %v633, 1
        %v635 = vmin.f32 %v633, %v634
        %s636 = vtos %v635
        %v637 = vstv %s636
        %v638 = vsub.f32 %v626, %v637
        %v639 = vsel %vm615, %v638, -inf
        %640 = vmax.xlane.f32.xlu0 %v639
        %v641 = vpop.xlane.xlu0 %640
        %v642 = vrot.slane %v641, 4
        %v643 = vmax.f32 %v641, %v642
        %v644 = vrot.slane %v643, 2
        %v645 = vmax.f32 %v643, %v644
        %v646 = vrot.slane %v645, 1
        %v647 = vmax.f32 %v645, %v646
        %s648 = vtos %v647
        %v649 = vstv %s648
        %v650 = vrcp.pop %v649
        %v651 = vmul.f32 %v638, %v650
        %v652 = vlaneseq
        %v653 = vshrl.u32 %v652, 7
        %v654 = vstv %s29
        %vm655 = vcmp.eq.s32.totalorder %v653, %v654
        %v656 = vsel %vm655, 1, 0
        %v657 = vcvt.s32.f32 %v656
        %v658 = vmul.f32 %v651, %v657
        %v659 = vsel %vm615, %v658, 0.0
        %v660 = vrot.slane %v659, 4
        %v661 = vadd.f32 %v659, %v660
        %v662 = vrot.slane %v661, 2
        %v663 = vadd.f32 %v661, %v662
        %v664 = vrot.slane %v663, 1
        %v665 = vadd.f32 %v663, %v664
        %666 = vst [vmem:[%s404] sm:$0x1] %v665
        %v667 = vld [vmem:[%s409] sm:$0xff]
        %v668 = vld [vmem:[%s409 + $0x8] sm:$0xff]
        %v669 = vld [vmem:[%s409 + $0x10] sm:$0xff]
        %v670 = vld [vmem:[%s409 + $0x18] sm:$0xff]
        %v671 = vld [vmem:[%s409 + $0x20] sm:$0xff]
        %v672 = vld [vmem:[%s409 + $0x28] sm:$0xff]
        %v673 = vld [vmem:[%s409 + $0x30] sm:$0xff]
        %v674 = vld [vmem:[%s409 + $0x38] sm:$0xff]
        %v675 = vld [vmem:[%s409 + $0x40] sm:$0xff]
        %v676 = vld [vmem:[%s409 + $0x48] sm:$0xff]
        %v677 = vld [vmem:[%s409 + $0x50] sm:$0xff]
        %v678 = vld [vmem:[%s409 + $0x58] sm:$0xff]
        %v679 = vld [vmem:[%s409 + $0x60] sm:$0xff]
        %v680 = vld [vmem:[%s409 + $0x68] sm:$0xff]
        %v681 = vld [vmem:[%s409 + $0x70] sm:$0xff]
        %v682 = vld [vmem:[%s409 + $0x78] sm:$0xff]
        %v683 = vld [vmem:[%s409 + $0x80] sm:$0xff]
        %v684 = vld [vmem:[%s409 + $0x88] sm:$0xff]
        %v685 = vld [vmem:[%s409 + $0x90] sm:$0xff]
        %v686 = vld [vmem:[%s409 + $0x98] sm:$0xff]
        %v687 = vld [vmem:[%s409 + $0xa0] sm:$0xff]
        %v688 = vld [vmem:[%s409 + $0xa8] sm:$0xff]
        %v689 = vld [vmem:[%s409 + $0xb0] sm:$0xff]
        %v690 = vld [vmem:[%s409 + $0xb8] sm:$0xff]
        %v691 = vld [vmem:[%s409 + $0xc0] sm:$0xff]
        %v692 = vld [vmem:[%s409 + $0xc8] sm:$0xff]
        %v693 = vld [vmem:[%s409 + $0xd0] sm:$0xff]
        %v694 = vld [vmem:[%s409 + $0xd8] sm:$0xff]
        %v695 = vld [vmem:[%s409 + $0xe0] sm:$0xff]
        %v696 = vld [vmem:[%s409 + $0xe8] sm:$0xff]
        %v697 = vld [vmem:[%s409 + $0xf0] sm:$0xff]
        %v698 = vld [vmem:[%s409 + $0xf8] sm:$0xff]
        %v699 = vmul.f32 %v667, %v665
        %v700 = vmul.f32 %v668, %v665
        %v701 = vmul.f32 %v669, %v665
        %v702 = vmul.f32 %v670, %v665
        %v703 = vmul.f32 %v671, %v665
        %v704 = vmul.f32 %v672, %v665
        %v705 = vmul.f32 %v673, %v665
        %v706 = vmul.f32 %v674, %v665
        %v707 = vmul.f32 %v675, %v665
        %v708 = vmul.f32 %v676, %v665
        %v709 = vmul.f32 %v677, %v665
        %v710 = vmul.f32 %v678, %v665
        %v711 = vmul.f32 %v679, %v665
        %v712 = vmul.f32 %v680, %v665
        %v713 = vmul.f32 %v681, %v665
        %v714 = vmul.f32 %v682, %v665
        %v715 = vmul.f32 %v683, %v665
        %v716 = vmul.f32 %v684, %v665
        %v717 = vmul.f32 %v685, %v665
        %v718 = vmul.f32 %v686, %v665
        %v719 = vmul.f32 %v687, %v665
        %v720 = vmul.f32 %v688, %v665
        %v721 = vmul.f32 %v689, %v665
        %v722 = vmul.f32 %v690, %v665
        %v723 = vmul.f32 %v691, %v665
        %v724 = vmul.f32 %v692, %v665
        %v725 = vmul.f32 %v693, %v665
        %v726 = vmul.f32 %v694, %v665
        %v727 = vmul.f32 %v695, %v665
        %v728 = vmul.f32 %v696, %v665
        %v729 = vmul.f32 %v697, %v665
        %v730 = vmul.f32 %v698, %v665
        %v731 = vpack.c.bf16 %v700, %v699
        %v732 = vpack.c.bf16 %v702, %v701
        %v733 = vpack.c.bf16 %v704, %v703
        %v734 = vpack.c.bf16 %v706, %v705
        %v735 = vpack.c.bf16 %v708, %v707
        %v736 = vpack.c.bf16 %v710, %v709
        %v737 = vpack.c.bf16 %v712, %v711
        %v738 = vpack.c.bf16 %v714, %v713
        %v739 = vpack.c.bf16 %v716, %v715
        %v740 = vpack.c.bf16 %v718, %v717
        %v741 = vpack.c.bf16 %v720, %v719
        %v742 = vpack.c.bf16 %v722, %v721
        %v743 = vpack.c.bf16 %v724, %v723
        %v744 = vpack.c.bf16 %v726, %v725
        %v745 = vpack.c.bf16 %v728, %v727
        %v746 = vpack.c.bf16 %v730, %v729
        %747 = vst [vmem:[#allocation2] sm:$0xf] 0
        %748 = vst [vmem:[#allocation2 + $0x4] sm:$0xf] 0
        %749 = vst [vmem:[#allocation2 + $0x8] sm:$0x1] 0
        %750 = vst [vmem:[#allocation2 + $0xc] sm:$0xf] 0
        %751 = vst [vmem:[#allocation2 + $0x10] sm:$0xf] 0
        %752 = vst [vmem:[#allocation2 + $0x14] sm:$0x1] 0
        %753 = vst [vmem:[#allocation2 + $0x18] sm:$0xf] 0
        %754 = vst [vmem:[#allocation2 + $0x1c] sm:$0xf] 0
        %755 = vst [vmem:[#allocation2 + $0x20] sm:$0x1] 0
        %756 = vst [vmem:[#allocation2 + $0x24] sm:$0xf] 0
        %757 = vst [vmem:[#allocation2 + $0x28] sm:$0xf] 0
        %758 = vst [vmem:[#allocation2 + $0x2c] sm:$0x1] 0
        %759 = vst [vmem:[#allocation2 + $0x30] sm:$0xf] 0
        %760 = vst [vmem:[#allocation2 + $0x34] sm:$0xf] 0
        %761 = vst [vmem:[#allocation2 + $0x38] sm:$0x1] 0
        %762 = vst [vmem:[#allocation2 + $0x3c] sm:$0xf] 0
        %763 = vst [vmem:[#allocation2 + $0x40] sm:$0xf] 0
        %764 = vst [vmem:[#allocation2 + $0x44] sm:$0x1] 0
        %765 = vst [vmem:[#allocation2 + $0x48] sm:$0xf] 0
        %766 = vst [vmem:[#allocation2 + $0x4c] sm:$0xf] 0
        %767 = vst [vmem:[#allocation2 + $0x50] sm:$0x1] 0
        %768 = vst [vmem:[#allocation2 + $0x54] sm:$0xf] 0
        %769 = vst [vmem:[#allocation2 + $0x58] sm:$0xf] 0
        %770 = vst [vmem:[#allocation2 + $0x5c] sm:$0x1] 0
        %771 = vst [vmem:[#allocation2 + $0x60] sm:$0xf] 0
        %772 = vst [vmem:[#allocation2 + $0x64] sm:$0xf] 0
        %773 = vst [vmem:[#allocation2 + $0x68] sm:$0x1] 0
        %774 = vst [vmem:[#allocation2 + $0x6c] sm:$0xf] 0
        %775 = vst [vmem:[#allocation2 + $0x70] sm:$0xf] 0
        %776 = vst [vmem:[#allocation2 + $0x74] sm:$0x1] 0
        %777 = vst [vmem:[#allocation2 + $0x78] sm:$0xf] 0
        %778 = vst [vmem:[#allocation2 + $0x7c] sm:$0xf] 0
        %779 = vst [vmem:[#allocation2 + $0x80] sm:$0x1] 0
        %780 = vst [vmem:[#allocation2 + $0x84] sm:$0xf] 0
        %781 = vst [vmem:[#allocation2 + $0x88] sm:$0xf] 0
        %782 = vst [vmem:[#allocation2 + $0x8c] sm:$0x1] 0
        %783 = vst [vmem:[#allocation2 + $0x90] sm:$0xf] 0
        %784 = vst [vmem:[#allocation2 + $0x94] sm:$0xf] 0
        %785 = vst [vmem:[#allocation2 + $0x98] sm:$0x1] 0
        %786 = vst [vmem:[#allocation2 + $0x9c] sm:$0xf] 0
        %787 = vst [vmem:[#allocation2 + $0xa0] sm:$0xf] 0
        %788 = vst [vmem:[#allocation2 + $0xa4] sm:$0x1] 0
        %789 = vst [vmem:[#allocation2 + $0xa8] sm:$0xf] 0
        %790 = vst [vmem:[#allocation2 + $0xac] sm:$0xf] 0
        %791 = vst [vmem:[#allocation2 + $0xb0] sm:$0x1] 0
        %792 = vst [vmem:[#allocation2 + $0xb4] sm:$0xf] 0
        %793 = vst [vmem:[#allocation2 + $0xb8] sm:$0xf] 0
        %794 = vst [vmem:[#allocation2 + $0xbc] sm:$0x1] 0
        %795 = vst [vmem:[#allocation2 + $0xc0] sm:$0xf] 0
        %796 = vst [vmem:[#allocation2 + $0xc4] sm:$0xf] 0
        %797 = vst [vmem:[#allocation2 + $0xc8] sm:$0x1] 0
        %798 = vst [vmem:[#allocation2 + $0xcc] sm:$0xf] 0
        %799 = vst [vmem:[#allocation2 + $0xd0] sm:$0xf] 0
        %800 = vst [vmem:[#allocation2 + $0xd4] sm:$0x1] 0
        %v817 = vunpack.c.l.b16 %v731
        %v818 = vunpack.c.h.b16 %v731
        %v819 = vunpack.c.l.b16 %v732
        %v820 = vunpack.c.h.b16 %v732
        %v821 = vunpack.c.l.b16 %v733
        %v822 = vunpack.c.h.b16 %v733
        %v823 = vunpack.c.l.b16 %v734
        %v824 = vunpack.c.h.b16 %v734
        %v825 = vunpack.c.l.b16 %v735
        %v826 = vunpack.c.h.b16 %v735
        %v827 = vunpack.c.l.b16 %v736
        %v828 = vunpack.c.h.b16 %v736
        %v829 = vunpack.c.l.b16 %v737
        %v830 = vunpack.c.h.b16 %v737
        %v831 = vunpack.c.l.b16 %v738
        %v832 = vunpack.c.h.b16 %v738
        %v833 = vunpack.c.l.b16 %v739
        %v834 = vunpack.c.h.b16 %v739
        %v835 = vunpack.c.l.b16 %v740
        %v836 = vunpack.c.h.b16 %v740
        %v837 = vunpack.c.l.b16 %v741
        %v838 = vunpack.c.h.b16 %v741
        %v839 = vunpack.c.l.b16 %v742
        %v840 = vunpack.c.h.b16 %v742
        %v841 = vunpack.c.l.b16 %v743
        %v842 = vunpack.c.h.b16 %v743
        %v843 = vunpack.c.l.b16 %v744
        %v844 = vunpack.c.h.b16 %v744
        %v845 = vunpack.c.l.b16 %v745
        %v846 = vunpack.c.h.b16 %v745
        %v847 = vunpack.c.l.b16 %v746
        %v848 = vunpack.c.h.b16 %v746
        %v849 = vpack.c.b16 %v817, %v817
        %v850 = vpack.c.b16 %v818, %v818
        %v851 = vpack.c.b16 %v819, %v819
        %v852 = vpack.c.b16 %v820, %v820
        %v853 = vpack.c.b16 %v821, %v821
        %v854 = vpack.c.b16 %v822, %v822
        %v855 = vpack.c.b16 %v823, %v823
        %v856 = vpack.c.b16 %v824, %v824
        %v857 = vpack.c.b16 %v825, %v825
        %v858 = vpack.c.b16 %v826, %v826
        %v859 = vpack.c.b16 %v827, %v827
        %v860 = vpack.c.b16 %v828, %v828
        %v861 = vpack.c.b16 %v829, %v829
        %v862 = vpack.c.b16 %v830, %v830
        %v863 = vpack.c.b16 %v831, %v831
        %v864 = vpack.c.b16 %v832, %v832
        %v865 = vpack.c.b16 %v833, %v833
        %v866 = vpack.c.b16 %v834, %v834
        %v867 = vpack.c.b16 %v835, %v835
        %v868 = vpack.c.b16 %v836, %v836
        %v869 = vpack.c.b16 %v837, %v837
        %v870 = vpack.c.b16 %v838, %v838
        %v871 = vpack.c.b16 %v839, %v839
        %v872 = vpack.c.b16 %v840, %v840
        %v873 = vpack.c.b16 %v841, %v841
        %v874 = vpack.c.b16 %v842, %v842
        %v875 = vpack.c.b16 %v843, %v843
        %v876 = vpack.c.b16 %v844, %v844
        %v877 = vpack.c.b16 %v845, %v845
        %v878 = vpack.c.b16 %v846, %v846
        %v879 = vpack.c.b16 %v847, %v847
        %v880 = vpack.c.b16 %v848, %v848
        %vm881 = vsmask.f32 256
        %vm882 = vsmask.f32 4368
        %vm883 = vmor %vm881, %vm882
        %v885 = vshrl.u32 %v849, 16
        %v887 = vrot.slane %v885, 7
        %v888 = vshll.u32 %v849, 16
        %v890 = vor.u32 %v887, %v888
        %v891 = vrot.slane %v887, 4
        %v893 = vshrl.u32 %v850, 16
        %v895 = vrot.slane %v893, 7
        %v896 = vshll.u32 %v850, 16
        %v898 = vor.u32 %v895, %v896
        %v899 = vsel %vm883, %v891, %v898
        %v900 = vrot.slane %v895, 4
        %v902 = vshrl.u32 %v851, 16
        %v904 = vrot.slane %v902, 7
        %v905 = vshll.u32 %v851, 16
        %v907 = vor.u32 %v904, %v905
        %v908 = vrot.slane %v904, 4
        %v910 = vshrl.u32 %v852, 16
        %v912 = vrot.slane %v910, 7
        %v913 = vshll.u32 %v852, 16
        %v915 = vor.u32 %v912, %v913
        %v916 = vsel %vm883, %v908, %v915
        %v917 = vrot.slane %v912, 4
        %v919 = vshrl.u32 %v853, 16
        %v921 = vrot.slane %v919, 7
        %v922 = vshll.u32 %v853, 16
        %v924 = vor.u32 %v921, %v922
        %v925 = vrot.slane %v921, 4
        %v927 = vshrl.u32 %v854, 16
        %v929 = vrot.slane %v927, 7
        %v930 = vshll.u32 %v854, 16
        %v932 = vor.u32 %v929, %v930
        %v933 = vsel %vm883, %v925, %v932
        %v934 = vrot.slane %v929, 4
        %v936 = vshrl.u32 %v855, 16
        %v938 = vrot.slane %v936, 7
        %v939 = vshll.u32 %v855, 16
        %v941 = vor.u32 %v938, %v939
        %v942 = vrot.slane %v938, 4
        %v944 = vshrl.u32 %v856, 16
        %v946 = vrot.slane %v944, 7
        %v947 = vshll.u32 %v856, 16
        %v949 = vor.u32 %v946, %v947
        %v950 = vsel %vm883, %v942, %v949
        %v951 = vrot.slane %v946, 4
        %v953 = vshrl.u32 %v857, 16
        %v955 = vrot.slane %v953, 7
        %v956 = vshll.u32 %v857, 16
        %v958 = vor.u32 %v955, %v956
        %v959 = vrot.slane %v955, 4
        %v961 = vshrl.u32 %v858, 16
        %v963 = vrot.slane %v961, 7
        %v964 = vshll.u32 %v858, 16
        %v966 = vor.u32 %v963, %v964
        %v967 = vsel %vm883, %v959, %v966
        %v968 = vrot.slane %v963, 4
        %v970 = vshrl.u32 %v859, 16
        %v972 = vrot.slane %v970, 7
        %v973 = vshll.u32 %v859, 16
        %v975 = vor.u32 %v972, %v973
        %v976 = vrot.slane %v972, 4
        %v978 = vshrl.u32 %v860, 16
        %v980 = vrot.slane %v978, 7
        %v981 = vshll.u32 %v860, 16
        %v983 = vor.u32 %v980, %v981
        %v984 = vsel %vm883, %v976, %v983
        %v985 = vrot.slane %v980, 4
        %v987 = vshrl.u32 %v861, 16
        %v989 = vrot.slane %v987, 7
        %v990 = vshll.u32 %v861, 16
        %v992 = vor.u32 %v989, %v990
        %v993 = vrot.slane %v989, 4
        %v995 = vshrl.u32 %v862, 16
        %v997 = vrot.slane %v995, 7
        %v998 = vshll.u32 %v862, 16
        %v1000 = vor.u32 %v997, %v998
        %v1001 = vsel %vm883, %v993, %v1000
        %v1002 = vrot.slane %v997, 4
        %v1004 = vshrl.u32 %v863, 16
        %v1006 = vrot.slane %v1004, 7
        %v1007 = vshll.u32 %v863, 16
        %v1009 = vor.u32 %v1006, %v1007
        %v1010 = vrot.slane %v1006, 4
        %v1012 = vshrl.u32 %v864, 16
        %v1014 = vrot.slane %v1012, 7
        %v1015 = vshll.u32 %v864, 16
        %v1017 = vor.u32 %v1014, %v1015
        %v1018 = vsel %vm883, %v1010, %v1017
        %v1019 = vrot.slane %v1014, 4
        %v1021 = vshrl.u32 %v865, 16
        %v1023 = vrot.slane %v1021, 7
        %v1024 = vshll.u32 %v865, 16
        %v1026 = vor.u32 %v1023, %v1024
        %v1027 = vrot.slane %v1023, 4
        %v1029 = vshrl.u32 %v866, 16
        %v1031 = vrot.slane %v1029, 7
        %v1032 = vshll.u32 %v866, 16
        %v1034 = vor.u32 %v1031, %v1032
        %v1035 = vsel %vm883, %v1027, %v1034
        %v1036 = vrot.slane %v1031, 4
        %v1038 = vshrl.u32 %v867, 16
        %v1040 = vrot.slane %v1038, 7
        %v1041 = vshll.u32 %v867, 16
        %v1043 = vor.u32 %v1040, %v1041
        %v1044 = vrot.slane %v1040, 4
        %v1046 = vshrl.u32 %v868, 16
        %v1048 = vrot.slane %v1046, 7
        %v1049 = vshll.u32 %v868, 16
        %v1051 = vor.u32 %v1048, %v1049
        %v1052 = vsel %vm883, %v1044, %v1051
        %v1053 = vrot.slane %v1048, 4
        %v1055 = vshrl.u32 %v869, 16
        %v1057 = vrot.slane %v1055, 7
        %v1058 = vshll.u32 %v869, 16
        %v1060 = vor.u32 %v1057, %v1058
        %v1061 = vrot.slane %v1057, 4
        %v1063 = vshrl.u32 %v870, 16
        %v1065 = vrot.slane %v1063, 7
        %v1066 = vshll.u32 %v870, 16
        %v1068 = vor.u32 %v1065, %v1066
        %v1069 = vsel %vm883, %v1061, %v1068
        %v1070 = vrot.slane %v1065, 4
        %v1072 = vshrl.u32 %v871, 16
        %v1074 = vrot.slane %v1072, 7
        %v1075 = vshll.u32 %v871, 16
        %v1077 = vor.u32 %v1074, %v1075
        %v1078 = vrot.slane %v1074, 4
        %v1080 = vshrl.u32 %v872, 16
        %v1082 = vrot.slane %v1080, 7
        %v1083 = vshll.u32 %v872, 16
        %v1085 = vor.u32 %v1082, %v1083
        %v1086 = vsel %vm883, %v1078, %v1085
        %v1087 = vrot.slane %v1082, 4
        %v1089 = vshrl.u32 %v873, 16
        %v1091 = vrot.slane %v1089, 7
        %v1092 = vshll.u32 %v873, 16
        %v1094 = vor.u32 %v1091, %v1092
        %v1095 = vrot.slane %v1091, 4
        %v1097 = vshrl.u32 %v874, 16
        %v1099 = vrot.slane %v1097, 7
        %v1100 = vshll.u32 %v874, 16
        %v1102 = vor.u32 %v1099, %v1100
        %v1103 = vsel %vm883, %v1095, %v1102
        %v1104 = vrot.slane %v1099, 4
        %v1106 = vshrl.u32 %v875, 16
        %v1108 = vrot.slane %v1106, 7
        %v1109 = vshll.u32 %v875, 16
        %v1111 = vor.u32 %v1108, %v1109
        %v1112 = vrot.slane %v1108, 4
        %v1114 = vshrl.u32 %v876, 16
        %v1116 = vrot.slane %v1114, 7
        %v1117 = vshll.u32 %v876, 16
        %v1119 = vor.u32 %v1116, %v1117
        %v1120 = vsel %vm883, %v1112, %v1119
        %v1121 = vrot.slane %v1116, 4
        %v1123 = vshrl.u32 %v877, 16
        %v1125 = vrot.slane %v1123, 7
        %v1126 = vshll.u32 %v877, 16
        %v1128 = vor.u32 %v1125, %v1126
        %v1129 = vrot.slane %v1125, 4
        %v1131 = vshrl.u32 %v878, 16
        %v1133 = vrot.slane %v1131, 7
        %v1134 = vshll.u32 %v878, 16
        %v1136 = vor.u32 %v1133, %v1134
        %v1137 = vsel %vm883, %v1129, %v1136
        %v1138 = vrot.slane %v1133, 4
        %v1140 = vshrl.u32 %v879, 16
        %v1142 = vrot.slane %v1140, 7
        %v1143 = vshll.u32 %v879, 16
        %v1145 = vor.u32 %v1142, %v1143
        %v1146 = vrot.slane %v1142, 4
        %v1148 = vshrl.u32 %v880, 16
        %v1150 = vrot.slane %v1148, 7
        %v1151 = vshll.u32 %v880, 16
        %v1153 = vor.u32 %v1150, %v1151
        %v1154 = vsel %vm883, %v1146, %v1153
        %v1155 = vrot.slane %v1150, 4
        %s1204 = scalar_lea.vmem [#allocation2], 12
        %vm1205 = vcmask 1043456
        %vm1206 = vsmask.f32 7938
        %vm1207 = vmand %vm1205, %vm1206
        %v1208 = vld [vmem:[%s1204] sm:$0xf]
        %v1209 = vsel %vm1207, %v890, %v1208
        %1210 = vst [vmem:[%s1204] sm:$0xf] %v1209
        %1211 = vst [vmem:[%s1204 + $0x4] sm:$0xf] %v899
        %vm1212 = vcmask 1040384
        %vm1213 = vmand %vm1212, %vm881
        %v1214 = vld [vmem:[%s1204 + $0x8] sm:$0x1]
        %v1215 = vsel %vm1213, %v900, %v1214
        %1216 = vst [vmem:[%s1204 + $0x8] sm:$0x1] %v1215
        %v1217 = vld [vmem:[%s1204 + $0xc] sm:$0xf]
        %v1218 = vsel %vm1207, %v907, %v1217
        %1219 = vst [vmem:[%s1204 + $0xc] sm:$0xf] %v1218
        %1220 = vst [vmem:[%s1204 + $0x10] sm:$0xf] %v916
        %v1221 = vld [vmem:[%s1204 + $0x14] sm:$0x1]
        %v1222 = vsel %vm1213, %v917, %v1221
        %1223 = vst [vmem:[%s1204 + $0x14] sm:$0x1] %v1222
        %v1224 = vld [vmem:[%s1204 + $0x18] sm:$0xf]
        %v1225 = vsel %vm1207, %v924, %v1224
        %1226 = vst [vmem:[%s1204 + $0x18] sm:$0xf] %v1225
        %1227 = vst [vmem:[%s1204 + $0x1c] sm:$0xf] %v933
        %v1228 = vld [vmem:[%s1204 + $0x20] sm:$0x1]
        %v1229 = vsel %vm1213, %v934, %v1228
        %1230 = vst [vmem:[%s1204 + $0x20] sm:$0x1] %v1229
        %v1231 = vld [vmem:[%s1204 + $0x24] sm:$0xf]
        %v1232 = vsel %vm1207, %v941, %v1231
        %1233 = vst [vmem:[%s1204 + $0x24] sm:$0xf] %v1232
        %1234 = vst [vmem:[%s1204 + $0x28] sm:$0xf] %v950
        %v1235 = vld [vmem:[%s1204 + $0x2c] sm:$0x1]
        %v1236 = vsel %vm1213, %v951, %v1235
        %1237 = vst [vmem:[%s1204 + $0x2c] sm:$0x1] %v1236
        %v1238 = vld [vmem:[%s1204 + $0x30] sm:$0xf]
        %v1239 = vsel %vm1207, %v958, %v1238
        %1240 = vst [vmem:[%s1204 + $0x30] sm:$0xf] %v1239
        %1241 = vst [vmem:[%s1204 + $0x34] sm:$0xf] %v967
        %v1242 = vld [vmem:[%s1204 + $0x38] sm:$0x1]
        %v1243 = vsel %vm1213, %v968, %v1242
        %1244 = vst [vmem:[%s1204 + $0x38] sm:$0x1] %v1243
        %v1245 = vld [vmem:[%s1204 + $0x3c] sm:$0xf]
        %v1246 = vsel %vm1207, %v975, %v1245
        %1247 = vst [vmem:[%s1204 + $0x3c] sm:$0xf] %v1246
        %1248 = vst [vmem:[%s1204 + $0x40] sm:$0xf] %v984
        %v1249 = vld [vmem:[%s1204 + $0x44] sm:$0x1]
        %v1250 = vsel %vm1213, %v985, %v1249
        %1251 = vst [vmem:[%s1204 + $0x44] sm:$0x1] %v1250
        %v1252 = vld [vmem:[%s1204 + $0x48] sm:$0xf]
        %v1253 = vsel %vm1207, %v992, %v1252
        %1254 = vst [vmem:[%s1204 + $0x48] sm:$0xf] %v1253
        %1255 = vst [vmem:[%s1204 + $0x4c] sm:$0xf] %v1001
        %v1256 = vld [vmem:[%s1204 + $0x50] sm:$0x1]
        %v1257 = vsel %vm1213, %v1002, %v1256
        %1258 = vst [vmem:[%s1204 + $0x50] sm:$0x1] %v1257
        %v1259 = vld [vmem:[%s1204 + $0x54] sm:$0xf]
        %v1260 = vsel %vm1207, %v1009, %v1259
        %1261 = vst [vmem:[%s1204 + $0x54] sm:$0xf] %v1260
        %1262 = vst [vmem:[%s1204 + $0x58] sm:$0xf] %v1018
        %v1263 = vld [vmem:[%s1204 + $0x5c] sm:$0x1]
        %v1264 = vsel %vm1213, %v1019, %v1263
        %1265 = vst [vmem:[%s1204 + $0x5c] sm:$0x1] %v1264
        %v1266 = vld [vmem:[%s1204 + $0x60] sm:$0xf]
        %v1267 = vsel %vm1207, %v1026, %v1266
        %1268 = vst [vmem:[%s1204 + $0x60] sm:$0xf] %v1267
        %1269 = vst [vmem:[%s1204 + $0x64] sm:$0xf] %v1035
        %v1270 = vld [vmem:[%s1204 + $0x68] sm:$0x1]
        %v1271 = vsel %vm1213, %v1036, %v1270
        %1272 = vst [vmem:[%s1204 + $0x68] sm:$0x1] %v1271
        %v1273 = vld [vmem:[%s1204 + $0x6c] sm:$0xf]
        %v1274 = vsel %vm1207, %v1043, %v1273
        %1275 = vst [vmem:[%s1204 + $0x6c] sm:$0xf] %v1274
        %1276 = vst [vmem:[%s1204 + $0x70] sm:$0xf] %v1052
        %v1277 = vld [vmem:[%s1204 + $0x74] sm:$0x1]
        %v1278 = vsel %vm1213, %v1053, %v1277
        %1279 = vst [vmem:[%s1204 + $0x74] sm:$0x1] %v1278
        %v1280 = vld [vmem:[%s1204 + $0x78] sm:$0xf]
        %v1281 = vsel %vm1207, %v1060, %v1280
        %1282 = vst [vmem:[%s1204 + $0x78] sm:$0xf] %v1281
        %1283 = vst [vmem:[%s1204 + $0x7c] sm:$0xf] %v1069
        %v1284 = vld [vmem:[%s1204 + $0x80] sm:$0x1]
        %v1285 = vsel %vm1213, %v1070, %v1284
        %1286 = vst [vmem:[%s1204 + $0x80] sm:$0x1] %v1285
        %v1287 = vld [vmem:[%s1204 + $0x84] sm:$0xf]
        %v1288 = vsel %vm1207, %v1077, %v1287
        %1289 = vst [vmem:[%s1204 + $0x84] sm:$0xf] %v1288
        %1290 = vst [vmem:[%s1204 + $0x88] sm:$0xf] %v1086
        %v1291 = vld [vmem:[%s1204 + $0x8c] sm:$0x1]
        %v1292 = vsel %vm1213, %v1087, %v1291
        %1293 = vst [vmem:[%s1204 + $0x8c] sm:$0x1] %v1292
        %v1294 = vld [vmem:[%s1204 + $0x90] sm:$0xf]
        %v1295 = vsel %vm1207, %v1094, %v1294
        %1296 = vst [vmem:[%s1204 + $0x90] sm:$0xf] %v1295
        %1297 = vst [vmem:[%s1204 + $0x94] sm:$0xf] %v1103
        %v1298 = vld [vmem:[%s1204 + $0x98] sm:$0x1]
        %v1299 = vsel %vm1213, %v1104, %v1298
        %1300 = vst [vmem:[%s1204 + $0x98] sm:$0x1] %v1299
        %v1301 = vld [vmem:[%s1204 + $0x9c] sm:$0xf]
        %v1302 = vsel %vm1207, %v1111, %v1301
        %1303 = vst [vmem:[%s1204 + $0x9c] sm:$0xf] %v1302
        %1304 = vst [vmem:[%s1204 + $0xa0] sm:$0xf] %v1120
        %v1305 = vld [vmem:[%s1204 + $0xa4] sm:$0x1]
        %v1306 = vsel %vm1213, %v1121, %v1305
        %1307 = vst [vmem:[%s1204 + $0xa4] sm:$0x1] %v1306
        %v1308 = vld [vmem:[%s1204 + $0xa8] sm:$0xf]
        %v1309 = vsel %vm1207, %v1128, %v1308
        %1310 = vst [vmem:[%s1204 + $0xa8] sm:$0xf] %v1309
        %1311 = vst [vmem:[%s1204 + $0xac] sm:$0xf] %v1137
        %v1312 = vld [vmem:[%s1204 + $0xb0] sm:$0x1]
        %v1313 = vsel %vm1213, %v1138, %v1312
        %1314 = vst [vmem:[%s1204 + $0xb0] sm:$0x1] %v1313
        %v1315 = vld [vmem:[%s1204 + $0xb4] sm:$0xf]
        %v1316 = vsel %vm1207, %v1145, %v1315
        %1317 = vst [vmem:[%s1204 + $0xb4] sm:$0xf] %v1316
        %1318 = vst [vmem:[%s1204 + $0xb8] sm:$0xf] %v1154
        %v1319 = vld [vmem:[%s1204 + $0xbc] sm:$0x1]
        %v1320 = vsel %vm1213, %v1155, %v1319
        %1321 = vst [vmem:[%s1204 + $0xbc] sm:$0x1] %v1320
        %v1322 = vld [vmem:[#allocation2] sm:$0xf]
        %v1323 = vld [vmem:[#allocation2 + $0x4] sm:$0xf]
        %v1324 = vld [vmem:[#allocation2 + $0xc] sm:$0xf]
        %v1325 = vld [vmem:[#allocation2 + $0x10] sm:$0xf]
        %v1326 = vld [vmem:[#allocation2 + $0x18] sm:$0xf]
        %v1327 = vld [vmem:[#allocation2 + $0x1c] sm:$0xf]
        %v1328 = vld [vmem:[#allocation2 + $0x24] sm:$0xf]
        %v1329 = vld [vmem:[#allocation2 + $0x28] sm:$0xf]
        %v1330 = vld [vmem:[#allocation2 + $0x30] sm:$0xf]
        %v1331 = vld [vmem:[#allocation2 + $0x34] sm:$0xf]
        %v1332 = vld [vmem:[#allocation2 + $0x3c] sm:$0xf]
        %v1333 = vld [vmem:[#allocation2 + $0x40] sm:$0xf]
        %v1334 = vld [vmem:[#allocation2 + $0x48] sm:$0xf]
        %v1335 = vld [vmem:[#allocation2 + $0x4c] sm:$0xf]
        %v1336 = vld [vmem:[#allocation2 + $0x54] sm:$0xf]
        %v1337 = vld [vmem:[#allocation2 + $0x58] sm:$0xf]
        %v1338 = vld [vmem:[#allocation2 + $0x60] sm:$0xf]
        %v1339 = vld [vmem:[#allocation2 + $0x64] sm:$0xf]
        %v1340 = vld [vmem:[#allocation2 + $0x6c] sm:$0xf]
        %v1341 = vld [vmem:[#allocation2 + $0x70] sm:$0xf]
        %v1342 = vld [vmem:[#allocation2 + $0x78] sm:$0xf]
        %v1343 = vld [vmem:[#allocation2 + $0x7c] sm:$0xf]
        %v1344 = vld [vmem:[#allocation2 + $0x84] sm:$0xf]
        %v1345 = vld [vmem:[#allocation2 + $0x88] sm:$0xf]
        %v1346 = vld [vmem:[#allocation2 + $0x90] sm:$0xf]
        %v1347 = vld [vmem:[#allocation2 + $0x94] sm:$0xf]
        %v1348 = vld [vmem:[#allocation2 + $0x9c] sm:$0xf]
        %v1349 = vld [vmem:[#allocation2 + $0xa0] sm:$0xf]
        %v1350 = vld [vmem:[#allocation2 + $0xa8] sm:$0xf]
        %v1351 = vld [vmem:[#allocation2 + $0xac] sm:$0xf]
        %v1352 = vld [vmem:[#allocation2 + $0xb4] sm:$0xf]
        %v1353 = vld [vmem:[#allocation2 + $0xb8] sm:$0xf]
        %v1386 = vunpack.c.l.b16 %v1322
        %v1387 = vunpack.c.l.b16 %v1323
        %v1388 = vunpack.c.l.b16 %v1324
        %v1389 = vunpack.c.l.b16 %v1325
        %v1390 = vunpack.c.l.b16 %v1326
        %v1391 = vunpack.c.l.b16 %v1327
        %v1392 = vunpack.c.l.b16 %v1328
        %v1393 = vunpack.c.l.b16 %v1329
        %v1394 = vunpack.c.l.b16 %v1330
        %v1395 = vunpack.c.l.b16 %v1331
        %v1396 = vunpack.c.l.b16 %v1332
        %v1397 = vunpack.c.l.b16 %v1333
        %v1398 = vunpack.c.l.b16 %v1334
        %v1399 = vunpack.c.l.b16 %v1335
        %v1400 = vunpack.c.l.b16 %v1336
        %v1401 = vunpack.c.l.b16 %v1337
        %v1402 = vunpack.c.l.b16 %v1338
        %v1403 = vunpack.c.l.b16 %v1339
        %v1404 = vunpack.c.l.b16 %v1340
        %v1405 = vunpack.c.l.b16 %v1341
        %v1406 = vunpack.c.l.b16 %v1342
        %v1407 = vunpack.c.l.b16 %v1343
        %v1408 = vunpack.c.l.b16 %v1344
        %v1409 = vunpack.c.l.b16 %v1345
        %v1410 = vunpack.c.l.b16 %v1346
        %v1411 = vunpack.c.l.b16 %v1347
        %v1412 = vunpack.c.l.b16 %v1348
        %v1413 = vunpack.c.l.b16 %v1349
        %v1414 = vunpack.c.l.b16 %v1350
        %v1415 = vunpack.c.l.b16 %v1351
        %v1416 = vunpack.c.l.b16 %v1352
        %v1417 = vunpack.c.l.b16 %v1353
        %v1418 = vpack.c.b16 %v1387, %v1386
        %v1419 = vpack.c.b16 %v1389, %v1388
        %v1420 = vpack.c.b16 %v1391, %v1390
        %v1421 = vpack.c.b16 %v1393, %v1392
        %v1422 = vpack.c.b16 %v1395, %v1394
        %v1423 = vpack.c.b16 %v1397, %v1396
        %v1424 = vpack.c.b16 %v1399, %v1398
        %v1425 = vpack.c.b16 %v1401, %v1400
        %v1426 = vpack.c.b16 %v1403, %v1402
        %v1427 = vpack.c.b16 %v1405, %v1404
        %v1428 = vpack.c.b16 %v1407, %v1406
        %v1429 = vpack.c.b16 %v1409, %v1408
        %v1430 = vpack.c.b16 %v1411, %v1410
        %v1431 = vpack.c.b16 %v1413, %v1412
        %v1432 = vpack.c.b16 %v1415, %v1414
        %v1433 = vpack.c.b16 %v1417, %v1416
        %1450 = vst [vmem:[#allocation3] sm:$0xff] %v1418
        %1451 = vst [vmem:[#allocation3 + $0x48] sm:$0xff] %v1419
        %1452 = vst [vmem:[#allocation3 + $0x90] sm:$0xff] %v1420
        %1453 = vst [vmem:[#allocation3 + $0xd8] sm:$0xff] %v1421
        %1454 = vst [vmem:[#allocation3 + $0x120] sm:$0xff] %v1422
        %1455 = vst [vmem:[#allocation3 + $0x168] sm:$0xff] %v1423
        %1456 = vst [vmem:[#allocation3 + $0x1b0] sm:$0xff] %v1424
        %1457 = vst [vmem:[#allocation3 + $0x1f8] sm:$0xff] %v1425
        %1458 = vst [vmem:[#allocation3 + $0x240] sm:$0xff] %v1426
        %1459 = vst [vmem:[#allocation3 + $0x288] sm:$0xff] %v1427
        %1460 = vst [vmem:[#allocation3 + $0x2d0] sm:$0xff] %v1428
        %1461 = vst [vmem:[#allocation3 + $0x318] sm:$0xff] %v1429
        %1462 = vst [vmem:[#allocation3 + $0x360] sm:$0xff] %v1430
        %1463 = vst [vmem:[#allocation3 + $0x3a8] sm:$0xff] %v1431
        %1464 = vst [vmem:[#allocation3 + $0x3f0] sm:$0xff] %v1432
        %1465 = vst [vmem:[#allocation3 + $0x438] sm:$0xff] %v1433
        %v1466 = vld [vmem:[#allocation2] sm:$0xf]
        %v1467 = vld [vmem:[#allocation2 + $0x4] sm:$0xf]
        %v1468 = vld [vmem:[#allocation2 + $0x8] sm:$0x1]
        %v1469 = vld [vmem:[#allocation2 + $0xc] sm:$0xf]
        %v1470 = vld [vmem:[#allocation2 + $0x10] sm:$0xf]
        %v1471 = vld [vmem:[#allocation2 + $0x14] sm:$0x1]
        %v1472 = vld [vmem:[#allocation2 + $0x18] sm:$0xf]
        %v1473 = vld [vmem:[#allocation2 + $0x1c] sm:$0xf]
        %v1474 = vld [vmem:[#allocation2 + $0x20] sm:$0x1]
        %v1475 = vld [vmem:[#allocation2 + $0x24] sm:$0xf]
        %v1476 = vld [vmem:[#allocation2 + $0x28] sm:$0xf]
        %v1477 = vld [vmem:[#allocation2 + $0x2c] sm:$0x1]
        %v1478 = vld [vmem:[#allocation2 + $0x30] sm:$0xf]
        %v1479 = vld [vmem:[#allocation2 + $0x34] sm:$0xf]
        %v1480 = vld [vmem:[#allocation2 + $0x38] sm:$0x1]
        %v1481 = vld [vmem:[#allocation2 + $0x3c] sm:$0xf]
        %v1482 = vld [vmem:[#allocation2 + $0x40] sm:$0xf]
        %v1483 = vld [vmem:[#allocation2 + $0x44] sm:$0x1]
        %v1484 = vld [vmem:[#allocation2 + $0x48] sm:$0xf]
        %v1485 = vld [vmem:[#allocation2 + $0x4c] sm:$0xf]
        %v1486 = vld [vmem:[#allocation2 + $0x50] sm:$0x1]
        %v1487 = vld [vmem:[#allocation2 + $0x54] sm:$0xf]
        %v1488 = vld [vmem:[#allocation2 + $0x58] sm:$0xf]
        %v1489 = vld [vmem:[#allocation2 + $0x5c] sm:$0x1]
        %v1490 = vld [vmem:[#allocation2 + $0x60] sm:$0xf]
        %v1491 = vld [vmem:[#allocation2 + $0x64] sm:$0xf]
        %v1492 = vld [vmem:[#allocation2 + $0x68] sm:$0x1]
        %v1493 = vld [vmem:[#allocation2 + $0x6c] sm:$0xf]
        %v1494 = vld [vmem:[#allocation2 + $0x70] sm:$0xf]
        %v1495 = vld [vmem:[#allocation2 + $0x74] sm:$0x1]
        %v1496 = vld [vmem:[#allocation2 + $0x78] sm:$0xf]
        %v1497 = vld [vmem:[#allocation2 + $0x7c] sm:$0xf]
        %v1498 = vld [vmem:[#allocation2 + $0x80] sm:$0x1]
        %v1499 = vld [vmem:[#allocation2 + $0x84] sm:$0xf]
        %v1500 = vld [vmem:[#allocation2 + $0x88] sm:$0xf]
        %v1501 = vld [vmem:[#allocation2 + $0x8c] sm:$0x1]
        %v1502 = vld [vmem:[#allocation2 + $0x90] sm:$0xf]
        %v1503 = vld [vmem:[#allocation2 + $0x94] sm:$0xf]
        %v1504 = vld [vmem:[#allocation2 + $0x98] sm:$0x1]
        %v1505 = vld [vmem:[#allocation2 + $0x9c] sm:$0xf]
        %v1506 = vld [vmem:[#allocation2 + $0xa0] sm:$0xf]
        %v1507 = vld [vmem:[#allocation2 + $0xa4] sm:$0x1]
        %v1508 = vld [vmem:[#allocation2 + $0xa8] sm:$0xf]
        %v1509 = vld [vmem:[#allocation2 + $0xac] sm:$0xf]
        %v1510 = vld [vmem:[#allocation2 + $0xb0] sm:$0x1]
        %v1511 = vld [vmem:[#allocation2 + $0xb4] sm:$0xf]
        %v1512 = vld [vmem:[#allocation2 + $0xb8] sm:$0xf]
        %v1513 = vld [vmem:[#allocation2 + $0xbc] sm:$0x1]
        %vm1514 = vsmask.f32 3328
        %vm1515 = vsmask.f32 7440
        %vm1516 = vmor %vm1514, %vm1515
        %v1518 = vshrl.u32 %v1466, 16
        %v1520 = vrot.slane %v1518, 4
        %v1521 = vshll.u32 %v1466, 16
        %v1523 = vrot.slane %v1521, 5
        %v1524 = vor.u32 %v1520, %v1523
        %v1525 = vrot.slane %v1524, 4
        %v1527 = vshll.u32 %v1467, 16
        %v1529 = vrot.slane %v1527, 5
        %v1530 = vsel %vm1516, %v1525, %v1529
        %v1531 = vshrl.u32 %v1467, 16
        %v1533 = vrot.slane %v1531, 4
        %v1534 = vor.u32 %v1533, %v1529
        %v1535 = vrot.slane %v1534, 4
        %v1537 = vshll.u32 %v1468, 16
        %v1539 = vrot.slane %v1537, 5
        %v1540 = vsel %vm1516, %v1535, %v1539
        %v1542 = vshrl.u32 %v1469, 16
        %v1544 = vrot.slane %v1542, 4
        %v1545 = vshll.u32 %v1469, 16
        %v1547 = vrot.slane %v1545, 5
        %v1548 = vor.u32 %v1544, %v1547
        %v1549 = vrot.slane %v1548, 4
        %v1551 = vshll.u32 %v1470, 16
        %v1553 = vrot.slane %v1551, 5
        %v1554 = vsel %vm1516, %v1549, %v1553
        %v1555 = vshrl.u32 %v1470, 16
        %v1557 = vrot.slane %v1555, 4
        %v1558 = vor.u32 %v1557, %v1553
        %v1559 = vrot.slane %v1558, 4
        %v1561 = vshll.u32 %v1471, 16
        %v1563 = vrot.slane %v1561, 5
        %v1564 = vsel %vm1516, %v1559, %v1563
        %v1566 = vshrl.u32 %v1472, 16
        %v1568 = vrot.slane %v1566, 4
        %v1569 = vshll.u32 %v1472, 16
        %v1571 = vrot.slane %v1569, 5
        %v1572 = vor.u32 %v1568, %v1571
        %v1573 = vrot.slane %v1572, 4
        %v1575 = vshll.u32 %v1473, 16
        %v1577 = vrot.slane %v1575, 5
        %v1578 = vsel %vm1516, %v1573, %v1577
        %v1579 = vshrl.u32 %v1473, 16
        %v1581 = vrot.slane %v1579, 4
        %v1582 = vor.u32 %v1581, %v1577
        %v1583 = vrot.slane %v1582, 4
        %v1585 = vshll.u32 %v1474, 16
        %v1587 = vrot.slane %v1585, 5
        %v1588 = vsel %vm1516, %v1583, %v1587
        %v1590 = vshrl.u32 %v1475, 16
        %v1592 = vrot.slane %v1590, 4
        %v1593 = vshll.u32 %v1475, 16
        %v1595 = vrot.slane %v1593, 5
        %v1596 = vor.u32 %v1592, %v1595
        %v1597 = vrot.slane %v1596, 4
        %v1599 = vshll.u32 %v1476, 16
        %v1601 = vrot.slane %v1599, 5
        %v1602 = vsel %vm1516, %v1597, %v1601
        %v1603 = vshrl.u32 %v1476, 16
        %v1605 = vrot.slane %v1603, 4
        %v1606 = vor.u32 %v1605, %v1601
        %v1607 = vrot.slane %v1606, 4
        %v1609 = vshll.u32 %v1477, 16
        %v1611 = vrot.slane %v1609, 5
        %v1612 = vsel %vm1516, %v1607, %v1611
        %v1614 = vshrl.u32 %v1478, 16
        %v1616 = vrot.slane %v1614, 4
        %v1617 = vshll.u32 %v1478, 16
        %v1619 = vrot.slane %v1617, 5
        %v1620 = vor.u32 %v1616, %v1619
        %v1621 = vrot.slane %v1620, 4
        %v1623 = vshll.u32 %v1479, 16
        %v1625 = vrot.slane %v1623, 5
        %v1626 = vsel %vm1516, %v1621, %v1625
        %v1627 = vshrl.u32 %v1479, 16
        %v1629 = vrot.slane %v1627, 4
        %v1630 = vor.u32 %v1629, %v1625
        %v1631 = vrot.slane %v1630, 4
        %v1633 = vshll.u32 %v1480, 16
        %v1635 = vrot.slane %v1633, 5
        %v1636 = vsel %vm1516, %v1631, %v1635
        %v1638 = vshrl.u32 %v1481, 16
        %v1640 = vrot.slane %v1638, 4
        %v1641 = vshll.u32 %v1481, 16
        %v1643 = vrot.slane %v1641, 5
        %v1644 = vor.u32 %v1640, %v1643
        %v1645 = vrot.slane %v1644, 4
        %v1647 = vshll.u32 %v1482, 16
        %v1649 = vrot.slane %v1647, 5
        %v1650 = vsel %vm1516, %v1645, %v1649
        %v1651 = vshrl.u32 %v1482, 16
        %v1653 = vrot.slane %v1651, 4
        %v1654 = vor.u32 %v1653, %v1649
        %v1655 = vrot.slane %v1654, 4
        %v1657 = vshll.u32 %v1483, 16
        %v1659 = vrot.slane %v1657, 5
        %v1660 = vsel %vm1516, %v1655, %v1659
        %v1662 = vshrl.u32 %v1484, 16
        %v1664 = vrot.slane %v1662, 4
        %v1665 = vshll.u32 %v1484, 16
        %v1667 = vrot.slane %v1665, 5
        %v1668 = vor.u32 %v1664, %v1667
        %v1669 = vrot.slane %v1668, 4
        %v1671 = vshll.u32 %v1485, 16
        %v1673 = vrot.slane %v1671, 5
        %v1674 = vsel %vm1516, %v1669, %v1673
        %v1675 = vshrl.u32 %v1485, 16
        %v1677 = vrot.slane %v1675, 4
        %v1678 = vor.u32 %v1677, %v1673
        %v1679 = vrot.slane %v1678, 4
        %v1681 = vshll.u32 %v1486, 16
        %v1683 = vrot.slane %v1681, 5
        %v1684 = vsel %vm1516, %v1679, %v1683
        %v1686 = vshrl.u32 %v1487, 16
        %v1688 = vrot.slane %v1686, 4
        %v1689 = vshll.u32 %v1487, 16
        %v1691 = vrot.slane %v1689, 5
        %v1692 = vor.u32 %v1688, %v1691
        %v1693 = vrot.slane %v1692, 4
        %v1695 = vshll.u32 %v1488, 16
        %v1697 = vrot.slane %v1695, 5
        %v1698 = vsel %vm1516, %v1693, %v1697
        %v1699 = vshrl.u32 %v1488, 16
        %v1701 = vrot.slane %v1699, 4
        %v1702 = vor.u32 %v1701, %v1697
        %v1703 = vrot.slane %v1702, 4
        %v1705 = vshll.u32 %v1489, 16
        %v1707 = vrot.slane %v1705, 5
        %v1708 = vsel %vm1516, %v1703, %v1707
        %v1710 = vshrl.u32 %v1490, 16
        %v1712 = vrot.slane %v1710, 4
        %v1713 = vshll.u32 %v1490, 16
        %v1715 = vrot.slane %v1713, 5
        %v1716 = vor.u32 %v1712, %v1715
        %v1717 = vrot.slane %v1716, 4
        %v1719 = vshll.u32 %v1491, 16
        %v1721 = vrot.slane %v1719, 5
        %v1722 = vsel %vm1516, %v1717, %v1721
        %v1723 = vshrl.u32 %v1491, 16
        %v1725 = vrot.slane %v1723, 4
        %v1726 = vor.u32 %v1725, %v1721
        %v1727 = vrot.slane %v1726, 4
        %v1729 = vshll.u32 %v1492, 16
        %v1731 = vrot.slane %v1729, 5
        %v1732 = vsel %vm1516, %v1727, %v1731
        %v1734 = vshrl.u32 %v1493, 16
        %v1736 = vrot.slane %v1734, 4
        %v1737 = vshll.u32 %v1493, 16
        %v1739 = vrot.slane %v1737, 5
        %v1740 = vor.u32 %v1736, %v1739
        %v1741 = vrot.slane %v1740, 4
        %v1743 = vshll.u32 %v1494, 16
        %v1745 = vrot.slane %v1743, 5
        %v1746 = vsel %vm1516, %v1741, %v1745
        %v1747 = vshrl.u32 %v1494, 16
        %v1749 = vrot.slane %v1747, 4
        %v1750 = vor.u32 %v1749, %v1745
        %v1751 = vrot.slane %v1750, 4
        %v1753 = vshll.u32 %v1495, 16
        %v1755 = vrot.slane %v1753, 5
        %v1756 = vsel %vm1516, %v1751, %v1755
        %v1758 = vshrl.u32 %v1496, 16
        %v1760 = vrot.slane %v1758, 4
        %v1761 = vshll.u32 %v1496, 16
        %v1763 = vrot.slane %v1761, 5
        %v1764 = vor.u32 %v1760, %v1763
        %v1765 = vrot.slane %v1764, 4
        %v1767 = vshll.u32 %v1497, 16
        %v1769 = vrot.slane %v1767, 5
        %v1770 = vsel %vm1516, %v1765, %v1769
        %v1771 = vshrl.u32 %v1497, 16
        %v1773 = vrot.slane %v1771, 4
        %v1774 = vor.u32 %v1773, %v1769
        %v1775 = vrot.slane %v1774, 4
        %v1777 = vshll.u32 %v1498, 16
        %v1779 = vrot.slane %v1777, 5
        %v1780 = vsel %vm1516, %v1775, %v1779
        %v1782 = vshrl.u32 %v1499, 16
        %v1784 = vrot.slane %v1782, 4
        %v1785 = vshll.u32 %v1499, 16
        %v1787 = vrot.slane %v1785, 5
        %v1788 = vor.u32 %v1784, %v1787
        %v1789 = vrot.slane %v1788, 4
        %v1791 = vshll.u32 %v1500, 16
        %v1793 = vrot.slane %v1791, 5
        %v1794 = vsel %vm1516, %v1789, %v1793
        %v1795 = vshrl.u32 %v1500, 16
        %v1797 = vrot.slane %v1795, 4
        %v1798 = vor.u32 %v1797, %v1793
        %v1799 = vrot.slane %v1798, 4
        %v1801 = vshll.u32 %v1501, 16
        %v1803 = vrot.slane %v1801, 5
        %v1804 = vsel %vm1516, %v1799, %v1803
        %v1806 = vshrl.u32 %v1502, 16
        %v1808 = vrot.slane %v1806, 4
        %v1809 = vshll.u32 %v1502, 16
        %v1811 = vrot.slane %v1809, 5
        %v1812 = vor.u32 %v1808, %v1811
        %v1813 = vrot.slane %v1812, 4
        %v1815 = vshll.u32 %v1503, 16
        %v1817 = vrot.slane %v1815, 5
        %v1818 = vsel %vm1516, %v1813, %v1817
        %v1819 = vshrl.u32 %v1503, 16
        %v1821 = vrot.slane %v1819, 4
        %v1822 = vor.u32 %v1821, %v1817
        %v1823 = vrot.slane %v1822, 4
        %v1825 = vshll.u32 %v1504, 16
        %v1827 = vrot.slane %v1825, 5
        %v1828 = vsel %vm1516, %v1823, %v1827
        %v1830 = vshrl.u32 %v1505, 16
        %v1832 = vrot.slane %v1830, 4
        %v1833 = vshll.u32 %v1505, 16
        %v1835 = vrot.slane %v1833, 5
        %v1836 = vor.u32 %v1832, %v1835
        %v1837 = vrot.slane %v1836, 4
        %v1839 = vshll.u32 %v1506, 16
        %v1841 = vrot.slane %v1839, 5
        %v1842 = vsel %vm1516, %v1837, %v1841
        %v1843 = vshrl.u32 %v1506, 16
        %v1845 = vrot.slane %v1843, 4
        %v1846 = vor.u32 %v1845, %v1841
        %v1847 = vrot.slane %v1846, 4
        %v1849 = vshll.u32 %v1507, 16
        %v1851 = vrot.slane %v1849, 5
        %v1852 = vsel %vm1516, %v1847, %v1851
        %v1854 = vshrl.u32 %v1508, 16
        %v1856 = vrot.slane %v1854, 4
        %v1857 = vshll.u32 %v1508, 16
        %v1859 = vrot.slane %v1857, 5
        %v1860 = vor.u32 %v1856, %v1859
        %v1861 = vrot.slane %v1860, 4
        %v1863 = vshll.u32 %v1509, 16
        %v1865 = vrot.slane %v1863, 5
        %v1866 = vsel %vm1516, %v1861, %v1865
        %v1867 = vshrl.u32 %v1509, 16
        %v1869 = vrot.slane %v1867, 4
        %v1870 = vor.u32 %v1869, %v1865
        %v1871 = vrot.slane %v1870, 4
        %v1873 = vshll.u32 %v1510, 16
        %v1875 = vrot.slane %v1873, 5
        %v1876 = vsel %vm1516, %v1871, %v1875
        %v1878 = vshrl.u32 %v1511, 16
        %v1880 = vrot.slane %v1878, 4
        %v1881 = vshll.u32 %v1511, 16
        %v1883 = vrot.slane %v1881, 5
        %v1884 = vor.u32 %v1880, %v1883
        %v1885 = vrot.slane %v1884, 4
        %v1887 = vshll.u32 %v1512, 16
        %v1889 = vrot.slane %v1887, 5
        %v1890 = vsel %vm1516, %v1885, %v1889
        %v1891 = vshrl.u32 %v1512, 16
        %v1893 = vrot.slane %v1891, 4
        %v1894 = vor.u32 %v1893, %v1889
        %v1895 = vrot.slane %v1894, 4
        %v1897 = vshll.u32 %v1513, 16
        %v1899 = vrot.slane %v1897, 5
        %v1900 = vsel %vm1516, %v1895, %v1899
        %v1901 = vunpack.c.l.b16 %v1530
        %v1902 = vunpack.c.l.b16 %v1540
        %v1903 = vunpack.c.l.b16 %v1554
        %v1904 = vunpack.c.l.b16 %v1564
        %v1905 = vunpack.c.l.b16 %v1578
        %v1906 = vunpack.c.l.b16 %v1588
        %v1907 = vunpack.c.l.b16 %v1602
        %v1908 = vunpack.c.l.b16 %v1612
        %v1909 = vunpack.c.l.b16 %v1626
        %v1910 = vunpack.c.l.b16 %v1636
        %v1911 = vunpack.c.l.b16 %v1650
        %v1912 = vunpack.c.l.b16 %v1660
        %v1913 = vunpack.c.l.b16 %v1674
        %v1914 = vunpack.c.l.b16 %v1684
        %v1915 = vunpack.c.l.b16 %v1698
        %v1916 = vunpack.c.l.b16 %v1708
        %v1917 = vunpack.c.l.b16 %v1722
        %v1918 = vunpack.c.l.b16 %v1732
        %v1919 = vunpack.c.l.b16 %v1746
        %v1920 = vunpack.c.l.b16 %v1756
        %v1921 = vunpack.c.l.b16 %v1770
        %v1922 = vunpack.c.l.b16 %v1780
        %v1923 = vunpack.c.l.b16 %v1794
        %v1924 = vunpack.c.l.b16 %v1804
        %v1925 = vunpack.c.l.b16 %v1818
        %v1926 = vunpack.c.l.b16 %v1828
        %v1927 = vunpack.c.l.b16 %v1842
        %v1928 = vunpack.c.l.b16 %v1852
        %v1929 = vunpack.c.l.b16 %v1866
        %v1930 = vunpack.c.l.b16 %v1876
        %v1931 = vunpack.c.l.b16 %v1890
        %v1932 = vunpack.c.l.b16 %v1900
        %v1933 = vpack.c.b16 %v1902, %v1901
        %v1934 = vpack.c.b16 %v1904, %v1903
        %v1935 = vpack.c.b16 %v1906, %v1905
        %v1936 = vpack.c.b16 %v1908, %v1907
        %v1937 = vpack.c.b16 %v1910, %v1909
        %v1938 = vpack.c.b16 %v1912, %v1911
        %v1939 = vpack.c.b16 %v1914, %v1913
        %v1940 = vpack.c.b16 %v1916, %v1915
        %v1941 = vpack.c.b16 %v1918, %v1917
        %v1942 = vpack.c.b16 %v1920, %v1919
        %v1943 = vpack.c.b16 %v1922, %v1921
        %v1944 = vpack.c.b16 %v1924, %v1923
        %v1945 = vpack.c.b16 %v1926, %v1925
        %v1946 = vpack.c.b16 %v1928, %v1927
        %v1947 = vpack.c.b16 %v1930, %v1929
        %v1948 = vpack.c.b16 %v1932, %v1931
        %1965 = vst [vmem:[#allocation3 + $0x8] sm:$0xff] %v1933
        %1966 = vst [vmem:[#allocation3 + $0x50] sm:$0xff] %v1934
        %1967 = vst [vmem:[#allocation3 + $0x98] sm:$0xff] %v1935
        %1968 = vst [vmem:[#allocation3 + $0xe0] sm:$0xff] %v1936
        %1969 = vst [vmem:[#allocation3 + $0x128] sm:$0xff] %v1937
        %1970 = vst [vmem:[#allocation3 + $0x170] sm:$0xff] %v1938
        %1971 = vst [vmem:[#allocation3 + $0x1b8] sm:$0xff] %v1939
        %1972 = vst [vmem:[#allocation3 + $0x200] sm:$0xff] %v1940
        %1973 = vst [vmem:[#allocation3 + $0x248] sm:$0xff] %v1941
        %1974 = vst [vmem:[#allocation3 + $0x290] sm:$0xff] %v1942
        %1975 = vst [vmem:[#allocation3 + $0x2d8] sm:$0xff] %v1943
        %1976 = vst [vmem:[#allocation3 + $0x320] sm:$0xff] %v1944
        %1977 = vst [vmem:[#allocation3 + $0x368] sm:$0xff] %v1945
        %1978 = vst [vmem:[#allocation3 + $0x3b0] sm:$0xff] %v1946
        %1979 = vst [vmem:[#allocation3 + $0x3f8] sm:$0xff] %v1947
        %1980 = vst [vmem:[#allocation3 + $0x440] sm:$0xff] %v1948
        %v1981 = vld [vmem:[#allocation2] sm:$0xe]
        %v1982 = vld [vmem:[#allocation2 + $0x4] sm:$0xf]
        %v1983 = vld [vmem:[#allocation2 + $0x8] sm:$0x1]
        %v1984 = vld [vmem:[#allocation2 + $0xc] sm:$0xe]
        %v1985 = vld [vmem:[#allocation2 + $0x10] sm:$0xf]
        %v1986 = vld [vmem:[#allocation2 + $0x14] sm:$0x1]
        %v1987 = vld [vmem:[#allocation2 + $0x18] sm:$0xe]
        %v1988 = vld [vmem:[#allocation2 + $0x1c] sm:$0xf]
        %v1989 = vld [vmem:[#allocation2 + $0x20] sm:$0x1]
        %v1990 = vld [vmem:[#allocation2 + $0x24] sm:$0xe]
        %v1991 = vld [vmem:[#allocation2 + $0x28] sm:$0xf]
        %v1992 = vld [vmem:[#allocation2 + $0x2c] sm:$0x1]
        %v1993 = vld [vmem:[#allocation2 + $0x30] sm:$0xe]
        %v1994 = vld [vmem:[#allocation2 + $0x34] sm:$0xf]
        %v1995 = vld [vmem:[#allocation2 + $0x38] sm:$0x1]
        %v1996 = vld [vmem:[#allocation2 + $0x3c] sm:$0xe]
        %v1997 = vld [vmem:[#allocation2 + $0x40] sm:$0xf]
        %v1998 = vld [vmem:[#allocation2 + $0x44] sm:$0x1]
        %v1999 = vld [vmem:[#allocation2 + $0x48] sm:$0xe]
        %v2000 = vld [vmem:[#allocation2 + $0x4c] sm:$0xf]
        %v2001 = vld [vmem:[#allocation2 + $0x50] sm:$0x1]
        %v2002 = vld [vmem:[#allocation2 + $0x54] sm:$0xe]
        %v2003 = vld [vmem:[#allocation2 + $0x58] sm:$0xf]
        %v2004 = vld [vmem:[#allocation2 + $0x5c] sm:$0x1]
        %v2005 = vld [vmem:[#allocation2 + $0x60] sm:$0xe]
        %v2006 = vld [vmem:[#allocation2 + $0x64] sm:$0xf]
        %v2007 = vld [vmem:[#allocation2 + $0x68] sm:$0x1]
        %v2008 = vld [vmem:[#allocation2 + $0x6c] sm:$0xe]
        %v2009 = vld [vmem:[#allocation2 + $0x70] sm:$0xf]
        %v2010 = vld [vmem:[#allocation2 + $0x74] sm:$0x1]
        %v2011 = vld [vmem:[#allocation2 + $0x78] sm:$0xe]
        %v2012 = vld [vmem:[#allocation2 + $0x7c] sm:$0xf]
        %v2013 = vld [vmem:[#allocation2 + $0x80] sm:$0x1]
        %v2014 = vld [vmem:[#allocation2 + $0x84] sm:$0xe]
        %v2015 = vld [vmem:[#allocation2 + $0x88] sm:$0xf]
        %v2016 = vld [vmem:[#allocation2 + $0x8c] sm:$0x1]
        %v2017 = vld [vmem:[#allocation2 + $0x90] sm:$0xe]
        %v2018 = vld [vmem:[#allocation2 + $0x94] sm:$0xf]
        %v2019 = vld [vmem:[#allocation2 + $0x98] sm:$0x1]
        %v2020 = vld [vmem:[#allocation2 + $0x9c] sm:$0xe]
        %v2021 = vld [vmem:[#allocation2 + $0xa0] sm:$0xf]
        %v2022 = vld [vmem:[#allocation2 + $0xa4] sm:$0x1]
        %v2023 = vld [vmem:[#allocation2 + $0xa8] sm:$0xe]
        %v2024 = vld [vmem:[#allocation2 + $0xac] sm:$0xf]
        %v2025 = vld [vmem:[#allocation2 + $0xb0] sm:$0x1]
        %v2026 = vld [vmem:[#allocation2 + $0xb4] sm:$0xe]
        %v2027 = vld [vmem:[#allocation2 + $0xb8] sm:$0xf]
        %v2028 = vld [vmem:[#allocation2 + $0xbc] sm:$0x1]
        %vm2077 = vcmask 1042432
        %vm2078 = vcmask 1046532
        %vm2079 = vmor %vm2077, %vm2078
        %v2080 = vrot.slane %v1981, 5
        %v2081 = vrot.slane %v2080, 4
        %v2082 = vrot.slane %v1982, 5
        %v2083 = vsel %vm2079, %v2081, %v2082
        %v2084 = vrot.slane %v2082, 4
        %v2085 = vrot.slane %v1983, 5
        %v2086 = vsel %vm2079, %v2084, %v2085
        %v2087 = vrot.slane %v1984, 5
        %v2088 = vrot.slane %v2087, 4
        %v2089 = vrot.slane %v1985, 5
        %v2090 = vsel %vm2079, %v2088, %v2089
        %v2091 = vrot.slane %v2089, 4
        %v2092 = vrot.slane %v1986, 5
        %v2093 = vsel %vm2079, %v2091, %v2092
        %v2094 = vrot.slane %v1987, 5
        %v2095 = vrot.slane %v2094, 4
        %v2096 = vrot.slane %v1988, 5
        %v2097 = vsel %vm2079, %v2095, %v2096
        %v2098 = vrot.slane %v2096, 4
        %v2099 = vrot.slane %v1989, 5
        %v2100 = vsel %vm2079, %v2098, %v2099
        %v2101 = vrot.slane %v1990, 5
        %v2102 = vrot.slane %v2101, 4
        %v2103 = vrot.slane %v1991, 5
        %v2104 = vsel %vm2079, %v2102, %v2103
        %v2105 = vrot.slane %v2103, 4
        %v2106 = vrot.slane %v1992, 5
        %v2107 = vsel %vm2079, %v2105, %v2106
        %v2108 = vrot.slane %v1993, 5
        %v2109 = vrot.slane %v2108, 4
        %v2110 = vrot.slane %v1994, 5
        %v2111 = vsel %vm2079, %v2109, %v2110
        %v2112 = vrot.slane %v2110, 4
        %v2113 = vrot.slane %v1995, 5
        %v2114 = vsel %vm2079, %v2112, %v2113
        %v2115 = vrot.slane %v1996, 5
        %v2116 = vrot.slane %v2115, 4
        %v2117 = vrot.slane %v1997, 5
        %v2118 = vsel %vm2079, %v2116, %v2117
        %v2119 = vrot.slane %v2117, 4
        %v2120 = vrot.slane %v1998, 5
        %v2121 = vsel %vm2079, %v2119, %v2120
        %v2122 = vrot.slane %v1999, 5
        %v2123 = vrot.slane %v2122, 4
        %v2124 = vrot.slane %v2000, 5
        %v2125 = vsel %vm2079, %v2123, %v2124
        %v2126 = vrot.slane %v2124, 4
        %v2127 = vrot.slane %v2001, 5
        %v2128 = vsel %vm2079, %v2126, %v2127
        %v2129 = vrot.slane %v2002, 5
        %v2130 = vrot.slane %v2129, 4
        %v2131 = vrot.slane %v2003, 5
        %v2132 = vsel %vm2079, %v2130, %v2131
        %v2133 = vrot.slane %v2131, 4
        %v2134 = vrot.slane %v2004, 5
        %v2135 = vsel %vm2079, %v2133, %v2134
        %v2136 = vrot.slane %v2005, 5
        %v2137 = vrot.slane %v2136, 4
        %v2138 = vrot.slane %v2006, 5
        %v2139 = vsel %vm2079, %v2137, %v2138
        %v2140 = vrot.slane %v2138, 4
        %v2141 = vrot.slane %v2007, 5
        %v2142 = vsel %vm2079, %v2140, %v2141
        %v2143 = vrot.slane %v2008, 5
        %v2144 = vrot.slane %v2143, 4
        %v2145 = vrot.slane %v2009, 5
        %v2146 = vsel %vm2079, %v2144, %v2145
        %v2147 = vrot.slane %v2145, 4
        %v2148 = vrot.slane %v2010, 5
        %v2149 = vsel %vm2079, %v2147, %v2148
        %v2150 = vrot.slane %v2011, 5
        %v2151 = vrot.slane %v2150, 4
        %v2152 = vrot.slane %v2012, 5
        %v2153 = vsel %vm2079, %v2151, %v2152
        %v2154 = vrot.slane %v2152, 4
        %v2155 = vrot.slane %v2013, 5
        %v2156 = vsel %vm2079, %v2154, %v2155
        %v2157 = vrot.slane %v2014, 5
        %v2158 = vrot.slane %v2157, 4
        %v2159 = vrot.slane %v2015, 5
        %v2160 = vsel %vm2079, %v2158, %v2159
        %v2161 = vrot.slane %v2159, 4
        %v2162 = vrot.slane %v2016, 5
        %v2163 = vsel %vm2079, %v2161, %v2162
        %v2164 = vrot.slane %v2017, 5
        %v2165 = vrot.slane %v2164, 4
        %v2166 = vrot.slane %v2018, 5
        %v2167 = vsel %vm2079, %v2165, %v2166
        %v2168 = vrot.slane %v2166, 4
        %v2169 = vrot.slane %v2019, 5
        %v2170 = vsel %vm2079, %v2168, %v2169
        %v2171 = vrot.slane %v2020, 5
        %v2172 = vrot.slane %v2171, 4
        %v2173 = vrot.slane %v2021, 5
        %v2174 = vsel %vm2079, %v2172, %v2173
        %v2175 = vrot.slane %v2173, 4
        %v2176 = vrot.slane %v2022, 5
        %v2177 = vsel %vm2079, %v2175, %v2176
        %v2178 = vrot.slane %v2023, 5
        %v2179 = vrot.slane %v2178, 4
        %v2180 = vrot.slane %v2024, 5
        %v2181 = vsel %vm2079, %v2179, %v2180
        %v2182 = vrot.slane %v2180, 4
        %v2183 = vrot.slane %v2025, 5
        %v2184 = vsel %vm2079, %v2182, %v2183
        %v2185 = vrot.slane %v2026, 5
        %v2186 = vrot.slane %v2185, 4
        %v2187 = vrot.slane %v2027, 5
        %v2188 = vsel %vm2079, %v2186, %v2187
        %v2189 = vrot.slane %v2187, 4
        %v2190 = vrot.slane %v2028, 5
        %v2191 = vsel %vm2079, %v2189, %v2190
        %v2192 = vunpack.c.l.b16 %v2083
        %v2193 = vunpack.c.l.b16 %v2086
        %v2194 = vunpack.c.l.b16 %v2090
        %v2195 = vunpack.c.l.b16 %v2093
        %v2196 = vunpack.c.l.b16 %v2097
        %v2197 = vunpack.c.l.b16 %v2100
        %v2198 = vunpack.c.l.b16 %v2104
        %v2199 = vunpack.c.l.b16 %v2107
        %v2200 = vunpack.c.l.b16 %v2111
        %v2201 = vunpack.c.l.b16 %v2114
        %v2202 = vunpack.c.l.b16 %v2118
        %v2203 = vunpack.c.l.b16 %v2121
        %v2204 = vunpack.c.l.b16 %v2125
        %v2205 = vunpack.c.l.b16 %v2128
        %v2206 = vunpack.c.l.b16 %v2132
        %v2207 = vunpack.c.l.b16 %v2135
        %v2208 = vunpack.c.l.b16 %v2139
        %v2209 = vunpack.c.l.b16 %v2142
        %v2210 = vunpack.c.l.b16 %v2146
        %v2211 = vunpack.c.l.b16 %v2149
        %v2212 = vunpack.c.l.b16 %v2153
        %v2213 = vunpack.c.l.b16 %v2156
        %v2214 = vunpack.c.l.b16 %v2160
        %v2215 = vunpack.c.l.b16 %v2163
        %v2216 = vunpack.c.l.b16 %v2167
        %v2217 = vunpack.c.l.b16 %v2170
        %v2218 = vunpack.c.l.b16 %v2174
        %v2219 = vunpack.c.l.b16 %v2177
        %v2220 = vunpack.c.l.b16 %v2181
        %v2221 = vunpack.c.l.b16 %v2184
        %v2222 = vunpack.c.l.b16 %v2188
        %v2223 = vunpack.c.l.b16 %v2191
        %v2224 = vpack.c.b16 %v2193, %v2192
        %v2225 = vpack.c.b16 %v2195, %v2194
        %v2226 = vpack.c.b16 %v2197, %v2196
        %v2227 = vpack.c.b16 %v2199, %v2198
        %v2228 = vpack.c.b16 %v2201, %v2200
        %v2229 = vpack.c.b16 %v2203, %v2202
        %v2230 = vpack.c.b16 %v2205, %v2204
        %v2231 = vpack.c.b16 %v2207, %v2206
        %v2232 = vpack.c.b16 %v2209, %v2208
        %v2233 = vpack.c.b16 %v2211, %v2210
        %v2234 = vpack.c.b16 %v2213, %v2212
        %v2235 = vpack.c.b16 %v2215, %v2214
        %v2236 = vpack.c.b16 %v2217, %v2216
        %v2237 = vpack.c.b16 %v2219, %v2218
        %v2238 = vpack.c.b16 %v2221, %v2220
        %v2239 = vpack.c.b16 %v2223, %v2222
        %2256 = vst [vmem:[#allocation3 + $0x10] sm:$0xff] %v2224
        %2257 = vst [vmem:[#allocation3 + $0x58] sm:$0xff] %v2225
        %2258 = vst [vmem:[#allocation3 + $0xa0] sm:$0xff] %v2226
        %2259 = vst [vmem:[#allocation3 + $0xe8] sm:$0xff] %v2227
        %2260 = vst [vmem:[#allocation3 + $0x130] sm:$0xff] %v2228
        %2261 = vst [vmem:[#allocation3 + $0x178] sm:$0xff] %v2229
        %2262 = vst [vmem:[#allocation3 + $0x1c0] sm:$0xff] %v2230
        %2263 = vst [vmem:[#allocation3 + $0x208] sm:$0xff] %v2231
        %2264 = vst [vmem:[#allocation3 + $0x250] sm:$0xff] %v2232
        %2265 = vst [vmem:[#allocation3 + $0x298] sm:$0xff] %v2233
        %2266 = vst [vmem:[#allocation3 + $0x2e0] sm:$0xff] %v2234
        %2267 = vst [vmem:[#allocation3 + $0x328] sm:$0xff] %v2235
        %2268 = vst [vmem:[#allocation3 + $0x370] sm:$0xff] %v2236
        %2269 = vst [vmem:[#allocation3 + $0x3b8] sm:$0xff] %v2237
        %2270 = vst [vmem:[#allocation3 + $0x400] sm:$0xff] %v2238
        %2271 = vst [vmem:[#allocation3 + $0x448] sm:$0xff] %v2239
        %v2272 = vld [vmem:[%s1204] sm:$0xf]
        %v2273 = vld [vmem:[%s1204 + $0x4] sm:$0xf]
        %v2274 = vld [vmem:[%s1204 + $0xc] sm:$0xf]
        %v2275 = vld [vmem:[%s1204 + $0x10] sm:$0xf]
        %v2276 = vld [vmem:[%s1204 + $0x18] sm:$0xf]
        %v2277 = vld [vmem:[%s1204 + $0x1c] sm:$0xf]
        %v2278 = vld [vmem:[%s1204 + $0x24] sm:$0xf]
        %v2279 = vld [vmem:[%s1204 + $0x28] sm:$0xf]
        %v2280 = vld [vmem:[%s1204 + $0x30] sm:$0xf]
        %v2281 = vld [vmem:[%s1204 + $0x34] sm:$0xf]
        %v2282 = vld [vmem:[%s1204 + $0x3c] sm:$0xf]
        %v2283 = vld [vmem:[%s1204 + $0x40] sm:$0xf]
        %v2284 = vld [vmem:[%s1204 + $0x48] sm:$0xf]
        %v2285 = vld [vmem:[%s1204 + $0x4c] sm:$0xf]
        %v2286 = vld [vmem:[%s1204 + $0x54] sm:$0xf]
        %v2287 = vld [vmem:[%s1204 + $0x58] sm:$0xf]
        %v2288 = vld [vmem:[%s1204 + $0x60] sm:$0xf]
        %v2289 = vld [vmem:[%s1204 + $0x64] sm:$0xf]
        %v2290 = vld [vmem:[%s1204 + $0x6c] sm:$0xf]
        %v2291 = vld [vmem:[%s1204 + $0x70] sm:$0xf]
        %v2292 = vld [vmem:[%s1204 + $0x78] sm:$0xf]
        %v2293 = vld [vmem:[%s1204 + $0x7c] sm:$0xf]
        %v2294 = vld [vmem:[%s1204 + $0x84] sm:$0xf]
        %v2295 = vld [vmem:[%s1204 + $0x88] sm:$0xf]
        %v2296 = vld [vmem:[%s1204 + $0x90] sm:$0xf]
        %v2297 = vld [vmem:[%s1204 + $0x94] sm:$0xf]
        %v2298 = vld [vmem:[%s1204 + $0x9c] sm:$0xf]
        %v2299 = vld [vmem:[%s1204 + $0xa0] sm:$0xf]
        %v2300 = vld [vmem:[%s1204 + $0xa8] sm:$0xf]
        %v2301 = vld [vmem:[%s1204 + $0xac] sm:$0xf]
        %v2302 = vld [vmem:[%s1204 + $0xb4] sm:$0xf]
        %v2303 = vld [vmem:[%s1204 + $0xb8] sm:$0xf]
        %v2336 = vunpack.c.l.b16 %v2272
        %v2337 = vunpack.c.l.b16 %v2273
        %v2338 = vunpack.c.l.b16 %v2274
        %v2339 = vunpack.c.l.b16 %v2275
        %v2340 = vunpack.c.l.b16 %v2276
        %v2341 = vunpack.c.l.b16 %v2277
        %v2342 = vunpack.c.l.b16 %v2278
        %v2343 = vunpack.c.l.b16 %v2279
        %v2344 = vunpack.c.l.b16 %v2280
        %v2345 = vunpack.c.l.b16 %v2281
        %v2346 = vunpack.c.l.b16 %v2282
        %v2347 = vunpack.c.l.b16 %v2283
        %v2348 = vunpack.c.l.b16 %v2284
        %v2349 = vunpack.c.l.b16 %v2285
        %v2350 = vunpack.c.l.b16 %v2286
        %v2351 = vunpack.c.l.b16 %v2287
        %v2352 = vunpack.c.l.b16 %v2288
        %v2353 = vunpack.c.l.b16 %v2289
        %v2354 = vunpack.c.l.b16 %v2290
        %v2355 = vunpack.c.l.b16 %v2291
        %v2356 = vunpack.c.l.b16 %v2292
        %v2357 = vunpack.c.l.b16 %v2293
        %v2358 = vunpack.c.l.b16 %v2294
        %v2359 = vunpack.c.l.b16 %v2295
        %v2360 = vunpack.c.l.b16 %v2296
        %v2361 = vunpack.c.l.b16 %v2297
        %v2362 = vunpack.c.l.b16 %v2298
        %v2363 = vunpack.c.l.b16 %v2299
        %v2364 = vunpack.c.l.b16 %v2300
        %v2365 = vunpack.c.l.b16 %v2301
        %v2366 = vunpack.c.l.b16 %v2302
        %v2367 = vunpack.c.l.b16 %v2303
        %v2368 = vpack.c.b16 %v2337, %v2336
        %v2369 = vpack.c.b16 %v2339, %v2338
        %v2370 = vpack.c.b16 %v2341, %v2340
        %v2371 = vpack.c.b16 %v2343, %v2342
        %v2372 = vpack.c.b16 %v2345, %v2344
        %v2373 = vpack.c.b16 %v2347, %v2346
        %v2374 = vpack.c.b16 %v2349, %v2348
        %v2375 = vpack.c.b16 %v2351, %v2350
        %v2376 = vpack.c.b16 %v2353, %v2352
        %v2377 = vpack.c.b16 %v2355, %v2354
        %v2378 = vpack.c.b16 %v2357, %v2356
        %v2379 = vpack.c.b16 %v2359, %v2358
        %v2380 = vpack.c.b16 %v2361, %v2360
        %v2381 = vpack.c.b16 %v2363, %v2362
        %v2382 = vpack.c.b16 %v2365, %v2364
        %v2383 = vpack.c.b16 %v2367, %v2366
        %2400 = vst [vmem:[#allocation3 + $0x18] sm:$0xff] %v2368
        %2401 = vst [vmem:[#allocation3 + $0x60] sm:$0xff] %v2369
        %2402 = vst [vmem:[#allocation3 + $0xa8] sm:$0xff] %v2370
        %2403 = vst [vmem:[#allocation3 + $0xf0] sm:$0xff] %v2371
        %2404 = vst [vmem:[#allocation3 + $0x138] sm:$0xff] %v2372
        %2405 = vst [vmem:[#allocation3 + $0x180] sm:$0xff] %v2373
        %2406 = vst [vmem:[#allocation3 + $0x1c8] sm:$0xff] %v2374
        %2407 = vst [vmem:[#allocation3 + $0x210] sm:$0xff] %v2375
        %2408 = vst [vmem:[#allocation3 + $0x258] sm:$0xff] %v2376
        %2409 = vst [vmem:[#allocation3 + $0x2a0] sm:$0xff] %v2377
        %2410 = vst [vmem:[#allocation3 + $0x2e8] sm:$0xff] %v2378
        %2411 = vst [vmem:[#allocation3 + $0x330] sm:$0xff] %v2379
        %2412 = vst [vmem:[#allocation3 + $0x378] sm:$0xff] %v2380
        %2413 = vst [vmem:[#allocation3 + $0x3c0] sm:$0xff] %v2381
        %2414 = vst [vmem:[#allocation3 + $0x408] sm:$0xff] %v2382
        %2415 = vst [vmem:[#allocation3 + $0x450] sm:$0xff] %v2383
        %v2416 = vld [vmem:[%s1204] sm:$0xf]
        %v2417 = vld [vmem:[%s1204 + $0x4] sm:$0xf]
        %v2418 = vld [vmem:[%s1204 + $0x8] sm:$0x1]
        %v2419 = vld [vmem:[%s1204 + $0xc] sm:$0xf]
        %v2420 = vld [vmem:[%s1204 + $0x10] sm:$0xf]
        %v2421 = vld [vmem:[%s1204 + $0x14] sm:$0x1]
        %v2422 = vld [vmem:[%s1204 + $0x18] sm:$0xf]
        %v2423 = vld [vmem:[%s1204 + $0x1c] sm:$0xf]
        %v2424 = vld [vmem:[%s1204 + $0x20] sm:$0x1]
        %v2425 = vld [vmem:[%s1204 + $0x24] sm:$0xf]
        %v2426 = vld [vmem:[%s1204 + $0x28] sm:$0xf]
        %v2427 = vld [vmem:[%s1204 + $0x2c] sm:$0x1]
        %v2428 = vld [vmem:[%s1204 + $0x30] sm:$0xf]
        %v2429 = vld [vmem:[%s1204 + $0x34] sm:$0xf]
        %v2430 = vld [vmem:[%s1204 + $0x38] sm:$0x1]
        %v2431 = vld [vmem:[%s1204 + $0x3c] sm:$0xf]
        %v2432 = vld [vmem:[%s1204 + $0x40] sm:$0xf]
        %v2433 = vld [vmem:[%s1204 + $0x44] sm:$0x1]
        %v2434 = vld [vmem:[%s1204 + $0x48] sm:$0xf]
        %v2435 = vld [vmem:[%s1204 + $0x4c] sm:$0xf]
        %v2436 = vld [vmem:[%s1204 + $0x50] sm:$0x1]
        %v2437 = vld [vmem:[%s1204 + $0x54] sm:$0xf]
        %v2438 = vld [vmem:[%s1204 + $0x58] sm:$0xf]
        %v2439 = vld [vmem:[%s1204 + $0x5c] sm:$0x1]
        %v2440 = vld [vmem:[%s1204 + $0x60] sm:$0xf]
        %v2441 = vld [vmem:[%s1204 + $0x64] sm:$0xf]
        %v2442 = vld [vmem:[%s1204 + $0x68] sm:$0x1]
        %v2443 = vld [vmem:[%s1204 + $0x6c] sm:$0xf]
        %v2444 = vld [vmem:[%s1204 + $0x70] sm:$0xf]
        %v2445 = vld [vmem:[%s1204 + $0x74] sm:$0x1]
        %v2446 = vld [vmem:[%s1204 + $0x78] sm:$0xf]
        %v2447 = vld [vmem:[%s1204 + $0x7c] sm:$0xf]
        %v2448 = vld [vmem:[%s1204 + $0x80] sm:$0x1]
        %v2449 = vld [vmem:[%s1204 + $0x84] sm:$0xf]
        %v2450 = vld [vmem:[%s1204 + $0x88] sm:$0xf]
        %v2451 = vld [vmem:[%s1204 + $0x8c] sm:$0x1]
        %v2452 = vld [vmem:[%s1204 + $0x90] sm:$0xf]
        %v2453 = vld [vmem:[%s1204 + $0x94] sm:$0xf]
        %v2454 = vld [vmem:[%s1204 + $0x98] sm:$0x1]
        %v2455 = vld [vmem:[%s1204 + $0x9c] sm:$0xf]
        %v2456 = vld [vmem:[%s1204 + $0xa0] sm:$0xf]
        %v2457 = vld [vmem:[%s1204 + $0xa4] sm:$0x1]
        %v2458 = vld [vmem:[%s1204 + $0xa8] sm:$0xf]
        %v2459 = vld [vmem:[%s1204 + $0xac] sm:$0xf]
        %v2460 = vld [vmem:[%s1204 + $0xb0] sm:$0x1]
        %v2461 = vld [vmem:[%s1204 + $0xb4] sm:$0xf]
        %v2462 = vld [vmem:[%s1204 + $0xb8] sm:$0xf]
        %v2463 = vld [vmem:[%s1204 + $0xbc] sm:$0x1]
        %v2465 = vshrl.u32 %v2416, 16
        %v2467 = vrot.slane %v2465, 4
        %v2468 = vshll.u32 %v2416, 16
        %v2470 = vrot.slane %v2468, 5
        %v2471 = vor.u32 %v2467, %v2470
        %v2472 = vrot.slane %v2471, 4
        %v2474 = vshll.u32 %v2417, 16
        %v2476 = vrot.slane %v2474, 5
        %v2477 = vsel %vm1516, %v2472, %v2476
        %v2478 = vshrl.u32 %v2417, 16
        %v2480 = vrot.slane %v2478, 4
        %v2481 = vor.u32 %v2480, %v2476
        %v2482 = vrot.slane %v2481, 4
        %v2484 = vshll.u32 %v2418, 16
        %v2486 = vrot.slane %v2484, 5
        %v2487 = vsel %vm1516, %v2482, %v2486
        %v2489 = vshrl.u32 %v2419, 16
        %v2491 = vrot.slane %v2489, 4
        %v2492 = vshll.u32 %v2419, 16
        %v2494 = vrot.slane %v2492, 5
        %v2495 = vor.u32 %v2491, %v2494
        %v2496 = vrot.slane %v2495, 4
        %v2498 = vshll.u32 %v2420, 16
        %v2500 = vrot.slane %v2498, 5
        %v2501 = vsel %vm1516, %v2496, %v2500
        %v2502 = vshrl.u32 %v2420, 16
        %v2504 = vrot.slane %v2502, 4
        %v2505 = vor.u32 %v2504, %v2500
        %v2506 = vrot.slane %v2505, 4
        %v2508 = vshll.u32 %v2421, 16
        %v2510 = vrot.slane %v2508, 5
        %v2511 = vsel %vm1516, %v2506, %v2510
        %v2513 = vshrl.u32 %v2422, 16
        %v2515 = vrot.slane %v2513, 4
        %v2516 = vshll.u32 %v2422, 16
        %v2518 = vrot.slane %v2516, 5
        %v2519 = vor.u32 %v2515, %v2518
        %v2520 = vrot.slane %v2519, 4
        %v2522 = vshll.u32 %v2423, 16
        %v2524 = vrot.slane %v2522, 5
        %v2525 = vsel %vm1516, %v2520, %v2524
        %v2526 = vshrl.u32 %v2423, 16
        %v2528 = vrot.slane %v2526, 4
        %v2529 = vor.u32 %v2528, %v2524
        %v2530 = vrot.slane %v2529, 4
        %v2532 = vshll.u32 %v2424, 16
        %v2534 = vrot.slane %v2532, 5
        %v2535 = vsel %vm1516, %v2530, %v2534
        %v2537 = vshrl.u32 %v2425, 16
        %v2539 = vrot.slane %v2537, 4
        %v2540 = vshll.u32 %v2425, 16
        %v2542 = vrot.slane %v2540, 5
        %v2543 = vor.u32 %v2539, %v2542
        %v2544 = vrot.slane %v2543, 4
        %v2546 = vshll.u32 %v2426, 16
        %v2548 = vrot.slane %v2546, 5
        %v2549 = vsel %vm1516, %v2544, %v2548
        %v2550 = vshrl.u32 %v2426, 16
        %v2552 = vrot.slane %v2550, 4
        %v2553 = vor.u32 %v2552, %v2548
        %v2554 = vrot.slane %v2553, 4
        %v2556 = vshll.u32 %v2427, 16
        %v2558 = vrot.slane %v2556, 5
        %v2559 = vsel %vm1516, %v2554, %v2558
        %v2561 = vshrl.u32 %v2428, 16
        %v2563 = vrot.slane %v2561, 4
        %v2564 = vshll.u32 %v2428, 16
        %v2566 = vrot.slane %v2564, 5
        %v2567 = vor.u32 %v2563, %v2566
        %v2568 = vrot.slane %v2567, 4
        %v2570 = vshll.u32 %v2429, 16
        %v2572 = vrot.slane %v2570, 5
        %v2573 = vsel %vm1516, %v2568, %v2572
        %v2574 = vshrl.u32 %v2429, 16
        %v2576 = vrot.slane %v2574, 4
        %v2577 = vor.u32 %v2576, %v2572
        %v2578 = vrot.slane %v2577, 4
        %v2580 = vshll.u32 %v2430, 16
        %v2582 = vrot.slane %v2580, 5
        %v2583 = vsel %vm1516, %v2578, %v2582
        %v2585 = vshrl.u32 %v2431, 16
        %v2587 = vrot.slane %v2585, 4
        %v2588 = vshll.u32 %v2431, 16
        %v2590 = vrot.slane %v2588, 5
        %v2591 = vor.u32 %v2587, %v2590
        %v2592 = vrot.slane %v2591, 4
        %v2594 = vshll.u32 %v2432, 16
        %v2596 = vrot.slane %v2594, 5
        %v2597 = vsel %vm1516, %v2592, %v2596
        %v2598 = vshrl.u32 %v2432, 16
        %v2600 = vrot.slane %v2598, 4
        %v2601 = vor.u32 %v2600, %v2596
        %v2602 = vrot.slane %v2601, 4
        %v2604 = vshll.u32 %v2433, 16
        %v2606 = vrot.slane %v2604, 5
        %v2607 = vsel %vm1516, %v2602, %v2606
        %v2609 = vshrl.u32 %v2434, 16
        %v2611 = vrot.slane %v2609, 4
        %v2612 = vshll.u32 %v2434, 16
        %v2614 = vrot.slane %v2612, 5
        %v2615 = vor.u32 %v2611, %v2614
        %v2616 = vrot.slane %v2615, 4
        %v2618 = vshll.u32 %v2435, 16
        %v2620 = vrot.slane %v2618, 5
        %v2621 = vsel %vm1516, %v2616, %v2620
        %v2622 = vshrl.u32 %v2435, 16
        %v2624 = vrot.slane %v2622, 4
        %v2625 = vor.u32 %v2624, %v2620
        %v2626 = vrot.slane %v2625, 4
        %v2628 = vshll.u32 %v2436, 16
        %v2630 = vrot.slane %v2628, 5
        %v2631 = vsel %vm1516, %v2626, %v2630
        %v2633 = vshrl.u32 %v2437, 16
        %v2635 = vrot.slane %v2633, 4
        %v2636 = vshll.u32 %v2437, 16
        %v2638 = vrot.slane %v2636, 5
        %v2639 = vor.u32 %v2635, %v2638
        %v2640 = vrot.slane %v2639, 4
        %v2642 = vshll.u32 %v2438, 16
        %v2644 = vrot.slane %v2642, 5
        %v2645 = vsel %vm1516, %v2640, %v2644
        %v2646 = vshrl.u32 %v2438, 16
        %v2648 = vrot.slane %v2646, 4
        %v2649 = vor.u32 %v2648, %v2644
        %v2650 = vrot.slane %v2649, 4
        %v2652 = vshll.u32 %v2439, 16
        %v2654 = vrot.slane %v2652, 5
        %v2655 = vsel %vm1516, %v2650, %v2654
        %v2657 = vshrl.u32 %v2440, 16
        %v2659 = vrot.slane %v2657, 4
        %v2660 = vshll.u32 %v2440, 16
        %v2662 = vrot.slane %v2660, 5
        %v2663 = vor.u32 %v2659, %v2662
        %v2664 = vrot.slane %v2663, 4
        %v2666 = vshll.u32 %v2441, 16
        %v2668 = vrot.slane %v2666, 5
        %v2669 = vsel %vm1516, %v2664, %v2668
        %v2670 = vshrl.u32 %v2441, 16
        %v2672 = vrot.slane %v2670, 4
        %v2673 = vor.u32 %v2672, %v2668
        %v2674 = vrot.slane %v2673, 4
        %v2676 = vshll.u32 %v2442, 16
        %v2678 = vrot.slane %v2676, 5
        %v2679 = vsel %vm1516, %v2674, %v2678
        %v2681 = vshrl.u32 %v2443, 16
        %v2683 = vrot.slane %v2681, 4
        %v2684 = vshll.u32 %v2443, 16
        %v2686 = vrot.slane %v2684, 5
        %v2687 = vor.u32 %v2683, %v2686
        %v2688 = vrot.slane %v2687, 4
        %v2690 = vshll.u32 %v2444, 16
        %v2692 = vrot.slane %v2690, 5
        %v2693 = vsel %vm1516, %v2688, %v2692
        %v2694 = vshrl.u32 %v2444, 16
        %v2696 = vrot.slane %v2694, 4
        %v2697 = vor.u32 %v2696, %v2692
        %v2698 = vrot.slane %v2697, 4
        %v2700 = vshll.u32 %v2445, 16
        %v2702 = vrot.slane %v2700, 5
        %v2703 = vsel %vm1516, %v2698, %v2702
        %v2705 = vshrl.u32 %v2446, 16
        %v2707 = vrot.slane %v2705, 4
        %v2708 = vshll.u32 %v2446, 16
        %v2710 = vrot.slane %v2708, 5
        %v2711 = vor.u32 %v2707, %v2710
        %v2712 = vrot.slane %v2711, 4
        %v2714 = vshll.u32 %v2447, 16
        %v2716 = vrot.slane %v2714, 5
        %v2717 = vsel %vm1516, %v2712, %v2716
        %v2718 = vshrl.u32 %v2447, 16
        %v2720 = vrot.slane %v2718, 4
        %v2721 = vor.u32 %v2720, %v2716
        %v2722 = vrot.slane %v2721, 4
        %v2724 = vshll.u32 %v2448, 16
        %v2726 = vrot.slane %v2724, 5
        %v2727 = vsel %vm1516, %v2722, %v2726
        %v2729 = vshrl.u32 %v2449, 16
        %v2731 = vrot.slane %v2729, 4
        %v2732 = vshll.u32 %v2449, 16
        %v2734 = vrot.slane %v2732, 5
        %v2735 = vor.u32 %v2731, %v2734
        %v2736 = vrot.slane %v2735, 4
        %v2738 = vshll.u32 %v2450, 16
        %v2740 = vrot.slane %v2738, 5
        %v2741 = vsel %vm1516, %v2736, %v2740
        %v2742 = vshrl.u32 %v2450, 16
        %v2744 = vrot.slane %v2742, 4
        %v2745 = vor.u32 %v2744, %v2740
        %v2746 = vrot.slane %v2745, 4
        %v2748 = vshll.u32 %v2451, 16
        %v2750 = vrot.slane %v2748, 5
        %v2751 = vsel %vm1516, %v2746, %v2750
        %v2753 = vshrl.u32 %v2452, 16
        %v2755 = vrot.slane %v2753, 4
        %v2756 = vshll.u32 %v2452, 16
        %v2758 = vrot.slane %v2756, 5
        %v2759 = vor.u32 %v2755, %v2758
        %v2760 = vrot.slane %v2759, 4
        %v2762 = vshll.u32 %v2453, 16
        %v2764 = vrot.slane %v2762, 5
        %v2765 = vsel %vm1516, %v2760, %v2764
        %v2766 = vshrl.u32 %v2453, 16
        %v2768 = vrot.slane %v2766, 4
        %v2769 = vor.u32 %v2768, %v2764
        %v2770 = vrot.slane %v2769, 4
        %v2772 = vshll.u32 %v2454, 16
        %v2774 = vrot.slane %v2772, 5
        %v2775 = vsel %vm1516, %v2770, %v2774
        %v2777 = vshrl.u32 %v2455, 16
        %v2779 = vrot.slane %v2777, 4
        %v2780 = vshll.u32 %v2455, 16
        %v2782 = vrot.slane %v2780, 5
        %v2783 = vor.u32 %v2779, %v2782
        %v2784 = vrot.slane %v2783, 4
        %v2786 = vshll.u32 %v2456, 16
        %v2788 = vrot.slane %v2786, 5
        %v2789 = vsel %vm1516, %v2784, %v2788
        %v2790 = vshrl.u32 %v2456, 16
        %v2792 = vrot.slane %v2790, 4
        %v2793 = vor.u32 %v2792, %v2788
        %v2794 = vrot.slane %v2793, 4
        %v2796 = vshll.u32 %v2457, 16
        %v2798 = vrot.slane %v2796, 5
        %v2799 = vsel %vm1516, %v2794, %v2798
        %v2801 = vshrl.u32 %v2458, 16
        %v2803 = vrot.slane %v2801, 4
        %v2804 = vshll.u32 %v2458, 16
        %v2806 = vrot.slane %v2804, 5
        %v2807 = vor.u32 %v2803, %v2806
        %v2808 = vrot.slane %v2807, 4
        %v2810 = vshll.u32 %v2459, 16
        %v2812 = vrot.slane %v2810, 5
        %v2813 = vsel %vm1516, %v2808, %v2812
        %v2814 = vshrl.u32 %v2459, 16
        %v2816 = vrot.slane %v2814, 4
        %v2817 = vor.u32 %v2816, %v2812
        %v2818 = vrot.slane %v2817, 4
        %v2820 = vshll.u32 %v2460, 16
        %v2822 = vrot.slane %v2820, 5
        %v2823 = vsel %vm1516, %v2818, %v2822
        %v2825 = vshrl.u32 %v2461, 16
        %v2827 = vrot.slane %v2825, 4
        %v2828 = vshll.u32 %v2461, 16
        %v2830 = vrot.slane %v2828, 5
        %v2831 = vor.u32 %v2827, %v2830
        %v2832 = vrot.slane %v2831, 4
        %v2834 = vshll.u32 %v2462, 16
        %v2836 = vrot.slane %v2834, 5
        %v2837 = vsel %vm1516, %v2832, %v2836
        %v2838 = vshrl.u32 %v2462, 16
        %v2840 = vrot.slane %v2838, 4
        %v2841 = vor.u32 %v2840, %v2836
        %v2842 = vrot.slane %v2841, 4
        %v2844 = vshll.u32 %v2463, 16
        %v2846 = vrot.slane %v2844, 5
        %v2847 = vsel %vm1516, %v2842, %v2846
        %v2848 = vunpack.c.l.b16 %v2477
        %v2849 = vunpack.c.l.b16 %v2487
        %v2850 = vunpack.c.l.b16 %v2501
        %v2851 = vunpack.c.l.b16 %v2511
        %v2852 = vunpack.c.l.b16 %v2525
        %v2853 = vunpack.c.l.b16 %v2535
        %v2854 = vunpack.c.l.b16 %v2549
        %v2855 = vunpack.c.l.b16 %v2559
        %v2856 = vunpack.c.l.b16 %v2573
        %v2857 = vunpack.c.l.b16 %v2583
        %v2858 = vunpack.c.l.b16 %v2597
        %v2859 = vunpack.c.l.b16 %v2607
        %v2860 = vunpack.c.l.b16 %v2621
        %v2861 = vunpack.c.l.b16 %v2631
        %v2862 = vunpack.c.l.b16 %v2645
        %v2863 = vunpack.c.l.b16 %v2655
        %v2864 = vunpack.c.l.b16 %v2669
        %v2865 = vunpack.c.l.b16 %v2679
        %v2866 = vunpack.c.l.b16 %v2693
        %v2867 = vunpack.c.l.b16 %v2703
        %v2868 = vunpack.c.l.b16 %v2717
        %v2869 = vunpack.c.l.b16 %v2727
        %v2870 = vunpack.c.l.b16 %v2741
        %v2871 = vunpack.c.l.b16 %v2751
        %v2872 = vunpack.c.l.b16 %v2765
        %v2873 = vunpack.c.l.b16 %v2775
        %v2874 = vunpack.c.l.b16 %v2789
        %v2875 = vunpack.c.l.b16 %v2799
        %v2876 = vunpack.c.l.b16 %v2813
        %v2877 = vunpack.c.l.b16 %v2823
        %v2878 = vunpack.c.l.b16 %v2837
        %v2879 = vunpack.c.l.b16 %v2847
        %v2880 = vpack.c.b16 %v2849, %v2848
        %v2881 = vpack.c.b16 %v2851, %v2850
        %v2882 = vpack.c.b16 %v2853, %v2852
        %v2883 = vpack.c.b16 %v2855, %v2854
        %v2884 = vpack.c.b16 %v2857, %v2856
        %v2885 = vpack.c.b16 %v2859, %v2858
        %v2886 = vpack.c.b16 %v2861, %v2860
        %v2887 = vpack.c.b16 %v2863, %v2862
        %v2888 = vpack.c.b16 %v2865, %v2864
        %v2889 = vpack.c.b16 %v2867, %v2866
        %v2890 = vpack.c.b16 %v2869, %v2868
        %v2891 = vpack.c.b16 %v2871, %v2870
        %v2892 = vpack.c.b16 %v2873, %v2872
        %v2893 = vpack.c.b16 %v2875, %v2874
        %v2894 = vpack.c.b16 %v2877, %v2876
        %v2895 = vpack.c.b16 %v2879, %v2878
        %2912 = vst [vmem:[#allocation3 + $0x20] sm:$0xff] %v2880
        %2913 = vst [vmem:[#allocation3 + $0x68] sm:$0xff] %v2881
        %2914 = vst [vmem:[#allocation3 + $0xb0] sm:$0xff] %v2882
        %2915 = vst [vmem:[#allocation3 + $0xf8] sm:$0xff] %v2883
        %2916 = vst [vmem:[#allocation3 + $0x140] sm:$0xff] %v2884
        %2917 = vst [vmem:[#allocation3 + $0x188] sm:$0xff] %v2885
        %2918 = vst [vmem:[#allocation3 + $0x1d0] sm:$0xff] %v2886
        %2919 = vst [vmem:[#allocation3 + $0x218] sm:$0xff] %v2887
        %2920 = vst [vmem:[#allocation3 + $0x260] sm:$0xff] %v2888
        %2921 = vst [vmem:[#allocation3 + $0x2a8] sm:$0xff] %v2889
        %2922 = vst [vmem:[#allocation3 + $0x2f0] sm:$0xff] %v2890
        %2923 = vst [vmem:[#allocation3 + $0x338] sm:$0xff] %v2891
        %2924 = vst [vmem:[#allocation3 + $0x380] sm:$0xff] %v2892
        %2925 = vst [vmem:[#allocation3 + $0x3c8] sm:$0xff] %v2893
        %2926 = vst [vmem:[#allocation3 + $0x410] sm:$0xff] %v2894
        %2927 = vst [vmem:[#allocation3 + $0x458] sm:$0xff] %v2895
        %v2928 = vld [vmem:[%s1204] sm:$0xe]
        %v2929 = vld [vmem:[%s1204 + $0x4] sm:$0xf]
        %v2930 = vld [vmem:[%s1204 + $0x8] sm:$0x1]
        %v2931 = vld [vmem:[%s1204 + $0xc] sm:$0xe]
        %v2932 = vld [vmem:[%s1204 + $0x10] sm:$0xf]
        %v2933 = vld [vmem:[%s1204 + $0x14] sm:$0x1]
        %v2934 = vld [vmem:[%s1204 + $0x18] sm:$0xe]
        %v2935 = vld [vmem:[%s1204 + $0x1c] sm:$0xf]
        %v2936 = vld [vmem:[%s1204 + $0x20] sm:$0x1]
        %v2937 = vld [vmem:[%s1204 + $0x24] sm:$0xe]
        %v2938 = vld [vmem:[%s1204 + $0x28] sm:$0xf]
        %v2939 = vld [vmem:[%s1204 + $0x2c] sm:$0x1]
        %v2940 = vld [vmem:[%s1204 + $0x30] sm:$0xe]
        %v2941 = vld [vmem:[%s1204 + $0x34] sm:$0xf]
        %v2942 = vld [vmem:[%s1204 + $0x38] sm:$0x1]
        %v2943 = vld [vmem:[%s1204 + $0x3c] sm:$0xe]
        %v2944 = vld [vmem:[%s1204 + $0x40] sm:$0xf]
        %v2945 = vld [vmem:[%s1204 + $0x44] sm:$0x1]
        %v2946 = vld [vmem:[%s1204 + $0x48] sm:$0xe]
        %v2947 = vld [vmem:[%s1204 + $0x4c] sm:$0xf]
        %v2948 = vld [vmem:[%s1204 + $0x50] sm:$0x1]
        %v2949 = vld [vmem:[%s1204 + $0x54] sm:$0xe]
        %v2950 = vld [vmem:[%s1204 + $0x58] sm:$0xf]
        %v2951 = vld [vmem:[%s1204 + $0x5c] sm:$0x1]
        %v2952 = vld [vmem:[%s1204 + $0x60] sm:$0xe]
        %v2953 = vld [vmem:[%s1204 + $0x64] sm:$0xf]
        %v2954 = vld [vmem:[%s1204 + $0x68] sm:$0x1]
        %v2955 = vld [vmem:[%s1204 + $0x6c] sm:$0xe]
        %v2956 = vld [vmem:[%s1204 + $0x70] sm:$0xf]
        %v2957 = vld [vmem:[%s1204 + $0x74] sm:$0x1]
        %v2958 = vld [vmem:[%s1204 + $0x78] sm:$0xe]
        %v2959 = vld [vmem:[%s1204 + $0x7c] sm:$0xf]
        %v2960 = vld [vmem:[%s1204 + $0x80] sm:$0x1]
        %v2961 = vld [vmem:[%s1204 + $0x84] sm:$0xe]
        %v2962 = vld [vmem:[%s1204 + $0x88] sm:$0xf]
        %v2963 = vld [vmem:[%s1204 + $0x8c] sm:$0x1]
        %v2964 = vld [vmem:[%s1204 + $0x90] sm:$0xe]
        %v2965 = vld [vmem:[%s1204 + $0x94] sm:$0xf]
        %v2966 = vld [vmem:[%s1204 + $0x98] sm:$0x1]
        %v2967 = vld [vmem:[%s1204 + $0x9c] sm:$0xe]
        %v2968 = vld [vmem:[%s1204 + $0xa0] sm:$0xf]
        %v2969 = vld [vmem:[%s1204 + $0xa4] sm:$0x1]
        %v2970 = vld [vmem:[%s1204 + $0xa8] sm:$0xe]
        %v2971 = vld [vmem:[%s1204 + $0xac] sm:$0xf]
        %v2972 = vld [vmem:[%s1204 + $0xb0] sm:$0x1]
        %v2973 = vld [vmem:[%s1204 + $0xb4] sm:$0xe]
        %v2974 = vld [vmem:[%s1204 + $0xb8] sm:$0xf]
        %v2975 = vld [vmem:[%s1204 + $0xbc] sm:$0x1]
        %v3024 = vrot.slane %v2928, 5
        %v3025 = vrot.slane %v3024, 4
        %v3026 = vrot.slane %v2929, 5
        %v3027 = vsel %vm2079, %v3025, %v3026
        %v3028 = vrot.slane %v3026, 4
        %v3029 = vrot.slane %v2930, 5
        %v3030 = vsel %vm2079, %v3028, %v3029
        %v3031 = vrot.slane %v2931, 5
        %v3032 = vrot.slane %v3031, 4
        %v3033 = vrot.slane %v2932, 5
        %v3034 = vsel %vm2079, %v3032, %v3033
        %v3035 = vrot.slane %v3033, 4
        %v3036 = vrot.slane %v2933, 5
        %v3037 = vsel %vm2079, %v3035, %v3036
        %v3038 = vrot.slane %v2934, 5
        %v3039 = vrot.slane %v3038, 4
        %v3040 = vrot.slane %v2935, 5
        %v3041 = vsel %vm2079, %v3039, %v3040
        %v3042 = vrot.slane %v3040, 4
        %v3043 = vrot.slane %v2936, 5
        %v3044 = vsel %vm2079, %v3042, %v3043
        %v3045 = vrot.slane %v2937, 5
        %v3046 = vrot.slane %v3045, 4
        %v3047 = vrot.slane %v2938, 5
        %v3048 = vsel %vm2079, %v3046, %v3047
        %v3049 = vrot.slane %v3047, 4
        %v3050 = vrot.slane %v2939, 5
        %v3051 = vsel %vm2079, %v3049, %v3050
        %v3052 = vrot.slane %v2940, 5
        %v3053 = vrot.slane %v3052, 4
        %v3054 = vrot.slane %v2941, 5
        %v3055 = vsel %vm2079, %v3053, %v3054
        %v3056 = vrot.slane %v3054, 4
        %v3057 = vrot.slane %v2942, 5
        %v3058 = vsel %vm2079, %v3056, %v3057
        %v3059 = vrot.slane %v2943, 5
        %v3060 = vrot.slane %v3059, 4
        %v3061 = vrot.slane %v2944, 5
        %v3062 = vsel %vm2079, %v3060, %v3061
        %v3063 = vrot.slane %v3061, 4
        %v3064 = vrot.slane %v2945, 5
        %v3065 = vsel %vm2079, %v3063, %v3064
        %v3066 = vrot.slane %v2946, 5
        %v3067 = vrot.slane %v3066, 4
        %v3068 = vrot.slane %v2947, 5
        %v3069 = vsel %vm2079, %v3067, %v3068
        %v3070 = vrot.slane %v3068, 4
        %v3071 = vrot.slane %v2948, 5
        %v3072 = vsel %vm2079, %v3070, %v3071
        %v3073 = vrot.slane %v2949, 5
        %v3074 = vrot.slane %v3073, 4
        %v3075 = vrot.slane %v2950, 5
        %v3076 = vsel %vm2079, %v3074, %v3075
        %v3077 = vrot.slane %v3075, 4
        %v3078 = vrot.slane %v2951, 5
        %v3079 = vsel %vm2079, %v3077, %v3078
        %v3080 = vrot.slane %v2952, 5
        %v3081 = vrot.slane %v3080, 4
        %v3082 = vrot.slane %v2953, 5
        %v3083 = vsel %vm2079, %v3081, %v3082
        %v3084 = vrot.slane %v3082, 4
        %v3085 = vrot.slane %v2954, 5
        %v3086 = vsel %vm2079, %v3084, %v3085
        %v3087 = vrot.slane %v2955, 5
        %v3088 = vrot.slane %v3087, 4
        %v3089 = vrot.slane %v2956, 5
        %v3090 = vsel %vm2079, %v3088, %v3089
        %v3091 = vrot.slane %v3089, 4
        %v3092 = vrot.slane %v2957, 5
        %v3093 = vsel %vm2079, %v3091, %v3092
        %v3094 = vrot.slane %v2958, 5
        %v3095 = vrot.slane %v3094, 4
        %v3096 = vrot.slane %v2959, 5
        %v3097 = vsel %vm2079, %v3095, %v3096
        %v3098 = vrot.slane %v3096, 4
        %v3099 = vrot.slane %v2960, 5
        %v3100 = vsel %vm2079, %v3098, %v3099
        %v3101 = vrot.slane %v2961, 5
        %v3102 = vrot.slane %v3101, 4
        %v3103 = vrot.slane %v2962, 5
        %v3104 = vsel %vm2079, %v3102, %v3103
        %v3105 = vrot.slane %v3103, 4
        %v3106 = vrot.slane %v2963, 5
        %v3107 = vsel %vm2079, %v3105, %v3106
        %v3108 = vrot.slane %v2964, 5
        %v3109 = vrot.slane %v3108, 4
        %v3110 = vrot.slane %v2965, 5
        %v3111 = vsel %vm2079, %v3109, %v3110
        %v3112 = vrot.slane %v3110, 4
        %v3113 = vrot.slane %v2966, 5
        %v3114 = vsel %vm2079, %v3112, %v3113
        %v3115 = vrot.slane %v2967, 5
        %v3116 = vrot.slane %v3115, 4
        %v3117 = vrot.slane %v2968, 5
        %v3118 = vsel %vm2079, %v3116, %v3117
        %v3119 = vrot.slane %v3117, 4
        %v3120 = vrot.slane %v2969, 5
        %v3121 = vsel %vm2079, %v3119, %v3120
        %v3122 = vrot.slane %v2970, 5
        %v3123 = vrot.slane %v3122, 4
        %v3124 = vrot.slane %v2971, 5
        %v3125 = vsel %vm2079, %v3123, %v3124
        %v3126 = vrot.slane %v3124, 4
        %v3127 = vrot.slane %v2972, 5
        %v3128 = vsel %vm2079, %v3126, %v3127
        %v3129 = vrot.slane %v2973, 5
        %v3130 = vrot.slane %v3129, 4
        %v3131 = vrot.slane %v2974, 5
        %v3132 = vsel %vm2079, %v3130, %v3131
        %v3133 = vrot.slane %v3131, 4
        %v3134 = vrot.slane %v2975, 5
        %v3135 = vsel %vm2079, %v3133, %v3134
        %v3136 = vunpack.c.l.b16 %v3027
        %v3137 = vunpack.c.l.b16 %v3030
        %v3138 = vunpack.c.l.b16 %v3034
        %v3139 = vunpack.c.l.b16 %v3037
        %v3140 = vunpack.c.l.b16 %v3041
        %v3141 = vunpack.c.l.b16 %v3044
        %v3142 = vunpack.c.l.b16 %v3048
        %v3143 = vunpack.c.l.b16 %v3051
        %v3144 = vunpack.c.l.b16 %v3055
        %v3145 = vunpack.c.l.b16 %v3058
        %v3146 = vunpack.c.l.b16 %v3062
        %v3147 = vunpack.c.l.b16 %v3065
        %v3148 = vunpack.c.l.b16 %v3069
        %v3149 = vunpack.c.l.b16 %v3072
        %v3150 = vunpack.c.l.b16 %v3076
        %v3151 = vunpack.c.l.b16 %v3079
        %v3152 = vunpack.c.l.b16 %v3083
        %v3153 = vunpack.c.l.b16 %v3086
        %v3154 = vunpack.c.l.b16 %v3090
        %v3155 = vunpack.c.l.b16 %v3093
        %v3156 = vunpack.c.l.b16 %v3097
        %v3157 = vunpack.c.l.b16 %v3100
        %v3158 = vunpack.c.l.b16 %v3104
        %v3159 = vunpack.c.l.b16 %v3107
        %v3160 = vunpack.c.l.b16 %v3111
        %v3161 = vunpack.c.l.b16 %v3114
        %v3162 = vunpack.c.l.b16 %v3118
        %v3163 = vunpack.c.l.b16 %v3121
        %v3164 = vunpack.c.l.b16 %v3125
        %v3165 = vunpack.c.l.b16 %v3128
        %v3166 = vunpack.c.l.b16 %v3132
        %v3167 = vunpack.c.l.b16 %v3135
        %v3168 = vpack.c.b16 %v3137, %v3136
        %v3169 = vpack.c.b16 %v3139, %v3138
        %v3170 = vpack.c.b16 %v3141, %v3140
        %v3171 = vpack.c.b16 %v3143, %v3142
        %v3172 = vpack.c.b16 %v3145, %v3144
        %v3173 = vpack.c.b16 %v3147, %v3146
        %v3174 = vpack.c.b16 %v3149, %v3148
        %v3175 = vpack.c.b16 %v3151, %v3150
        %v3176 = vpack.c.b16 %v3153, %v3152
        %v3177 = vpack.c.b16 %v3155, %v3154
        %v3178 = vpack.c.b16 %v3157, %v3156
        %v3179 = vpack.c.b16 %v3159, %v3158
        %v3180 = vpack.c.b16 %v3161, %v3160
        %v3181 = vpack.c.b16 %v3163, %v3162
        %v3182 = vpack.c.b16 %v3165, %v3164
        %v3183 = vpack.c.b16 %v3167, %v3166
        %3200 = vst [vmem:[#allocation3 + $0x28] sm:$0xff] %v3168
        %3201 = vst [vmem:[#allocation3 + $0x70] sm:$0xff] %v3169
        %3202 = vst [vmem:[#allocation3 + $0xb8] sm:$0xff] %v3170
        %3203 = vst [vmem:[#allocation3 + $0x100] sm:$0xff] %v3171
        %3204 = vst [vmem:[#allocation3 + $0x148] sm:$0xff] %v3172
        %3205 = vst [vmem:[#allocation3 + $0x190] sm:$0xff] %v3173
        %3206 = vst [vmem:[#allocation3 + $0x1d8] sm:$0xff] %v3174
        %3207 = vst [vmem:[#allocation3 + $0x220] sm:$0xff] %v3175
        %3208 = vst [vmem:[#allocation3 + $0x268] sm:$0xff] %v3176
        %3209 = vst [vmem:[#allocation3 + $0x2b0] sm:$0xff] %v3177
        %3210 = vst [vmem:[#allocation3 + $0x2f8] sm:$0xff] %v3178
        %3211 = vst [vmem:[#allocation3 + $0x340] sm:$0xff] %v3179
        %3212 = vst [vmem:[#allocation3 + $0x388] sm:$0xff] %v3180
        %3213 = vst [vmem:[#allocation3 + $0x3d0] sm:$0xff] %v3181
        %3214 = vst [vmem:[#allocation3 + $0x418] sm:$0xff] %v3182
        %3215 = vst [vmem:[#allocation3 + $0x460] sm:$0xff] %v3183
        %s3216 = scalar_lea.vmem [#allocation2], 24
        %v3217 = vld [vmem:[%s3216] sm:$0xf]
        %v3218 = vld [vmem:[%s3216 + $0x4] sm:$0xf]
        %v3219 = vld [vmem:[%s3216 + $0xc] sm:$0xf]
        %v3220 = vld [vmem:[%s3216 + $0x10] sm:$0xf]
        %v3221 = vld [vmem:[%s3216 + $0x18] sm:$0xf]
        %v3222 = vld [vmem:[%s3216 + $0x1c] sm:$0xf]
        %v3223 = vld [vmem:[%s3216 + $0x24] sm:$0xf]
        %v3224 = vld [vmem:[%s3216 + $0x28] sm:$0xf]
        %v3225 = vld [vmem:[%s3216 + $0x30] sm:$0xf]
        %v3226 = vld [vmem:[%s3216 + $0x34] sm:$0xf]
        %v3227 = vld [vmem:[%s3216 + $0x3c] sm:$0xf]
        %v3228 = vld [vmem:[%s3216 + $0x40] sm:$0xf]
        %v3229 = vld [vmem:[%s3216 + $0x48] sm:$0xf]
        %v3230 = vld [vmem:[%s3216 + $0x4c] sm:$0xf]
        %v3231 = vld [vmem:[%s3216 + $0x54] sm:$0xf]
        %v3232 = vld [vmem:[%s3216 + $0x58] sm:$0xf]
        %v3233 = vld [vmem:[%s3216 + $0x60] sm:$0xf]
        %v3234 = vld [vmem:[%s3216 + $0x64] sm:$0xf]
        %v3235 = vld [vmem:[%s3216 + $0x6c] sm:$0xf]
        %v3236 = vld [vmem:[%s3216 + $0x70] sm:$0xf]
        %v3237 = vld [vmem:[%s3216 + $0x78] sm:$0xf]
        %v3238 = vld [vmem:[%s3216 + $0x7c] sm:$0xf]
        %v3239 = vld [vmem:[%s3216 + $0x84] sm:$0xf]
        %v3240 = vld [vmem:[%s3216 + $0x88] sm:$0xf]
        %v3241 = vld [vmem:[%s3216 + $0x90] sm:$0xf]
        %v3242 = vld [vmem:[%s3216 + $0x94] sm:$0xf]
        %v3243 = vld [vmem:[%s3216 + $0x9c] sm:$0xf]
        %v3244 = vld [vmem:[%s3216 + $0xa0] sm:$0xf]
        %v3245 = vld [vmem:[%s3216 + $0xa8] sm:$0xf]
        %v3246 = vld [vmem:[%s3216 + $0xac] sm:$0xf]
        %v3247 = vld [vmem:[%s3216 + $0xb4] sm:$0xf]
        %v3248 = vld [vmem:[%s3216 + $0xb8] sm:$0xf]
        %v3281 = vunpack.c.l.b16 %v3217
        %v3282 = vunpack.c.l.b16 %v3218
        %v3283 = vunpack.c.l.b16 %v3219
        %v3284 = vunpack.c.l.b16 %v3220
        %v3285 = vunpack.c.l.b16 %v3221
        %v3286 = vunpack.c.l.b16 %v3222
        %v3287 = vunpack.c.l.b16 %v3223
        %v3288 = vunpack.c.l.b16 %v3224
        %v3289 = vunpack.c.l.b16 %v3225
        %v3290 = vunpack.c.l.b16 %v3226
        %v3291 = vunpack.c.l.b16 %v3227
        %v3292 = vunpack.c.l.b16 %v3228
        %v3293 = vunpack.c.l.b16 %v3229
        %v3294 = vunpack.c.l.b16 %v3230
        %v3295 = vunpack.c.l.b16 %v3231
        %v3296 = vunpack.c.l.b16 %v3232
        %v3297 = vunpack.c.l.b16 %v3233
        %v3298 = vunpack.c.l.b16 %v3234
        %v3299 = vunpack.c.l.b16 %v3235
        %v3300 = vunpack.c.l.b16 %v3236
        %v3301 = vunpack.c.l.b16 %v3237
        %v3302 = vunpack.c.l.b16 %v3238
        %v3303 = vunpack.c.l.b16 %v3239
        %v3304 = vunpack.c.l.b16 %v3240
        %v3305 = vunpack.c.l.b16 %v3241
        %v3306 = vunpack.c.l.b16 %v3242
        %v3307 = vunpack.c.l.b16 %v3243
        %v3308 = vunpack.c.l.b16 %v3244
        %v3309 = vunpack.c.l.b16 %v3245
        %v3310 = vunpack.c.l.b16 %v3246
        %v3311 = vunpack.c.l.b16 %v3247
        %v3312 = vunpack.c.l.b16 %v3248
        %v3313 = vpack.c.b16 %v3282, %v3281
        %v3314 = vpack.c.b16 %v3284, %v3283
        %v3315 = vpack.c.b16 %v3286, %v3285
        %v3316 = vpack.c.b16 %v3288, %v3287
        %v3317 = vpack.c.b16 %v3290, %v3289
        %v3318 = vpack.c.b16 %v3292, %v3291
        %v3319 = vpack.c.b16 %v3294, %v3293
        %v3320 = vpack.c.b16 %v3296, %v3295
        %v3321 = vpack.c.b16 %v3298, %v3297
        %v3322 = vpack.c.b16 %v3300, %v3299
        %v3323 = vpack.c.b16 %v3302, %v3301
        %v3324 = vpack.c.b16 %v3304, %v3303
        %v3325 = vpack.c.b16 %v3306, %v3305
        %v3326 = vpack.c.b16 %v3308, %v3307
        %v3327 = vpack.c.b16 %v3310, %v3309
        %v3328 = vpack.c.b16 %v3312, %v3311
        %3345 = vst [vmem:[#allocation3 + $0x30] sm:$0xff] %v3313
        %3346 = vst [vmem:[#allocation3 + $0x78] sm:$0xff] %v3314
        %3347 = vst [vmem:[#allocation3 + $0xc0] sm:$0xff] %v3315
        %3348 = vst [vmem:[#allocation3 + $0x108] sm:$0xff] %v3316
        %3349 = vst [vmem:[#allocation3 + $0x150] sm:$0xff] %v3317
        %3350 = vst [vmem:[#allocation3 + $0x198] sm:$0xff] %v3318
        %3351 = vst [vmem:[#allocation3 + $0x1e0] sm:$0xff] %v3319
        %3352 = vst [vmem:[#allocation3 + $0x228] sm:$0xff] %v3320
        %3353 = vst [vmem:[#allocation3 + $0x270] sm:$0xff] %v3321
        %3354 = vst [vmem:[#allocation3 + $0x2b8] sm:$0xff] %v3322
        %3355 = vst [vmem:[#allocation3 + $0x300] sm:$0xff] %v3323
        %3356 = vst [vmem:[#allocation3 + $0x348] sm:$0xff] %v3324
        %3357 = vst [vmem:[#allocation3 + $0x390] sm:$0xff] %v3325
        %3358 = vst [vmem:[#allocation3 + $0x3d8] sm:$0xff] %v3326
        %3359 = vst [vmem:[#allocation3 + $0x420] sm:$0xff] %v3327
        %3360 = vst [vmem:[#allocation3 + $0x468] sm:$0xff] %v3328
        %v3361 = vld [vmem:[%s3216] sm:$0xf]
        %v3362 = vld [vmem:[%s3216 + $0x4] sm:$0xf]
        %v3363 = vld [vmem:[%s3216 + $0x8] sm:$0x1]
        %v3364 = vld [vmem:[%s3216 + $0xc] sm:$0xf]
        %v3365 = vld [vmem:[%s3216 + $0x10] sm:$0xf]
        %v3366 = vld [vmem:[%s3216 + $0x14] sm:$0x1]
        %v3367 = vld [vmem:[%s3216 + $0x18] sm:$0xf]
        %v3368 = vld [vmem:[%s3216 + $0x1c] sm:$0xf]
        %v3369 = vld [vmem:[%s3216 + $0x20] sm:$0x1]
        %v3370 = vld [vmem:[%s3216 + $0x24] sm:$0xf]
        %v3371 = vld [vmem:[%s3216 + $0x28] sm:$0xf]
        %v3372 = vld [vmem:[%s3216 + $0x2c] sm:$0x1]
        %v3373 = vld [vmem:[%s3216 + $0x30] sm:$0xf]
        %v3374 = vld [vmem:[%s3216 + $0x34] sm:$0xf]
        %v3375 = vld [vmem:[%s3216 + $0x38] sm:$0x1]
        %v3376 = vld [vmem:[%s3216 + $0x3c] sm:$0xf]
        %v3377 = vld [vmem:[%s3216 + $0x40] sm:$0xf]
        %v3378 = vld [vmem:[%s3216 + $0x44] sm:$0x1]
        %v3379 = vld [vmem:[%s3216 + $0x48] sm:$0xf]
        %v3380 = vld [vmem:[%s3216 + $0x4c] sm:$0xf]
        %v3381 = vld [vmem:[%s3216 + $0x50] sm:$0x1]
        %v3382 = vld [vmem:[%s3216 + $0x54] sm:$0xf]
        %v3383 = vld [vmem:[%s3216 + $0x58] sm:$0xf]
        %v3384 = vld [vmem:[%s3216 + $0x5c] sm:$0x1]
        %v3385 = vld [vmem:[%s3216 + $0x60] sm:$0xf]
        %v3386 = vld [vmem:[%s3216 + $0x64] sm:$0xf]
        %v3387 = vld [vmem:[%s3216 + $0x68] sm:$0x1]
        %v3388 = vld [vmem:[%s3216 + $0x6c] sm:$0xf]
        %v3389 = vld [vmem:[%s3216 + $0x70] sm:$0xf]
        %v3390 = vld [vmem:[%s3216 + $0x74] sm:$0x1]
        %v3391 = vld [vmem:[%s3216 + $0x78] sm:$0xf]
        %v3392 = vld [vmem:[%s3216 + $0x7c] sm:$0xf]
        %v3393 = vld [vmem:[%s3216 + $0x80] sm:$0x1]
        %v3394 = vld [vmem:[%s3216 + $0x84] sm:$0xf]
        %v3395 = vld [vmem:[%s3216 + $0x88] sm:$0xf]
        %v3396 = vld [vmem:[%s3216 + $0x8c] sm:$0x1]
        %v3397 = vld [vmem:[%s3216 + $0x90] sm:$0xf]
        %v3398 = vld [vmem:[%s3216 + $0x94] sm:$0xf]
        %v3399 = vld [vmem:[%s3216 + $0x98] sm:$0x1]
        %v3400 = vld [vmem:[%s3216 + $0x9c] sm:$0xf]
        %v3401 = vld [vmem:[%s3216 + $0xa0] sm:$0xf]
        %v3402 = vld [vmem:[%s3216 + $0xa4] sm:$0x1]
        %v3403 = vld [vmem:[%s3216 + $0xa8] sm:$0xf]
        %v3404 = vld [vmem:[%s3216 + $0xac] sm:$0xf]
        %v3405 = vld [vmem:[%s3216 + $0xb0] sm:$0x1]
        %v3406 = vld [vmem:[%s3216 + $0xb4] sm:$0xf]
        %v3407 = vld [vmem:[%s3216 + $0xb8] sm:$0xf]
        %v3408 = vld [vmem:[%s3216 + $0xbc] sm:$0x1]
        %v3410 = vshrl.u32 %v3361, 16
        %v3412 = vrot.slane %v3410, 4
        %v3413 = vshll.u32 %v3361, 16
        %v3415 = vrot.slane %v3413, 5
        %v3416 = vor.u32 %v3412, %v3415
        %v3417 = vrot.slane %v3416, 4
        %v3419 = vshll.u32 %v3362, 16
        %v3421 = vrot.slane %v3419, 5
        %v3422 = vsel %vm1516, %v3417, %v3421
        %v3423 = vshrl.u32 %v3362, 16
        %v3425 = vrot.slane %v3423, 4
        %v3426 = vor.u32 %v3425, %v3421
        %v3427 = vrot.slane %v3426, 4
        %v3429 = vshll.u32 %v3363, 16
        %v3431 = vrot.slane %v3429, 5
        %v3432 = vsel %vm1516, %v3427, %v3431
        %v3434 = vshrl.u32 %v3364, 16
        %v3436 = vrot.slane %v3434, 4
        %v3437 = vshll.u32 %v3364, 16
        %v3439 = vrot.slane %v3437, 5
        %v3440 = vor.u32 %v3436, %v3439
        %v3441 = vrot.slane %v3440, 4
        %v3443 = vshll.u32 %v3365, 16
        %v3445 = vrot.slane %v3443, 5
        %v3446 = vsel %vm1516, %v3441, %v3445
        %v3447 = vshrl.u32 %v3365, 16
        %v3449 = vrot.slane %v3447, 4
        %v3450 = vor.u32 %v3449, %v3445
        %v3451 = vrot.slane %v3450, 4
        %v3453 = vshll.u32 %v3366, 16
        %v3455 = vrot.slane %v3453, 5
        %v3456 = vsel %vm1516, %v3451, %v3455
        %v3458 = vshrl.u32 %v3367, 16
        %v3460 = vrot.slane %v3458, 4
        %v3461 = vshll.u32 %v3367, 16
        %v3463 = vrot.slane %v3461, 5
        %v3464 = vor.u32 %v3460, %v3463
        %v3465 = vrot.slane %v3464, 4
        %v3467 = vshll.u32 %v3368, 16
        %v3469 = vrot.slane %v3467, 5
        %v3470 = vsel %vm1516, %v3465, %v3469
        %v3471 = vshrl.u32 %v3368, 16
        %v3473 = vrot.slane %v3471, 4
        %v3474 = vor.u32 %v3473, %v3469
        %v3475 = vrot.slane %v3474, 4
        %v3477 = vshll.u32 %v3369, 16
        %v3479 = vrot.slane %v3477, 5
        %v3480 = vsel %vm1516, %v3475, %v3479
        %v3482 = vshrl.u32 %v3370, 16
        %v3484 = vrot.slane %v3482, 4
        %v3485 = vshll.u32 %v3370, 16
        %v3487 = vrot.slane %v3485, 5
        %v3488 = vor.u32 %v3484, %v3487
        %v3489 = vrot.slane %v3488, 4
        %v3491 = vshll.u32 %v3371, 16
        %v3493 = vrot.slane %v3491, 5
        %v3494 = vsel %vm1516, %v3489, %v3493
        %v3495 = vshrl.u32 %v3371, 16
        %v3497 = vrot.slane %v3495, 4
        %v3498 = vor.u32 %v3497, %v3493
        %v3499 = vrot.slane %v3498, 4
        %v3501 = vshll.u32 %v3372, 16
        %v3503 = vrot.slane %v3501, 5
        %v3504 = vsel %vm1516, %v3499, %v3503
        %v3506 = vshrl.u32 %v3373, 16
        %v3508 = vrot.slane %v3506, 4
        %v3509 = vshll.u32 %v3373, 16
        %v3511 = vrot.slane %v3509, 5
        %v3512 = vor.u32 %v3508, %v3511
        %v3513 = vrot.slane %v3512, 4
        %v3515 = vshll.u32 %v3374, 16
        %v3517 = vrot.slane %v3515, 5
        %v3518 = vsel %vm1516, %v3513, %v3517
        %v3519 = vshrl.u32 %v3374, 16
        %v3521 = vrot.slane %v3519, 4
        %v3522 = vor.u32 %v3521, %v3517
        %v3523 = vrot.slane %v3522, 4
        %v3525 = vshll.u32 %v3375, 16
        %v3527 = vrot.slane %v3525, 5
        %v3528 = vsel %vm1516, %v3523, %v3527
        %v3530 = vshrl.u32 %v3376, 16
        %v3532 = vrot.slane %v3530, 4
        %v3533 = vshll.u32 %v3376, 16
        %v3535 = vrot.slane %v3533, 5
        %v3536 = vor.u32 %v3532, %v3535
        %v3537 = vrot.slane %v3536, 4
        %v3539 = vshll.u32 %v3377, 16
        %v3541 = vrot.slane %v3539, 5
        %v3542 = vsel %vm1516, %v3537, %v3541
        %v3543 = vshrl.u32 %v3377, 16
        %v3545 = vrot.slane %v3543, 4
        %v3546 = vor.u32 %v3545, %v3541
        %v3547 = vrot.slane %v3546, 4
        %v3549 = vshll.u32 %v3378, 16
        %v3551 = vrot.slane %v3549, 5
        %v3552 = vsel %vm1516, %v3547, %v3551
        %v3554 = vshrl.u32 %v3379, 16
        %v3556 = vrot.slane %v3554, 4
        %v3557 = vshll.u32 %v3379, 16
        %v3559 = vrot.slane %v3557, 5
        %v3560 = vor.u32 %v3556, %v3559
        %v3561 = vrot.slane %v3560, 4
        %v3563 = vshll.u32 %v3380, 16
        %v3565 = vrot.slane %v3563, 5
        %v3566 = vsel %vm1516, %v3561, %v3565
        %v3567 = vshrl.u32 %v3380, 16
        %v3569 = vrot.slane %v3567, 4
        %v3570 = vor.u32 %v3569, %v3565
        %v3571 = vrot.slane %v3570, 4
        %v3573 = vshll.u32 %v3381, 16
        %v3575 = vrot.slane %v3573, 5
        %v3576 = vsel %vm1516, %v3571, %v3575
        %v3578 = vshrl.u32 %v3382, 16
        %v3580 = vrot.slane %v3578, 4
        %v3581 = vshll.u32 %v3382, 16
        %v3583 = vrot.slane %v3581, 5
        %v3584 = vor.u32 %v3580, %v3583
        %v3585 = vrot.slane %v3584, 4
        %v3587 = vshll.u32 %v3383, 16
        %v3589 = vrot.slane %v3587, 5
        %v3590 = vsel %vm1516, %v3585, %v3589
        %v3591 = vshrl.u32 %v3383, 16
        %v3593 = vrot.slane %v3591, 4
        %v3594 = vor.u32 %v3593, %v3589
        %v3595 = vrot.slane %v3594, 4
        %v3597 = vshll.u32 %v3384, 16
        %v3599 = vrot.slane %v3597, 5
        %v3600 = vsel %vm1516, %v3595, %v3599
        %v3602 = vshrl.u32 %v3385, 16
        %v3604 = vrot.slane %v3602, 4
        %v3605 = vshll.u32 %v3385, 16
        %v3607 = vrot.slane %v3605, 5
        %v3608 = vor.u32 %v3604, %v3607
        %v3609 = vrot.slane %v3608, 4
        %v3611 = vshll.u32 %v3386, 16
        %v3613 = vrot.slane %v3611, 5
        %v3614 = vsel %vm1516, %v3609, %v3613
        %v3615 = vshrl.u32 %v3386, 16
        %v3617 = vrot.slane %v3615, 4
        %v3618 = vor.u32 %v3617, %v3613
        %v3619 = vrot.slane %v3618, 4
        %v3621 = vshll.u32 %v3387, 16
        %v3623 = vrot.slane %v3621, 5
        %v3624 = vsel %vm1516, %v3619, %v3623
        %v3626 = vshrl.u32 %v3388, 16
        %v3628 = vrot.slane %v3626, 4
        %v3629 = vshll.u32 %v3388, 16
        %v3631 = vrot.slane %v3629, 5
        %v3632 = vor.u32 %v3628, %v3631
        %v3633 = vrot.slane %v3632, 4
        %v3635 = vshll.u32 %v3389, 16
        %v3637 = vrot.slane %v3635, 5
        %v3638 = vsel %vm1516, %v3633, %v3637
        %v3639 = vshrl.u32 %v3389, 16
        %v3641 = vrot.slane %v3639, 4
        %v3642 = vor.u32 %v3641, %v3637
        %v3643 = vrot.slane %v3642, 4
        %v3645 = vshll.u32 %v3390, 16
        %v3647 = vrot.slane %v3645, 5
        %v3648 = vsel %vm1516, %v3643, %v3647
        %v3650 = vshrl.u32 %v3391, 16
        %v3652 = vrot.slane %v3650, 4
        %v3653 = vshll.u32 %v3391, 16
        %v3655 = vrot.slane %v3653, 5
        %v3656 = vor.u32 %v3652, %v3655
        %v3657 = vrot.slane %v3656, 4
        %v3659 = vshll.u32 %v3392, 16
        %v3661 = vrot.slane %v3659, 5
        %v3662 = vsel %vm1516, %v3657, %v3661
        %v3663 = vshrl.u32 %v3392, 16
        %v3665 = vrot.slane %v3663, 4
        %v3666 = vor.u32 %v3665, %v3661
        %v3667 = vrot.slane %v3666, 4
        %v3669 = vshll.u32 %v3393, 16
        %v3671 = vrot.slane %v3669, 5
        %v3672 = vsel %vm1516, %v3667, %v3671
        %v3674 = vshrl.u32 %v3394, 16
        %v3676 = vrot.slane %v3674, 4
        %v3677 = vshll.u32 %v3394, 16
        %v3679 = vrot.slane %v3677, 5
        %v3680 = vor.u32 %v3676, %v3679
        %v3681 = vrot.slane %v3680, 4
        %v3683 = vshll.u32 %v3395, 16
        %v3685 = vrot.slane %v3683, 5
        %v3686 = vsel %vm1516, %v3681, %v3685
        %v3687 = vshrl.u32 %v3395, 16
        %v3689 = vrot.slane %v3687, 4
        %v3690 = vor.u32 %v3689, %v3685
        %v3691 = vrot.slane %v3690, 4
        %v3693 = vshll.u32 %v3396, 16
        %v3695 = vrot.slane %v3693, 5
        %v3696 = vsel %vm1516, %v3691, %v3695
        %v3698 = vshrl.u32 %v3397, 16
        %v3700 = vrot.slane %v3698, 4
        %v3701 = vshll.u32 %v3397, 16
        %v3703 = vrot.slane %v3701, 5
        %v3704 = vor.u32 %v3700, %v3703
        %v3705 = vrot.slane %v3704, 4
        %v3707 = vshll.u32 %v3398, 16
        %v3709 = vrot.slane %v3707, 5
        %v3710 = vsel %vm1516, %v3705, %v3709
        %v3711 = vshrl.u32 %v3398, 16
        %v3713 = vrot.slane %v3711, 4
        %v3714 = vor.u32 %v3713, %v3709
        %v3715 = vrot.slane %v3714, 4
        %v3717 = vshll.u32 %v3399, 16
        %v3719 = vrot.slane %v3717, 5
        %v3720 = vsel %vm1516, %v3715, %v3719
        %v3722 = vshrl.u32 %v3400, 16
        %v3724 = vrot.slane %v3722, 4
        %v3725 = vshll.u32 %v3400, 16
        %v3727 = vrot.slane %v3725, 5
        %v3728 = vor.u32 %v3724, %v3727
        %v3729 = vrot.slane %v3728, 4
        %v3731 = vshll.u32 %v3401, 16
        %v3733 = vrot.slane %v3731, 5
        %v3734 = vsel %vm1516, %v3729, %v3733
        %v3735 = vshrl.u32 %v3401, 16
        %v3737 = vrot.slane %v3735, 4
        %v3738 = vor.u32 %v3737, %v3733
        %v3739 = vrot.slane %v3738, 4
        %v3741 = vshll.u32 %v3402, 16
        %v3743 = vrot.slane %v3741, 5
        %v3744 = vsel %vm1516, %v3739, %v3743
        %v3746 = vshrl.u32 %v3403, 16
        %v3748 = vrot.slane %v3746, 4
        %v3749 = vshll.u32 %v3403, 16
        %v3751 = vrot.slane %v3749, 5
        %v3752 = vor.u32 %v3748, %v3751
        %v3753 = vrot.slane %v3752, 4
        %v3755 = vshll.u32 %v3404, 16
        %v3757 = vrot.slane %v3755, 5
        %v3758 = vsel %vm1516, %v3753, %v3757
        %v3759 = vshrl.u32 %v3404, 16
        %v3761 = vrot.slane %v3759, 4
        %v3762 = vor.u32 %v3761, %v3757
        %v3763 = vrot.slane %v3762, 4
        %v3765 = vshll.u32 %v3405, 16
        %v3767 = vrot.slane %v3765, 5
        %v3768 = vsel %vm1516, %v3763, %v3767
        %v3770 = vshrl.u32 %v3406, 16
        %v3772 = vrot.slane %v3770, 4
        %v3773 = vshll.u32 %v3406, 16
        %v3775 = vrot.slane %v3773, 5
        %v3776 = vor.u32 %v3772, %v3775
        %v3777 = vrot.slane %v3776, 4
        %v3779 = vshll.u32 %v3407, 16
        %v3781 = vrot.slane %v3779, 5
        %v3782 = vsel %vm1516, %v3777, %v3781
        %v3783 = vshrl.u32 %v3407, 16
        %v3785 = vrot.slane %v3783, 4
        %v3786 = vor.u32 %v3785, %v3781
        %v3787 = vrot.slane %v3786, 4
        %v3789 = vshll.u32 %v3408, 16
        %v3791 = vrot.slane %v3789, 5
        %v3792 = vsel %vm1516, %v3787, %v3791
        %v3793 = vunpack.c.l.b16 %v3422
        %v3794 = vunpack.c.l.b16 %v3432
        %v3795 = vunpack.c.l.b16 %v3446
        %v3796 = vunpack.c.l.b16 %v3456
        %v3797 = vunpack.c.l.b16 %v3470
        %v3798 = vunpack.c.l.b16 %v3480
        %v3799 = vunpack.c.l.b16 %v3494
        %v3800 = vunpack.c.l.b16 %v3504
        %v3801 = vunpack.c.l.b16 %v3518
        %v3802 = vunpack.c.l.b16 %v3528
        %v3803 = vunpack.c.l.b16 %v3542
        %v3804 = vunpack.c.l.b16 %v3552
        %v3805 = vunpack.c.l.b16 %v3566
        %v3806 = vunpack.c.l.b16 %v3576
        %v3807 = vunpack.c.l.b16 %v3590
        %v3808 = vunpack.c.l.b16 %v3600
        %v3809 = vunpack.c.l.b16 %v3614
        %v3810 = vunpack.c.l.b16 %v3624
        %v3811 = vunpack.c.l.b16 %v3638
        %v3812 = vunpack.c.l.b16 %v3648
        %v3813 = vunpack.c.l.b16 %v3662
        %v3814 = vunpack.c.l.b16 %v3672
        %v3815 = vunpack.c.l.b16 %v3686
        %v3816 = vunpack.c.l.b16 %v3696
        %v3817 = vunpack.c.l.b16 %v3710
        %v3818 = vunpack.c.l.b16 %v3720
        %v3819 = vunpack.c.l.b16 %v3734
        %v3820 = vunpack.c.l.b16 %v3744
        %v3821 = vunpack.c.l.b16 %v3758
        %v3822 = vunpack.c.l.b16 %v3768
        %v3823 = vunpack.c.l.b16 %v3782
        %v3824 = vunpack.c.l.b16 %v3792
        %v3825 = vpack.c.b16 %v3794, %v3793
        %v3826 = vpack.c.b16 %v3796, %v3795
        %v3827 = vpack.c.b16 %v3798, %v3797
        %v3828 = vpack.c.b16 %v3800, %v3799
        %v3829 = vpack.c.b16 %v3802, %v3801
        %v3830 = vpack.c.b16 %v3804, %v3803
        %v3831 = vpack.c.b16 %v3806, %v3805
        %v3832 = vpack.c.b16 %v3808, %v3807
        %v3833 = vpack.c.b16 %v3810, %v3809
        %v3834 = vpack.c.b16 %v3812, %v3811
        %v3835 = vpack.c.b16 %v3814, %v3813
        %v3836 = vpack.c.b16 %v3816, %v3815
        %v3837 = vpack.c.b16 %v3818, %v3817
        %v3838 = vpack.c.b16 %v3820, %v3819
        %v3839 = vpack.c.b16 %v3822, %v3821
        %v3840 = vpack.c.b16 %v3824, %v3823
        %3857 = vst [vmem:[#allocation3 + $0x38] sm:$0xff] %v3825
        %3858 = vst [vmem:[#allocation3 + $0x80] sm:$0xff] %v3826
        %3859 = vst [vmem:[#allocation3 + $0xc8] sm:$0xff] %v3827
        %3860 = vst [vmem:[#allocation3 + $0x110] sm:$0xff] %v3828
        %3861 = vst [vmem:[#allocation3 + $0x158] sm:$0xff] %v3829
        %3862 = vst [vmem:[#allocation3 + $0x1a0] sm:$0xff] %v3830
        %3863 = vst [vmem:[#allocation3 + $0x1e8] sm:$0xff] %v3831
        %3864 = vst [vmem:[#allocation3 + $0x230] sm:$0xff] %v3832
        %3865 = vst [vmem:[#allocation3 + $0x278] sm:$0xff] %v3833
        %3866 = vst [vmem:[#allocation3 + $0x2c0] sm:$0xff] %v3834
        %3867 = vst [vmem:[#allocation3 + $0x308] sm:$0xff] %v3835
        %3868 = vst [vmem:[#allocation3 + $0x350] sm:$0xff] %v3836
        %3869 = vst [vmem:[#allocation3 + $0x398] sm:$0xff] %v3837
        %3870 = vst [vmem:[#allocation3 + $0x3e0] sm:$0xff] %v3838
        %3871 = vst [vmem:[#allocation3 + $0x428] sm:$0xff] %v3839
        %3872 = vst [vmem:[#allocation3 + $0x470] sm:$0xff] %v3840
        %v3873 = vld [vmem:[%s3216] sm:$0xe]
        %v3874 = vld [vmem:[%s3216 + $0x4] sm:$0xf]
        %v3875 = vld [vmem:[%s3216 + $0x8] sm:$0x1]
        %v3876 = vld [vmem:[%s3216 + $0xc] sm:$0xe]
        %v3877 = vld [vmem:[%s3216 + $0x10] sm:$0xf]
        %v3878 = vld [vmem:[%s3216 + $0x14] sm:$0x1]
        %v3879 = vld [vmem:[%s3216 + $0x18] sm:$0xe]
        %v3880 = vld [vmem:[%s3216 + $0x1c] sm:$0xf]
        %v3881 = vld [vmem:[%s3216 + $0x20] sm:$0x1]
        %v3882 = vld [vmem:[%s3216 + $0x24] sm:$0xe]
        %v3883 = vld [vmem:[%s3216 + $0x28] sm:$0xf]
        %v3884 = vld [vmem:[%s3216 + $0x2c] sm:$0x1]
        %v3885 = vld [vmem:[%s3216 + $0x30] sm:$0xe]
        %v3886 = vld [vmem:[%s3216 + $0x34] sm:$0xf]
        %v3887 = vld [vmem:[%s3216 + $0x38] sm:$0x1]
        %v3888 = vld [vmem:[%s3216 + $0x3c] sm:$0xe]
        %v3889 = vld [vmem:[%s3216 + $0x40] sm:$0xf]
        %v3890 = vld [vmem:[%s3216 + $0x44] sm:$0x1]
        %v3891 = vld [vmem:[%s3216 + $0x48] sm:$0xe]
        %v3892 = vld [vmem:[%s3216 + $0x4c] sm:$0xf]
        %v3893 = vld [vmem:[%s3216 + $0x50] sm:$0x1]
        %v3894 = vld [vmem:[%s3216 + $0x54] sm:$0xe]
        %v3895 = vld [vmem:[%s3216 + $0x58] sm:$0xf]
        %v3896 = vld [vmem:[%s3216 + $0x5c] sm:$0x1]
        %v3897 = vld [vmem:[%s3216 + $0x60] sm:$0xe]
        %v3898 = vld [vmem:[%s3216 + $0x64] sm:$0xf]
        %v3899 = vld [vmem:[%s3216 + $0x68] sm:$0x1]
        %v3900 = vld [vmem:[%s3216 + $0x6c] sm:$0xe]
        %v3901 = vld [vmem:[%s3216 + $0x70] sm:$0xf]
        %v3902 = vld [vmem:[%s3216 + $0x74] sm:$0x1]
        %v3903 = vld [vmem:[%s3216 + $0x78] sm:$0xe]
        %v3904 = vld [vmem:[%s3216 + $0x7c] sm:$0xf]
        %v3905 = vld [vmem:[%s3216 + $0x80] sm:$0x1]
        %v3906 = vld [vmem:[%s3216 + $0x84] sm:$0xe]
        %v3907 = vld [vmem:[%s3216 + $0x88] sm:$0xf]
        %v3908 = vld [vmem:[%s3216 + $0x8c] sm:$0x1]
        %v3909 = vld [vmem:[%s3216 + $0x90] sm:$0xe]
        %v3910 = vld [vmem:[%s3216 + $0x94] sm:$0xf]
        %v3911 = vld [vmem:[%s3216 + $0x98] sm:$0x1]
        %v3912 = vld [vmem:[%s3216 + $0x9c] sm:$0xe]
        %v3913 = vld [vmem:[%s3216 + $0xa0] sm:$0xf]
        %v3914 = vld [vmem:[%s3216 + $0xa4] sm:$0x1]
        %v3915 = vld [vmem:[%s3216 + $0xa8] sm:$0xe]
        %v3916 = vld [vmem:[%s3216 + $0xac] sm:$0xf]
        %v3917 = vld [vmem:[%s3216 + $0xb0] sm:$0x1]
        %v3918 = vld [vmem:[%s3216 + $0xb4] sm:$0xe]
        %v3919 = vld [vmem:[%s3216 + $0xb8] sm:$0xf]
        %v3920 = vld [vmem:[%s3216 + $0xbc] sm:$0x1]
        %v3969 = vrot.slane %v3873, 5
        %v3970 = vrot.slane %v3969, 4
        %v3971 = vrot.slane %v3874, 5
        %v3972 = vsel %vm2079, %v3970, %v3971
        %v3973 = vrot.slane %v3971, 4
        %v3974 = vrot.slane %v3875, 5
        %v3975 = vsel %vm2079, %v3973, %v3974
        %v3976 = vrot.slane %v3876, 5
        %v3977 = vrot.slane %v3976, 4
        %v3978 = vrot.slane %v3877, 5
        %v3979 = vsel %vm2079, %v3977, %v3978
        %v3980 = vrot.slane %v3978, 4
        %v3981 = vrot.slane %v3878, 5
        %v3982 = vsel %vm2079, %v3980, %v3981
        %v3983 = vrot.slane %v3879, 5
        %v3984 = vrot.slane %v3983, 4
        %v3985 = vrot.slane %v3880, 5
        %v3986 = vsel %vm2079, %v3984, %v3985
        %v3987 = vrot.slane %v3985, 4
        %v3988 = vrot.slane %v3881, 5
        %v3989 = vsel %vm2079, %v3987, %v3988
        %v3990 = vrot.slane %v3882, 5
        %v3991 = vrot.slane %v3990, 4
        %v3992 = vrot.slane %v3883, 5
        %v3993 = vsel %vm2079, %v3991, %v3992
        %v3994 = vrot.slane %v3992, 4
        %v3995 = vrot.slane %v3884, 5
        %v3996 = vsel %vm2079, %v3994, %v3995
        %v3997 = vrot.slane %v3885, 5
        %v3998 = vrot.slane %v3997, 4
        %v3999 = vrot.slane %v3886, 5
        %v4000 = vsel %vm2079, %v3998, %v3999
        %v4001 = vrot.slane %v3999, 4
        %v4002 = vrot.slane %v3887, 5
        %v4003 = vsel %vm2079, %v4001, %v4002
        %v4004 = vrot.slane %v3888, 5
        %v4005 = vrot.slane %v4004, 4
        %v4006 = vrot.slane %v3889, 5
        %v4007 = vsel %vm2079, %v4005, %v4006
        %v4008 = vrot.slane %v4006, 4
        %v4009 = vrot.slane %v3890, 5
        %v4010 = vsel %vm2079, %v4008, %v4009
        %v4011 = vrot.slane %v3891, 5
        %v4012 = vrot.slane %v4011, 4
        %v4013 = vrot.slane %v3892, 5
        %v4014 = vsel %vm2079, %v4012, %v4013
        %v4015 = vrot.slane %v4013, 4
        %v4016 = vrot.slane %v3893, 5
        %v4017 = vsel %vm2079, %v4015, %v4016
        %v4018 = vrot.slane %v3894, 5
        %v4019 = vrot.slane %v4018, 4
        %v4020 = vrot.slane %v3895, 5
        %v4021 = vsel %vm2079, %v4019, %v4020
        %v4022 = vrot.slane %v4020, 4
        %v4023 = vrot.slane %v3896, 5
        %v4024 = vsel %vm2079, %v4022, %v4023
        %v4025 = vrot.slane %v3897, 5
        %v4026 = vrot.slane %v4025, 4
        %v4027 = vrot.slane %v3898, 5
        %v4028 = vsel %vm2079, %v4026, %v4027
        %v4029 = vrot.slane %v4027, 4
        %v4030 = vrot.slane %v3899, 5
        %v4031 = vsel %vm2079, %v4029, %v4030
        %v4032 = vrot.slane %v3900, 5
        %v4033 = vrot.slane %v4032, 4
        %v4034 = vrot.slane %v3901, 5
        %v4035 = vsel %vm2079, %v4033, %v4034
        %v4036 = vrot.slane %v4034, 4
        %v4037 = vrot.slane %v3902, 5
        %v4038 = vsel %vm2079, %v4036, %v4037
        %v4039 = vrot.slane %v3903, 5
        %v4040 = vrot.slane %v4039, 4
        %v4041 = vrot.slane %v3904, 5
        %v4042 = vsel %vm2079, %v4040, %v4041
        %v4043 = vrot.slane %v4041, 4
        %v4044 = vrot.slane %v3905, 5
        %v4045 = vsel %vm2079, %v4043, %v4044
        %v4046 = vrot.slane %v3906, 5
        %v4047 = vrot.slane %v4046, 4
        %v4048 = vrot.slane %v3907, 5
        %v4049 = vsel %vm2079, %v4047, %v4048
        %v4050 = vrot.slane %v4048, 4
        %v4051 = vrot.slane %v3908, 5
        %v4052 = vsel %vm2079, %v4050, %v4051
        %v4053 = vrot.slane %v3909, 5
        %v4054 = vrot.slane %v4053, 4
        %v4055 = vrot.slane %v3910, 5
        %v4056 = vsel %vm2079, %v4054, %v4055
        %v4057 = vrot.slane %v4055, 4
        %v4058 = vrot.slane %v3911, 5
        %v4059 = vsel %vm2079, %v4057, %v4058
        %v4060 = vrot.slane %v3912, 5
        %v4061 = vrot.slane %v4060, 4
        %v4062 = vrot.slane %v3913, 5
        %v4063 = vsel %vm2079, %v4061, %v4062
        %v4064 = vrot.slane %v4062, 4
        %v4065 = vrot.slane %v3914, 5
        %v4066 = vsel %vm2079, %v4064, %v4065
        %v4067 = vrot.slane %v3915, 5
        %v4068 = vrot.slane %v4067, 4
        %v4069 = vrot.slane %v3916, 5
        %v4070 = vsel %vm2079, %v4068, %v4069
        %v4071 = vrot.slane %v4069, 4
        %v4072 = vrot.slane %v3917, 5
        %v4073 = vsel %vm2079, %v4071, %v4072
        %v4074 = vrot.slane %v3918, 5
        %v4075 = vrot.slane %v4074, 4
        %v4076 = vrot.slane %v3919, 5
        %v4077 = vsel %vm2079, %v4075, %v4076
        %v4078 = vrot.slane %v4076, 4
        %v4079 = vrot.slane %v3920, 5
        %v4080 = vsel %vm2079, %v4078, %v4079
        %v4081 = vunpack.c.l.b16 %v3972
        %v4082 = vunpack.c.l.b16 %v3975
        %v4083 = vunpack.c.l.b16 %v3979
        %v4084 = vunpack.c.l.b16 %v3982
        %v4085 = vunpack.c.l.b16 %v3986
        %v4086 = vunpack.c.l.b16 %v3989
        %v4087 = vunpack.c.l.b16 %v3993
        %v4088 = vunpack.c.l.b16 %v3996
        %v4089 = vunpack.c.l.b16 %v4000
        %v4090 = vunpack.c.l.b16 %v4003
        %v4091 = vunpack.c.l.b16 %v4007
        %v4092 = vunpack.c.l.b16 %v4010
        %v4093 = vunpack.c.l.b16 %v4014
        %v4094 = vunpack.c.l.b16 %v4017
        %v4095 = vunpack.c.l.b16 %v4021
        %v4096 = vunpack.c.l.b16 %v4024
        %v4097 = vunpack.c.l.b16 %v4028
        %v4098 = vunpack.c.l.b16 %v4031
        %v4099 = vunpack.c.l.b16 %v4035
        %v4100 = vunpack.c.l.b16 %v4038
        %v4101 = vunpack.c.l.b16 %v4042
        %v4102 = vunpack.c.l.b16 %v4045
        %v4103 = vunpack.c.l.b16 %v4049
        %v4104 = vunpack.c.l.b16 %v4052
        %v4105 = vunpack.c.l.b16 %v4056
        %v4106 = vunpack.c.l.b16 %v4059
        %v4107 = vunpack.c.l.b16 %v4063
        %v4108 = vunpack.c.l.b16 %v4066
        %v4109 = vunpack.c.l.b16 %v4070
        %v4110 = vunpack.c.l.b16 %v4073
        %v4111 = vunpack.c.l.b16 %v4077
        %v4112 = vunpack.c.l.b16 %v4080
        %v4113 = vpack.c.b16 %v4082, %v4081
        %v4114 = vpack.c.b16 %v4084, %v4083
        %v4115 = vpack.c.b16 %v4086, %v4085
        %v4116 = vpack.c.b16 %v4088, %v4087
        %v4117 = vpack.c.b16 %v4090, %v4089
        %v4118 = vpack.c.b16 %v4092, %v4091
        %v4119 = vpack.c.b16 %v4094, %v4093
        %v4120 = vpack.c.b16 %v4096, %v4095
        %v4121 = vpack.c.b16 %v4098, %v4097
        %v4122 = vpack.c.b16 %v4100, %v4099
        %v4123 = vpack.c.b16 %v4102, %v4101
        %v4124 = vpack.c.b16 %v4104, %v4103
        %v4125 = vpack.c.b16 %v4106, %v4105
        %v4126 = vpack.c.b16 %v4108, %v4107
        %v4127 = vpack.c.b16 %v4110, %v4109
        %v4128 = vpack.c.b16 %v4112, %v4111
        %4145 = vst [vmem:[#allocation3 + $0x40] sm:$0xff] %v4113
        %4146 = vst [vmem:[#allocation3 + $0x88] sm:$0xff] %v4114
        %4147 = vst [vmem:[#allocation3 + $0xd0] sm:$0xff] %v4115
        %4148 = vst [vmem:[#allocation3 + $0x118] sm:$0xff] %v4116
        %4149 = vst [vmem:[#allocation3 + $0x160] sm:$0xff] %v4117
        %4150 = vst [vmem:[#allocation3 + $0x1a8] sm:$0xff] %v4118
        %4151 = vst [vmem:[#allocation3 + $0x1f0] sm:$0xff] %v4119
        %4152 = vst [vmem:[#allocation3 + $0x238] sm:$0xff] %v4120
        %4153 = vst [vmem:[#allocation3 + $0x280] sm:$0xff] %v4121
        %4154 = vst [vmem:[#allocation3 + $0x2c8] sm:$0xff] %v4122
        %4155 = vst [vmem:[#allocation3 + $0x310] sm:$0xff] %v4123
        %4156 = vst [vmem:[#allocation3 + $0x358] sm:$0xff] %v4124
        %4157 = vst [vmem:[#allocation3 + $0x3a0] sm:$0xff] %v4125
        %4158 = vst [vmem:[#allocation3 + $0x3e8] sm:$0xff] %v4126
        %4159 = vst [vmem:[#allocation3 + $0x430] sm:$0xff] %v4127
        %4160 = vst [vmem:[#allocation3 + $0x478] sm:$0xff] %v4128
        %v4161 = vld [vmem:[#allocation3] sm:$0xff]
        %v4162 = vld [vmem:[#allocation3 + $0x8] sm:$0xff]
        %v4163 = vld [vmem:[#allocation3 + $0x10] sm:$0xff]
        %v4164 = vld [vmem:[#allocation3 + $0x18] sm:$0xff]
        %v4165 = vld [vmem:[#allocation3 + $0x20] sm:$0xff]
        %v4166 = vld [vmem:[#allocation3 + $0x28] sm:$0xff]
        %v4167 = vld [vmem:[#allocation3 + $0x30] sm:$0xff]
        %v4168 = vld [vmem:[#allocation3 + $0x38] sm:$0xff]
        %v4169 = vld [vmem:[#allocation3 + $0x40] sm:$0xff]
        %v4170 = vld [vmem:[#allocation3 + $0x48] sm:$0xff]
        %v4171 = vld [vmem:[#allocation3 + $0x50] sm:$0xff]
        %v4172 = vld [vmem:[#allocation3 + $0x58] sm:$0xff]
        %v4173 = vld [vmem:[#allocation3 + $0x60] sm:$0xff]
        %v4174 = vld [vmem:[#allocation3 + $0x68] sm:$0xff]
        %v4175 = vld [vmem:[#allocation3 + $0x70] sm:$0xff]
        %v4176 = vld [vmem:[#allocation3 + $0x78] sm:$0xff]
        %v4177 = vld [vmem:[#allocation3 + $0x80] sm:$0xff]
        %v4178 = vld [vmem:[#allocation3 + $0x88] sm:$0xff]
        %v4179 = vld [vmem:[#allocation3 + $0x90] sm:$0xff]
        %v4180 = vld [vmem:[#allocation3 + $0x98] sm:$0xff]
        %v4181 = vld [vmem:[#allocation3 + $0xa0] sm:$0xff]
        %v4182 = vld [vmem:[#allocation3 + $0xa8] sm:$0xff]
        %v4183 = vld [vmem:[#allocation3 + $0xb0] sm:$0xff]
        %v4184 = vld [vmem:[#allocation3 + $0xb8] sm:$0xff]
        %v4185 = vld [vmem:[#allocation3 + $0xc0] sm:$0xff]
        %v4186 = vld [vmem:[#allocation3 + $0xc8] sm:$0xff]
        %v4187 = vld [vmem:[#allocation3 + $0xd0] sm:$0xff]
        %v4188 = vld [vmem:[#allocation3 + $0xd8] sm:$0xff]
        %v4189 = vld [vmem:[#allocation3 + $0xe0] sm:$0xff]
        %v4190 = vld [vmem:[#allocation3 + $0xe8] sm:$0xff]
        %v4191 = vld [vmem:[#allocation3 + $0xf0] sm:$0xff]
        %v4192 = vld [vmem:[#allocation3 + $0xf8] sm:$0xff]
        %v4193 = vld [vmem:[#allocation3 + $0x100] sm:$0xff]
        %v4194 = vld [vmem:[#allocation3 + $0x108] sm:$0xff]
        %v4195 = vld [vmem:[#allocation3 + $0x110] sm:$0xff]
        %v4196 = vld [vmem:[#allocation3 + $0x118] sm:$0xff]
        %v4197 = vld [vmem:[#allocation3 + $0x120] sm:$0xff]
        %v4198 = vld [vmem:[#allocation3 + $0x128] sm:$0xff]
        %v4199 = vld [vmem:[#allocation3 + $0x130] sm:$0xff]
        %v4200 = vld [vmem:[#allocation3 + $0x138] sm:$0xff]
        %v4201 = vld [vmem:[#allocation3 + $0x140] sm:$0xff]
        %v4202 = vld [vmem:[#allocation3 + $0x148] sm:$0xff]
        %v4203 = vld [vmem:[#allocation3 + $0x150] sm:$0xff]
        %v4204 = vld [vmem:[#allocation3 + $0x158] sm:$0xff]
        %v4205 = vld [vmem:[#allocation3 + $0x160] sm:$0xff]
        %v4206 = vld [vmem:[#allocation3 + $0x168] sm:$0xff]
        %v4207 = vld [vmem:[#allocation3 + $0x170] sm:$0xff]
        %v4208 = vld [vmem:[#allocation3 + $0x178] sm:$0xff]
        %v4209 = vld [vmem:[#allocation3 + $0x180] sm:$0xff]
        %v4210 = vld [vmem:[#allocation3 + $0x188] sm:$0xff]
        %v4211 = vld [vmem:[#allocation3 + $0x190] sm:$0xff]
        %v4212 = vld [vmem:[#allocation3 + $0x198] sm:$0xff]
        %v4213 = vld [vmem:[#allocation3 + $0x1a0] sm:$0xff]
        %v4214 = vld [vmem:[#allocation3 + $0x1a8] sm:$0xff]
        %v4215 = vld [vmem:[#allocation3 + $0x1b0] sm:$0xff]
        %v4216 = vld [vmem:[#allocation3 + $0x1b8] sm:$0xff]
        %v4217 = vld [vmem:[#allocation3 + $0x1c0] sm:$0xff]
        %v4218 = vld [vmem:[#allocation3 + $0x1c8] sm:$0xff]
        %v4219 = vld [vmem:[#allocation3 + $0x1d0] sm:$0xff]
        %v4220 = vld [vmem:[#allocation3 + $0x1d8] sm:$0xff]
        %v4221 = vld [vmem:[#allocation3 + $0x1e0] sm:$0xff]
        %v4222 = vld [vmem:[#allocation3 + $0x1e8] sm:$0xff]
        %v4223 = vld [vmem:[#allocation3 + $0x1f0] sm:$0xff]
        %v4224 = vld [vmem:[#allocation3 + $0x1f8] sm:$0xff]
        %v4225 = vld [vmem:[#allocation3 + $0x200] sm:$0xff]
        %v4226 = vld [vmem:[#allocation3 + $0x208] sm:$0xff]
        %v4227 = vld [vmem:[#allocation3 + $0x210] sm:$0xff]
        %v4228 = vld [vmem:[#allocation3 + $0x218] sm:$0xff]
        %v4229 = vld [vmem:[#allocation3 + $0x220] sm:$0xff]
        %v4230 = vld [vmem:[#allocation3 + $0x228] sm:$0xff]
        %v4231 = vld [vmem:[#allocation3 + $0x230] sm:$0xff]
        %v4232 = vld [vmem:[#allocation3 + $0x238] sm:$0xff]
        %v4233 = vld [vmem:[#allocation3 + $0x240] sm:$0xff]
        %v4234 = vld [vmem:[#allocation3 + $0x248] sm:$0xff]
        %v4235 = vld [vmem:[#allocation3 + $0x250] sm:$0xff]
        %v4236 = vld [vmem:[#allocation3 + $0x258] sm:$0xff]
        %v4237 = vld [vmem:[#allocation3 + $0x260] sm:$0xff]
        %v4238 = vld [vmem:[#allocation3 + $0x268] sm:$0xff]
        %v4239 = vld [vmem:[#allocation3 + $0x270] sm:$0xff]
        %v4240 = vld [vmem:[#allocation3 + $0x278] sm:$0xff]
        %v4241 = vld [vmem:[#allocation3 + $0x280] sm:$0xff]
        %v4242 = vld [vmem:[#allocation3 + $0x288] sm:$0xff]
        %v4243 = vld [vmem:[#allocation3 + $0x290] sm:$0xff]
        %v4244 = vld [vmem:[#allocation3 + $0x298] sm:$0xff]
        %v4245 = vld [vmem:[#allocation3 + $0x2a0] sm:$0xff]
        %v4246 = vld [vmem:[#allocation3 + $0x2a8] sm:$0xff]
        %v4247 = vld [vmem:[#allocation3 + $0x2b0] sm:$0xff]
        %v4248 = vld [vmem:[#allocation3 + $0x2b8] sm:$0xff]
        %v4249 = vld [vmem:[#allocation3 + $0x2c0] sm:$0xff]
        %v4250 = vld [vmem:[#allocation3 + $0x2c8] sm:$0xff]
        %v4251 = vld [vmem:[#allocation3 + $0x2d0] sm:$0xff]
        %v4252 = vld [vmem:[#allocation3 + $0x2d8] sm:$0xff]
        %v4253 = vld [vmem:[#allocation3 + $0x2e0] sm:$0xff]
        %v4254 = vld [vmem:[#allocation3 + $0x2e8] sm:$0xff]
        %v4255 = vld [vmem:[#allocation3 + $0x2f0] sm:$0xff]
        %v4256 = vld [vmem:[#allocation3 + $0x2f8] sm:$0xff]
        %v4257 = vld [vmem:[#allocation3 + $0x300] sm:$0xff]
        %v4258 = vld [vmem:[#allocation3 + $0x308] sm:$0xff]
        %v4259 = vld [vmem:[#allocation3 + $0x310] sm:$0xff]
        %v4260 = vld [vmem:[#allocation3 + $0x318] sm:$0xff]
        %v4261 = vld [vmem:[#allocation3 + $0x320] sm:$0xff]
        %v4262 = vld [vmem:[#allocation3 + $0x328] sm:$0xff]
        %v4263 = vld [vmem:[#allocation3 + $0x330] sm:$0xff]
        %v4264 = vld [vmem:[#allocation3 + $0x338] sm:$0xff]
        %v4265 = vld [vmem:[#allocation3 + $0x340] sm:$0xff]
        %v4266 = vld [vmem:[#allocation3 + $0x348] sm:$0xff]
        %v4267 = vld [vmem:[#allocation3 + $0x350] sm:$0xff]
        %v4268 = vld [vmem:[#allocation3 + $0x358] sm:$0xff]
        %v4269 = vld [vmem:[#allocation3 + $0x360] sm:$0xff]
        %v4270 = vld [vmem:[#allocation3 + $0x368] sm:$0xff]
        %v4271 = vld [vmem:[#allocation3 + $0x370] sm:$0xff]
        %v4272 = vld [vmem:[#allocation3 + $0x378] sm:$0xff]
        %v4273 = vld [vmem:[#allocation3 + $0x380] sm:$0xff]
        %v4274 = vld [vmem:[#allocation3 + $0x388] sm:$0xff]
        %v4275 = vld [vmem:[#allocation3 + $0x390] sm:$0xff]
        %v4276 = vld [vmem:[#allocation3 + $0x398] sm:$0xff]
        %v4277 = vld [vmem:[#allocation3 + $0x3a0] sm:$0xff]
        %v4278 = vld [vmem:[#allocation3 + $0x3a8] sm:$0xff]
        %v4279 = vld [vmem:[#allocation3 + $0x3b0] sm:$0xff]
        %v4280 = vld [vmem:[#allocation3 + $0x3b8] sm:$0xff]
        %v4281 = vld [vmem:[#allocation3 + $0x3c0] sm:$0xff]
        %v4282 = vld [vmem:[#allocation3 + $0x3c8] sm:$0xff]
        %v4283 = vld [vmem:[#allocation3 + $0x3d0] sm:$0xff]
        %v4284 = vld [vmem:[#allocation3 + $0x3d8] sm:$0xff]
        %v4285 = vld [vmem:[#allocation3 + $0x3e0] sm:$0xff]
        %v4286 = vld [vmem:[#allocation3 + $0x3e8] sm:$0xff]
        %v4287 = vld [vmem:[#allocation3 + $0x3f0] sm:$0xff]
        %v4288 = vld [vmem:[#allocation3 + $0x3f8] sm:$0xff]
        %v4289 = vld [vmem:[#allocation3 + $0x400] sm:$0xff]
        %v4290 = vld [vmem:[#allocation3 + $0x408] sm:$0xff]
        %v4291 = vld [vmem:[#allocation3 + $0x410] sm:$0xff]
        %v4292 = vld [vmem:[#allocation3 + $0x418] sm:$0xff]
        %v4293 = vld [vmem:[#allocation3 + $0x420] sm:$0xff]
        %v4294 = vld [vmem:[#allocation3 + $0x428] sm:$0xff]
        %v4295 = vld [vmem:[#allocation3 + $0x430] sm:$0xff]
        %v4296 = vld [vmem:[#allocation3 + $0x438] sm:$0xff]
        %v4297 = vld [vmem:[#allocation3 + $0x440] sm:$0xff]
        %v4298 = vld [vmem:[#allocation3 + $0x448] sm:$0xff]
        %v4299 = vld [vmem:[#allocation3 + $0x450] sm:$0xff]
        %v4300 = vld [vmem:[#allocation3 + $0x458] sm:$0xff]
        %v4301 = vld [vmem:[#allocation3 + $0x460] sm:$0xff]
        %v4302 = vld [vmem:[#allocation3 + $0x468] sm:$0xff]
        %v4303 = vld [vmem:[#allocation3 + $0x470] sm:$0xff]
        %v4304 = vld [vmem:[#allocation3 + $0x478] sm:$0xff]
        %v4305 = vld [vmem:[%s7] sm:$0xf]
        %v4306 = vld [vmem:[%s7 + $0x4] sm:$0xf]
        %v4307 = vld [vmem:[%s7 + $0x8] sm:$0xf]
        %v4308 = vld [vmem:[%s7 + $0xc] sm:$0xf]
        %v4309 = vld [vmem:[%s7 + $0x10] sm:$0xf]
        %v4310 = vld [vmem:[%s7 + $0x14] sm:$0xf]
        %v4311 = vld [vmem:[%s7 + $0x18] sm:$0xf]
        %v4312 = vld [vmem:[%s7 + $0x1c] sm:$0xf]
        %v4313 = vld [vmem:[%s7 + $0x20] sm:$0xf]
        %v4314 = vld [vmem:[%s7 + $0x24] sm:$0xf]
        %v4315 = vld [vmem:[%s7 + $0x28] sm:$0xf]
        %v4316 = vld [vmem:[%s7 + $0x2c] sm:$0xf]
        %v4317 = vld [vmem:[%s7 + $0x30] sm:$0xf]
        %v4318 = vld [vmem:[%s7 + $0x34] sm:$0xf]
        %v4319 = vld [vmem:[%s7 + $0x38] sm:$0xf]
        %v4320 = vld [vmem:[%s7 + $0x3c] sm:$0xf]
        %v4321 = vld [vmem:[%s7 + $0x40] sm:$0xf]
        %v4322 = vld [vmem:[%s7 + $0x44] sm:$0xf]
        %v4323 = vld [vmem:[%s7 + $0x48] sm:$0xf]
        %v4324 = vld [vmem:[%s7 + $0x4c] sm:$0xf]
        %v4325 = vld [vmem:[%s7 + $0x50] sm:$0xf]
        %v4326 = vld [vmem:[%s7 + $0x54] sm:$0xf]
        %v4327 = vld [vmem:[%s7 + $0x58] sm:$0xf]
        %v4328 = vld [vmem:[%s7 + $0x5c] sm:$0xf]
        %v4329 = vld [vmem:[%s7 + $0x60] sm:$0xf]
        %v4330 = vld [vmem:[%s7 + $0x64] sm:$0xf]
        %v4331 = vld [vmem:[%s7 + $0x68] sm:$0xf]
        %v4332 = vld [vmem:[%s7 + $0x6c] sm:$0xf]
        %v4333 = vld [vmem:[%s7 + $0x70] sm:$0xf]
        %v4334 = vld [vmem:[%s7 + $0x74] sm:$0xf]
        %v4335 = vld [vmem:[%s7 + $0x78] sm:$0xf]
        %v4336 = vld [vmem:[%s7 + $0x7c] sm:$0xf]
        %v4337 = vld [vmem:[%s7 + $0x80] sm:$0xf]
        %v4338 = vld [vmem:[%s7 + $0x84] sm:$0xf]
        %v4339 = vld [vmem:[%s7 + $0x88] sm:$0xf]
        %v4340 = vld [vmem:[%s7 + $0x8c] sm:$0xf]
        %v4341 = vld [vmem:[%s7 + $0x90] sm:$0xf]
        %v4342 = vld [vmem:[%s7 + $0x94] sm:$0xf]
        %v4343 = vld [vmem:[%s7 + $0x98] sm:$0xf]
        %v4344 = vld [vmem:[%s7 + $0x9c] sm:$0xf]
        %v4345 = vld [vmem:[%s7 + $0xa0] sm:$0xf]
        %v4346 = vld [vmem:[%s7 + $0xa4] sm:$0xf]
        %v4347 = vld [vmem:[%s7 + $0xa8] sm:$0xf]
        %v4348 = vld [vmem:[%s7 + $0xac] sm:$0xf]
        %v4349 = vld [vmem:[%s7 + $0xb0] sm:$0xf]
        %v4350 = vld [vmem:[%s7 + $0xb4] sm:$0xf]
        %v4351 = vld [vmem:[%s7 + $0xb8] sm:$0xf]
        %v4352 = vld [vmem:[%s7 + $0xbc] sm:$0xf]
        %v4353 = vld [vmem:[%s7 + $0xc0] sm:$0xf]
        %v4354 = vld [vmem:[%s7 + $0xc4] sm:$0xf]
        %v4355 = vld [vmem:[%s7 + $0xc8] sm:$0xf]
        %v4356 = vld [vmem:[%s7 + $0xcc] sm:$0xf]
        %v4357 = vld [vmem:[%s7 + $0xd0] sm:$0xf]
        %v4358 = vld [vmem:[%s7 + $0xd4] sm:$0xf]
        %v4359 = vld [vmem:[%s7 + $0xd8] sm:$0xf]
        %v4360 = vld [vmem:[%s7 + $0xdc] sm:$0xf]
        %v4361 = vld [vmem:[%s7 + $0xe0] sm:$0xf]
        %v4362 = vld [vmem:[%s7 + $0xe4] sm:$0xf]
        %v4363 = vld [vmem:[%s7 + $0xe8] sm:$0xf]
        %v4364 = vld [vmem:[%s7 + $0xec] sm:$0xf]
        %v4365 = vld [vmem:[%s7 + $0xf0] sm:$0xf]
        %v4366 = vld [vmem:[%s7 + $0xf4] sm:$0xf]
        %v4367 = vld [vmem:[%s7 + $0xf8] sm:$0xf]
        %v4368 = vld [vmem:[%s7 + $0xfc] sm:$0xf]
        %v4369 = vld [vmem:[%s7 + $0x100] sm:$0xf]
        %v4370 = vld [vmem:[%s7 + $0x104] sm:$0xf]
        %v4371 = vld [vmem:[%s7 + $0x108] sm:$0xf]
        %v4372 = vld [vmem:[%s7 + $0x10c] sm:$0xf]
        %v4373 = vld [vmem:[%s7 + $0x110] sm:$0xf]
        %v4374 = vld [vmem:[%s7 + $0x114] sm:$0xf]
        %v4375 = vld [vmem:[%s7 + $0x118] sm:$0xf]
        %v4376 = vld [vmem:[%s7 + $0x11c] sm:$0xf]
        %v4377 = vld [vmem:[%s7 + $0x120] sm:$0xf]
        %v4378 = vld [vmem:[%s7 + $0x124] sm:$0xf]
        %v4379 = vld [vmem:[%s7 + $0x128] sm:$0xf]
        %v4380 = vld [vmem:[%s7 + $0x12c] sm:$0xf]
        %v4381 = vld [vmem:[%s7 + $0x130] sm:$0xf]
        %v4382 = vld [vmem:[%s7 + $0x134] sm:$0xf]
        %v4383 = vld [vmem:[%s7 + $0x138] sm:$0xf]
        %v4384 = vld [vmem:[%s7 + $0x13c] sm:$0xf]
        %v4385 = vld [vmem:[%s7 + $0x140] sm:$0xf]
        %v4386 = vld [vmem:[%s7 + $0x144] sm:$0xf]
        %v4387 = vld [vmem:[%s7 + $0x148] sm:$0xf]
        %v4388 = vld [vmem:[%s7 + $0x14c] sm:$0xf]
        %v4389 = vld [vmem:[%s7 + $0x150] sm:$0xf]
        %v4390 = vld [vmem:[%s7 + $0x154] sm:$0xf]
        %v4391 = vld [vmem:[%s7 + $0x158] sm:$0xf]
        %v4392 = vld [vmem:[%s7 + $0x15c] sm:$0xf]
        %v4393 = vld [vmem:[%s7 + $0x160] sm:$0xf]
        %v4394 = vld [vmem:[%s7 + $0x164] sm:$0xf]
        %v4395 = vld [vmem:[%s7 + $0x168] sm:$0xf]
        %v4396 = vld [vmem:[%s7 + $0x16c] sm:$0xf]
        %v4397 = vld [vmem:[%s7 + $0x170] sm:$0xf]
        %v4398 = vld [vmem:[%s7 + $0x174] sm:$0xf]
        %v4399 = vld [vmem:[%s7 + $0x178] sm:$0xf]
        %v4400 = vld [vmem:[%s7 + $0x17c] sm:$0xf]
        %v4401 = vld [vmem:[%s7 + $0x180] sm:$0xf]
        %v4402 = vld [vmem:[%s7 + $0x184] sm:$0xf]
        %v4403 = vld [vmem:[%s7 + $0x188] sm:$0xf]
        %v4404 = vld [vmem:[%s7 + $0x18c] sm:$0xf]
        %v4405 = vld [vmem:[%s7 + $0x190] sm:$0xf]
        %v4406 = vld [vmem:[%s7 + $0x194] sm:$0xf]
        %v4407 = vld [vmem:[%s7 + $0x198] sm:$0xf]
        %v4408 = vld [vmem:[%s7 + $0x19c] sm:$0xf]
        %v4409 = vld [vmem:[%s7 + $0x1a0] sm:$0xf]
        %v4410 = vld [vmem:[%s7 + $0x1a4] sm:$0xf]
        %v4411 = vld [vmem:[%s7 + $0x1a8] sm:$0xf]
        %v4412 = vld [vmem:[%s7 + $0x1ac] sm:$0xf]
        %v4413 = vld [vmem:[%s7 + $0x1b0] sm:$0xf]
        %v4414 = vld [vmem:[%s7 + $0x1b4] sm:$0xf]
        %v4415 = vld [vmem:[%s7 + $0x1b8] sm:$0xf]
        %v4416 = vld [vmem:[%s7 + $0x1bc] sm:$0xf]
        %v4417 = vld [vmem:[%s7 + $0x1c0] sm:$0xf]
        %v4418 = vld [vmem:[%s7 + $0x1c4] sm:$0xf]
        %v4419 = vld [vmem:[%s7 + $0x1c8] sm:$0xf]
        %v4420 = vld [vmem:[%s7 + $0x1cc] sm:$0xf]
        %v4421 = vld [vmem:[%s7 + $0x1d0] sm:$0xf]
        %v4422 = vld [vmem:[%s7 + $0x1d4] sm:$0xf]
        %v4423 = vld [vmem:[%s7 + $0x1d8] sm:$0xf]
        %v4424 = vld [vmem:[%s7 + $0x1dc] sm:$0xf]
        %v4425 = vld [vmem:[%s7 + $0x1e0] sm:$0xf]
        %v4426 = vld [vmem:[%s7 + $0x1e4] sm:$0xf]
        %v4427 = vld [vmem:[%s7 + $0x1e8] sm:$0xf]
        %v4428 = vld [vmem:[%s7 + $0x1ec] sm:$0xf]
        %v4429 = vld [vmem:[%s7 + $0x1f0] sm:$0xf]
        %v4430 = vld [vmem:[%s7 + $0x1f4] sm:$0xf]
        %v4431 = vld [vmem:[%s7 + $0x1f8] sm:$0xf]
        %v4432 = vld [vmem:[%s7 + $0x1fc] sm:$0xf]
        %v4433 = vld [vmem:[%s7 + $0x200] sm:$0xf]
        %v4434 = vld [vmem:[%s7 + $0x204] sm:$0xf]
        %v4435 = vld [vmem:[%s7 + $0x208] sm:$0xf]
        %v4436 = vld [vmem:[%s7 + $0x20c] sm:$0xf]
        %v4437 = vld [vmem:[%s7 + $0x210] sm:$0xf]
        %v4438 = vld [vmem:[%s7 + $0x214] sm:$0xf]
        %v4439 = vld [vmem:[%s7 + $0x218] sm:$0xf]
        %v4440 = vld [vmem:[%s7 + $0x21c] sm:$0xf]
        %v4441 = vld [vmem:[%s7 + $0x220] sm:$0xf]
        %v4442 = vld [vmem:[%s7 + $0x224] sm:$0xf]
        %v4443 = vld [vmem:[%s7 + $0x228] sm:$0xf]
        %v4444 = vld [vmem:[%s7 + $0x22c] sm:$0xf]
        %v4445 = vld [vmem:[%s7 + $0x230] sm:$0xf]
        %v4446 = vld [vmem:[%s7 + $0x234] sm:$0xf]
        %v4447 = vld [vmem:[%s7 + $0x238] sm:$0xf]
        %v4448 = vld [vmem:[%s7 + $0x23c] sm:$0xf]
        %v4593 = vunpack.c.l.b16 %v4305
        %v4594 = vunpack.c.l.b16 %v4306
        %v4595 = vunpack.c.l.b16 %v4307
        %v4596 = vunpack.c.l.b16 %v4308
        %v4597 = vunpack.c.l.b16 %v4309
        %v4598 = vunpack.c.l.b16 %v4310
        %v4599 = vunpack.c.l.b16 %v4311
        %v4600 = vunpack.c.l.b16 %v4312
        %v4601 = vunpack.c.l.b16 %v4313
        %v4602 = vunpack.c.l.b16 %v4314
        %v4603 = vunpack.c.l.b16 %v4315
        %v4604 = vunpack.c.l.b16 %v4316
        %v4605 = vunpack.c.l.b16 %v4317
        %v4606 = vunpack.c.l.b16 %v4318
        %v4607 = vunpack.c.l.b16 %v4319
        %v4608 = vunpack.c.l.b16 %v4320
        %v4609 = vunpack.c.l.b16 %v4321
        %v4610 = vunpack.c.l.b16 %v4322
        %v4611 = vunpack.c.l.b16 %v4323
        %v4612 = vunpack.c.l.b16 %v4324
        %v4613 = vunpack.c.l.b16 %v4325
        %v4614 = vunpack.c.l.b16 %v4326
        %v4615 = vunpack.c.l.b16 %v4327
        %v4616 = vunpack.c.l.b16 %v4328
        %v4617 = vunpack.c.l.b16 %v4329
        %v4618 = vunpack.c.l.b16 %v4330
        %v4619 = vunpack.c.l.b16 %v4331
        %v4620 = vunpack.c.l.b16 %v4332
        %v4621 = vunpack.c.l.b16 %v4333
        %v4622 = vunpack.c.l.b16 %v4334
        %v4623 = vunpack.c.l.b16 %v4335
        %v4624 = vunpack.c.l.b16 %v4336
        %v4625 = vunpack.c.l.b16 %v4337
        %v4626 = vunpack.c.l.b16 %v4338
        %v4627 = vunpack.c.l.b16 %v4339
        %v4628 = vunpack.c.l.b16 %v4340
        %v4629 = vunpack.c.l.b16 %v4341
        %v4630 = vunpack.c.l.b16 %v4342
        %v4631 = vunpack.c.l.b16 %v4343
        %v4632 = vunpack.c.l.b16 %v4344
        %v4633 = vunpack.c.l.b16 %v4345
        %v4634 = vunpack.c.l.b16 %v4346
        %v4635 = vunpack.c.l.b16 %v4347
        %v4636 = vunpack.c.l.b16 %v4348
        %v4637 = vunpack.c.l.b16 %v4349
        %v4638 = vunpack.c.l.b16 %v4350
        %v4639 = vunpack.c.l.b16 %v4351
        %v4640 = vunpack.c.l.b16 %v4352
        %v4641 = vunpack.c.l.b16 %v4353
        %v4642 = vunpack.c.l.b16 %v4354
        %v4643 = vunpack.c.l.b16 %v4355
        %v4644 = vunpack.c.l.b16 %v4356
        %v4645 = vunpack.c.l.b16 %v4357
        %v4646 = vunpack.c.l.b16 %v4358
        %v4647 = vunpack.c.l.b16 %v4359
        %v4648 = vunpack.c.l.b16 %v4360
        %v4649 = vunpack.c.l.b16 %v4361
        %v4650 = vunpack.c.l.b16 %v4362
        %v4651 = vunpack.c.l.b16 %v4363
        %v4652 = vunpack.c.l.b16 %v4364
        %v4653 = vunpack.c.l.b16 %v4365
        %v4654 = vunpack.c.l.b16 %v4366
        %v4655 = vunpack.c.l.b16 %v4367
        %v4656 = vunpack.c.l.b16 %v4368
        %v4657 = vunpack.c.l.b16 %v4369
        %v4658 = vunpack.c.l.b16 %v4370
        %v4659 = vunpack.c.l.b16 %v4371
        %v4660 = vunpack.c.l.b16 %v4372
        %v4661 = vunpack.c.l.b16 %v4373
        %v4662 = vunpack.c.l.b16 %v4374
        %v4663 = vunpack.c.l.b16 %v4375
        %v4664 = vunpack.c.l.b16 %v4376
        %v4665 = vunpack.c.l.b16 %v4377
        %v4666 = vunpack.c.l.b16 %v4378
        %v4667 = vunpack.c.l.b16 %v4379
        %v4668 = vunpack.c.l.b16 %v4380
        %v4669 = vunpack.c.l.b16 %v4381
        %v4670 = vunpack.c.l.b16 %v4382
        %v4671 = vunpack.c.l.b16 %v4383
        %v4672 = vunpack.c.l.b16 %v4384
        %v4673 = vunpack.c.l.b16 %v4385
        %v4674 = vunpack.c.l.b16 %v4386
        %v4675 = vunpack.c.l.b16 %v4387
        %v4676 = vunpack.c.l.b16 %v4388
        %v4677 = vunpack.c.l.b16 %v4389
        %v4678 = vunpack.c.l.b16 %v4390
        %v4679 = vunpack.c.l.b16 %v4391
        %v4680 = vunpack.c.l.b16 %v4392
        %v4681 = vunpack.c.l.b16 %v4393
        %v4682 = vunpack.c.l.b16 %v4394
        %v4683 = vunpack.c.l.b16 %v4395
        %v4684 = vunpack.c.l.b16 %v4396
        %v4685 = vunpack.c.l.b16 %v4397
        %v4686 = vunpack.c.l.b16 %v4398
        %v4687 = vunpack.c.l.b16 %v4399
        %v4688 = vunpack.c.l.b16 %v4400
        %v4689 = vunpack.c.l.b16 %v4401
        %v4690 = vunpack.c.l.b16 %v4402
        %v4691 = vunpack.c.l.b16 %v4403
        %v4692 = vunpack.c.l.b16 %v4404
        %v4693 = vunpack.c.l.b16 %v4405
        %v4694 = vunpack.c.l.b16 %v4406
        %v4695 = vunpack.c.l.b16 %v4407
        %v4696 = vunpack.c.l.b16 %v4408
        %v4697 = vunpack.c.l.b16 %v4409
        %v4698 = vunpack.c.l.b16 %v4410
        %v4699 = vunpack.c.l.b16 %v4411
        %v4700 = vunpack.c.l.b16 %v4412
        %v4701 = vunpack.c.l.b16 %v4413
        %v4702 = vunpack.c.l.b16 %v4414
        %v4703 = vunpack.c.l.b16 %v4415
        %v4704 = vunpack.c.l.b16 %v4416
        %v4705 = vunpack.c.l.b16 %v4417
        %v4706 = vunpack.c.l.b16 %v4418
        %v4707 = vunpack.c.l.b16 %v4419
        %v4708 = vunpack.c.l.b16 %v4420
        %v4709 = vunpack.c.l.b16 %v4421
        %v4710 = vunpack.c.l.b16 %v4422
        %v4711 = vunpack.c.l.b16 %v4423
        %v4712 = vunpack.c.l.b16 %v4424
        %v4713 = vunpack.c.l.b16 %v4425
        %v4714 = vunpack.c.l.b16 %v4426
        %v4715 = vunpack.c.l.b16 %v4427
        %v4716 = vunpack.c.l.b16 %v4428
        %v4717 = vunpack.c.l.b16 %v4429
        %v4718 = vunpack.c.l.b16 %v4430
        %v4719 = vunpack.c.l.b16 %v4431
        %v4720 = vunpack.c.l.b16 %v4432
        %v4721 = vunpack.c.l.b16 %v4433
        %v4722 = vunpack.c.l.b16 %v4434
        %v4723 = vunpack.c.l.b16 %v4435
        %v4724 = vunpack.c.l.b16 %v4436
        %v4725 = vunpack.c.l.b16 %v4437
        %v4726 = vunpack.c.l.b16 %v4438
        %v4727 = vunpack.c.l.b16 %v4439
        %v4728 = vunpack.c.l.b16 %v4440
        %v4729 = vunpack.c.l.b16 %v4441
        %v4730 = vunpack.c.l.b16 %v4442
        %v4731 = vunpack.c.l.b16 %v4443
        %v4732 = vunpack.c.l.b16 %v4444
        %v4733 = vunpack.c.l.b16 %v4445
        %v4734 = vunpack.c.l.b16 %v4446
        %v4735 = vunpack.c.l.b16 %v4447
        %v4736 = vunpack.c.l.b16 %v4448
        %v4737 = vpack.c.b16 %v4594, %v4593
        %v4738 = vpack.c.b16 %v4596, %v4595
        %v4739 = vpack.c.b16 %v4598, %v4597
        %v4740 = vpack.c.b16 %v4600, %v4599
        %v4741 = vpack.c.b16 %v4602, %v4601
        %v4742 = vpack.c.b16 %v4604, %v4603
        %v4743 = vpack.c.b16 %v4606, %v4605
        %v4744 = vpack.c.b16 %v4608, %v4607
        %v4745 = vpack.c.b16 %v4610, %v4609
        %v4746 = vpack.c.b16 %v4612, %v4611
        %v4747 = vpack.c.b16 %v4614, %v4613
        %v4748 = vpack.c.b16 %v4616, %v4615
        %v4749 = vpack.c.b16 %v4618, %v4617
        %v4750 = vpack.c.b16 %v4620, %v4619
        %v4751 = vpack.c.b16 %v4622, %v4621
        %v4752 = vpack.c.b16 %v4624, %v4623
        %v4753 = vpack.c.b16 %v4626, %v4625
        %v4754 = vpack.c.b16 %v4628, %v4627
        %v4755 = vpack.c.b16 %v4630, %v4629
        %v4756 = vpack.c.b16 %v4632, %v4631
        %v4757 = vpack.c.b16 %v4634, %v4633
        %v4758 = vpack.c.b16 %v4636, %v4635
        %v4759 = vpack.c.b16 %v4638, %v4637
        %v4760 = vpack.c.b16 %v4640, %v4639
        %v4761 = vpack.c.b16 %v4642, %v4641
        %v4762 = vpack.c.b16 %v4644, %v4643
        %v4763 = vpack.c.b16 %v4646, %v4645
        %v4764 = vpack.c.b16 %v4648, %v4647
        %v4765 = vpack.c.b16 %v4650, %v4649
        %v4766 = vpack.c.b16 %v4652, %v4651
        %v4767 = vpack.c.b16 %v4654, %v4653
        %v4768 = vpack.c.b16 %v4656, %v4655
        %v4769 = vpack.c.b16 %v4658, %v4657
        %v4770 = vpack.c.b16 %v4660, %v4659
        %v4771 = vpack.c.b16 %v4662, %v4661
        %v4772 = vpack.c.b16 %v4664, %v4663
        %v4773 = vpack.c.b16 %v4666, %v4665
        %v4774 = vpack.c.b16 %v4668, %v4667
        %v4775 = vpack.c.b16 %v4670, %v4669
        %v4776 = vpack.c.b16 %v4672, %v4671
        %v4777 = vpack.c.b16 %v4674, %v4673
        %v4778 = vpack.c.b16 %v4676, %v4675
        %v4779 = vpack.c.b16 %v4678, %v4677
        %v4780 = vpack.c.b16 %v4680, %v4679
        %v4781 = vpack.c.b16 %v4682, %v4681
        %v4782 = vpack.c.b16 %v4684, %v4683
        %v4783 = vpack.c.b16 %v4686, %v4685
        %v4784 = vpack.c.b16 %v4688, %v4687
        %v4785 = vpack.c.b16 %v4690, %v4689
        %v4786 = vpack.c.b16 %v4692, %v4691
        %v4787 = vpack.c.b16 %v4694, %v4693
        %v4788 = vpack.c.b16 %v4696, %v4695
        %v4789 = vpack.c.b16 %v4698, %v4697
        %v4790 = vpack.c.b16 %v4700, %v4699
        %v4791 = vpack.c.b16 %v4702, %v4701
        %v4792 = vpack.c.b16 %v4704, %v4703
        %v4793 = vpack.c.b16 %v4706, %v4705
        %v4794 = vpack.c.b16 %v4708, %v4707
        %v4795 = vpack.c.b16 %v4710, %v4709
        %v4796 = vpack.c.b16 %v4712, %v4711
        %v4797 = vpack.c.b16 %v4714, %v4713
        %v4798 = vpack.c.b16 %v4716, %v4715
        %v4799 = vpack.c.b16 %v4718, %v4717
        %v4800 = vpack.c.b16 %v4720, %v4719
        %v4801 = vpack.c.b16 %v4722, %v4721
        %v4802 = vpack.c.b16 %v4724, %v4723
        %v4803 = vpack.c.b16 %v4726, %v4725
        %v4804 = vpack.c.b16 %v4728, %v4727
        %v4805 = vpack.c.b16 %v4730, %v4729
        %v4806 = vpack.c.b16 %v4732, %v4731
        %v4807 = vpack.c.b16 %v4734, %v4733
        %v4808 = vpack.c.b16 %v4736, %v4735
        %4881 = vmatprep.subr.bf16.mxu0 0
        %4882 = vmatpush1.bf16.msra.mxu0 %v4737
        %4883 = vmatprep.subr.bf16.mxu0 0
        %4884 = vmatpush1.bf16.msra.mxu0 %v4738
        %4885 = vmatprep.subr.bf16.mxu0 0
        %4886 = vmatpush1.bf16.msra.mxu0 %v4739
        %4887 = vmatprep.subr.bf16.mxu0 0
        %4888 = vmatpush1.bf16.msra.mxu0 %v4740
        %4889 = vmatprep.subr.bf16.mxu0 0
        %4890 = vmatpush1.bf16.msra.mxu0 %v4741
        %4891 = vmatprep.subr.bf16.mxu0 0
        %4892 = vmatpush1.bf16.msra.mxu0 %v4742
        %4893 = vmatprep.subr.bf16.mxu0 0
        %4894 = vmatpush1.bf16.msra.mxu0 %v4743
        %4895 = vmatprep.subr.bf16.mxu0 0
        %4896 = vmatpush1.bf16.msra.mxu0 %v4744
        %4897 = vmatprep.subr.bf16.mxu0 0
        %4898 = vmatpush1.bf16.msra.mxu0 %v4745
        %4899 = vmatprep.subr.bf16.mxu0 0
        %4900 = vmatpush1.bf16.msra.mxu0 %v4746
        %4901 = vmatprep.subr.bf16.mxu0 0
        %4902 = vmatpush1.bf16.msra.mxu0 %v4747
        %4903 = vmatprep.subr.bf16.mxu0 0
        %4904 = vmatpush1.bf16.msra.mxu0 %v4748
        %4905 = vmatprep.subr.bf16.mxu0 0
        %4906 = vmatpush1.bf16.msra.mxu0 %v4749
        %4907 = vmatprep.subr.bf16.mxu0 0
        %4908 = vmatpush1.bf16.msra.mxu0 %v4750
        %4909 = vmatprep.subr.bf16.mxu0 0
        %4910 = vmatpush1.bf16.msra.mxu0 %v4751
        %4911 = vmatprep.subr.bf16.mxu0 0
        %4912 = vmatpush1.bf16.msra.mxu0 %v4752
        %4913 = vmatprep.mubr.bf16.mxu0 %v4162
        %4914 = vmatmul.mubr.bf16.gmra.mrb[0].mxu0 %v4161
        %v4915 = vpop.f32.mrb[0].mxu0
        %v4916 = vadd.f32 0.0, %v4915
        %v4917 = vpop.f32.mrb[0].mxu0
        %v4918 = vpop.f32.mrb[0].mxu0
        %v4919 = vadd.f32 0.0, %v4918
        %v4920 = vpop.f32.mrb[0].mxu0
        %4921 = vmatprep.mubr.bf16.mxu0 %v4171
        %4922 = vmatmul.mubr.bf16.gmra.mrb[0].mxu0 %v4170
        %v4923 = vpop.f32.mrb[0].mxu0
        %v4924 = vadd.f32 0.0, %v4923
        %v4925 = vpop.f32.mrb[0].mxu0
        %v4926 = vpop.f32.mrb[0].mxu0
        %v4927 = vadd.f32 0.0, %v4926
        %v4928 = vpop.f32.mrb[0].mxu0
        %4929 = vmatprep.mubr.bf16.mxu0 %v4180
        %4930 = vmatmul.mubr.bf16.gmra.mrb[0].mxu0 %v4179
        %v4931 = vpop.f32.mrb[0].mxu0
        %v4932 = vadd.f32 0.0, %v4931
        %v4933 = vpop.f32.mrb[0].mxu0
        %v4934 = vpop.f32.mrb[0].mxu0
        %v4935 = vadd.f32 0.0, %v4934
        %v4936 = vpop.f32.mrb[0].mxu0
        %4937 = vmatprep.mubr.bf16.mxu0 %v4189
        %4938 = vmatmul.mubr.bf16.gmra.mrb[0].mxu0 %v4188
        %v4939 = vpop.f32.mrb[0].mxu0
        %v4940 = vadd.f32 0.0, %v4939
        %v4941 = vpop.f32.mrb[0].mxu0
        %v4942 = vpop.f32.mrb[0].mxu0
        %v4943 = vadd.f32 0.0, %v4942
        %v4944 = vpop.f32.mrb[0].mxu0
        %4945 = vmatprep.mubr.bf16.mxu0 %v4198
        %4946 = vmatmul.mubr.bf16.gmra.mrb[0].mxu0 %v4197
        %v4947 = vpop.f32.mrb[0].mxu0
        %v4948 = vadd.f32 0.0, %v4947
        %v4949 = vpop.f32.mrb[0].mxu0
        %v4950 = vpop.f32.mrb[0].mxu0
        %v4951 = vadd.f32 0.0, %v4950
        %v4952 = vpop.f32.mrb[0].mxu0
        %4953 = vmatprep.mubr.bf16.mxu0 %v4207
        %4954 = vmatmul.mubr.bf16.gmra.mrb[0].mxu0 %v4206
        %v4955 = vpop.f32.mrb[0].mxu0
        %v4956 = vadd.f32 0.0, %v4955
        %v4957 = vpop.f32.mrb[0].mxu0
        %v4958 = vpop.f32.mrb[0].mxu0
        %v4959 = vadd.f32 0.0, %v4958
        %v4960 = vpop.f32.mrb[0].mxu0
        %4961 = vmatprep.mubr.bf16.mxu0 %v4216
        %4962 = vmatmul.mubr.bf16.gmra.mrb[0].mxu0 %v4215
        %v4963 = vpop.f32.mrb[0].mxu0
        %v4964 = vadd.f32 0.0, %v4963
        %v4965 = vpop.f32.mrb[0].mxu0
        %v4966 = vpop.f32.mrb[0].mxu0
        %v4967 = vadd.f32 0.0, %v4966
        %v4968 = vpop.f32.mrb[0].mxu0
        %4969 = vmatprep.mubr.bf16.mxu0 %v4225
        %4970 = vmatmul.mubr.bf16.gmra.mrb[0].mxu0 %v4224
        %v4971 = vpop.f32.mrb[0].mxu0
        %v4972 = vadd.f32 0.0, %v4971
        %v4973 = vpop.f32.mrb[0].mxu0
        %v4974 = vpop.f32.mrb[0].mxu0
        %v4975 = vadd.f32 0.0, %v4974
        %v4976 = vpop.f32.mrb[0].mxu0
        %4977 = vmatprep.mubr.bf16.mxu0 %v4234
        %4978 = vmatmul.mubr.bf16.gmra.mrb[0].mxu0 %v4233
        %v4979 = vpop.f32.mrb[0].mxu0
        %v4980 = vadd.f32 0.0, %v4979
        %v4981 = vpop.f32.mrb[0].mxu0
        %v4982 = vpop.f32.mrb[0].mxu0
        %v4983 = vadd.f32 0.0, %v4982
        %v4984 = vpop.f32.mrb[0].mxu0
        %4985 = vmatprep.mubr.bf16.mxu0 %v4243
        %4986 = vmatmul.mubr.bf16.gmra.mrb[0].mxu0 %v4242
        %v4987 = vpop.f32.mrb[0].mxu0
        %v4988 = vadd.f32 0.0, %v4987
        %v4989 = vpop.f32.mrb[0].mxu0
        %v4990 = vpop.f32.mrb[0].mxu0
        %v4991 = vadd.f32 0.0, %v4990
        %v4992 = vpop.f32.mrb[0].mxu0
        %4993 = vmatprep.mubr.bf16.mxu0 %v4252
        %4994 = vmatmul.mubr.bf16.gmra.mrb[0].mxu0 %v4251
        %v4995 = vpop.f32.mrb[0].mxu0
        %v4996 = vadd.f32 0.0, %v4995
        %v4997 = vpop.f32.mrb[0].mxu0
        %v4998 = vpop.f32.mrb[0].mxu0
        %v4999 = vadd.f32 0.0, %v4998
        %v5000 = vpop.f32.mrb[0].mxu0
        %5001 = vmatprep.mubr.bf16.mxu0 %v4261
        %5002 = vmatmul.mubr.bf16.gmra.mrb[0].mxu0 %v4260
        %v5003 = vpop.f32.mrb[0].mxu0
        %v5004 = vadd.f32 0.0, %v5003
        %v5005 = vpop.f32.mrb[0].mxu0
        %v5006 = vpop.f32.mrb[0].mxu0
        %v5007 = vadd.f32 0.0, %v5006
        %v5008 = vpop.f32.mrb[0].mxu0
        %5009 = vmatprep.mubr.bf16.mxu0 %v4270
        %5010 = vmatmul.mubr.bf16.gmra.mrb[0].mxu0 %v4269
        %v5011 = vpop.f32.mrb[0].mxu0
        %v5012 = vadd.f32 0.0, %v5011
        %v5013 = vpop.f32.mrb[0].mxu0
        %v5014 = vpop.f32.mrb[0].mxu0
        %v5015 = vadd.f32 0.0, %v5014
        %v5016 = vpop.f32.mrb[0].mxu0
        %5017 = vmatprep.mubr.bf16.mxu0 %v4279
        %5018 = vmatmul.mubr.bf16.gmra.mrb[0].mxu0 %v4278
        %v5019 = vpop.f32.mrb[0].mxu0
        %v5020 = vadd.f32 0.0, %v5019
        %v5021 = vpop.f32.mrb[0].mxu0
        %v5022 = vpop.f32.mrb[0].mxu0
        %v5023 = vadd.f32 0.0, %v5022
        %v5024 = vpop.f32.mrb[0].mxu0
        %5025 = vmatprep.mubr.bf16.mxu0 %v4288
        %5026 = vmatmul.mubr.bf16.gmra.mrb[0].mxu0 %v4287
        %v5027 = vpop.f32.mrb[0].mxu0
        %v5028 = vadd.f32 0.0, %v5027
        %v5029 = vpop.f32.mrb[0].mxu0
        %v5030 = vpop.f32.mrb[0].mxu0
        %v5031 = vadd.f32 0.0, %v5030
        %v5032 = vpop.f32.mrb[0].mxu0
        %5033 = vmatprep.mubr.bf16.mxu0 %v4297
        %5034 = vmatmul.mubr.bf16.gmra.mrb[0].mxu0 %v4296
        %v5035 = vpop.f32.mrb[0].mxu0
        %v5036 = vadd.f32 0.0, %v5035
        %v5037 = vpop.f32.mrb[0].mxu0
        %v5038 = vpop.f32.mrb[0].mxu0
        %v5039 = vadd.f32 0.0, %v5038
        %v5040 = vpop.f32.mrb[0].mxu0
        %5041 = vdwg.mxu0
        %5042 = vmatprep.subr.bf16.mxu0 0
        %5043 = vmatpush1.bf16.msra.mxu0 %v4753
        %5044 = vmatprep.subr.bf16.mxu0 0
        %5045 = vmatpush1.bf16.msra.mxu0 %v4754
        %5046 = vmatprep.subr.bf16.mxu0 0
        %5047 = vmatpush1.bf16.msra.mxu0 %v4755
        %5048 = vmatprep.subr.bf16.mxu0 0
        %5049 = vmatpush1.bf16.msra.mxu0 %v4756
        %5050 = vmatprep.subr.bf16.mxu0 0
        %5051 = vmatpush1.bf16.msra.mxu0 %v4757
        %5052 = vmatprep.subr.bf16.mxu0 0
        %5053 = vmatpush1.bf16.msra.mxu0 %v4758
        %5054 = vmatprep.subr.bf16.mxu0 0
        %5055 = vmatpush1.bf16.msra.mxu0 %v4759
        %5056 = vmatprep.subr.bf16.mxu0 0
        %5057 = vmatpush1.bf16.msra.mxu0 %v4760
        %5058 = vmatprep.subr.bf16.mxu0 0
        %5059 = vmatpush1.bf16.msra.mxu0 %v4761
        %5060 = vmatprep.subr.bf16.mxu0 0
        %5061 = vmatpush1.bf16.msra.mxu0 %v4762
        %5062 = vmatprep.subr.bf16.mxu0 0
        %5063 = vmatpush1.bf16.msra.mxu0 %v4763
        %5064 = vmatprep.subr.bf16.mxu0 0
        %5065 = vmatpush1.bf16.msra.mxu0 %v4764
        %5066 = vmatprep.subr.bf16.mxu0 0
        %5067 = vmatpush1.bf16.msra.mxu0 %v4765
        %5068 = vmatprep.subr.bf16.mxu0 0
        %5069 = vmatpush1.bf16.msra.mxu0 %v4766
        %5070 = vmatprep.subr.bf16.mxu0 0
        %5071 = vmatpush1.bf16.msra.mxu0 %v4767
        %5072 = vmatprep.subr.bf16.mxu0 0
        %5073 = vmatpush1.bf16.msra.mxu0 %v4768
        %5074 = vmatprep.mubr.bf16.mxu0 %v4164
        %5075 = vmatmul.mubr.bf16.gmra.mrb[0].mxu0 %v4163
        %v5076 = vpop.f32.mrb[0].mxu0
        %v5077 = vadd.f32 %v4916, %v5076
        %v5078 = vpop.f32.mrb[0].mxu0
        %v5079 = vpop.f32.mrb[0].mxu0
        %v5080 = vadd.f32 %v4919, %v5079
        %v5081 = vpop.f32.mrb[0].mxu0
        %5082 = vmatprep.mubr.bf16.mxu0 %v4173
        %5083 = vmatmul.mubr.bf16.gmra.mrb[0].mxu0 %v4172
        %v5084 = vpop.f32.mrb[0].mxu0
        %v5085 = vadd.f32 %v4924, %v5084
        %v5086 = vpop.f32.mrb[0].mxu0
        %v5087 = vpop.f32.mrb[0].mxu0
        %v5088 = vadd.f32 %v4927, %v5087
        %v5089 = vpop.f32.mrb[0].mxu0
        %5090 = vmatprep.mubr.bf16.mxu0 %v4182
        %5091 = vmatmul.mubr.bf16.gmra.mrb[0].mxu0 %v4181
        %v5092 = vpop.f32.mrb[0].mxu0
        %v5093 = vadd.f32 %v4932, %v5092
        %v5094 = vpop.f32.mrb[0].mxu0
        %v5095 = vpop.f32.mrb[0].mxu0
        %v5096 = vadd.f32 %v4935, %v5095
        %v5097 = vpop.f32.mrb[0].mxu0
        %5098 = vmatprep.mubr.bf16.mxu0 %v4191
        %5099 = vmatmul.mubr.bf16.gmra.mrb[0].mxu0 %v4190
        %v5100 = vpop.f32.mrb[0].mxu0
        %v5101 = vadd.f32 %v4940, %v5100
        %v5102 = vpop.f32.mrb[0].mxu0
        %v5103 = vpop.f32.mrb[0].mxu0
        %v5104 = vadd.f32 %v4943, %v5103
        %v5105 = vpop.f32.mrb[0].mxu0
        %5106 = vmatprep.mubr.bf16.mxu0 %v4200
        %5107 = vmatmul.mubr.bf16.gmra.mrb[0].mxu0 %v4199
        %v5108 = vpop.f32.mrb[0].mxu0
        %v5109 = vadd.f32 %v4948, %v5108
        %v5110 = vpop.f32.mrb[0].mxu0
        %v5111 = vpop.f32.mrb[0].mxu0
        %v5112 = vadd.f32 %v4951, %v5111
        %v5113 = vpop.f32.mrb[0].mxu0
        %5114 = vmatprep.mubr.bf16.mxu0 %v4209
        %5115 = vmatmul.mubr.bf16.gmra.mrb[0].mxu0 %v4208
        %v5116 = vpop.f32.mrb[0].mxu0
        %v5117 = vadd.f32 %v4956, %v5116
        %v5118 = vpop.f32.mrb[0].mxu0
        %v5119 = vpop.f32.mrb[0].mxu0
        %v5120 = vadd.f32 %v4959, %v5119
        %v5121 = vpop.f32.mrb[0].mxu0
        %5122 = vmatprep.mubr.bf16.mxu0 %v4218
        %5123 = vmatmul.mubr.bf16.gmra.mrb[0].mxu0 %v4217
        %v5124 = vpop.f32.mrb[0].mxu0
        %v5125 = vadd.f32 %v4964, %v5124
        %v5126 = vpop.f32.mrb[0].mxu0
        %v5127 = vpop.f32.mrb[0].mxu0
        %v5128 = vadd.f32 %v4967, %v5127
        %v5129 = vpop.f32.mrb[0].mxu0
        %5130 = vmatprep.mubr.bf16.mxu0 %v4227
        %5131 = vmatmul.mubr.bf16.gmra.mrb[0].mxu0 %v4226
        %v5132 = vpop.f32.mrb[0].mxu0
        %v5133 = vadd.f32 %v4972, %v5132
        %v5134 = vpop.f32.mrb[0].mxu0
        %v5135 = vpop.f32.mrb[0].mxu0
        %v5136 = vadd.f32 %v4975, %v5135
        %v5137 = vpop.f32.mrb[0].mxu0
        %5138 = vmatprep.mubr.bf16.mxu0 %v4236
        %5139 = vmatmul.mubr.bf16.gmra.mrb[0].mxu0 %v4235
        %v5140 = vpop.f32.mrb[0].mxu0
        %v5141 = vadd.f32 %v4980, %v5140
        %v5142 = vpop.f32.mrb[0].mxu0
        %v5143 = vpop.f32.mrb[0].mxu0
        %v5144 = vadd.f32 %v4983, %v5143
        %v5145 = vpop.f32.mrb[0].mxu0
        %5146 = vmatprep.mubr.bf16.mxu0 %v4245
        %5147 = vmatmul.mubr.bf16.gmra.mrb[0].mxu0 %v4244
        %v5148 = vpop.f32.mrb[0].mxu0
        %v5149 = vadd.f32 %v4988, %v5148
        %v5150 = vpop.f32.mrb[0].mxu0
        %v5151 = vpop.f32.mrb[0].mxu0
        %v5152 = vadd.f32 %v4991, %v5151
        %v5153 = vpop.f32.mrb[0].mxu0
        %5154 = vmatprep.mubr.bf16.mxu0 %v4254
        %5155 = vmatmul.mubr.bf16.gmra.mrb[0].mxu0 %v4253
        %v5156 = vpop.f32.mrb[0].mxu0
        %v5157 = vadd.f32 %v4996, %v5156
        %v5158 = vpop.f32.mrb[0].mxu0
        %v5159 = vpop.f32.mrb[0].mxu0
        %v5160 = vadd.f32 %v4999, %v5159
        %v5161 = vpop.f32.mrb[0].mxu0
        %5162 = vmatprep.mubr.bf16.mxu0 %v4263
        %5163 = vmatmul.mubr.bf16.gmra.mrb[0].mxu0 %v4262
        %v5164 = vpop.f32.mrb[0].mxu0
        %v5165 = vadd.f32 %v5004, %v5164
        %v5166 = vpop.f32.mrb[0].mxu0
        %v5167 = vpop.f32.mrb[0].mxu0
        %v5168 = vadd.f32 %v5007, %v5167
        %v5169 = vpop.f32.mrb[0].mxu0
        %5170 = vmatprep.mubr.bf16.mxu0 %v4272
        %5171 = vmatmul.mubr.bf16.gmra.mrb[0].mxu0 %v4271
        %v5172 = vpop.f32.mrb[0].mxu0
        %v5173 = vadd.f32 %v5012, %v5172
        %v5174 = vpop.f32.mrb[0].mxu0
        %v5175 = vpop.f32.mrb[0].mxu0
        %v5176 = vadd.f32 %v5015, %v5175
        %v5177 = vpop.f32.mrb[0].mxu0
        %5178 = vmatprep.mubr.bf16.mxu0 %v4281
        %5179 = vmatmul.mubr.bf16.gmra.mrb[0].mxu0 %v4280
        %v5180 = vpop.f32.mrb[0].mxu0
        %v5181 = vadd.f32 %v5020, %v5180
        %v5182 = vpop.f32.mrb[0].mxu0
        %v5183 = vpop.f32.mrb[0].mxu0
        %v5184 = vadd.f32 %v5023, %v5183
        %v5185 = vpop.f32.mrb[0].mxu0
        %5186 = vmatprep.mubr.bf16.mxu0 %v4290
        %5187 = vmatmul.mubr.bf16.gmra.mrb[0].mxu0 %v4289
        %v5188 = vpop.f32.mrb[0].mxu0
        %v5189 = vadd.f32 %v5028, %v5188
        %v5190 = vpop.f32.mrb[0].mxu0
        %v5191 = vpop.f32.mrb[0].mxu0
        %v5192 = vadd.f32 %v5031, %v5191
        %v5193 = vpop.f32.mrb[0].mxu0
        %5194 = vmatprep.mubr.bf16.mxu0 %v4299
        %5195 = vmatmul.mubr.bf16.gmra.mrb[0].mxu0 %v4298
        %v5196 = vpop.f32.mrb[0].mxu0
        %v5197 = vadd.f32 %v5036, %v5196
        %v5198 = vpop.f32.mrb[0].mxu0
        %v5199 = vpop.f32.mrb[0].mxu0
        %v5200 = vadd.f32 %v5039, %v5199
        %v5201 = vpop.f32.mrb[0].mxu0
        %5202 = vdwg.mxu0
        %5203 = vmatprep.subr.bf16.mxu0 0
        %5204 = vmatpush1.bf16.msra.mxu0 %v4769
        %5205 = vmatprep.subr.bf16.mxu0 0
        %5206 = vmatpush1.bf16.msra.mxu0 %v4770
        %5207 = vmatprep.subr.bf16.mxu0 0
        %5208 = vmatpush1.bf16.msra.mxu0 %v4771
        %5209 = vmatprep.subr.bf16.mxu0 0
        %5210 = vmatpush1.bf16.msra.mxu0 %v4772
        %5211 = vmatprep.subr.bf16.mxu0 0
        %5212 = vmatpush1.bf16.msra.mxu0 %v4773
        %5213 = vmatprep.subr.bf16.mxu0 0
        %5214 = vmatpush1.bf16.msra.mxu0 %v4774
        %5215 = vmatprep.subr.bf16.mxu0 0
        %5216 = vmatpush1.bf16.msra.mxu0 %v4775
        %5217 = vmatprep.subr.bf16.mxu0 0
        %5218 = vmatpush1.bf16.msra.mxu0 %v4776
        %5219 = vmatprep.subr.bf16.mxu0 0
        %5220 = vmatpush1.bf16.msra.mxu0 %v4777
        %5221 = vmatprep.subr.bf16.mxu0 0
        %5222 = vmatpush1.bf16.msra.mxu0 %v4778
        %5223 = vmatprep.subr.bf16.mxu0 0
        %5224 = vmatpush1.bf16.msra.mxu0 %v4779
        %5225 = vmatprep.subr.bf16.mxu0 0
        %5226 = vmatpush1.bf16.msra.mxu0 %v4780
        %5227 = vmatprep.subr.bf16.mxu0 0
        %5228 = vmatpush1.bf16.msra.mxu0 %v4781
        %5229 = vmatprep.subr.bf16.mxu0 0
        %5230 = vmatpush1.bf16.msra.mxu0 %v4782
        %5231 = vmatprep.subr.bf16.mxu0 0
        %5232 = vmatpush1.bf16.msra.mxu0 %v4783
        %5233 = vmatprep.subr.bf16.mxu0 0
        %5234 = vmatpush1.bf16.msra.mxu0 %v4784
        %5235 = vmatprep.mubr.bf16.mxu0 %v4166
        %5236 = vmatmul.mubr.bf16.gmra.mrb[0].mxu0 %v4165
        %v5237 = vpop.f32.mrb[0].mxu0
        %v5238 = vadd.f32 %v5077, %v5237
        %v5239 = vpop.f32.mrb[0].mxu0
        %v5240 = vpop.f32.mrb[0].mxu0
        %v5241 = vadd.f32 %v5080, %v5240
        %v5242 = vpop.f32.mrb[0].mxu0
        %5243 = vmatprep.mubr.bf16.mxu0 %v4175
        %5244 = vmatmul.mubr.bf16.gmra.mrb[0].mxu0 %v4174
        %v5245 = vpop.f32.mrb[0].mxu0
        %v5246 = vadd.f32 %v5085, %v5245
        %v5247 = vpop.f32.mrb[0].mxu0
        %v5248 = vpop.f32.mrb[0].mxu0
        %v5249 = vadd.f32 %v5088, %v5248
        %v5250 = vpop.f32.mrb[0].mxu0
        %5251 = vmatprep.mubr.bf16.mxu0 %v4184
        %5252 = vmatmul.mubr.bf16.gmra.mrb[0].mxu0 %v4183
        %v5253 = vpop.f32.mrb[0].mxu0
        %v5254 = vadd.f32 %v5093, %v5253
        %v5255 = vpop.f32.mrb[0].mxu0
        %v5256 = vpop.f32.mrb[0].mxu0
        %v5257 = vadd.f32 %v5096, %v5256
        %v5258 = vpop.f32.mrb[0].mxu0
        %5259 = vmatprep.mubr.bf16.mxu0 %v4193
        %5260 = vmatmul.mubr.bf16.gmra.mrb[0].mxu0 %v4192
        %v5261 = vpop.f32.mrb[0].mxu0
        %v5262 = vadd.f32 %v5101, %v5261
        %v5263 = vpop.f32.mrb[0].mxu0
        %v5264 = vpop.f32.mrb[0].mxu0
        %v5265 = vadd.f32 %v5104, %v5264
        %v5266 = vpop.f32.mrb[0].mxu0
        %5267 = vmatprep.mubr.bf16.mxu0 %v4202
        %5268 = vmatmul.mubr.bf16.gmra.mrb[0].mxu0 %v4201
        %v5269 = vpop.f32.mrb[0].mxu0
        %v5270 = vadd.f32 %v5109, %v5269
        %v5271 = vpop.f32.mrb[0].mxu0
        %v5272 = vpop.f32.mrb[0].mxu0
        %v5273 = vadd.f32 %v5112, %v5272
        %v5274 = vpop.f32.mrb[0].mxu0
        %5275 = vmatprep.mubr.bf16.mxu0 %v4211
        %5276 = vmatmul.mubr.bf16.gmra.mrb[0].mxu0 %v4210
        %v5277 = vpop.f32.mrb[0].mxu0
        %v5278 = vadd.f32 %v5117, %v5277
        %v5279 = vpop.f32.mrb[0].mxu0
        %v5280 = vpop.f32.mrb[0].mxu0
        %v5281 = vadd.f32 %v5120, %v5280
        %v5282 = vpop.f32.mrb[0].mxu0
        %5283 = vmatprep.mubr.bf16.mxu0 %v4220
        %5284 = vmatmul.mubr.bf16.gmra.mrb[0].mxu0 %v4219
        %v5285 = vpop.f32.mrb[0].mxu0
        %v5286 = vadd.f32 %v5125, %v5285
        %v5287 = vpop.f32.mrb[0].mxu0
        %v5288 = vpop.f32.mrb[0].mxu0
        %v5289 = vadd.f32 %v5128, %v5288
        %v5290 = vpop.f32.mrb[0].mxu0
        %5291 = vmatprep.mubr.bf16.mxu0 %v4229
        %5292 = vmatmul.mubr.bf16.gmra.mrb[0].mxu0 %v4228
        %v5293 = vpop.f32.mrb[0].mxu0
        %v5294 = vadd.f32 %v5133, %v5293
        %v5295 = vpop.f32.mrb[0].mxu0
        %v5296 = vpop.f32.mrb[0].mxu0
        %v5297 = vadd.f32 %v5136, %v5296
        %v5298 = vpop.f32.mrb[0].mxu0
        %5299 = vmatprep.mubr.bf16.mxu0 %v4238
        %5300 = vmatmul.mubr.bf16.gmra.mrb[0].mxu0 %v4237
        %v5301 = vpop.f32.mrb[0].mxu0
        %v5302 = vadd.f32 %v5141, %v5301
        %v5303 = vpop.f32.mrb[0].mxu0
        %v5304 = vpop.f32.mrb[0].mxu0
        %v5305 = vadd.f32 %v5144, %v5304
        %v5306 = vpop.f32.mrb[0].mxu0
        %5307 = vmatprep.mubr.bf16.mxu0 %v4247
        %5308 = vmatmul.mubr.bf16.gmra.mrb[0].mxu0 %v4246
        %v5309 = vpop.f32.mrb[0].mxu0
        %v5310 = vadd.f32 %v5149, %v5309
        %v5311 = vpop.f32.mrb[0].mxu0
        %v5312 = vpop.f32.mrb[0].mxu0
        %v5313 = vadd.f32 %v5152, %v5312
        %v5314 = vpop.f32.mrb[0].mxu0
        %5315 = vmatprep.mubr.bf16.mxu0 %v4256
        %5316 = vmatmul.mubr.bf16.gmra.mrb[0].mxu0 %v4255
        %v5317 = vpop.f32.mrb[0].mxu0
        %v5318 = vadd.f32 %v5157, %v5317
        %v5319 = vpop.f32.mrb[0].mxu0
        %v5320 = vpop.f32.mrb[0].mxu0
        %v5321 = vadd.f32 %v5160, %v5320
        %v5322 = vpop.f32.mrb[0].mxu0
        %5323 = vmatprep.mubr.bf16.mxu0 %v4265
        %5324 = vmatmul.mubr.bf16.gmra.mrb[0].mxu0 %v4264
        %v5325 = vpop.f32.mrb[0].mxu0
        %v5326 = vadd.f32 %v5165, %v5325
        %v5327 = vpop.f32.mrb[0].mxu0
        %v5328 = vpop.f32.mrb[0].mxu0
        %v5329 = vadd.f32 %v5168, %v5328
        %v5330 = vpop.f32.mrb[0].mxu0
        %5331 = vmatprep.mubr.bf16.mxu0 %v4274
        %5332 = vmatmul.mubr.bf16.gmra.mrb[0].mxu0 %v4273
        %v5333 = vpop.f32.mrb[0].mxu0
        %v5334 = vadd.f32 %v5173, %v5333
        %v5335 = vpop.f32.mrb[0].mxu0
        %v5336 = vpop.f32.mrb[0].mxu0
        %v5337 = vadd.f32 %v5176, %v5336
        %v5338 = vpop.f32.mrb[0].mxu0
        %5339 = vmatprep.mubr.bf16.mxu0 %v4283
        %5340 = vmatmul.mubr.bf16.gmra.mrb[0].mxu0 %v4282
        %v5341 = vpop.f32.mrb[0].mxu0
        %v5342 = vadd.f32 %v5181, %v5341
        %v5343 = vpop.f32.mrb[0].mxu0
        %v5344 = vpop.f32.mrb[0].mxu0
        %v5345 = vadd.f32 %v5184, %v5344
        %v5346 = vpop.f32.mrb[0].mxu0
        %5347 = vmatprep.mubr.bf16.mxu0 %v4292
        %5348 = vmatmul.mubr.bf16.gmra.mrb[0].mxu0 %v4291
        %v5349 = vpop.f32.mrb[0].mxu0
        %v5350 = vadd.f32 %v5189, %v5349
        %v5351 = vpop.f32.mrb[0].mxu0
        %v5352 = vpop.f32.mrb[0].mxu0
        %v5353 = vadd.f32 %v5192, %v5352
        %v5354 = vpop.f32.mrb[0].mxu0
        %5355 = vmatprep.mubr.bf16.mxu0 %v4301
        %5356 = vmatmul.mubr.bf16.gmra.mrb[0].mxu0 %v4300
        %v5357 = vpop.f32.mrb[0].mxu0
        %v5358 = vadd.f32 %v5197, %v5357
        %v5359 = vpop.f32.mrb[0].mxu0
        %v5360 = vpop.f32.mrb[0].mxu0
        %v5361 = vadd.f32 %v5200, %v5360
        %v5362 = vpop.f32.mrb[0].mxu0
        %5363 = vdwg.mxu0
        %5364 = vmatprep.subr.bf16.mxu0 0
        %5365 = vmatpush1.bf16.msra.mxu0 %v4785
        %5366 = vmatprep.subr.bf16.mxu0 0
        %5367 = vmatpush1.bf16.msra.mxu0 %v4786
        %5368 = vmatprep.subr.bf16.mxu0 0
        %5369 = vmatpush1.bf16.msra.mxu0 %v4787
        %5370 = vmatprep.subr.bf16.mxu0 0
        %5371 = vmatpush1.bf16.msra.mxu0 %v4788
        %5372 = vmatprep.subr.bf16.mxu0 0
        %5373 = vmatpush1.bf16.msra.mxu0 %v4789
        %5374 = vmatprep.subr.bf16.mxu0 0
        %5375 = vmatpush1.bf16.msra.mxu0 %v4790
        %5376 = vmatprep.subr.bf16.mxu0 0
        %5377 = vmatpush1.bf16.msra.mxu0 %v4791
        %5378 = vmatprep.subr.bf16.mxu0 0
        %5379 = vmatpush1.bf16.msra.mxu0 %v4792
        %5380 = vmatprep.subr.bf16.mxu0 0
        %5381 = vmatpush1.bf16.msra.mxu0 %v4793
        %5382 = vmatprep.subr.bf16.mxu0 0
        %5383 = vmatpush1.bf16.msra.mxu0 %v4794
        %5384 = vmatprep.subr.bf16.mxu0 0
        %5385 = vmatpush1.bf16.msra.mxu0 %v4795
        %5386 = vmatprep.subr.bf16.mxu0 0
        %5387 = vmatpush1.bf16.msra.mxu0 %v4796
        %5388 = vmatprep.subr.bf16.mxu0 0
        %5389 = vmatpush1.bf16.msra.mxu0 %v4797
        %5390 = vmatprep.subr.bf16.mxu0 0
        %5391 = vmatpush1.bf16.msra.mxu0 %v4798
        %5392 = vmatprep.subr.bf16.mxu0 0
        %5393 = vmatpush1.bf16.msra.mxu0 %v4799
        %5394 = vmatprep.subr.bf16.mxu0 0
        %5395 = vmatpush1.bf16.msra.mxu0 %v4800
        %5396 = vmatprep.mubr.bf16.mxu0 %v4168
        %5397 = vmatmul.mubr.bf16.gmra.mrb[0].mxu0 %v4167
        %v5398 = vpop.f32.mrb[0].mxu0
        %v5399 = vadd.f32 %v5238, %v5398
        %v5400 = vpop.f32.mrb[0].mxu0
        %v5401 = vpop.f32.mrb[0].mxu0
        %v5402 = vadd.f32 %v5241, %v5401
        %v5403 = vpop.f32.mrb[0].mxu0
        %5404 = vmatprep.mubr.bf16.mxu0 %v4177
        %5405 = vmatmul.mubr.bf16.gmra.mrb[0].mxu0 %v4176
        %v5406 = vpop.f32.mrb[0].mxu0
        %v5407 = vadd.f32 %v5246, %v5406
        %v5408 = vpop.f32.mrb[0].mxu0
        %v5409 = vpop.f32.mrb[0].mxu0
        %v5410 = vadd.f32 %v5249, %v5409
        %v5411 = vpop.f32.mrb[0].mxu0
        %5412 = vmatprep.mubr.bf16.mxu0 %v4186
        %5413 = vmatmul.mubr.bf16.gmra.mrb[0].mxu0 %v4185
        %v5414 = vpop.f32.mrb[0].mxu0
        %v5415 = vadd.f32 %v5254, %v5414
        %v5416 = vpop.f32.mrb[0].mxu0
        %v5417 = vpop.f32.mrb[0].mxu0
        %v5418 = vadd.f32 %v5257, %v5417
        %v5419 = vpop.f32.mrb[0].mxu0
        %5420 = vmatprep.mubr.bf16.mxu0 %v4195
        %5421 = vmatmul.mubr.bf16.gmra.mrb[0].mxu0 %v4194
        %v5422 = vpop.f32.mrb[0].mxu0
        %v5423 = vadd.f32 %v5262, %v5422
        %v5424 = vpop.f32.mrb[0].mxu0
        %v5425 = vpop.f32.mrb[0].mxu0
        %v5426 = vadd.f32 %v5265, %v5425
        %v5427 = vpop.f32.mrb[0].mxu0
        %5428 = vmatprep.mubr.bf16.mxu0 %v4204
        %5429 = vmatmul.mubr.bf16.gmra.mrb[0].mxu0 %v4203
        %v5430 = vpop.f32.mrb[0].mxu0
        %v5431 = vadd.f32 %v5270, %v5430
        %v5432 = vpop.f32.mrb[0].mxu0
        %v5433 = vpop.f32.mrb[0].mxu0
        %v5434 = vadd.f32 %v5273, %v5433
        %v5435 = vpop.f32.mrb[0].mxu0
        %5436 = vmatprep.mubr.bf16.mxu0 %v4213
        %5437 = vmatmul.mubr.bf16.gmra.mrb[0].mxu0 %v4212
        %v5438 = vpop.f32.mrb[0].mxu0
        %v5439 = vadd.f32 %v5278, %v5438
        %v5440 = vpop.f32.mrb[0].mxu0
        %v5441 = vpop.f32.mrb[0].mxu0
        %v5442 = vadd.f32 %v5281, %v5441
        %v5443 = vpop.f32.mrb[0].mxu0
        %5444 = vmatprep.mubr.bf16.mxu0 %v4222
        %5445 = vmatmul.mubr.bf16.gmra.mrb[0].mxu0 %v4221
        %v5446 = vpop.f32.mrb[0].mxu0
        %v5447 = vadd.f32 %v5286, %v5446
        %v5448 = vpop.f32.mrb[0].mxu0
        %v5449 = vpop.f32.mrb[0].mxu0
        %v5450 = vadd.f32 %v5289, %v5449
        %v5451 = vpop.f32.mrb[0].mxu0
        %5452 = vmatprep.mubr.bf16.mxu0 %v4231
        %5453 = vmatmul.mubr.bf16.gmra.mrb[0].mxu0 %v4230
        %v5454 = vpop.f32.mrb[0].mxu0
        %v5455 = vadd.f32 %v5294, %v5454
        %v5456 = vpop.f32.mrb[0].mxu0
        %v5457 = vpop.f32.mrb[0].mxu0
        %v5458 = vadd.f32 %v5297, %v5457
        %v5459 = vpop.f32.mrb[0].mxu0
        %5460 = vmatprep.mubr.bf16.mxu0 %v4240
        %5461 = vmatmul.mubr.bf16.gmra.mrb[0].mxu0 %v4239
        %v5462 = vpop.f32.mrb[0].mxu0
        %v5463 = vadd.f32 %v5302, %v5462
        %v5464 = vpop.f32.mrb[0].mxu0
        %v5465 = vpop.f32.mrb[0].mxu0
        %v5466 = vadd.f32 %v5305, %v5465
        %v5467 = vpop.f32.mrb[0].mxu0
        %5468 = vmatprep.mubr.bf16.mxu0 %v4249
        %5469 = vmatmul.mubr.bf16.gmra.mrb[0].mxu0 %v4248
        %v5470 = vpop.f32.mrb[0].mxu0
        %v5471 = vadd.f32 %v5310, %v5470
        %v5472 = vpop.f32.mrb[0].mxu0
        %v5473 = vpop.f32.mrb[0].mxu0
        %v5474 = vadd.f32 %v5313, %v5473
        %v5475 = vpop.f32.mrb[0].mxu0
        %5476 = vmatprep.mubr.bf16.mxu0 %v4258
        %5477 = vmatmul.mubr.bf16.gmra.mrb[0].mxu0 %v4257
        %v5478 = vpop.f32.mrb[0].mxu0
        %v5479 = vadd.f32 %v5318, %v5478
        %v5480 = vpop.f32.mrb[0].mxu0
        %v5481 = vpop.f32.mrb[0].mxu0
        %v5482 = vadd.f32 %v5321, %v5481
        %v5483 = vpop.f32.mrb[0].mxu0
        %5484 = vmatprep.mubr.bf16.mxu0 %v4267
        %5485 = vmatmul.mubr.bf16.gmra.mrb[0].mxu0 %v4266
        %v5486 = vpop.f32.mrb[0].mxu0
        %v5487 = vadd.f32 %v5326, %v5486
        %v5488 = vpop.f32.mrb[0].mxu0
        %v5489 = vpop.f32.mrb[0].mxu0
        %v5490 = vadd.f32 %v5329, %v5489
        %v5491 = vpop.f32.mrb[0].mxu0
        %5492 = vmatprep.mubr.bf16.mxu0 %v4276
        %5493 = vmatmul.mubr.bf16.gmra.mrb[0].mxu0 %v4275
        %v5494 = vpop.f32.mrb[0].mxu0
        %v5495 = vadd.f32 %v5334, %v5494
        %v5496 = vpop.f32.mrb[0].mxu0
        %v5497 = vpop.f32.mrb[0].mxu0
        %v5498 = vadd.f32 %v5337, %v5497
        %v5499 = vpop.f32.mrb[0].mxu0
        %5500 = vmatprep.mubr.bf16.mxu0 %v4285
        %5501 = vmatmul.mubr.bf16.gmra.mrb[0].mxu0 %v4284
        %v5502 = vpop.f32.mrb[0].mxu0
        %v5503 = vadd.f32 %v5342, %v5502
        %v5504 = vpop.f32.mrb[0].mxu0
        %v5505 = vpop.f32.mrb[0].mxu0
        %v5506 = vadd.f32 %v5345, %v5505
        %v5507 = vpop.f32.mrb[0].mxu0
        %5508 = vmatprep.mubr.bf16.mxu0 %v4294
        %5509 = vmatmul.mubr.bf16.gmra.mrb[0].mxu0 %v4293
        %v5510 = vpop.f32.mrb[0].mxu0
        %v5511 = vadd.f32 %v5350, %v5510
        %v5512 = vpop.f32.mrb[0].mxu0
        %v5513 = vpop.f32.mrb[0].mxu0
        %v5514 = vadd.f32 %v5353, %v5513
        %v5515 = vpop.f32.mrb[0].mxu0
        %5516 = vmatprep.mubr.bf16.mxu0 %v4303
        %5517 = vmatmul.mubr.bf16.gmra.mrb[0].mxu0 %v4302
        %v5518 = vpop.f32.mrb[0].mxu0
        %v5519 = vadd.f32 %v5358, %v5518
        %v5520 = vpop.f32.mrb[0].mxu0
        %v5521 = vpop.f32.mrb[0].mxu0
        %v5522 = vadd.f32 %v5361, %v5521
        %v5523 = vpop.f32.mrb[0].mxu0
        %5524 = vdwg.mxu0
        %5525 = vmatprep.subr.bf16.mxu0 0
        %5526 = vmatpush1.bf16.msra.mxu0 %v4801
        %5527 = vmatprep.subr.bf16.mxu0 0
        %5528 = vmatpush1.bf16.msra.mxu0 %v4802
        %5529 = vmatprep.subr.bf16.mxu0 0
        %5530 = vmatpush1.bf16.msra.mxu0 %v4803
        %5531 = vmatprep.subr.bf16.mxu0 0
        %5532 = vmatpush1.bf16.msra.mxu0 %v4804
        %5533 = vmatprep.subr.bf16.mxu0 0
        %5534 = vmatpush1.bf16.msra.mxu0 %v4805
        %5535 = vmatprep.subr.bf16.mxu0 0
        %5536 = vmatpush1.bf16.msra.mxu0 %v4806
        %5537 = vmatprep.subr.bf16.mxu0 0
        %5538 = vmatpush1.bf16.msra.mxu0 %v4807
        %5539 = vmatprep.subr.bf16.mxu0 0
        %5540 = vmatpush1.bf16.msra.mxu0 %v4808
        %5541 = vmatprep.subr.bf16.mxu0 0
        %5542 = vmatpush1.bf16.msra.mxu0 0
        %5543 = vmatprep.subr.bf16.mxu0 0
        %5544 = vmatpush1.bf16.msra.mxu0 0
        %5545 = vmatprep.subr.bf16.mxu0 0
        %5546 = vmatpush1.bf16.msra.mxu0 0
        %5547 = vmatprep.subr.bf16.mxu0 0
        %5548 = vmatpush1.bf16.msra.mxu0 0
        %5549 = vmatprep.subr.bf16.mxu0 0
        %5550 = vmatpush1.bf16.msra.mxu0 0
        %5551 = vmatprep.subr.bf16.mxu0 0
        %5552 = vmatpush1.bf16.msra.mxu0 0
        %5553 = vmatprep.subr.bf16.mxu0 0
        %5554 = vmatpush1.bf16.msra.mxu0 0
        %5555 = vmatprep.subr.bf16.mxu0 0
        %5556 = vmatpush1.bf16.msra.mxu0 0
        %5557 = vmatprep.mubr.bf16.mxu0 0
        %5558 = vmatmul.mubr.bf16.gmra.mrb[0].mxu0 %v4169
        %v5559 = vpop.f32.mrb[0].mxu0
        %v5560 = vadd.f32 %v5399, %v5559
        %v5561 = vpop.f32.mrb[0].mxu0
        %v5562 = vpop.f32.mrb[0].mxu0
        %v5563 = vadd.f32 %v5402, %v5562
        %v5564 = vpop.f32.mrb[0].mxu0
        %5565 = vmatprep.mubr.bf16.mxu0 0
        %5566 = vmatmul.mubr.bf16.gmra.mrb[0].mxu0 %v4178
        %v5567 = vpop.f32.mrb[0].mxu0
        %v5568 = vadd.f32 %v5407, %v5567
        %v5569 = vpop.f32.mrb[0].mxu0
        %v5570 = vpop.f32.mrb[0].mxu0
        %v5571 = vadd.f32 %v5410, %v5570
        %v5572 = vpop.f32.mrb[0].mxu0
        %5573 = vmatprep.mubr.bf16.mxu0 0
        %5574 = vmatmul.mubr.bf16.gmra.mrb[0].mxu0 %v4187
        %v5575 = vpop.f32.mrb[0].mxu0
        %v5576 = vadd.f32 %v5415, %v5575
        %v5577 = vpop.f32.mrb[0].mxu0
        %v5578 = vpop.f32.mrb[0].mxu0
        %v5579 = vadd.f32 %v5418, %v5578
        %v5580 = vpop.f32.mrb[0].mxu0
        %5581 = vmatprep.mubr.bf16.mxu0 0
        %5582 = vmatmul.mubr.bf16.gmra.mrb[0].mxu0 %v4196
        %v5583 = vpop.f32.mrb[0].mxu0
        %v5584 = vadd.f32 %v5423, %v5583
        %v5585 = vpop.f32.mrb[0].mxu0
        %v5586 = vpop.f32.mrb[0].mxu0
        %v5587 = vadd.f32 %v5426, %v5586
        %v5588 = vpop.f32.mrb[0].mxu0
        %5589 = vmatprep.mubr.bf16.mxu0 0
        %5590 = vmatmul.mubr.bf16.gmra.mrb[0].mxu0 %v4205
        %v5591 = vpop.f32.mrb[0].mxu0
        %v5592 = vadd.f32 %v5431, %v5591
        %v5593 = vpop.f32.mrb[0].mxu0
        %v5594 = vpop.f32.mrb[0].mxu0
        %v5595 = vadd.f32 %v5434, %v5594
        %v5596 = vpop.f32.mrb[0].mxu0
        %5597 = vmatprep.mubr.bf16.mxu0 0
        %5598 = vmatmul.mubr.bf16.gmra.mrb[0].mxu0 %v4214
        %v5599 = vpop.f32.mrb[0].mxu0
        %v5600 = vadd.f32 %v5439, %v5599
        %v5601 = vpop.f32.mrb[0].mxu0
        %v5602 = vpop.f32.mrb[0].mxu0
        %v5603 = vadd.f32 %v5442, %v5602
        %v5604 = vpop.f32.mrb[0].mxu0
        %5605 = vmatprep.mubr.bf16.mxu0 0
        %5606 = vmatmul.mubr.bf16.gmra.mrb[0].mxu0 %v4223
        %v5607 = vpop.f32.mrb[0].mxu0
        %v5608 = vadd.f32 %v5447, %v5607
        %v5609 = vpop.f32.mrb[0].mxu0
        %v5610 = vpop.f32.mrb[0].mxu0
        %v5611 = vadd.f32 %v5450, %v5610
        %v5612 = vpop.f32.mrb[0].mxu0
        %5613 = vmatprep.mubr.bf16.mxu0 0
        %5614 = vmatmul.mubr.bf16.gmra.mrb[0].mxu0 %v4232
        %v5615 = vpop.f32.mrb[0].mxu0
        %v5616 = vadd.f32 %v5455, %v5615
        %v5617 = vpop.f32.mrb[0].mxu0
        %v5618 = vpop.f32.mrb[0].mxu0
        %v5619 = vadd.f32 %v5458, %v5618
        %v5620 = vpop.f32.mrb[0].mxu0
        %5621 = vmatprep.mubr.bf16.mxu0 0
        %5622 = vmatmul.mubr.bf16.gmra.mrb[0].mxu0 %v4241
        %v5623 = vpop.f32.mrb[0].mxu0
        %v5624 = vadd.f32 %v5463, %v5623
        %v5625 = vpop.f32.mrb[0].mxu0
        %v5626 = vpop.f32.mrb[0].mxu0
        %v5627 = vadd.f32 %v5466, %v5626
        %v5628 = vpop.f32.mrb[0].mxu0
        %5629 = vmatprep.mubr.bf16.mxu0 0
        %5630 = vmatmul.mubr.bf16.gmra.mrb[0].mxu0 %v4250
        %v5631 = vpop.f32.mrb[0].mxu0
        %v5632 = vadd.f32 %v5471, %v5631
        %v5633 = vpop.f32.mrb[0].mxu0
        %v5634 = vpop.f32.mrb[0].mxu0
        %v5635 = vadd.f32 %v5474, %v5634
        %v5636 = vpop.f32.mrb[0].mxu0
        %5637 = vmatprep.mubr.bf16.mxu0 0
        %5638 = vmatmul.mubr.bf16.gmra.mrb[0].mxu0 %v4259
        %v5639 = vpop.f32.mrb[0].mxu0
        %v5640 = vadd.f32 %v5479, %v5639
        %v5641 = vpop.f32.mrb[0].mxu0
        %v5642 = vpop.f32.mrb[0].mxu0
        %v5643 = vadd.f32 %v5482, %v5642
        %v5644 = vpop.f32.mrb[0].mxu0
        %5645 = vmatprep.mubr.bf16.mxu0 0
        %5646 = vmatmul.mubr.bf16.gmra.mrb[0].mxu0 %v4268
        %v5647 = vpop.f32.mrb[0].mxu0
        %v5648 = vadd.f32 %v5487, %v5647
        %v5649 = vpop.f32.mrb[0].mxu0
        %v5650 = vpop.f32.mrb[0].mxu0
        %v5651 = vadd.f32 %v5490, %v5650
        %v5652 = vpop.f32.mrb[0].mxu0
        %5653 = vmatprep.mubr.bf16.mxu0 0
        %5654 = vmatmul.mubr.bf16.gmra.mrb[0].mxu0 %v4277
        %v5655 = vpop.f32.mrb[0].mxu0
        %v5656 = vadd.f32 %v5495, %v5655
        %v5657 = vpop.f32.mrb[0].mxu0
        %v5658 = vpop.f32.mrb[0].mxu0
        %v5659 = vadd.f32 %v5498, %v5658
        %v5660 = vpop.f32.mrb[0].mxu0
        %5661 = vmatprep.mubr.bf16.mxu0 0
        %5662 = vmatmul.mubr.bf16.gmra.mrb[0].mxu0 %v4286
        %v5663 = vpop.f32.mrb[0].mxu0
        %v5664 = vadd.f32 %v5503, %v5663
        %v5665 = vpop.f32.mrb[0].mxu0
        %v5666 = vpop.f32.mrb[0].mxu0
        %v5667 = vadd.f32 %v5506, %v5666
        %v5668 = vpop.f32.mrb[0].mxu0
        %5669 = vmatprep.mubr.bf16.mxu0 0
        %5670 = vmatmul.mubr.bf16.gmra.mrb[0].mxu0 %v4295
        %v5671 = vpop.f32.mrb[0].mxu0
        %v5672 = vadd.f32 %v5511, %v5671
        %v5673 = vpop.f32.mrb[0].mxu0
        %v5674 = vpop.f32.mrb[0].mxu0
        %v5675 = vadd.f32 %v5514, %v5674
        %v5676 = vpop.f32.mrb[0].mxu0
        %5677 = vmatprep.mubr.bf16.mxu0 0
        %5678 = vmatmul.mubr.bf16.gmra.mrb[0].mxu0 %v4304
        %v5679 = vpop.f32.mrb[0].mxu0
        %v5680 = vadd.f32 %v5519, %v5679
        %v5681 = vpop.f32.mrb[0].mxu0
        %v5682 = vpop.f32.mrb[0].mxu0
        %v5683 = vadd.f32 %v5522, %v5682
        %v5684 = vpop.f32.mrb[0].mxu0
        %5685 = vdwg.mxu0
        %v5686 = vld [vmem:[%s8] sm:$0x1]
        %v5688 = vlaneseq
        %v5689 = vshrl.u32 %v5688, 7
        %v5690 = vsub.s32 0, %v5689
        %v5691 = vrot.slane %v5686, %v5690
        %v5693 = vmul.f32 %v5560, %v5691
        %v5694 = vmul.f32 %v5563, %v5691
        %v5695 = vmul.f32 %v5568, %v5691
        %v5696 = vmul.f32 %v5571, %v5691
        %v5697 = vmul.f32 %v5576, %v5691
        %v5698 = vmul.f32 %v5579, %v5691
        %v5699 = vmul.f32 %v5584, %v5691
        %v5700 = vmul.f32 %v5587, %v5691
        %v5701 = vmul.f32 %v5592, %v5691
        %v5702 = vmul.f32 %v5595, %v5691
        %v5703 = vmul.f32 %v5600, %v5691
        %v5704 = vmul.f32 %v5603, %v5691
        %v5705 = vmul.f32 %v5608, %v5691
        %v5706 = vmul.f32 %v5611, %v5691
        %v5707 = vmul.f32 %v5616, %v5691
        %v5708 = vmul.f32 %v5619, %v5691
        %v5709 = vmul.f32 %v5624, %v5691
        %v5710 = vmul.f32 %v5627, %v5691
        %v5711 = vmul.f32 %v5632, %v5691
        %v5712 = vmul.f32 %v5635, %v5691
        %v5713 = vmul.f32 %v5640, %v5691
        %v5714 = vmul.f32 %v5643, %v5691
        %v5715 = vmul.f32 %v5648, %v5691
        %v5716 = vmul.f32 %v5651, %v5691
        %v5717 = vmul.f32 %v5656, %v5691
        %v5718 = vmul.f32 %v5659, %v5691
        %v5719 = vmul.f32 %v5664, %v5691
        %v5720 = vmul.f32 %v5667, %v5691
        %v5721 = vmul.f32 %v5672, %v5691
        %v5722 = vmul.f32 %v5675, %v5691
        %v5723 = vmul.f32 %v5680, %v5691
        %v5724 = vmul.f32 %v5683, %v5691
        %v5725 = vld [vmem:[%s9] sm:$0x1]
        %v5727 = vlaneseq
        %v5728 = vshrl.u32 %v5727, 7
        %v5729 = vsub.s32 0, %v5728
        %v5730 = vrot.slane %v5725, %v5729
        %v5732 = vadd.f32 %v5693, %v5730
        %v5733 = vadd.f32 %v5694, %v5730
        %v5734 = vadd.f32 %v5695, %v5730
        %v5735 = vadd.f32 %v5696, %v5730
        %v5736 = vadd.f32 %v5697, %v5730
        %v5737 = vadd.f32 %v5698, %v5730
        %v5738 = vadd.f32 %v5699, %v5730
        %v5739 = vadd.f32 %v5700, %v5730
        %v5740 = vadd.f32 %v5701, %v5730
        %v5741 = vadd.f32 %v5702, %v5730
        %v5742 = vadd.f32 %v5703, %v5730
        %v5743 = vadd.f32 %v5704, %v5730
        %v5744 = vadd.f32 %v5705, %v5730
        %v5745 = vadd.f32 %v5706, %v5730
        %v5746 = vadd.f32 %v5707, %v5730
        %v5747 = vadd.f32 %v5708, %v5730
        %v5748 = vadd.f32 %v5709, %v5730
        %v5749 = vadd.f32 %v5710, %v5730
        %v5750 = vadd.f32 %v5711, %v5730
        %v5751 = vadd.f32 %v5712, %v5730
        %v5752 = vadd.f32 %v5713, %v5730
        %v5753 = vadd.f32 %v5714, %v5730
        %v5754 = vadd.f32 %v5715, %v5730
        %v5755 = vadd.f32 %v5716, %v5730
        %v5756 = vadd.f32 %v5717, %v5730
        %v5757 = vadd.f32 %v5718, %v5730
        %v5758 = vadd.f32 %v5719, %v5730
        %v5759 = vadd.f32 %v5720, %v5730
        %v5760 = vadd.f32 %v5721, %v5730
        %v5761 = vadd.f32 %v5722, %v5730
        %v5762 = vadd.f32 %v5723, %v5730
        %v5763 = vadd.f32 %v5724, %v5730
        %v5764 = vld [vmem:[%s414] sm:$0xff]
        %v5765 = vld [vmem:[%s414 + $0x8] sm:$0xff]
        %v5766 = vld [vmem:[%s414 + $0x10] sm:$0xff]
        %v5767 = vld [vmem:[%s414 + $0x18] sm:$0xff]
        %v5768 = vld [vmem:[%s414 + $0x20] sm:$0xff]
        %v5769 = vld [vmem:[%s414 + $0x28] sm:$0xff]
        %v5770 = vld [vmem:[%s414 + $0x30] sm:$0xff]
        %v5771 = vld [vmem:[%s414 + $0x38] sm:$0xff]
        %v5772 = vld [vmem:[%s414 + $0x40] sm:$0xff]
        %v5773 = vld [vmem:[%s414 + $0x48] sm:$0xff]
        %v5774 = vld [vmem:[%s414 + $0x50] sm:$0xff]
        %v5775 = vld [vmem:[%s414 + $0x58] sm:$0xff]
        %v5776 = vld [vmem:[%s414 + $0x60] sm:$0xff]
        %v5777 = vld [vmem:[%s414 + $0x68] sm:$0xff]
        %v5778 = vld [vmem:[%s414 + $0x70] sm:$0xff]
        %v5779 = vld [vmem:[%s414 + $0x78] sm:$0xff]
        %v5780 = vld [vmem:[%s414 + $0x80] sm:$0xff]
        %v5781 = vld [vmem:[%s414 + $0x88] sm:$0xff]
        %v5782 = vld [vmem:[%s414 + $0x90] sm:$0xff]
        %v5783 = vld [vmem:[%s414 + $0x98] sm:$0xff]
        %v5784 = vld [vmem:[%s414 + $0xa0] sm:$0xff]
        %v5785 = vld [vmem:[%s414 + $0xa8] sm:$0xff]
        %v5786 = vld [vmem:[%s414 + $0xb0] sm:$0xff]
        %v5787 = vld [vmem:[%s414 + $0xb8] sm:$0xff]
        %v5788 = vld [vmem:[%s414 + $0xc0] sm:$0xff]
        %v5789 = vld [vmem:[%s414 + $0xc8] sm:$0xff]
        %v5790 = vld [vmem:[%s414 + $0xd0] sm:$0xff]
        %v5791 = vld [vmem:[%s414 + $0xd8] sm:$0xff]
        %v5792 = vld [vmem:[%s414 + $0xe0] sm:$0xff]
        %v5793 = vld [vmem:[%s414 + $0xe8] sm:$0xff]
        %v5794 = vld [vmem:[%s414 + $0xf0] sm:$0xff]
        %v5795 = vld [vmem:[%s414 + $0xf8] sm:$0xff]
        %v5796 = vadd.f32 %v5732, %v5764
        %v5797 = vadd.f32 %v5733, %v5765
        %v5798 = vadd.f32 %v5734, %v5766
        %v5799 = vadd.f32 %v5735, %v5767
        %v5800 = vadd.f32 %v5736, %v5768
        %v5801 = vadd.f32 %v5737, %v5769
        %v5802 = vadd.f32 %v5738, %v5770
        %v5803 = vadd.f32 %v5739, %v5771
        %v5804 = vadd.f32 %v5740, %v5772
        %v5805 = vadd.f32 %v5741, %v5773
        %v5806 = vadd.f32 %v5742, %v5774
        %v5807 = vadd.f32 %v5743, %v5775
        %v5808 = vadd.f32 %v5744, %v5776
        %v5809 = vadd.f32 %v5745, %v5777
        %v5810 = vadd.f32 %v5746, %v5778
        %v5811 = vadd.f32 %v5747, %v5779
        %v5812 = vadd.f32 %v5748, %v5780
        %v5813 = vadd.f32 %v5749, %v5781
        %v5814 = vadd.f32 %v5750, %v5782
        %v5815 = vadd.f32 %v5751, %v5783
        %v5816 = vadd.f32 %v5752, %v5784
        %v5817 = vadd.f32 %v5753, %v5785
        %v5818 = vadd.f32 %v5754, %v5786
        %v5819 = vadd.f32 %v5755, %v5787
        %v5820 = vadd.f32 %v5756, %v5788
        %v5821 = vadd.f32 %v5757, %v5789
        %v5822 = vadd.f32 %v5758, %v5790
        %v5823 = vadd.f32 %v5759, %v5791
        %v5824 = vadd.f32 %v5760, %v5792
        %v5825 = vadd.f32 %v5761, %v5793
        %v5826 = vadd.f32 %v5762, %v5794
        %v5827 = vadd.f32 %v5763, %v5795
        %v5828 = vmax.f32 %v5796, 0.0
        %v5829 = vmax.f32 %v5797, 0.0
        %v5830 = vmax.f32 %v5798, 0.0
        %v5831 = vmax.f32 %v5799, 0.0
        %v5832 = vmax.f32 %v5800, 0.0
        %v5833 = vmax.f32 %v5801, 0.0
        %v5834 = vmax.f32 %v5802, 0.0
        %v5835 = vmax.f32 %v5803, 0.0
        %v5836 = vmax.f32 %v5804, 0.0
        %v5837 = vmax.f32 %v5805, 0.0
        %v5838 = vmax.f32 %v5806, 0.0
        %v5839 = vmax.f32 %v5807, 0.0
        %v5840 = vmax.f32 %v5808, 0.0
        %v5841 = vmax.f32 %v5809, 0.0
        %v5842 = vmax.f32 %v5810, 0.0
        %v5843 = vmax.f32 %v5811, 0.0
        %v5844 = vmax.f32 %v5812, 0.0
        %v5845 = vmax.f32 %v5813, 0.0
        %v5846 = vmax.f32 %v5814, 0.0
        %v5847 = vmax.f32 %v5815, 0.0
        %v5848 = vmax.f32 %v5816, 0.0
        %v5849 = vmax.f32 %v5817, 0.0
        %v5850 = vmax.f32 %v5818, 0.0
        %v5851 = vmax.f32 %v5819, 0.0
        %v5852 = vmax.f32 %v5820, 0.0
        %v5853 = vmax.f32 %v5821, 0.0
        %v5854 = vmax.f32 %v5822, 0.0
        %v5855 = vmax.f32 %v5823, 0.0
        %v5856 = vmax.f32 %v5824, 0.0
        %v5857 = vmax.f32 %v5825, 0.0
        %v5858 = vmax.f32 %v5826, 0.0
        %v5859 = vmax.f32 %v5827, 0.0
        %vm5860 = vcmask 523264
        %5861 = vst.msk [vmem:[%s398] sm:$0xff] %vm5860, %v5828
        %5862 = vst.msk [vmem:[%s398 + $0x8] sm:$0xff] %vm5860, %v5829
        %5863 = vst.msk [vmem:[%s398 + $0x10] sm:$0xff] %vm5860, %v5830
        %5864 = vst.msk [vmem:[%s398 + $0x18] sm:$0xff] %vm5860, %v5831
        %5865 = vst.msk [vmem:[%s398 + $0x20] sm:$0xff] %vm5860, %v5832
        %5866 = vst.msk [vmem:[%s398 + $0x28] sm:$0xff] %vm5860, %v5833
        %5867 = vst.msk [vmem:[%s398 + $0x30] sm:$0xff] %vm5860, %v5834
        %5868 = vst.msk [vmem:[%s398 + $0x38] sm:$0xff] %vm5860, %v5835
        %5869 = vst.msk [vmem:[%s398 + $0x40] sm:$0xff] %vm5860, %v5836
        %5870 = vst.msk [vmem:[%s398 + $0x48] sm:$0xff] %vm5860, %v5837
        %5871 = vst.msk [vmem:[%s398 + $0x50] sm:$0xff] %vm5860, %v5838
        %5872 = vst.msk [vmem:[%s398 + $0x58] sm:$0xff] %vm5860, %v5839
        %5873 = vst.msk [vmem:[%s398 + $0x60] sm:$0xff] %vm5860, %v5840
        %5874 = vst.msk [vmem:[%s398 + $0x68] sm:$0xff] %vm5860, %v5841
        %5875 = vst.msk [vmem:[%s398 + $0x70] sm:$0xff] %vm5860, %v5842
        %5876 = vst.msk [vmem:[%s398 + $0x78] sm:$0xff] %vm5860, %v5843
        %5877 = vst.msk [vmem:[%s398 + $0x80] sm:$0xff] %vm5860, %v5844
        %5878 = vst.msk [vmem:[%s398 + $0x88] sm:$0xff] %vm5860, %v5845
        %5879 = vst.msk [vmem:[%s398 + $0x90] sm:$0xff] %vm5860, %v5846
        %5880 = vst.msk [vmem:[%s398 + $0x98] sm:$0xff] %vm5860, %v5847
        %5881 = vst.msk [vmem:[%s398 + $0xa0] sm:$0xff] %vm5860, %v5848
        %5882 = vst.msk [vmem:[%s398 + $0xa8] sm:$0xff] %vm5860, %v5849
        %5883 = vst.msk [vmem:[%s398 + $0xb0] sm:$0xff] %vm5860, %v5850
        %5884 = vst.msk [vmem:[%s398 + $0xb8] sm:$0xff] %vm5860, %v5851
        %5885 = vst.msk [vmem:[%s398 + $0xc0] sm:$0xff] %vm5860, %v5852
        %5886 = vst.msk [vmem:[%s398 + $0xc8] sm:$0xff] %vm5860, %v5853
        %5887 = vst.msk [vmem:[%s398 + $0xd0] sm:$0xff] %vm5860, %v5854
        %5888 = vst.msk [vmem:[%s398 + $0xd8] sm:$0xff] %vm5860, %v5855
        %5889 = vst.msk [vmem:[%s398 + $0xe0] sm:$0xff] %vm5860, %v5856
        %5890 = vst.msk [vmem:[%s398 + $0xe8] sm:$0xff] %vm5860, %v5857
        %5891 = vst.msk [vmem:[%s398 + $0xf0] sm:$0xff] %vm5860, %v5858
        %5892 = vst.msk [vmem:[%s398 + $0xf8] sm:$0xff] %vm5860, %v5859
        %s5893 = sand.u32 %s257, 1
        %s5894 = scalar_lea.sflag [#allocation5], %s5893
        %s5895 = sand.u32 %s257, 1
        %s5896 = smul.addr %s5895, 256
        %s5897 = scalar_lea.vmem [#allocation4], %s5896
        %s5898 = sand.u32 %s283, 1
        %s5899 = scalar_lea.sflag [#allocation7], %s5898
        %s5900 = sand.u32 %s283, 1
        %s5901 = scalar_lea.vmem [#allocation6], %s5900
        // Predicated region
        $region61: #{bdrm_forward.3} parent=59 // pred_check
          %p5902 = pneg %p267
        $region62: #{bdrm_forward.3} parent=59 // pred_check_branch
          %5904 = sbr.rel (%p5902) target = $region64
        $region63: #{bdrm_forward.3} parent=59 // pred_region
          %s5906 = ssub.s32 4096, 4096
          %5907 = vsyncadd %s5894, %s5906
          %s5908 = smul.addr %s29, 32
          %s5909 = smul.addr %s5908, 128
          %s5910 = scalar_lea.hbm %s10, %s5909
          %s5911 = sshll.u32 %s5897, 4
          %s5912 = int_to_ptr.vmem [resolvable:$true] %s5911
          %5917 = dma.vmem_to_hbm [thread:$0]  %s5912, 4096, %s5910, %s5894, 128, 128, 8
        $region64: #{bdrm_forward.3} parent=59 // pred_fallthru
          _
        // Predicated region
        $region65: #{bdrm_forward.3} parent=59 // pred_check
          %p5918 = pneg %p293
        $region66: #{bdrm_forward.3} parent=59 // pred_check_branch
          %5920 = sbr.rel (%p5918) target = $region68
        $region67: #{bdrm_forward.3} parent=59 // pred_region
          %s5922 = ssub.s32 16, 16
          %5923 = vsyncadd %s5899, %s5922
          %s5924 = smul.addr %s29, 16
          %s5925 = scalar_lea.hbm %s11, %s5924
          %s5927 = sshll.u32 %s5901, 4
          %s5928 = int_to_ptr.vmem [resolvable:$true] %s5927
          %5930 = dma.vmem_to_hbm [thread:$0]  %s5928, 16, %s5925, %s5899
        $region68: #{bdrm_forward.3} parent=59 // pred_fallthru
          _
      $region60: #{bdrm_forward.3} parent=5 // pred_fallthru
        _
      %p5931 = scmp.le.s32.totalorder 2, %s24
      // Predicated region
      $region69: #{bdrm_forward.3} parent=5 // pred_check
        %p5932 = pneg %p5931
      $region70: #{bdrm_forward.3} parent=5 // pred_check_branch
        %5934 = sbr.rel (%p5932) target = $region72
      $region71: #{bdrm_forward.3} parent=5 // pred_region
        %s5935 = ssub.s32 %s24, 2
        // Predicated region
        $region73: #{bdrm_forward.3} parent=71 // pred_check
          %p5936 = pneg %p273
        $region74: #{bdrm_forward.3} parent=71 // pred_check_branch
          %5938 = sbr.rel (%p5936) target = $region76
        $region75: #{bdrm_forward.3} parent=71 // pred_region
          %s5939 = sand.u32 %s258, 1
          %s5940 = scalar_lea.sflag [#allocation5], %s5939
          %s5941 = sand.u32 %s258, 1
          %s5942 = smul.addr %s5941, 256
          %s5943 = scalar_lea.vmem [#allocation4], %s5942
          %5944 = dma.done %s5940, 4096
        $region76: #{bdrm_forward.3} parent=71 // pred_fallthru
          _
        // Predicated region
        $region77: #{bdrm_forward.3} parent=71 // pred_check
          %p5945 = pneg %p299
        $region78: #{bdrm_forward.3} parent=71 // pred_check_branch
          %5947 = sbr.rel (%p5945) target = $region80
        $region79: #{bdrm_forward.3} parent=71 // pred_region
          %s5948 = sand.u32 %s284, 1
          %s5949 = scalar_lea.sflag [#allocation7], %s5948
          %s5950 = sand.u32 %s284, 1
          %s5951 = scalar_lea.vmem [#allocation6], %s5950
          %5952 = dma.done %s5949, 16
        $region80: #{bdrm_forward.3} parent=71 // pred_fallthru
          _
      $region72: #{bdrm_forward.3} parent=5 // pred_fallthru
        _
    $region6: #{bdrm_forward.3} parent=1 // loop_footer
      %s28 = sadd.s32 1, %s24
    $region7: #{bdrm_forward.3} parent=1 // loop_footer_branch
      %23 = sbr.rel target = $region3
    $region8: #{bdrm_forward.3} parent=1 // loop_exit
      _
    %5953 = vsyncpa [#allocation5], 1
    %s5954 = scalar_lea.sflag [#allocation5], 1
    %5955 = vsyncpa %s5954, 1
    %5956 = vsyncpa [#allocation7], 1
    %s5957 = scalar_lea.sflag [#allocation7], 1
    %5958 = vsyncpa %s5957, 1

</llo_original>
